<compile_context>
chip_gen: v6e
topology: v6e:2x2x1
jax: 0.10.0
libtpu: 0.0.40
codegen_flags: <defaults>
</compile_context>

<pallas_src>
import jax
import jax.numpy as jnp
from jax import lax
from jax.experimental import pallas as pl
from jax.experimental.pallas import tpu as pltpu

_EPS = 1e-5  # nn.InstanceNorm2d default eps (affine=False, biased variance)


def _resblock_kernel(x_ref, w1_ref, b1_ref, w2_ref, b2_ref, o_ref, pad_ref):
    H, W, Cp = x_ref.shape
    HW = H * W

    x = x_ref[...].astype(jnp.float32)            # (H, W, Cp)
    b1 = b1_ref[...].astype(jnp.float32)          # (1, Cp)
    b2 = b2_ref[...].astype(jnp.float32)          # (1, Cp)

    def conv3x3(v, w_ref, bias):
        # v: (H, W, Cp) f32.  ReflectionPad2d(1) + valid 3x3 cross-correlation.
        # H reflection in registers (leading-dim concat), W reflection via the
        # small VMEM scratch; the 9 taps each become one MXU matmul.
        rows = jnp.concatenate([v[1:2], v, v[H - 2:H - 1]], axis=0)     # (H+2, W, Cp)
        pad_ref[:, 1:W + 1, :] = rows                                   # interior (single wide store)
        pad_ref[:, 0:1, :] = rows[:, 1:2, :]                            # left  <- col 1
        pad_ref[:, W + 1:W + 2, :] = rows[:, W - 2:W - 1, :]            # right <- col W-2

        acc = None
        for dy in range(3):
            for dx in range(3):
                patch = pad_ref[dy:dy + H, dx:dx + W, :].reshape(HW, Cp)
                part = jnp.dot(patch, w_ref[dy * 3 + dx],
                               preferred_element_type=jnp.float32)      # (HW, Cp) on MXU
                acc = part if acc is None else acc + part
        return acc + bias                                               # bias once, after matmuls

    def instance_norm(h):
        # h: (HW, Cp) — per-channel spatial mean / biased variance.
        m = jnp.mean(h, axis=0, keepdims=True)
        c = h - m
        v = jnp.mean(c * c, axis=0, keepdims=True)
        return c * lax.rsqrt(v + _EPS)

    # block 1: pad -> conv -> inorm -> relu
    h = conv3x3(x, w1_ref, b1)
    h = jnp.maximum(instance_norm(h), 0.0)

    # block 2: pad -> conv -> inorm
    h = conv3x3(h.reshape(H, W, Cp), w2_ref, b2)
    h = instance_norm(h)

    # residual
    o_ref[...] = (x + h.reshape(H, W, Cp)).astype(o_ref.dtype)


def resblock_forward(x_nchw, w1_oihw, b1, w2_oihw, b2):
    B, C, H, W = x_nchw.shape
    # lane-dense working channel count (multiple of 128, at least 128)
    Cp = max(128, ((C + 127) // 128) * 128)

    x = jnp.transpose(x_nchw, (0, 2, 3, 1))                          # NCHW -> NHWC
    x = jnp.pad(x, ((0, 0), (0, 0), (0, 0), (0, Cp - C)))

    def prep_w(w_oihw):
        # OIHW -> HWIO -> zero-pad channels -> (9, Cp, Cp), tap index = dy*3+dx
        w = jnp.transpose(w_oihw, (2, 3, 1, 0))
        w = jnp.pad(w, ((0, 0), (0, 0), (0, Cp - C), (0, Cp - C)))
        return w.reshape(9, Cp, Cp).astype(jnp.float32)

    def prep_b(b):
        return jnp.pad(b, (0, Cp - C)).reshape(1, Cp).astype(jnp.float32)

    # NOTE: W is assumed to be a multiple of 8 (standard image sizes) so the
    # (H, W, Cp) <-> (H*W, Cp) in-kernel reshapes stay tile-aligned.
    # TODO(synk): for very large images (v7x, 64 MiB VMEM) tile H into row strips
    # with a 1-row halo and accumulate InstanceNorm sum / sum-of-squares across
    # strips; whole-image blocks are fine at these sizes.
    out = pl.pallas_call(
        _resblock_kernel,
        out_shape=jax.ShapeDtypeStruct((B, H, W, Cp), x.dtype),
        grid=(B,),
        in_specs=[
            pl.BlockSpec((None, H, W, Cp), lambda b: (b, 0, 0, 0)),  # one image per step
            pl.BlockSpec((9, Cp, Cp), lambda b: (0, 0, 0)),          # conv1 weights (per-tap slabs)
            pl.BlockSpec((1, Cp), lambda b: (0, 0)),                 # conv1 bias
            pl.BlockSpec((9, Cp, Cp), lambda b: (0, 0, 0)),          # conv2 weights
            pl.BlockSpec((1, Cp), lambda b: (0, 0)),                 # conv2 bias
        ],
        out_specs=pl.BlockSpec((None, H, W, Cp), lambda b: (b, 0, 0, 0)),
        scratch_shapes=[pltpu.VMEM((H + 2, W + 2, Cp), jnp.float32)],  # W-halo scratch
        compiler_params=pltpu.CompilerParams(
            dimension_semantics=("parallel",)),                      # v7x: 2 TCs over batch
    )(x, prep_w(w1_oihw), prep_b(b1), prep_w(w2_oihw), prep_b(b2))

    out = out[..., :C]                                               # drop channel padding
    return jnp.transpose(out, (0, 3, 1, 2))                          # NHWC -> NCHW


def _ref_resblock(x_nchw, w1_oihw, b1, w2_oihw, b2):
    # pure-JAX reference for verification
    x = jnp.transpose(x_nchw, (0, 2, 3, 1))
    C = x.shape[-1]

    def block(h, w_oihw, b, relu):
        hp = jnp.pad(h, ((0, 0), (1, 1), (1, 1), (0, 0)), mode="reflect")
        w_hwio = jnp.transpose(w_oihw, (2, 3, 1, 0))
        y = lax.conv_general_dilated(hp, w_hwio, (1, 1), "VALID",
                                     dimension_numbers=("NHWC", "HWIO", "NHWC"))
        y = y + b.reshape(1, 1, 1, C)
        m = y.mean(axis=(1, 2), keepdims=True)
        v = ((y - m) ** 2).mean(axis=(1, 2), keepdims=True)
        y = (y - m) * lax.rsqrt(v + _EPS)
        if relu:
            y = jnp.maximum(y, 0.0)
        return y

    h = block(x, w1_oihw, b1, True)
    h = block(h, w2_oihw, b2, False)
    return jnp.transpose(x + h, (0, 3, 1, 2))


if __name__ == "__main__":
    key = jax.random.PRNGKey(0)
    kx, kw1, kb1, kw2, kb2 = jax.random.split(key, 5)
    B, C, H, W = 2, 4, 16, 16

    x = jax.random.normal(kx, (B, C, H, W), jnp.float32)
    # deterministic synthetic parameters (PyTorch Conv2d shapes: OIHW weights, (C,) bias)
    w1 = jax.random.normal(kw1, (C, C, 3, 3), jnp.float32) * 0.2
    b1 = jax.random.normal(kb1, (C,), jnp.float32) * 0.1
    w2 = jax.random.normal(kw2, (C, C, 3, 3), jnp.float32) * 0.2
    b2 = jax.random.normal(kb2, (C,), jnp.float32) * 0.1

    out = jax.block_until_ready(resblock_forward(x, w1, b1, w2, b2))
    ref = jax.block_until_ready(_ref_resblock(x, w1, b1, w2, b2))

    assert out.shape == (B, C, H, W)
    err = float(jnp.max(jnp.abs(out - ref)))
    assert jnp.allclose(out, ref, atol=1e-3, rtol=1e-3), f"max abs err = {err}"
    print("KERNEL_OK")
</pallas_src>

<mosaic_0001>
module attributes {stable_mosaic.version = 11 : i64} {
  func.func @_resblock_kernel(%arg0: i32, %arg1: memref<1x16x16x128xf32, #tpu.memory_space<vmem>>, %arg2: memref<9x128x128xf32, #tpu.memory_space<vmem>>, %arg3: memref<1x128xf32, #tpu.memory_space<vmem>>, %arg4: memref<9x128x128xf32, #tpu.memory_space<vmem>>, %arg5: memref<1x128xf32, #tpu.memory_space<vmem>>, %arg6: memref<1x16x16x128xf32, #tpu.memory_space<vmem>>, %arg7: memref<18x18x128xf32, #tpu.memory_space<vmem>>) attributes {dimension_semantics = [#tpu.dimension_semantics<parallel>], iteration_bounds = array<i64: 2>, scalar_prefetch = 0 : i64, scratch_operands = 1 : i64, tpu.core_type = #tpu.core_type<tc>, window_params = [{transform_indices = @transform_0, window_bounds = array<i64: 1, 16, 16, 128>}, {pipeline_mode = #tpu.pipeline_mode<synchronous>, transform_indices = @transform_1, window_bounds = array<i64: 9, 128, 128>}, {pipeline_mode = #tpu.pipeline_mode<synchronous>, transform_indices = @transform_2, window_bounds = array<i64: 1, 128>}, {pipeline_mode = #tpu.pipeline_mode<synchronous>, transform_indices = @transform_3, window_bounds = array<i64: 9, 128, 128>}, {pipeline_mode = #tpu.pipeline_mode<synchronous>, transform_indices = @transform_4, window_bounds = array<i64: 1, 128>}, {transform_indices = @transform_5, window_bounds = array<i64: 1, 16, 16, 128>}]} {
    %c0 = arith.constant 0 : index
    %c0_0 = arith.constant 0 : index
    %c0_1 = arith.constant 0 : index
    %c0_2 = arith.constant 0 : index
    %0 = vector.load %arg1[%c0, %c0_0, %c0_1, %c0_2] : memref<1x16x16x128xf32, #tpu.memory_space<vmem>>, vector<1x16x16x128xf32>
    %1 = vector.shape_cast %0 : vector<1x16x16x128xf32> to vector<16x16x128xf32>
    %c0_3 = arith.constant 0 : index
    %c0_4 = arith.constant 0 : index
    %2 = vector.load %arg3[%c0_3, %c0_4] : memref<1x128xf32, #tpu.memory_space<vmem>>, vector<1x128xf32>
    %c0_5 = arith.constant 0 : index
    %c0_6 = arith.constant 0 : index
    %3 = vector.load %arg5[%c0_5, %c0_6] : memref<1x128xf32, #tpu.memory_space<vmem>>, vector<1x128xf32>
    %4 = vector.extract_strided_slice %1 {offsets = [1, 0, 0], sizes = [1, 16, 128], strides = [1, 1, 1]} : vector<16x16x128xf32> to vector<1x16x128xf32>
    %5 = vector.extract_strided_slice %1 {offsets = [14, 0, 0], sizes = [1, 16, 128], strides = [1, 1, 1]} : vector<16x16x128xf32> to vector<1x16x128xf32>
    %6 = tpu.concatenate %4, %1, %5 in 0 : vector<1x16x128xf32>, vector<16x16x128xf32>, vector<1x16x128xf32> -> vector<18x16x128xf32>
    %c0_7 = arith.constant 0 : index
    %c1 = arith.constant 1 : index
    %c0_8 = arith.constant 0 : index
    %7 = vector.load %arg7[%c0_7, %c1, %c0_8] : memref<18x18x128xf32, #tpu.memory_space<vmem>>, vector<18x16x128xf32>
    tpu.vector_store %arg7[%c0_7, %c1, %c0_8], %6 {strides = array<i32>} : memref<18x18x128xf32, #tpu.memory_space<vmem>>, vector<18x16x128xf32>,
    %8 = vector.extract_strided_slice %6 {offsets = [0, 1, 0], sizes = [18, 1, 128], strides = [1, 1, 1]} : vector<18x16x128xf32> to vector<18x1x128xf32>
    %c0_9 = arith.constant 0 : index
    %c0_10 = arith.constant 0 : index
    %c0_11 = arith.constant 0 : index
    %9 = vector.load %arg7[%c0_9, %c0_10, %c0_11] : memref<18x18x128xf32, #tpu.memory_space<vmem>>, vector<18x1x128xf32>
    tpu.vector_store %arg7[%c0_9, %c0_10, %c0_11], %8 {strides = array<i32>} : memref<18x18x128xf32, #tpu.memory_space<vmem>>, vector<18x1x128xf32>,
    %10 = vector.extract_strided_slice %6 {offsets = [0, 14, 0], sizes = [18, 1, 128], strides = [1, 1, 1]} : vector<18x16x128xf32> to vector<18x1x128xf32>
    %c0_12 = arith.constant 0 : index
    %c17 = arith.constant 17 : index
    %c0_13 = arith.constant 0 : index
    %11 = vector.load %arg7[%c0_12, %c17, %c0_13] : memref<18x18x128xf32, #tpu.memory_space<vmem>>, vector<18x1x128xf32>
    tpu.vector_store %arg7[%c0_12, %c17, %c0_13], %10 {strides = array<i32>} : memref<18x18x128xf32, #tpu.memory_space<vmem>>, vector<18x1x128xf32>,
    %c0_14 = arith.constant 0 : index
    %c0_15 = arith.constant 0 : index
    %c0_16 = arith.constant 0 : index
    %12 = vector.load %arg7[%c0_14, %c0_15, %c0_16] : memref<18x18x128xf32, #tpu.memory_space<vmem>>, vector<16x16x128xf32>
    %13 = vector.shape_cast %12 : vector<16x16x128xf32> to vector<256x128xf32>
    %c0_17 = arith.constant 0 : index
    %c0_18 = arith.constant 0 : index
    %c0_19 = arith.constant 0 : index
    %14 = vector.load %arg2[%c0_17, %c0_18, %c0_19] : memref<9x128x128xf32, #tpu.memory_space<vmem>>, vector<1x128x128xf32>
    %15 = vector.shape_cast %14 : vector<1x128x128xf32> to vector<128x128xf32>
    %cst = arith.constant dense<0.000000e+00> : vector<256x128xf32>
    %16 = tpu.matmul %13, %15, %cst {dimension_numbers = #tpu.dot_dimension_numbers<[1], [0], [0], [1], [0, 0, 1, 1], [], []>} : vector<256x128xf32>, vector<128x128xf32>, vector<256x128xf32> -> vector<256x128xf32>
    %c0_20 = arith.constant 0 : index
    %c1_21 = arith.constant 1 : index
    %c0_22 = arith.constant 0 : index
    %17 = vector.load %arg7[%c0_20, %c1_21, %c0_22] : memref<18x18x128xf32, #tpu.memory_space<vmem>>, vector<16x16x128xf32>
    %18 = vector.shape_cast %17 : vector<16x16x128xf32> to vector<256x128xf32>
    %c1_23 = arith.constant 1 : index
    %c0_24 = arith.constant 0 : index
    %c0_25 = arith.constant 0 : index
    %19 = vector.load %arg2[%c1_23, %c0_24, %c0_25] : memref<9x128x128xf32, #tpu.memory_space<vmem>>, vector<1x128x128xf32>
    %20 = vector.shape_cast %19 : vector<1x128x128xf32> to vector<128x128xf32>
    %cst_26 = arith.constant dense<0.000000e+00> : vector<256x128xf32>
    %21 = tpu.matmul %18, %20, %cst_26 {dimension_numbers = #tpu.dot_dimension_numbers<[1], [0], [0], [1], [0, 0, 1, 1], [], []>} : vector<256x128xf32>, vector<128x128xf32>, vector<256x128xf32> -> vector<256x128xf32>
    %22 = arith.addf %16, %21 : vector<256x128xf32>
    %c0_27 = arith.constant 0 : index
    %c2 = arith.constant 2 : index
    %c0_28 = arith.constant 0 : index
    %23 = vector.load %arg7[%c0_27, %c2, %c0_28] : memref<18x18x128xf32, #tpu.memory_space<vmem>>, vector<16x16x128xf32>
    %24 = vector.shape_cast %23 : vector<16x16x128xf32> to vector<256x128xf32>
    %c2_29 = arith.constant 2 : index
    %c0_30 = arith.constant 0 : index
    %c0_31 = arith.constant 0 : index
    %25 = vector.load %arg2[%c2_29, %c0_30, %c0_31] : memref<9x128x128xf32, #tpu.memory_space<vmem>>, vector<1x128x128xf32>
    %26 = vector.shape_cast %25 : vector<1x128x128xf32> to vector<128x128xf32>
    %cst_32 = arith.constant dense<0.000000e+00> : vector<256x128xf32>
    %27 = tpu.matmul %24, %26, %cst_32 {dimension_numbers = #tpu.dot_dimension_numbers<[1], [0], [0], [1], [0, 0, 1, 1], [], []>} : vector<256x128xf32>, vector<128x128xf32>, vector<256x128xf32> -> vector<256x128xf32>
    %28 = arith.addf %22, %27 : vector<256x128xf32>
    %c1_33 = arith.constant 1 : index
    %c0_34 = arith.constant 0 : index
    %c0_35 = arith.constant 0 : index
    %29 = vector.load %arg7[%c1_33, %c0_34, %c0_35] : memref<18x18x128xf32, #tpu.memory_space<vmem>>, vector<16x16x128xf32>
    %30 = vector.shape_cast %29 : vector<16x16x128xf32> to vector<256x128xf32>
    %c3 = arith.constant 3 : index
    %c0_36 = arith.constant 0 : index
    %c0_37 = arith.constant 0 : index
    %31 = vector.load %arg2[%c3, %c0_36, %c0_37] : memref<9x128x128xf32, #tpu.memory_space<vmem>>, vector<1x128x128xf32>
    %32 = vector.shape_cast %31 : vector<1x128x128xf32> to vector<128x128xf32>
    %cst_38 = arith.constant dense<0.000000e+00> : vector<256x128xf32>
    %33 = tpu.matmul %30, %32, %cst_38 {dimension_numbers = #tpu.dot_dimension_numbers<[1], [0], [0], [1], [0, 0, 1, 1], [], []>} : vector<256x128xf32>, vector<128x128xf32>, vector<256x128xf32> -> vector<256x128xf32>
    %34 = arith.addf %28, %33 : vector<256x128xf32>
    %c1_39 = arith.constant 1 : index
    %c1_40 = arith.constant 1 : index
    %c0_41 = arith.constant 0 : index
    %35 = vector.load %arg7[%c1_39, %c1_40, %c0_41] : memref<18x18x128xf32, #tpu.memory_space<vmem>>, vector<16x16x128xf32>
    %36 = vector.shape_cast %35 : vector<16x16x128xf32> to vector<256x128xf32>
    %c4 = arith.constant 4 : index
    %c0_42 = arith.constant 0 : index
    %c0_43 = arith.constant 0 : index
    %37 = vector.load %arg2[%c4, %c0_42, %c0_43] : memref<9x128x128xf32, #tpu.memory_space<vmem>>, vector<1x128x128xf32>
    %38 = vector.shape_cast %37 : vector<1x128x128xf32> to vector<128x128xf32>
    %cst_44 = arith.constant dense<0.000000e+00> : vector<256x128xf32>
    %39 = tpu.matmul %36, %38, %cst_44 {dimension_numbers = #tpu.dot_dimension_numbers<[1], [0], [0], [1], [0, 0, 1, 1], [], []>} : vector<256x128xf32>, vector<128x128xf32>, vector<256x128xf32> -> vector<256x128xf32>
    %40 = arith.addf %34, %39 : vector<256x128xf32>
    %c1_45 = arith.constant 1 : index
    %c2_46 = arith.constant 2 : index
    %c0_47 = arith.constant 0 : index
    %41 = vector.load %arg7[%c1_45, %c2_46, %c0_47] : memref<18x18x128xf32, #tpu.memory_space<vmem>>, vector<16x16x128xf32>
    %42 = vector.shape_cast %41 : vector<16x16x128xf32> to vector<256x128xf32>
    %c5 = arith.constant 5 : index
    %c0_48 = arith.constant 0 : index
    %c0_49 = arith.constant 0 : index
    %43 = vector.load %arg2[%c5, %c0_48, %c0_49] : memref<9x128x128xf32, #tpu.memory_space<vmem>>, vector<1x128x128xf32>
    %44 = vector.shape_cast %43 : vector<1x128x128xf32> to vector<128x128xf32>
    %cst_50 = arith.constant dense<0.000000e+00> : vector<256x128xf32>
    %45 = tpu.matmul %42, %44, %cst_50 {dimension_numbers = #tpu.dot_dimension_numbers<[1], [0], [0], [1], [0, 0, 1, 1], [], []>} : vector<256x128xf32>, vector<128x128xf32>, vector<256x128xf32> -> vector<256x128xf32>
    %46 = arith.addf %40, %45 : vector<256x128xf32>
    %c2_51 = arith.constant 2 : index
    %c0_52 = arith.constant 0 : index
    %c0_53 = arith.constant 0 : index
    %47 = vector.load %arg7[%c2_51, %c0_52, %c0_53] : memref<18x18x128xf32, #tpu.memory_space<vmem>>, vector<16x16x128xf32>
    %48 = vector.shape_cast %47 : vector<16x16x128xf32> to vector<256x128xf32>
    %c6 = arith.constant 6 : index
    %c0_54 = arith.constant 0 : index
    %c0_55 = arith.constant 0 : index
    %49 = vector.load %arg2[%c6, %c0_54, %c0_55] : memref<9x128x128xf32, #tpu.memory_space<vmem>>, vector<1x128x128xf32>
    %50 = vector.shape_cast %49 : vector<1x128x128xf32> to vector<128x128xf32>
    %cst_56 = arith.constant dense<0.000000e+00> : vector<256x128xf32>
    %51 = tpu.matmul %48, %50, %cst_56 {dimension_numbers = #tpu.dot_dimension_numbers<[1], [0], [0], [1], [0, 0, 1, 1], [], []>} : vector<256x128xf32>, vector<128x128xf32>, vector<256x128xf32> -> vector<256x128xf32>
    %52 = arith.addf %46, %51 : vector<256x128xf32>
    %c2_57 = arith.constant 2 : index
    %c1_58 = arith.constant 1 : index
    %c0_59 = arith.constant 0 : index
    %53 = vector.load %arg7[%c2_57, %c1_58, %c0_59] : memref<18x18x128xf32, #tpu.memory_space<vmem>>, vector<16x16x128xf32>
    %54 = vector.shape_cast %53 : vector<16x16x128xf32> to vector<256x128xf32>
    %c7 = arith.constant 7 : index
    %c0_60 = arith.constant 0 : index
    %c0_61 = arith.constant 0 : index
    %55 = vector.load %arg2[%c7, %c0_60, %c0_61] : memref<9x128x128xf32, #tpu.memory_space<vmem>>, vector<1x128x128xf32>
    %56 = vector.shape_cast %55 : vector<1x128x128xf32> to vector<128x128xf32>
    %cst_62 = arith.constant dense<0.000000e+00> : vector<256x128xf32>
    %57 = tpu.matmul %54, %56, %cst_62 {dimension_numbers = #tpu.dot_dimension_numbers<[1], [0], [0], [1], [0, 0, 1, 1], [], []>} : vector<256x128xf32>, vector<128x128xf32>, vector<256x128xf32> -> vector<256x128xf32>
    %58 = arith.addf %52, %57 : vector<256x128xf32>
    %c2_63 = arith.constant 2 : index
    %c2_64 = arith.constant 2 : index
    %c0_65 = arith.constant 0 : index
    %59 = vector.load %arg7[%c2_63, %c2_64, %c0_65] : memref<18x18x128xf32, #tpu.memory_space<vmem>>, vector<16x16x128xf32>
    %60 = vector.shape_cast %59 : vector<16x16x128xf32> to vector<256x128xf32>
    %c8 = arith.constant 8 : index
    %c0_66 = arith.constant 0 : index
    %c0_67 = arith.constant 0 : index
    %61 = vector.load %arg2[%c8, %c0_66, %c0_67] : memref<9x128x128xf32, #tpu.memory_space<vmem>>, vector<1x128x128xf32>
    %62 = vector.shape_cast %61 : vector<1x128x128xf32> to vector<128x128xf32>
    %cst_68 = arith.constant dense<0.000000e+00> : vector<256x128xf32>
    %63 = tpu.matmul %60, %62, %cst_68 {dimension_numbers = #tpu.dot_dimension_numbers<[1], [0], [0], [1], [0, 0, 1, 1], [], []>} : vector<256x128xf32>, vector<128x128xf32>, vector<256x128xf32> -> vector<256x128xf32>
    %64 = arith.addf %58, %63 : vector<256x128xf32>
    %65 = vector.broadcast %2 : vector<1x128xf32> to vector<256x128xf32>
    %66 = arith.addf %64, %65 : vector<256x128xf32>
    %cst_69 = arith.constant dense<0.000000e+00> : vector<128xf32>
    %67 = vector.multi_reduction <add>, %66, %cst_69 [0] : vector<256x128xf32> to vector<128xf32>
    %68 = vector.shape_cast %67 : vector<128xf32> to vector<1x128xf32>
    %cst_70 = arith.constant 2.560000e+02 : f32
    %69 = vector.broadcast %cst_70 : f32 to vector<1x128xf32>
    %70 = arith.divf %68, %69 : vector<1x128xf32>
    %71 = vector.broadcast %70 : vector<1x128xf32> to vector<256x128xf32>
    %72 = arith.subf %66, %71 : vector<256x128xf32>
    %73 = arith.mulf %72, %72 : vector<256x128xf32>
    %cst_71 = arith.constant dense<0.000000e+00> : vector<128xf32>
    %74 = vector.multi_reduction <add>, %73, %cst_71 [0] : vector<256x128xf32> to vector<128xf32>
    %75 = vector.shape_cast %74 : vector<128xf32> to vector<1x128xf32>
    %cst_72 = arith.constant 2.560000e+02 : f32
    %76 = vector.broadcast %cst_72 : f32 to vector<1x128xf32>
    %77 = arith.divf %75, %76 : vector<1x128xf32>
    %cst_73 = arith.constant 9.99999974E-6 : f32
    %78 = vector.broadcast %cst_73 : f32 to vector<1x128xf32>
    %79 = arith.addf %77, %78 : vector<1x128xf32>
    %80 = math.rsqrt %79 : vector<1x128xf32>
    %81 = vector.broadcast %80 : vector<1x128xf32> to vector<256x128xf32>
    %82 = arith.mulf %72, %81 : vector<256x128xf32>
    %cst_74 = arith.constant 0.000000e+00 : f32
    %83 = vector.broadcast %cst_74 : f32 to vector<256x128xf32>
    %84 = arith.maximumf %82, %83 : vector<256x128xf32>
    %85 = vector.shape_cast %84 : vector<256x128xf32> to vector<16x16x128xf32>
    %86 = vector.extract_strided_slice %85 {offsets = [1, 0, 0], sizes = [1, 16, 128], strides = [1, 1, 1]} : vector<16x16x128xf32> to vector<1x16x128xf32>
    %87 = vector.extract_strided_slice %85 {offsets = [14, 0, 0], sizes = [1, 16, 128], strides = [1, 1, 1]} : vector<16x16x128xf32> to vector<1x16x128xf32>
    %88 = tpu.concatenate %86, %85, %87 in 0 : vector<1x16x128xf32>, vector<16x16x128xf32>, vector<1x16x128xf32> -> vector<18x16x128xf32>
    %c0_75 = arith.constant 0 : index
    %c1_76 = arith.constant 1 : index
    %c0_77 = arith.constant 0 : index
    %89 = vector.load %arg7[%c0_75, %c1_76, %c0_77] : memref<18x18x128xf32, #tpu.memory_space<vmem>>, vector<18x16x128xf32>
    tpu.vector_store %arg7[%c0_75, %c1_76, %c0_77], %88 {strides = array<i32>} : memref<18x18x128xf32, #tpu.memory_space<vmem>>, vector<18x16x128xf32>,
    %90 = vector.extract_strided_slice %88 {offsets = [0, 1, 0], sizes = [18, 1, 128], strides = [1, 1, 1]} : vector<18x16x128xf32> to vector<18x1x128xf32>
    %c0_78 = arith.constant 0 : index
    %c0_79 = arith.constant 0 : index
    %c0_80 = arith.constant 0 : index
    %91 = vector.load %arg7[%c0_78, %c0_79, %c0_80] : memref<18x18x128xf32, #tpu.memory_space<vmem>>, vector<18x1x128xf32>
    tpu.vector_store %arg7[%c0_78, %c0_79, %c0_80], %90 {strides = array<i32>} : memref<18x18x128xf32, #tpu.memory_space<vmem>>, vector<18x1x128xf32>,
    %92 = vector.extract_strided_slice %88 {offsets = [0, 14, 0], sizes = [18, 1, 128], strides = [1, 1, 1]} : vector<18x16x128xf32> to vector<18x1x128xf32>
    %c0_81 = arith.constant 0 : index
    %c17_82 = arith.constant 17 : index
    %c0_83 = arith.constant 0 : index
    %93 = vector.load %arg7[%c0_81, %c17_82, %c0_83] : memref<18x18x128xf32, #tpu.memory_space<vmem>>, vector<18x1x128xf32>
    tpu.vector_store %arg7[%c0_81, %c17_82, %c0_83], %92 {strides = array<i32>} : memref<18x18x128xf32, #tpu.memory_space<vmem>>, vector<18x1x128xf32>,
    %c0_84 = arith.constant 0 : index
    %c0_85 = arith.constant 0 : index
    %c0_86 = arith.constant 0 : index
    %94 = vector.load %arg7[%c0_84, %c0_85, %c0_86] : memref<18x18x128xf32, #tpu.memory_space<vmem>>, vector<16x16x128xf32>
    %95 = vector.shape_cast %94 : vector<16x16x128xf32> to vector<256x128xf32>
    %c0_87 = arith.constant 0 : index
    %c0_88 = arith.constant 0 : index
    %c0_89 = arith.constant 0 : index
    %96 = vector.load %arg4[%c0_87, %c0_88, %c0_89] : memref<9x128x128xf32, #tpu.memory_space<vmem>>, vector<1x128x128xf32>
    %97 = vector.shape_cast %96 : vector<1x128x128xf32> to vector<128x128xf32>
    %cst_90 = arith.constant dense<0.000000e+00> : vector<256x128xf32>
    %98 = tpu.matmul %95, %97, %cst_90 {dimension_numbers = #tpu.dot_dimension_numbers<[1], [0], [0], [1], [0, 0, 1, 1], [], []>} : vector<256x128xf32>, vector<128x128xf32>, vector<256x128xf32> -> vector<256x128xf32>
    %c0_91 = arith.constant 0 : index
    %c1_92 = arith.constant 1 : index
    %c0_93 = arith.constant 0 : index
    %99 = vector.load %arg7[%c0_91, %c1_92, %c0_93] : memref<18x18x128xf32, #tpu.memory_space<vmem>>, vector<16x16x128xf32>
    %100 = vector.shape_cast %99 : vector<16x16x128xf32> to vector<256x128xf32>
    %c1_94 = arith.constant 1 : index
    %c0_95 = arith.constant 0 : index
    %c0_96 = arith.constant 0 : index
    %101 = vector.load %arg4[%c1_94, %c0_95, %c0_96] : memref<9x128x128xf32, #tpu.memory_space<vmem>>, vector<1x128x128xf32>
    %102 = vector.shape_cast %101 : vector<1x128x128xf32> to vector<128x128xf32>
    %cst_97 = arith.constant dense<0.000000e+00> : vector<256x128xf32>
    %103 = tpu.matmul %100, %102, %cst_97 {dimension_numbers = #tpu.dot_dimension_numbers<[1], [0], [0], [1], [0, 0, 1, 1], [], []>} : vector<256x128xf32>, vector<128x128xf32>, vector<256x128xf32> -> vector<256x128xf32>
    %104 = arith.addf %98, %103 : vector<256x128xf32>
    %c0_98 = arith.constant 0 : index
    %c2_99 = arith.constant 2 : index
    %c0_100 = arith.constant 0 : index
    %105 = vector.load %arg7[%c0_98, %c2_99, %c0_100] : memref<18x18x128xf32, #tpu.memory_space<vmem>>, vector<16x16x128xf32>
    %106 = vector.shape_cast %105 : vector<16x16x128xf32> to vector<256x128xf32>
    %c2_101 = arith.constant 2 : index
    %c0_102 = arith.constant 0 : index
    %c0_103 = arith.constant 0 : index
    %107 = vector.load %arg4[%c2_101, %c0_102, %c0_103] : memref<9x128x128xf32, #tpu.memory_space<vmem>>, vector<1x128x128xf32>
    %108 = vector.shape_cast %107 : vector<1x128x128xf32> to vector<128x128xf32>
    %cst_104 = arith.constant dense<0.000000e+00> : vector<256x128xf32>
    %109 = tpu.matmul %106, %108, %cst_104 {dimension_numbers = #tpu.dot_dimension_numbers<[1], [0], [0], [1], [0, 0, 1, 1], [], []>} : vector<256x128xf32>, vector<128x128xf32>, vector<256x128xf32> -> vector<256x128xf32>
    %110 = arith.addf %104, %109 : vector<256x128xf32>
    %c1_105 = arith.constant 1 : index
    %c0_106 = arith.constant 0 : index
    %c0_107 = arith.constant 0 : index
    %111 = vector.load %arg7[%c1_105, %c0_106, %c0_107] : memref<18x18x128xf32, #tpu.memory_space<vmem>>, vector<16x16x128xf32>
    %112 = vector.shape_cast %111 : vector<16x16x128xf32> to vector<256x128xf32>
    %c3_108 = arith.constant 3 : index
    %c0_109 = arith.constant 0 : index
    %c0_110 = arith.constant 0 : index
    %113 = vector.load %arg4[%c3_108, %c0_109, %c0_110] : memref<9x128x128xf32, #tpu.memory_space<vmem>>, vector<1x128x128xf32>
    %114 = vector.shape_cast %113 : vector<1x128x128xf32> to vector<128x128xf32>
    %cst_111 = arith.constant dense<0.000000e+00> : vector<256x128xf32>
    %115 = tpu.matmul %112, %114, %cst_111 {dimension_numbers = #tpu.dot_dimension_numbers<[1], [0], [0], [1], [0, 0, 1, 1], [], []>} : vector<256x128xf32>, vector<128x128xf32>, vector<256x128xf32> -> vector<256x128xf32>
    %116 = arith.addf %110, %115 : vector<256x128xf32>
    %c1_112 = arith.constant 1 : index
    %c1_113 = arith.constant 1 : index
    %c0_114 = arith.constant 0 : index
    %117 = vector.load %arg7[%c1_112, %c1_113, %c0_114] : memref<18x18x128xf32, #tpu.memory_space<vmem>>, vector<16x16x128xf32>
    %118 = vector.shape_cast %117 : vector<16x16x128xf32> to vector<256x128xf32>
    %c4_115 = arith.constant 4 : index
    %c0_116 = arith.constant 0 : index
    %c0_117 = arith.constant 0 : index
    %119 = vector.load %arg4[%c4_115, %c0_116, %c0_117] : memref<9x128x128xf32, #tpu.memory_space<vmem>>, vector<1x128x128xf32>
    %120 = vector.shape_cast %119 : vector<1x128x128xf32> to vector<128x128xf32>
    %cst_118 = arith.constant dense<0.000000e+00> : vector<256x128xf32>
    %121 = tpu.matmul %118, %120, %cst_118 {dimension_numbers = #tpu.dot_dimension_numbers<[1], [0], [0], [1], [0, 0, 1, 1], [], []>} : vector<256x128xf32>, vector<128x128xf32>, vector<256x128xf32> -> vector<256x128xf32>
    %122 = arith.addf %116, %121 : vector<256x128xf32>
    %c1_119 = arith.constant 1 : index
    %c2_120 = arith.constant 2 : index
    %c0_121 = arith.constant 0 : index
    %123 = vector.load %arg7[%c1_119, %c2_120, %c0_121] : memref<18x18x128xf32, #tpu.memory_space<vmem>>, vector<16x16x128xf32>
    %124 = vector.shape_cast %123 : vector<16x16x128xf32> to vector<256x128xf32>
    %c5_122 = arith.constant 5 : index
    %c0_123 = arith.constant 0 : index
    %c0_124 = arith.constant 0 : index
    %125 = vector.load %arg4[%c5_122, %c0_123, %c0_124] : memref<9x128x128xf32, #tpu.memory_space<vmem>>, vector<1x128x128xf32>
    %126 = vector.shape_cast %125 : vector<1x128x128xf32> to vector<128x128xf32>
    %cst_125 = arith.constant dense<0.000000e+00> : vector<256x128xf32>
    %127 = tpu.matmul %124, %126, %cst_125 {dimension_numbers = #tpu.dot_dimension_numbers<[1], [0], [0], [1], [0, 0, 1, 1], [], []>} : vector<256x128xf32>, vector<128x128xf32>, vector<256x128xf32> -> vector<256x128xf32>
    %128 = arith.addf %122, %127 : vector<256x128xf32>
    %c2_126 = arith.constant 2 : index
    %c0_127 = arith.constant 0 : index
    %c0_128 = arith.constant 0 : index
    %129 = vector.load %arg7[%c2_126, %c0_127, %c0_128] : memref<18x18x128xf32, #tpu.memory_space<vmem>>, vector<16x16x128xf32>
    %130 = vector.shape_cast %129 : vector<16x16x128xf32> to vector<256x128xf32>
    %c6_129 = arith.constant 6 : index
    %c0_130 = arith.constant 0 : index
    %c0_131 = arith.constant 0 : index
    %131 = vector.load %arg4[%c6_129, %c0_130, %c0_131] : memref<9x128x128xf32, #tpu.memory_space<vmem>>, vector<1x128x128xf32>
    %132 = vector.shape_cast %131 : vector<1x128x128xf32> to vector<128x128xf32>
    %cst_132 = arith.constant dense<0.000000e+00> : vector<256x128xf32>
    %133 = tpu.matmul %130, %132, %cst_132 {dimension_numbers = #tpu.dot_dimension_numbers<[1], [0], [0], [1], [0, 0, 1, 1], [], []>} : vector<256x128xf32>, vector<128x128xf32>, vector<256x128xf32> -> vector<256x128xf32>
    %134 = arith.addf %128, %133 : vector<256x128xf32>
    %c2_133 = arith.constant 2 : index
    %c1_134 = arith.constant 1 : index
    %c0_135 = arith.constant 0 : index
    %135 = vector.load %arg7[%c2_133, %c1_134, %c0_135] : memref<18x18x128xf32, #tpu.memory_space<vmem>>, vector<16x16x128xf32>
    %136 = vector.shape_cast %135 : vector<16x16x128xf32> to vector<256x128xf32>
    %c7_136 = arith.constant 7 : index
    %c0_137 = arith.constant 0 : index
    %c0_138 = arith.constant 0 : index
    %137 = vector.load %arg4[%c7_136, %c0_137, %c0_138] : memref<9x128x128xf32, #tpu.memory_space<vmem>>, vector<1x128x128xf32>
    %138 = vector.shape_cast %137 : vector<1x128x128xf32> to vector<128x128xf32>
    %cst_139 = arith.constant dense<0.000000e+00> : vector<256x128xf32>
    %139 = tpu.matmul %136, %138, %cst_139 {dimension_numbers = #tpu.dot_dimension_numbers<[1], [0], [0], [1], [0, 0, 1, 1], [], []>} : vector<256x128xf32>, vector<128x128xf32>, vector<256x128xf32> -> vector<256x128xf32>
    %140 = arith.addf %134, %139 : vector<256x128xf32>
    %c2_140 = arith.constant 2 : index
    %c2_141 = arith.constant 2 : index
    %c0_142 = arith.constant 0 : index
    %141 = vector.load %arg7[%c2_140, %c2_141, %c0_142] : memref<18x18x128xf32, #tpu.memory_space<vmem>>, vector<16x16x128xf32>
    %142 = vector.shape_cast %141 : vector<16x16x128xf32> to vector<256x128xf32>
    %c8_143 = arith.constant 8 : index
    %c0_144 = arith.constant 0 : index
    %c0_145 = arith.constant 0 : index
    %143 = vector.load %arg4[%c8_143, %c0_144, %c0_145] : memref<9x128x128xf32, #tpu.memory_space<vmem>>, vector<1x128x128xf32>
    %144 = vector.shape_cast %143 : vector<1x128x128xf32> to vector<128x128xf32>
    %cst_146 = arith.constant dense<0.000000e+00> : vector<256x128xf32>
    %145 = tpu.matmul %142, %144, %cst_146 {dimension_numbers = #tpu.dot_dimension_numbers<[1], [0], [0], [1], [0, 0, 1, 1], [], []>} : vector<256x128xf32>, vector<128x128xf32>, vector<256x128xf32> -> vector<256x128xf32>
    %146 = arith.addf %140, %145 : vector<256x128xf32>
    %147 = vector.broadcast %3 : vector<1x128xf32> to vector<256x128xf32>
    %148 = arith.addf %146, %147 : vector<256x128xf32>
    %cst_147 = arith.constant dense<0.000000e+00> : vector<128xf32>
    %149 = vector.multi_reduction <add>, %148, %cst_147 [0] : vector<256x128xf32> to vector<128xf32>
    %150 = vector.shape_cast %149 : vector<128xf32> to vector<1x128xf32>
    %cst_148 = arith.constant 2.560000e+02 : f32
    %151 = vector.broadcast %cst_148 : f32 to vector<1x128xf32>
    %152 = arith.divf %150, %151 : vector<1x128xf32>
    %153 = vector.broadcast %152 : vector<1x128xf32> to vector<256x128xf32>
    %154 = arith.subf %148, %153 : vector<256x128xf32>
    %155 = arith.mulf %154, %154 : vector<256x128xf32>
    %cst_149 = arith.constant dense<0.000000e+00> : vector<128xf32>
    %156 = vector.multi_reduction <add>, %155, %cst_149 [0] : vector<256x128xf32> to vector<128xf32>
    %157 = vector.shape_cast %156 : vector<128xf32> to vector<1x128xf32>
    %cst_150 = arith.constant 2.560000e+02 : f32
    %158 = vector.broadcast %cst_150 : f32 to vector<1x128xf32>
    %159 = arith.divf %157, %158 : vector<1x128xf32>
    %cst_151 = arith.constant 9.99999974E-6 : f32
    %160 = vector.broadcast %cst_151 : f32 to vector<1x128xf32>
    %161 = arith.addf %159, %160 : vector<1x128xf32>
    %162 = math.rsqrt %161 : vector<1x128xf32>
    %163 = vector.broadcast %162 : vector<1x128xf32> to vector<256x128xf32>
    %164 = arith.mulf %154, %163 : vector<256x128xf32>
    %165 = vector.shape_cast %164 : vector<256x128xf32> to vector<16x16x128xf32>
    %166 = arith.addf %1, %165 : vector<16x16x128xf32>
    %c0_152 = arith.constant 0 : index
    %c0_153 = arith.constant 0 : index
    %c0_154 = arith.constant 0 : index
    %c0_155 = arith.constant 0 : index
    %167 = vector.load %arg6[%c0_152, %c0_153, %c0_154, %c0_155] : memref<1x16x16x128xf32, #tpu.memory_space<vmem>>, vector<1x16x16x128xf32>
    %168 = vector.shape_cast %167 : vector<1x16x16x128xf32> to vector<16x16x128xf32>
    %169 = vector.shape_cast %166 : vector<16x16x128xf32> to vector<1x16x16x128xf32>
    tpu.vector_store %arg6[%c0_152, %c0_153, %c0_154, %c0_155], %169 {strides = array<i32>} : memref<1x16x16x128xf32, #tpu.memory_space<vmem>>, vector<1x16x16x128xf32>,
    return
  }
  func.func @transform_0(%arg0: i32) -> (i32, i32, i32, i32) {
    %c0_i32 = arith.constant 0 : i32
    %c0_i32_0 = arith.constant 0 : i32
    %c0_i32_1 = arith.constant 0 : i32
    %c0_i32_2 = arith.constant 0 : i32
    return %arg0, %c0_i32, %c0_i32_0, %c0_i32_1 : i32, i32, i32, i32
  }
  func.func @transform_1(%arg0: i32) -> (i32, i32, i32) {
    %c0_i32 = arith.constant 0 : i32
    %c0_i32_0 = arith.constant 0 : i32
    %c0_i32_1 = arith.constant 0 : i32
    %c0_i32_2 = arith.constant 0 : i32
    return %c0_i32, %c0_i32_0, %c0_i32_1 : i32, i32, i32
  }
  func.func @transform_2(%arg0: i32) -> (i32, i32) {
    %c0_i32 = arith.constant 0 : i32
    %c0_i32_0 = arith.constant 0 : i32
    %c0_i32_1 = arith.constant 0 : i32
    return %c0_i32, %c0_i32_0 : i32, i32
  }
  func.func @transform_3(%arg0: i32) -> (i32, i32, i32) {
    %c0_i32 = arith.constant 0 : i32
    %c0_i32_0 = arith.constant 0 : i32
    %c0_i32_1 = arith.constant 0 : i32
    %c0_i32_2 = arith.constant 0 : i32
    return %c0_i32, %c0_i32_0, %c0_i32_1 : i32, i32, i32
  }
  func.func @transform_4(%arg0: i32) -> (i32, i32) {
    %c0_i32 = arith.constant 0 : i32
    %c0_i32_0 = arith.constant 0 : i32
    %c0_i32_1 = arith.constant 0 : i32
    return %c0_i32, %c0_i32_0 : i32, i32
  }
  func.func @transform_5(%arg0: i32) -> (i32, i32, i32, i32) {
    %c0_i32 = arith.constant 0 : i32
    %c0_i32_0 = arith.constant 0 : i32
    %c0_i32_1 = arith.constant 0 : i32
    %c0_i32_2 = arith.constant 0 : i32
    return %arg0, %c0_i32, %c0_i32_0, %c0_i32_1 : i32, i32, i32, i32
  }
}

</mosaic_0001>

<llo_original>
// kernel: tpu_custom_call.1
$region0: #{tpu_custom_call.1}
  #allocation0 [shape = 'u32[]', space=smem, size = 0x4, offset = 0x4, fixed_abs, tag = 'smem constant byte address 0x4 - core index']
  #allocation1 [shape = 'u32[144,128]{1,0:T(1,128)}', space=vmem, size = 0x12000, scoped, tag = 'internal scratch']
  #allocation2 [shape = 'f32[18,18,128]{2,1,0:T(8,128)}', space=vmem, size = 0x36000, scoped, tag = 'scratch operand']
  %s0 = inlined_call_operand.hbm [shape: f32[2,16,16,128], index: 0, kind: input, shape index: {}]
  %s1 = inlined_call_operand.hbm [shape: f32[9,128,128], index: 1, kind: input, shape index: {}]
  %s2 = inlined_call_operand.vmem [shape: f32[1,128], index: 2, kind: input, shape index: {}]
  %s3 = inlined_call_operand.hbm [shape: f32[9,128,128], index: 3, kind: input, shape index: {}]
  %s4 = inlined_call_operand.vmem [shape: f32[1,128], index: 4, kind: input, shape index: {}]
  %s5 = inlined_call_operand.hbm [shape: f32[2,16,16,128], index: 5, kind: output, shape index: {}]
  %s6 = sld [smem:[#allocation0]]
  $region65: #{tpu_custom_call.1} parent=0
    _
  %s8 = ssub.s32 1, %s6
  %s9 = scalar_select 0, %s8, %s6
  $region1: #{tpu_custom_call.1} parent=0
    #allocation3 [shape = 'u8[262144]{0}', space=vmem, size = 0x40000, scoped, tag = 'input window, operand 0']
    #allocation4 [shape = 's32[2]{0}', space=sflag, size = 0x8, scoped, tag = 'scoped memory for tpu_custom_call.1']
    #allocation5 [shape = 's32[2]{0}', space=sflag, size = 0x8, scoped, tag = 'scoped memory for tpu_custom_call.1']
    #allocation6 [shape = 'u8[589824]{0}', space=vmem, size = 0x90000, scoped, tag = 'input window, operand 1, single buffered']
    #allocation7 [shape = 's32[1]{0}', space=sflag, size = 0x4, scoped, tag = 'scoped memory for tpu_custom_call.1']
    #allocation8 [shape = 'u8[589824]{0}', space=vmem, size = 0x90000, scoped, tag = 'input window, operand 3, single buffered']
    #allocation9 [shape = 'u8[262144]{0}', space=vmem, size = 0x40000, scoped, tag = 'output window, operand 0']
    %10 = vsyncpa [#allocation4], 0
    %s11 = scalar_lea.sflag [#allocation4], 1
    %12 = vsyncpa %s11, 0
    %13 = vsyncpa [#allocation7], 0
    %14 = vsyncpa [#allocation5], 0
    %s15 = scalar_lea.sflag [#allocation5], 1
    %16 = vsyncpa %s15, 0
    loop: start=0, step=1, limit=4
    $region2: #{tpu_custom_call.1} parent=1 // loop_pre_header
      _
    $region3: #{tpu_custom_call.1} parent=1 // loop_header
      %s18 = sphi 0, %s22
      %p19 = scmp.ge.s32.totalorder %s18, 4
      %s28 = sphi 0, %s30
      %s31 = sphi 0, %s28
      %s32 = sphi 0, %s31
      %s48 = sphi 0, %s32
      %s52 = sphi 0, %s52
      %s54 = sphi 0, %s52
      %s55 = sphi 0, %s54
      %s69 = sphi 0, %s55
      %s73 = sphi 0, %s73
      %s75 = sphi 0, %s73
      %s76 = sphi 0, %s75
      %s90 = sphi 0, %s76
      %s94 = sphi 0, %s94
      %s96 = sphi 0, %s94
      %s97 = sphi 0, %s96
      %s111 = sphi 0, %s97
      %s115 = sphi 0, %s115
      %s117 = sphi 0, %s115
      %s118 = sphi 0, %s117
      %s132 = sphi 0, %s118
      %s138 = sphi 0, %s140
      %s141 = sphi 0, %s138
      %s142 = sphi 0, %s141
      %s158 = sphi 0, %s142
    $region4: #{tpu_custom_call.1} parent=1 // loop_header_branch
      %21 = sbr.rel (%p19) target = $region8
    $region5: #{tpu_custom_call.1} parent=1 // loop_body
      %s23 = ssub.s32 %s18, 1
      %s24 = ssub.s32 %s18, 2
      %s25 = sadd.s32 %s18, 1
      %s26 = ssub.s32 %s18, %s25
      %p27 = scmp.eq.s32.totalorder %s26, 0
      %s29 = sadd.s32 %s28, 1
      %s30 = scalar_select %p27, %s28, %s29
      %p33 = pneg %p27
      %p34 = scmp.eq.s32.totalorder %s18, 1
      %p35 = por %p33, %p34
      %p36 = scmp.ne.s32.totalorder %s28, %s31
      %p37 = scmp.eq.s32.totalorder %s18, 0
      %p38 = por %p36, %p37
      %p39 = scmp.ne.s32.totalorder %s28, %s31
      %p40 = scmp.eq.s32.totalorder %s23, 1
      %p41 = por %p39, %p40
      %p42 = scmp.ne.s32.totalorder %s31, %s32
      %p43 = scmp.eq.s32.totalorder %s23, 0
      %p44 = por %p42, %p43
      %p45 = scmp.ne.s32.totalorder %s31, %s32
      %p46 = scmp.eq.s32.totalorder %s24, 1
      %p47 = por %p45, %p46
      %p49 = scmp.ne.s32.totalorder %s32, %s48
      %p50 = scmp.eq.s32.totalorder %s24, 0
      %p51 = por %p49, %p50
      %s53 = sadd.s32 %s52, 1
      %p56 = scmp.eq.s32.totalorder %s18, 1
      %p57 = scmp.ne.s32.totalorder %s52, %s54
      %p58 = scmp.eq.s32.totalorder %s18, 0
      %p59 = por %p57, %p58
      %p60 = scmp.ne.s32.totalorder %s52, %s54
      %p61 = scmp.eq.s32.totalorder %s23, 1
      %p62 = por %p60, %p61
      %p63 = scmp.ne.s32.totalorder %s54, %s55
      %p64 = scmp.eq.s32.totalorder %s23, 0
      %p65 = por %p63, %p64
      %p66 = scmp.ne.s32.totalorder %s54, %s55
      %p67 = scmp.eq.s32.totalorder %s24, 1
      %p68 = por %p66, %p67
      %p70 = scmp.ne.s32.totalorder %s55, %s69
      %p71 = scmp.eq.s32.totalorder %s24, 0
      %p72 = por %p70, %p71
      %s74 = sadd.s32 %s73, 1
      %p77 = scmp.eq.s32.totalorder %s18, 1
      %p78 = scmp.ne.s32.totalorder %s73, %s75
      %p79 = scmp.eq.s32.totalorder %s18, 0
      %p80 = por %p78, %p79
      %p81 = scmp.ne.s32.totalorder %s73, %s75
      %p82 = scmp.eq.s32.totalorder %s23, 1
      %p83 = por %p81, %p82
      %p84 = scmp.ne.s32.totalorder %s75, %s76
      %p85 = scmp.eq.s32.totalorder %s23, 0
      %p86 = por %p84, %p85
      %p87 = scmp.ne.s32.totalorder %s75, %s76
      %p88 = scmp.eq.s32.totalorder %s24, 1
      %p89 = por %p87, %p88
      %p91 = scmp.ne.s32.totalorder %s76, %s90
      %p92 = scmp.eq.s32.totalorder %s24, 0
      %p93 = por %p91, %p92
      %s95 = sadd.s32 %s94, 1
      %p98 = scmp.eq.s32.totalorder %s18, 1
      %p99 = scmp.ne.s32.totalorder %s94, %s96
      %p100 = scmp.eq.s32.totalorder %s18, 0
      %p101 = por %p99, %p100
      %p102 = scmp.ne.s32.totalorder %s94, %s96
      %p103 = scmp.eq.s32.totalorder %s23, 1
      %p104 = por %p102, %p103
      %p105 = scmp.ne.s32.totalorder %s96, %s97
      %p106 = scmp.eq.s32.totalorder %s23, 0
      %p107 = por %p105, %p106
      %p108 = scmp.ne.s32.totalorder %s96, %s97
      %p109 = scmp.eq.s32.totalorder %s24, 1
      %p110 = por %p108, %p109
      %p112 = scmp.ne.s32.totalorder %s97, %s111
      %p113 = scmp.eq.s32.totalorder %s24, 0
      %p114 = por %p112, %p113
      %s116 = sadd.s32 %s115, 1
      %p119 = scmp.eq.s32.totalorder %s18, 1
      %p120 = scmp.ne.s32.totalorder %s115, %s117
      %p121 = scmp.eq.s32.totalorder %s18, 0
      %p122 = por %p120, %p121
      %p123 = scmp.ne.s32.totalorder %s115, %s117
      %p124 = scmp.eq.s32.totalorder %s23, 1
      %p125 = por %p123, %p124
      %p126 = scmp.ne.s32.totalorder %s117, %s118
      %p127 = scmp.eq.s32.totalorder %s23, 0
      %p128 = por %p126, %p127
      %p129 = scmp.ne.s32.totalorder %s117, %s118
      %p130 = scmp.eq.s32.totalorder %s24, 1
      %p131 = por %p129, %p130
      %p133 = scmp.ne.s32.totalorder %s118, %s132
      %p134 = scmp.eq.s32.totalorder %s24, 0
      %p135 = por %p133, %p134
      %s136 = ssub.s32 %s18, %s25
      %p137 = scmp.eq.s32.totalorder %s136, 0
      %s139 = sadd.s32 %s138, 1
      %s140 = scalar_select %p137, %s138, %s139
      %p143 = pneg %p137
      %p144 = scmp.eq.s32.totalorder %s18, 1
      %p145 = por %p143, %p144
      %p146 = scmp.ne.s32.totalorder %s138, %s141
      %p147 = scmp.eq.s32.totalorder %s18, 0
      %p148 = por %p146, %p147
      %p149 = scmp.ne.s32.totalorder %s138, %s141
      %p150 = scmp.eq.s32.totalorder %s23, 1
      %p151 = por %p149, %p150
      %p152 = scmp.ne.s32.totalorder %s141, %s142
      %p153 = scmp.eq.s32.totalorder %s23, 0
      %p154 = por %p152, %p153
      %p155 = scmp.ne.s32.totalorder %s141, %s142
      %p156 = scmp.eq.s32.totalorder %s24, 1
      %p157 = por %p155, %p156
      %p159 = scmp.ne.s32.totalorder %s142, %s158
      %p160 = scmp.eq.s32.totalorder %s24, 0
      %p161 = por %p159, %p160
      %p162 = scmp.le.s32.totalorder 1, %s18
      %p163 = scmp.lt.s32.totalorder %s18, 3
      %p164 = pnand %p162, %p163
      %p165 = pneg %p164
      // Predicated region
      $region9: #{tpu_custom_call.1} parent=5 // pred_check
        _
      $region10: #{tpu_custom_call.1} parent=5 // pred_check_branch
        %167 = sbr.rel (%p164) target = $region12
      $region11: #{tpu_custom_call.1} parent=5 // pred_region
        %s168 = ssub.s32 %s18, 1
        // Predicated region
        $region13: #{tpu_custom_call.1} parent=11 // pred_check
          %p169 = pneg %p65
        $region14: #{tpu_custom_call.1} parent=11 // pred_check_branch
          %171 = sbr.rel (%p169) target = $region16
        $region15: #{tpu_custom_call.1} parent=11 // pred_region
          %s173 = ssub.s32 18432, 18432
          %174 = vsyncadd [#allocation7], %s173
          %s175 = sshll.u32 [#allocation6], 4
          %s176 = int_to_ptr.vmem [resolvable:$true] %s175
          %181 = dma.hbm_to_vmem [thread:$0]  %s1, 18432, %s176, [#allocation7], 128, 128, 8
        $region16: #{tpu_custom_call.1} parent=11 // pred_fallthru
          _
        // Predicated region
        $region17: #{tpu_custom_call.1} parent=11 // pred_check
          %p182 = pneg %p86
        $region18: #{tpu_custom_call.1} parent=11 // pred_check_branch
          %184 = sbr.rel (%p182) target = $region20
        $region19: #{tpu_custom_call.1} parent=11 // pred_region
          _
        $region20: #{tpu_custom_call.1} parent=11 // pred_fallthru
          _
        // Predicated region
        $region21: #{tpu_custom_call.1} parent=11 // pred_check
          %p185 = pneg %p107
        $region22: #{tpu_custom_call.1} parent=11 // pred_check_branch
          %187 = sbr.rel (%p185) target = $region24
        $region23: #{tpu_custom_call.1} parent=11 // pred_region
          %s189 = ssub.s32 18432, 18432
          %190 = vsyncadd [#allocation7], %s189
          %s191 = sshll.u32 [#allocation8], 4
          %s192 = int_to_ptr.vmem [resolvable:$true] %s191
          %197 = dma.hbm_to_vmem [thread:$0]  %s3, 18432, %s192, [#allocation7], 128, 128, 8
        $region24: #{tpu_custom_call.1} parent=11 // pred_fallthru
          _
        // Predicated region
        $region25: #{tpu_custom_call.1} parent=11 // pred_check
          %p198 = pneg %p128
        $region26: #{tpu_custom_call.1} parent=11 // pred_check_branch
          %200 = sbr.rel (%p198) target = $region28
        $region27: #{tpu_custom_call.1} parent=11 // pred_region
          _
        $region28: #{tpu_custom_call.1} parent=11 // pred_fallthru
          _
      $region12: #{tpu_custom_call.1} parent=5 // pred_fallthru
        _
      %p201 = scmp.lt.s32.totalorder %s18, 2
      // Predicated region
      $region29: #{tpu_custom_call.1} parent=5 // pred_check
        %p202 = pneg %p201
      $region30: #{tpu_custom_call.1} parent=5 // pred_check_branch
        %204 = sbr.rel (%p202) target = $region32
      $region31: #{tpu_custom_call.1} parent=5 // pred_region
        // Predicated region
        $region33: #{tpu_custom_call.1} parent=31 // pred_check
          %p205 = pneg %p38
        $region34: #{tpu_custom_call.1} parent=31 // pred_check_branch
          %207 = sbr.rel (%p205) target = $region36
        $region35: #{tpu_custom_call.1} parent=31 // pred_region
          %s208 = sand.u32 %s28, 1
          %s209 = scalar_lea.sflag [#allocation4], %s208
          %s210 = sand.u32 %s28, 1
          %s211 = smul.addr %s210, 256
          %s212 = scalar_lea.vmem [#allocation3], %s211
          %s214 = ssub.s32 4096, 4096
          %215 = vsyncadd %s209, %s214
          %s216 = smul.addr %s18, 32
          %s217 = smul.addr %s216, 128
          %s218 = scalar_lea.hbm %s0, %s217
          %s219 = sshll.u32 %s212, 4
          %s220 = int_to_ptr.vmem [resolvable:$true] %s219
          %225 = dma.hbm_to_vmem [thread:$0]  %s218, 4096, %s220, %s209, 128, 128, 8
        $region36: #{tpu_custom_call.1} parent=31 // pred_fallthru
          _
      $region32: #{tpu_custom_call.1} parent=5 // pred_fallthru
        _
      %p226 = scmp.le.s32.totalorder 1, %s18
      %p227 = scmp.lt.s32.totalorder %s18, 3
      %p228 = pnand %p226, %p227
      %p229 = pneg %p228
      // Predicated region
      $region37: #{tpu_custom_call.1} parent=5 // pred_check
        _
      $region38: #{tpu_custom_call.1} parent=5 // pred_check_branch
        %231 = sbr.rel (%p228) target = $region40
      $region39: #{tpu_custom_call.1} parent=5 // pred_region
        %s232 = ssub.s32 %s18, 1
        %s233 = sand.u32 %s31, 1
        %s234 = scalar_lea.sflag [#allocation4], %s233
        %s235 = sand.u32 %s31, 1
        %s236 = smul.addr %s235, 256
        %s237 = scalar_lea.vmem [#allocation3], %s236
        // Predicated region
        $region41: #{tpu_custom_call.1} parent=39 // pred_check
          %p238 = pneg %p44
        $region42: #{tpu_custom_call.1} parent=39 // pred_check_branch
          %240 = sbr.rel (%p238) target = $region44
        $region43: #{tpu_custom_call.1} parent=39 // pred_region
          %241 = dma.done %s234, 4096
        $region44: #{tpu_custom_call.1} parent=39 // pred_fallthru
          _
        // Predicated region
        $region45: #{tpu_custom_call.1} parent=39 // pred_check
          %p242 = pneg %p65
        $region46: #{tpu_custom_call.1} parent=39 // pred_check_branch
          %244 = sbr.rel (%p242) target = $region48
        $region47: #{tpu_custom_call.1} parent=39 // pred_region
          %245 = dma.done [#allocation7], 18432
        $region48: #{tpu_custom_call.1} parent=39 // pred_fallthru
          _
        // Predicated region
        $region49: #{tpu_custom_call.1} parent=39 // pred_check
          %p246 = pneg %p107
        $region50: #{tpu_custom_call.1} parent=39 // pred_check_branch
          %248 = sbr.rel (%p246) target = $region52
        $region51: #{tpu_custom_call.1} parent=39 // pred_region
          %249 = dma.done [#allocation7], 18432
        $region52: #{tpu_custom_call.1} parent=39 // pred_fallthru
          _
        %s250 = sand.u32 %s31, 1
        %s251 = scalar_lea.sflag [#allocation4], %s250
        %s252 = sand.u32 %s31, 1
        %s253 = smul.addr %s252, 256
        %s254 = scalar_lea.vmem [#allocation3], %s253
        %p255 = pneg %p44
        %p256 = pneg %p41
        %p257 = pneg %p65
        %p258 = pneg %p62
        %p259 = pneg %p86
        %p260 = pneg %p83
        %p261 = pneg %p107
        %p262 = pneg %p104
        %p263 = pneg %p128
        %p264 = pneg %p125
        %p265 = pneg %p154
        %p266 = pneg %p151
        %s267 = sand.u32 %s141, 1
        %s268 = scalar_lea.sflag [#allocation5], %s267
        %s269 = sand.u32 %s141, 1
        %s270 = smul.addr %s269, 256
        %s271 = scalar_lea.vmem [#allocation9], %s270
        %v272 = vld [vmem:[%s237] sm:$0xff]
        %v273 = vld [vmem:[%s237 + $0x8] sm:$0xff]
        %v274 = vld [vmem:[%s237 + $0x10] sm:$0xff]
        %v275 = vld [vmem:[%s237 + $0x18] sm:$0xff]
        %v276 = vld [vmem:[%s237 + $0x20] sm:$0xff]
        %v277 = vld [vmem:[%s237 + $0x28] sm:$0xff]
        %v278 = vld [vmem:[%s237 + $0x30] sm:$0xff]
        %v279 = vld [vmem:[%s237 + $0x38] sm:$0xff]
        %v280 = vld [vmem:[%s237 + $0x40] sm:$0xff]
        %v281 = vld [vmem:[%s237 + $0x48] sm:$0xff]
        %v282 = vld [vmem:[%s237 + $0x50] sm:$0xff]
        %v283 = vld [vmem:[%s237 + $0x58] sm:$0xff]
        %v284 = vld [vmem:[%s237 + $0x60] sm:$0xff]
        %v285 = vld [vmem:[%s237 + $0x68] sm:$0xff]
        %v286 = vld [vmem:[%s237 + $0x70] sm:$0xff]
        %v287 = vld [vmem:[%s237 + $0x78] sm:$0xff]
        %v288 = vld [vmem:[%s237 + $0x80] sm:$0xff]
        %v289 = vld [vmem:[%s237 + $0x88] sm:$0xff]
        %v290 = vld [vmem:[%s237 + $0x90] sm:$0xff]
        %v291 = vld [vmem:[%s237 + $0x98] sm:$0xff]
        %v292 = vld [vmem:[%s237 + $0xa0] sm:$0xff]
        %v293 = vld [vmem:[%s237 + $0xa8] sm:$0xff]
        %v294 = vld [vmem:[%s237 + $0xb0] sm:$0xff]
        %v295 = vld [vmem:[%s237 + $0xb8] sm:$0xff]
        %v296 = vld [vmem:[%s237 + $0xc0] sm:$0xff]
        %v297 = vld [vmem:[%s237 + $0xc8] sm:$0xff]
        %v298 = vld [vmem:[%s237 + $0xd0] sm:$0xff]
        %v299 = vld [vmem:[%s237 + $0xd8] sm:$0xff]
        %v300 = vld [vmem:[%s237 + $0xe0] sm:$0xff]
        %v301 = vld [vmem:[%s237 + $0xe8] sm:$0xff]
        %v302 = vld [vmem:[%s237 + $0xf0] sm:$0xff]
        %v303 = vld [vmem:[%s237 + $0xf8] sm:$0xff]
        %v304 = vld [vmem:[%s2] sm:$0x1]
        %v305 = vld [vmem:[%s4] sm:$0x1]
        %306 = vst [vmem:[#allocation2 + $0x1] sm:$0xff] %v274
        %307 = vst [vmem:[#allocation2 + $0x9] sm:$0xff] %v275
        %308 = vst [vmem:[#allocation2 + $0x19] sm:$0xff] %v272
        %309 = vst [vmem:[#allocation2 + $0x21] sm:$0xff] %v273
        %310 = vst [vmem:[#allocation2 + $0x31] sm:$0xff] %v274
        %311 = vst [vmem:[#allocation2 + $0x39] sm:$0xff] %v275
        %312 = vst [vmem:[#allocation2 + $0x49] sm:$0xff] %v276
        %313 = vst [vmem:[#allocation2 + $0x51] sm:$0xff] %v277
        %314 = vst [vmem:[#allocation2 + $0x61] sm:$0xff] %v278
        %315 = vst [vmem:[#allocation2 + $0x69] sm:$0xff] %v279
        %316 = vst [vmem:[#allocation2 + $0x79] sm:$0xff] %v280
        %317 = vst [vmem:[#allocation2 + $0x81] sm:$0xff] %v281
        %318 = vst [vmem:[#allocation2 + $0x91] sm:$0xff] %v282
        %319 = vst [vmem:[#allocation2 + $0x99] sm:$0xff] %v283
        %320 = vst [vmem:[#allocation2 + $0xa9] sm:$0xff] %v284
        %321 = vst [vmem:[#allocation2 + $0xb1] sm:$0xff] %v285
        %322 = vst [vmem:[#allocation2 + $0xc1] sm:$0xff] %v286
        %323 = vst [vmem:[#allocation2 + $0xc9] sm:$0xff] %v287
        %324 = vst [vmem:[#allocation2 + $0xd9] sm:$0xff] %v288
        %325 = vst [vmem:[#allocation2 + $0xe1] sm:$0xff] %v289
        %326 = vst [vmem:[#allocation2 + $0xf1] sm:$0xff] %v290
        %327 = vst [vmem:[#allocation2 + $0xf9] sm:$0xff] %v291
        %328 = vst [vmem:[#allocation2 + $0x109] sm:$0xff] %v292
        %329 = vst [vmem:[#allocation2 + $0x111] sm:$0xff] %v293
        %330 = vst [vmem:[#allocation2 + $0x121] sm:$0xff] %v294
        %331 = vst [vmem:[#allocation2 + $0x129] sm:$0xff] %v295
        %332 = vst [vmem:[#allocation2 + $0x139] sm:$0xff] %v296
        %333 = vst [vmem:[#allocation2 + $0x141] sm:$0xff] %v297
        %334 = vst [vmem:[#allocation2 + $0x151] sm:$0xff] %v298
        %335 = vst [vmem:[#allocation2 + $0x159] sm:$0xff] %v299
        %336 = vst [vmem:[#allocation2 + $0x169] sm:$0xff] %v300
        %337 = vst [vmem:[#allocation2 + $0x171] sm:$0xff] %v301
        %338 = vst [vmem:[#allocation2 + $0x181] sm:$0xff] %v302
        %339 = vst [vmem:[#allocation2 + $0x189] sm:$0xff] %v303
        %340 = vst [vmem:[#allocation2 + $0x199] sm:$0xff] %v300
        %341 = vst [vmem:[#allocation2 + $0x1a1] sm:$0xff] %v301
        %342 = vst [vmem:[#allocation2 - $0x1] sm:$0x2] %v274
        %343 = vst [vmem:[#allocation2 + $0x17] sm:$0x2] %v272
        %344 = vst [vmem:[#allocation2 + $0x2f] sm:$0x2] %v274
        %345 = vst [vmem:[#allocation2 + $0x47] sm:$0x2] %v276
        %346 = vst [vmem:[#allocation2 + $0x5f] sm:$0x2] %v278
        %347 = vst [vmem:[#allocation2 + $0x77] sm:$0x2] %v280
        %348 = vst [vmem:[#allocation2 + $0x8f] sm:$0x2] %v282
        %349 = vst [vmem:[#allocation2 + $0xa7] sm:$0x2] %v284
        %350 = vst [vmem:[#allocation2 + $0xbf] sm:$0x2] %v286
        %351 = vst [vmem:[#allocation2 + $0xd7] sm:$0x2] %v288
        %352 = vst [vmem:[#allocation2 + $0xef] sm:$0x2] %v290
        %353 = vst [vmem:[#allocation2 + $0x107] sm:$0x2] %v292
        %354 = vst [vmem:[#allocation2 + $0x11f] sm:$0x2] %v294
        %355 = vst [vmem:[#allocation2 + $0x137] sm:$0x2] %v296
        %356 = vst [vmem:[#allocation2 + $0x14f] sm:$0x2] %v298
        %357 = vst [vmem:[#allocation2 + $0x167] sm:$0x2] %v300
        %358 = vst [vmem:[#allocation2 + $0x17f] sm:$0x2] %v302
        %359 = vst [vmem:[#allocation2 + $0x197] sm:$0x2] %v300
        %360 = vst [vmem:[#allocation2 + $0xb] sm:$0x40] %v275
        %361 = vst [vmem:[#allocation2 + $0x23] sm:$0x40] %v273
        %362 = vst [vmem:[#allocation2 + $0x3b] sm:$0x40] %v275
        %363 = vst [vmem:[#allocation2 + $0x53] sm:$0x40] %v277
        %364 = vst [vmem:[#allocation2 + $0x6b] sm:$0x40] %v279
        %365 = vst [vmem:[#allocation2 + $0x83] sm:$0x40] %v281
        %366 = vst [vmem:[#allocation2 + $0x9b] sm:$0x40] %v283
        %367 = vst [vmem:[#allocation2 + $0xb3] sm:$0x40] %v285
        %368 = vst [vmem:[#allocation2 + $0xcb] sm:$0x40] %v287
        %369 = vst [vmem:[#allocation2 + $0xe3] sm:$0x40] %v289
        %370 = vst [vmem:[#allocation2 + $0xfb] sm:$0x40] %v291
        %371 = vst [vmem:[#allocation2 + $0x113] sm:$0x40] %v293
        %372 = vst [vmem:[#allocation2 + $0x12b] sm:$0x40] %v295
        %373 = vst [vmem:[#allocation2 + $0x143] sm:$0x40] %v297
        %374 = vst [vmem:[#allocation2 + $0x15b] sm:$0x40] %v299
        %375 = vst [vmem:[#allocation2 + $0x173] sm:$0x40] %v301
        %376 = vst [vmem:[#allocation2 + $0x18b] sm:$0x40] %v303
        %377 = vst [vmem:[#allocation2 + $0x1a3] sm:$0x40] %v301
        %v378 = vld [vmem:[#allocation2] sm:$0xff]
        %v379 = vld [vmem:[#allocation2 + $0x8] sm:$0xff]
        %v380 = vld [vmem:[#allocation2 + $0x18] sm:$0xff]
        %v381 = vld [vmem:[#allocation2 + $0x20] sm:$0xff]
        %v382 = vld [vmem:[#allocation2 + $0x30] sm:$0xff]
        %v383 = vld [vmem:[#allocation2 + $0x38] sm:$0xff]
        %v384 = vld [vmem:[#allocation2 + $0x48] sm:$0xff]
        %v385 = vld [vmem:[#allocation2 + $0x50] sm:$0xff]
        %v386 = vld [vmem:[#allocation2 + $0x60] sm:$0xff]
        %v387 = vld [vmem:[#allocation2 + $0x68] sm:$0xff]
        %v388 = vld [vmem:[#allocation2 + $0x78] sm:$0xff]
        %v389 = vld [vmem:[#allocation2 + $0x80] sm:$0xff]
        %v390 = vld [vmem:[#allocation2 + $0x90] sm:$0xff]
        %v391 = vld [vmem:[#allocation2 + $0x98] sm:$0xff]
        %v392 = vld [vmem:[#allocation2 + $0xa8] sm:$0xff]
        %v393 = vld [vmem:[#allocation2 + $0xb0] sm:$0xff]
        %v394 = vld [vmem:[#allocation2 + $0xc0] sm:$0xff]
        %v395 = vld [vmem:[#allocation2 + $0xc8] sm:$0xff]
        %v396 = vld [vmem:[#allocation2 + $0xd8] sm:$0xff]
        %v397 = vld [vmem:[#allocation2 + $0xe0] sm:$0xff]
        %v398 = vld [vmem:[#allocation2 + $0xf0] sm:$0xff]
        %v399 = vld [vmem:[#allocation2 + $0xf8] sm:$0xff]
        %v400 = vld [vmem:[#allocation2 + $0x108] sm:$0xff]
        %v401 = vld [vmem:[#allocation2 + $0x110] sm:$0xff]
        %v402 = vld [vmem:[#allocation2 + $0x120] sm:$0xff]
        %v403 = vld [vmem:[#allocation2 + $0x128] sm:$0xff]
        %v404 = vld [vmem:[#allocation2 + $0x138] sm:$0xff]
        %v405 = vld [vmem:[#allocation2 + $0x140] sm:$0xff]
        %v406 = vld [vmem:[#allocation2 + $0x150] sm:$0xff]
        %v407 = vld [vmem:[#allocation2 + $0x158] sm:$0xff]
        %v408 = vld [vmem:[#allocation2 + $0x168] sm:$0xff]
        %v409 = vld [vmem:[#allocation2 + $0x170] sm:$0xff]
        %v410 = vld [vmem:[#allocation6] sm:$0xff]
        %v411 = vld [vmem:[#allocation6 + $0x8] sm:$0xff]
        %v412 = vld [vmem:[#allocation6 + $0x10] sm:$0xff]
        %v413 = vld [vmem:[#allocation6 + $0x18] sm:$0xff]
        %v414 = vld [vmem:[#allocation6 + $0x20] sm:$0xff]
        %v415 = vld [vmem:[#allocation6 + $0x28] sm:$0xff]
        %v416 = vld [vmem:[#allocation6 + $0x30] sm:$0xff]
        %v417 = vld [vmem:[#allocation6 + $0x38] sm:$0xff]
        %v418 = vld [vmem:[#allocation6 + $0x40] sm:$0xff]
        %v419 = vld [vmem:[#allocation6 + $0x48] sm:$0xff]
        %v420 = vld [vmem:[#allocation6 + $0x50] sm:$0xff]
        %v421 = vld [vmem:[#allocation6 + $0x58] sm:$0xff]
        %v422 = vld [vmem:[#allocation6 + $0x60] sm:$0xff]
        %v423 = vld [vmem:[#allocation6 + $0x68] sm:$0xff]
        %v424 = vld [vmem:[#allocation6 + $0x70] sm:$0xff]
        %v425 = vld [vmem:[#allocation6 + $0x78] sm:$0xff]
        %v426 = vld [vmem:[#allocation2 + $0x1] sm:$0xff]
        %v427 = vld [vmem:[#allocation2 + $0x9] sm:$0xff]
        %v428 = vld [vmem:[#allocation2 + $0x19] sm:$0xff]
        %v429 = vld [vmem:[#allocation2 + $0x21] sm:$0xff]
        %v430 = vld [vmem:[#allocation2 + $0x31] sm:$0xff]
        %v431 = vld [vmem:[#allocation2 + $0x39] sm:$0xff]
        %v432 = vld [vmem:[#allocation2 + $0x49] sm:$0xff]
        %v433 = vld [vmem:[#allocation2 + $0x51] sm:$0xff]
        %v434 = vld [vmem:[#allocation2 + $0x61] sm:$0xff]
        %v435 = vld [vmem:[#allocation2 + $0x69] sm:$0xff]
        %v436 = vld [vmem:[#allocation2 + $0x79] sm:$0xff]
        %v437 = vld [vmem:[#allocation2 + $0x81] sm:$0xff]
        %v438 = vld [vmem:[#allocation2 + $0x91] sm:$0xff]
        %v439 = vld [vmem:[#allocation2 + $0x99] sm:$0xff]
        %v440 = vld [vmem:[#allocation2 + $0xa9] sm:$0xff]
        %v441 = vld [vmem:[#allocation2 + $0xb1] sm:$0xff]
        %v442 = vld [vmem:[#allocation2 + $0xc1] sm:$0xff]
        %v443 = vld [vmem:[#allocation2 + $0xc9] sm:$0xff]
        %v444 = vld [vmem:[#allocation2 + $0xd9] sm:$0xff]
        %v445 = vld [vmem:[#allocation2 + $0xe1] sm:$0xff]
        %v446 = vld [vmem:[#allocation2 + $0xf1] sm:$0xff]
        %v447 = vld [vmem:[#allocation2 + $0xf9] sm:$0xff]
        %v448 = vld [vmem:[#allocation2 + $0x109] sm:$0xff]
        %v449 = vld [vmem:[#allocation2 + $0x111] sm:$0xff]
        %v450 = vld [vmem:[#allocation2 + $0x121] sm:$0xff]
        %v451 = vld [vmem:[#allocation2 + $0x129] sm:$0xff]
        %v452 = vld [vmem:[#allocation2 + $0x139] sm:$0xff]
        %v453 = vld [vmem:[#allocation2 + $0x141] sm:$0xff]
        %v454 = vld [vmem:[#allocation2 + $0x151] sm:$0xff]
        %v455 = vld [vmem:[#allocation2 + $0x159] sm:$0xff]
        %v456 = vld [vmem:[#allocation2 + $0x169] sm:$0xff]
        %v457 = vld [vmem:[#allocation2 + $0x171] sm:$0xff]
        %s458 = scalar_lea.vmem [#allocation6], 128
        %v459 = vld [vmem:[%s458] sm:$0xff]
        %v460 = vld [vmem:[%s458 + $0x8] sm:$0xff]
        %v461 = vld [vmem:[%s458 + $0x10] sm:$0xff]
        %v462 = vld [vmem:[%s458 + $0x18] sm:$0xff]
        %v463 = vld [vmem:[%s458 + $0x20] sm:$0xff]
        %v464 = vld [vmem:[%s458 + $0x28] sm:$0xff]
        %v465 = vld [vmem:[%s458 + $0x30] sm:$0xff]
        %v466 = vld [vmem:[%s458 + $0x38] sm:$0xff]
        %v467 = vld [vmem:[%s458 + $0x40] sm:$0xff]
        %v468 = vld [vmem:[%s458 + $0x48] sm:$0xff]
        %v469 = vld [vmem:[%s458 + $0x50] sm:$0xff]
        %v470 = vld [vmem:[%s458 + $0x58] sm:$0xff]
        %v471 = vld [vmem:[%s458 + $0x60] sm:$0xff]
        %v472 = vld [vmem:[%s458 + $0x68] sm:$0xff]
        %v473 = vld [vmem:[%s458 + $0x70] sm:$0xff]
        %v474 = vld [vmem:[%s458 + $0x78] sm:$0xff]
        %475 = vmatprep.subr.mxu0 0.0
        %476 = vmatpush1.msra.mxu0 %v474
        %477 = vmatprep.subr.mxu0 0.0
        %478 = vmatpush1.msra.mxu0 %v473
        %479 = vmatprep.subr.mxu0 0.0
        %480 = vmatpush1.msra.mxu0 %v472
        %481 = vmatprep.subr.mxu0 0.0
        %482 = vmatpush1.msra.mxu0 %v471
        %483 = vmatprep.subr.mxu0 0.0
        %484 = vmatpush1.msra.mxu0 %v470
        %485 = vmatprep.subr.mxu0 0.0
        %486 = vmatpush1.msra.mxu0 %v469
        %487 = vmatprep.subr.mxu0 0.0
        %488 = vmatpush1.msra.mxu0 %v468
        %489 = vmatprep.subr.mxu0 0.0
        %490 = vmatpush1.msra.mxu0 %v467
        %491 = vmatprep.subr.mxu0 0.0
        %492 = vmatpush1.msra.mxu0 %v466
        %493 = vmatprep.subr.mxu0 0.0
        %494 = vmatpush1.msra.mxu0 %v465
        %495 = vmatprep.subr.mxu0 0.0
        %496 = vmatpush1.msra.mxu0 %v464
        %497 = vmatprep.subr.mxu0 0.0
        %498 = vmatpush1.msra.mxu0 %v463
        %499 = vmatprep.subr.mxu0 0.0
        %500 = vmatpush1.msra.mxu0 %v462
        %501 = vmatprep.subr.mxu0 0.0
        %502 = vmatpush1.msra.mxu0 %v461
        %503 = vmatprep.subr.mxu0 0.0
        %504 = vmatpush1.msra.mxu0 %v460
        %505 = vmatprep.subr.mxu0 0.0
        %506 = vmatpush1.msra.mxu0 %v459
        %507 = vmatprep.subr.mxu0 0.0
        %508 = vmatpush2.msra.mxu0 0.0
        %509 = vmatprep.subr.mxu0 0.0
        %510 = vmatpush2.msra.mxu0 0.0
        %511 = vmatprep.subr.mxu0 0.0
        %512 = vmatpush2.msra.mxu0 0.0
        %513 = vmatprep.subr.mxu0 0.0
        %514 = vmatpush2.msra.mxu0 0.0
        %515 = vmatprep.subr.mxu0 0.0
        %516 = vmatpush2.msra.mxu0 0.0
        %517 = vmatprep.subr.mxu0 0.0
        %518 = vmatpush2.msra.mxu0 0.0
        %519 = vmatprep.subr.mxu0 0.0
        %520 = vmatpush2.msra.mxu0 0.0
        %521 = vmatprep.subr.mxu0 0.0
        %522 = vmatpush2.msra.mxu0 0.0
        %523 = vmatprep.subr.mxu0 0.0
        %524 = vmatpush2.msra.mxu0 0.0
        %525 = vmatprep.subr.mxu0 0.0
        %526 = vmatpush2.msra.mxu0 0.0
        %527 = vmatprep.subr.mxu0 0.0
        %528 = vmatpush2.msra.mxu0 0.0
        %529 = vmatprep.subr.mxu0 0.0
        %530 = vmatpush2.msra.mxu0 0.0
        %531 = vmatprep.subr.mxu0 0.0
        %532 = vmatpush2.msra.mxu0 0.0
        %533 = vmatprep.subr.mxu0 0.0
        %534 = vmatpush2.msra.mxu0 0.0
        %535 = vmatprep.subr.mxu0 0.0
        %536 = vmatpush2.msra.mxu0 0.0
        %537 = vmatprep.subr.mxu0 0.0
        %538 = vmatpush2.msra.mxu0 0.0
        %539 = vmatprep.mubr.f32.mxu0 0.0
        %540 = vmatmul.mubr.f32.gmra.mxu0 %v426
        %v541 = vpop.f32.mrf.mxu0
        %v542 = vadd.f32 0.0, %v541
        %v543 = vpop.f32.mrf.mxu0
        %544 = vmatprep.mubr.f32.mxu0 0.0
        %545 = vmatmul.mubr.f32.gmra.mxu0 %v427
        %v546 = vpop.f32.mrf.mxu0
        %v547 = vadd.f32 0.0, %v546
        %v548 = vpop.f32.mrf.mxu0
        %549 = vmatprep.mubr.f32.mxu0 0.0
        %550 = vmatmul.mubr.f32.gmra.mxu0 %v428
        %v551 = vpop.f32.mrf.mxu0
        %v552 = vadd.f32 0.0, %v551
        %v553 = vpop.f32.mrf.mxu0
        %554 = vmatprep.mubr.f32.mxu0 0.0
        %555 = vmatmul.mubr.f32.gmra.mxu0 %v429
        %v556 = vpop.f32.mrf.mxu0
        %v557 = vadd.f32 0.0, %v556
        %v558 = vpop.f32.mrf.mxu0
        %559 = vmatprep.mubr.f32.mxu0 0.0
        %560 = vmatmul.mubr.f32.gmra.mxu0 %v430
        %v561 = vpop.f32.mrf.mxu0
        %v562 = vadd.f32 0.0, %v561
        %v563 = vpop.f32.mrf.mxu0
        %564 = vmatprep.mubr.f32.mxu0 0.0
        %565 = vmatmul.mubr.f32.gmra.mxu0 %v431
        %v566 = vpop.f32.mrf.mxu0
        %v567 = vadd.f32 0.0, %v566
        %v568 = vpop.f32.mrf.mxu0
        %569 = vmatprep.mubr.f32.mxu0 0.0
        %570 = vmatmul.mubr.f32.gmra.mxu0 %v432
        %v571 = vpop.f32.mrf.mxu0
        %v572 = vadd.f32 0.0, %v571
        %v573 = vpop.f32.mrf.mxu0
        %574 = vmatprep.mubr.f32.mxu0 0.0
        %575 = vmatmul.mubr.f32.gmra.mxu0 %v433
        %v576 = vpop.f32.mrf.mxu0
        %v577 = vadd.f32 0.0, %v576
        %v578 = vpop.f32.mrf.mxu0
        %579 = vmatprep.mubr.f32.mxu0 0.0
        %580 = vmatmul.mubr.f32.gmra.mxu0 %v434
        %v581 = vpop.f32.mrf.mxu0
        %v582 = vadd.f32 0.0, %v581
        %v583 = vpop.f32.mrf.mxu0
        %584 = vmatprep.mubr.f32.mxu0 0.0
        %585 = vmatmul.mubr.f32.gmra.mxu0 %v435
        %v586 = vpop.f32.mrf.mxu0
        %v587 = vadd.f32 0.0, %v586
        %v588 = vpop.f32.mrf.mxu0
        %589 = vmatprep.mubr.f32.mxu0 0.0
        %590 = vmatmul.mubr.f32.gmra.mxu0 %v436
        %v591 = vpop.f32.mrf.mxu0
        %v592 = vadd.f32 0.0, %v591
        %v593 = vpop.f32.mrf.mxu0
        %594 = vmatprep.mubr.f32.mxu0 0.0
        %595 = vmatmul.mubr.f32.gmra.mxu0 %v437
        %v596 = vpop.f32.mrf.mxu0
        %v597 = vadd.f32 0.0, %v596
        %v598 = vpop.f32.mrf.mxu0
        %599 = vmatprep.mubr.f32.mxu0 0.0
        %600 = vmatmul.mubr.f32.gmra.mxu0 %v438
        %v601 = vpop.f32.mrf.mxu0
        %v602 = vadd.f32 0.0, %v601
        %v603 = vpop.f32.mrf.mxu0
        %604 = vmatprep.mubr.f32.mxu0 0.0
        %605 = vmatmul.mubr.f32.gmra.mxu0 %v439
        %v606 = vpop.f32.mrf.mxu0
        %v607 = vadd.f32 0.0, %v606
        %v608 = vpop.f32.mrf.mxu0
        %609 = vmatprep.mubr.f32.mxu0 0.0
        %610 = vmatmul.mubr.f32.gmra.mxu0 %v440
        %v611 = vpop.f32.mrf.mxu0
        %v612 = vadd.f32 0.0, %v611
        %v613 = vpop.f32.mrf.mxu0
        %614 = vmatprep.mubr.f32.mxu0 0.0
        %615 = vmatmul.mubr.f32.gmra.mxu0 %v441
        %v616 = vpop.f32.mrf.mxu0
        %v617 = vadd.f32 0.0, %v616
        %v618 = vpop.f32.mrf.mxu0
        %619 = vmatprep.mubr.f32.mxu0 0.0
        %620 = vmatmul.mubr.f32.gmra.mxu0 %v442
        %v621 = vpop.f32.mrf.mxu0
        %v622 = vadd.f32 0.0, %v621
        %v623 = vpop.f32.mrf.mxu0
        %624 = vmatprep.mubr.f32.mxu0 0.0
        %625 = vmatmul.mubr.f32.gmra.mxu0 %v443
        %v626 = vpop.f32.mrf.mxu0
        %v627 = vadd.f32 0.0, %v626
        %v628 = vpop.f32.mrf.mxu0
        %629 = vmatprep.mubr.f32.mxu0 0.0
        %630 = vmatmul.mubr.f32.gmra.mxu0 %v444
        %v631 = vpop.f32.mrf.mxu0
        %v632 = vadd.f32 0.0, %v631
        %v633 = vpop.f32.mrf.mxu0
        %634 = vmatprep.mubr.f32.mxu0 0.0
        %635 = vmatmul.mubr.f32.gmra.mxu0 %v445
        %v636 = vpop.f32.mrf.mxu0
        %v637 = vadd.f32 0.0, %v636
        %v638 = vpop.f32.mrf.mxu0
        %639 = vmatprep.mubr.f32.mxu0 0.0
        %640 = vmatmul.mubr.f32.gmra.mxu0 %v446
        %v641 = vpop.f32.mrf.mxu0
        %v642 = vadd.f32 0.0, %v641
        %v643 = vpop.f32.mrf.mxu0
        %644 = vmatprep.mubr.f32.mxu0 0.0
        %645 = vmatmul.mubr.f32.gmra.mxu0 %v447
        %v646 = vpop.f32.mrf.mxu0
        %v647 = vadd.f32 0.0, %v646
        %v648 = vpop.f32.mrf.mxu0
        %649 = vmatprep.mubr.f32.mxu0 0.0
        %650 = vmatmul.mubr.f32.gmra.mxu0 %v448
        %v651 = vpop.f32.mrf.mxu0
        %v652 = vadd.f32 0.0, %v651
        %v653 = vpop.f32.mrf.mxu0
        %654 = vmatprep.mubr.f32.mxu0 0.0
        %655 = vmatmul.mubr.f32.gmra.mxu0 %v449
        %v656 = vpop.f32.mrf.mxu0
        %v657 = vadd.f32 0.0, %v656
        %v658 = vpop.f32.mrf.mxu0
        %659 = vmatprep.mubr.f32.mxu0 0.0
        %660 = vmatmul.mubr.f32.gmra.mxu0 %v450
        %v661 = vpop.f32.mrf.mxu0
        %v662 = vadd.f32 0.0, %v661
        %v663 = vpop.f32.mrf.mxu0
        %664 = vmatprep.mubr.f32.mxu0 0.0
        %665 = vmatmul.mubr.f32.gmra.mxu0 %v451
        %v666 = vpop.f32.mrf.mxu0
        %v667 = vadd.f32 0.0, %v666
        %v668 = vpop.f32.mrf.mxu0
        %669 = vmatprep.mubr.f32.mxu0 0.0
        %670 = vmatmul.mubr.f32.gmra.mxu0 %v452
        %v671 = vpop.f32.mrf.mxu0
        %v672 = vadd.f32 0.0, %v671
        %v673 = vpop.f32.mrf.mxu0
        %674 = vmatprep.mubr.f32.mxu0 0.0
        %675 = vmatmul.mubr.f32.gmra.mxu0 %v453
        %v676 = vpop.f32.mrf.mxu0
        %v677 = vadd.f32 0.0, %v676
        %v678 = vpop.f32.mrf.mxu0
        %679 = vmatprep.mubr.f32.mxu0 0.0
        %680 = vmatmul.mubr.f32.gmra.mxu0 %v454
        %v681 = vpop.f32.mrf.mxu0
        %v682 = vadd.f32 0.0, %v681
        %v683 = vpop.f32.mrf.mxu0
        %684 = vmatprep.mubr.f32.mxu0 0.0
        %685 = vmatmul.mubr.f32.gmra.mxu0 %v455
        %v686 = vpop.f32.mrf.mxu0
        %v687 = vadd.f32 0.0, %v686
        %v688 = vpop.f32.mrf.mxu0
        %689 = vmatprep.mubr.f32.mxu0 0.0
        %690 = vmatmul.mubr.f32.gmra.mxu0 %v456
        %v691 = vpop.f32.mrf.mxu0
        %v692 = vadd.f32 0.0, %v691
        %v693 = vpop.f32.mrf.mxu0
        %694 = vmatprep.mubr.f32.mxu0 0.0
        %695 = vmatmul.mubr.f32.gmra.mxu0 %v457
        %v696 = vpop.f32.mrf.mxu0
        %v697 = vadd.f32 0.0, %v696
        %v698 = vpop.f32.mrf.mxu0
        %699 = vdwg.mxu0
        %700 = vmatprep.subr.mxu0 0.0
        %701 = vmatpush1.msra.mxu0 %v425
        %702 = vmatprep.subr.mxu0 0.0
        %703 = vmatpush1.msra.mxu0 %v424
        %704 = vmatprep.subr.mxu0 0.0
        %705 = vmatpush1.msra.mxu0 %v423
        %706 = vmatprep.subr.mxu0 0.0
        %707 = vmatpush1.msra.mxu0 %v422
        %708 = vmatprep.subr.mxu0 0.0
        %709 = vmatpush1.msra.mxu0 %v421
        %710 = vmatprep.subr.mxu0 0.0
        %711 = vmatpush1.msra.mxu0 %v420
        %712 = vmatprep.subr.mxu0 0.0
        %713 = vmatpush1.msra.mxu0 %v419
        %714 = vmatprep.subr.mxu0 0.0
        %715 = vmatpush1.msra.mxu0 %v418
        %716 = vmatprep.subr.mxu0 0.0
        %717 = vmatpush1.msra.mxu0 %v417
        %718 = vmatprep.subr.mxu0 0.0
        %719 = vmatpush1.msra.mxu0 %v416
        %720 = vmatprep.subr.mxu0 0.0
        %721 = vmatpush1.msra.mxu0 %v415
        %722 = vmatprep.subr.mxu0 0.0
        %723 = vmatpush1.msra.mxu0 %v414
        %724 = vmatprep.subr.mxu0 0.0
        %725 = vmatpush1.msra.mxu0 %v413
        %726 = vmatprep.subr.mxu0 0.0
        %727 = vmatpush1.msra.mxu0 %v412
        %728 = vmatprep.subr.mxu0 0.0
        %729 = vmatpush1.msra.mxu0 %v411
        %730 = vmatprep.subr.mxu0 0.0
        %731 = vmatpush1.msra.mxu0 %v410
        %732 = vmatprep.subr.mxu0 0.0
        %733 = vmatpush2.msra.mxu0 0.0
        %734 = vmatprep.subr.mxu0 0.0
        %735 = vmatpush2.msra.mxu0 0.0
        %736 = vmatprep.subr.mxu0 0.0
        %737 = vmatpush2.msra.mxu0 0.0
        %738 = vmatprep.subr.mxu0 0.0
        %739 = vmatpush2.msra.mxu0 0.0
        %740 = vmatprep.subr.mxu0 0.0
        %741 = vmatpush2.msra.mxu0 0.0
        %742 = vmatprep.subr.mxu0 0.0
        %743 = vmatpush2.msra.mxu0 0.0
        %744 = vmatprep.subr.mxu0 0.0
        %745 = vmatpush2.msra.mxu0 0.0
        %746 = vmatprep.subr.mxu0 0.0
        %747 = vmatpush2.msra.mxu0 0.0
        %748 = vmatprep.subr.mxu0 0.0
        %749 = vmatpush2.msra.mxu0 0.0
        %750 = vmatprep.subr.mxu0 0.0
        %751 = vmatpush2.msra.mxu0 0.0
        %752 = vmatprep.subr.mxu0 0.0
        %753 = vmatpush2.msra.mxu0 0.0
        %754 = vmatprep.subr.mxu0 0.0
        %755 = vmatpush2.msra.mxu0 0.0
        %756 = vmatprep.subr.mxu0 0.0
        %757 = vmatpush2.msra.mxu0 0.0
        %758 = vmatprep.subr.mxu0 0.0
        %759 = vmatpush2.msra.mxu0 0.0
        %760 = vmatprep.subr.mxu0 0.0
        %761 = vmatpush2.msra.mxu0 0.0
        %762 = vmatprep.subr.mxu0 0.0
        %763 = vmatpush2.msra.mxu0 0.0
        %764 = vmatprep.mubr.f32.mxu0 0.0
        %765 = vmatmul.mubr.f32.gmra.mxu0 %v378
        %v766 = vpop.f32.mrf.mxu0
        %v767 = vadd.f32 %v542, %v766
        %v768 = vpop.f32.mrf.mxu0
        %769 = vmatprep.mubr.f32.mxu0 0.0
        %770 = vmatmul.mubr.f32.gmra.mxu0 %v379
        %v771 = vpop.f32.mrf.mxu0
        %v772 = vadd.f32 %v547, %v771
        %v773 = vpop.f32.mrf.mxu0
        %774 = vmatprep.mubr.f32.mxu0 0.0
        %775 = vmatmul.mubr.f32.gmra.mxu0 %v380
        %v776 = vpop.f32.mrf.mxu0
        %v777 = vadd.f32 %v552, %v776
        %v778 = vpop.f32.mrf.mxu0
        %779 = vmatprep.mubr.f32.mxu0 0.0
        %780 = vmatmul.mubr.f32.gmra.mxu0 %v381
        %v781 = vpop.f32.mrf.mxu0
        %v782 = vadd.f32 %v557, %v781
        %v783 = vpop.f32.mrf.mxu0
        %784 = vmatprep.mubr.f32.mxu0 0.0
        %785 = vmatmul.mubr.f32.gmra.mxu0 %v382
        %v786 = vpop.f32.mrf.mxu0
        %v787 = vadd.f32 %v562, %v786
        %v788 = vpop.f32.mrf.mxu0
        %789 = vmatprep.mubr.f32.mxu0 0.0
        %790 = vmatmul.mubr.f32.gmra.mxu0 %v383
        %v791 = vpop.f32.mrf.mxu0
        %v792 = vadd.f32 %v567, %v791
        %v793 = vpop.f32.mrf.mxu0
        %794 = vmatprep.mubr.f32.mxu0 0.0
        %795 = vmatmul.mubr.f32.gmra.mxu0 %v384
        %v796 = vpop.f32.mrf.mxu0
        %v797 = vadd.f32 %v572, %v796
        %v798 = vpop.f32.mrf.mxu0
        %799 = vmatprep.mubr.f32.mxu0 0.0
        %800 = vmatmul.mubr.f32.gmra.mxu0 %v385
        %v801 = vpop.f32.mrf.mxu0
        %v802 = vadd.f32 %v577, %v801
        %v803 = vpop.f32.mrf.mxu0
        %804 = vmatprep.mubr.f32.mxu0 0.0
        %805 = vmatmul.mubr.f32.gmra.mxu0 %v386
        %v806 = vpop.f32.mrf.mxu0
        %v807 = vadd.f32 %v582, %v806
        %v808 = vpop.f32.mrf.mxu0
        %809 = vmatprep.mubr.f32.mxu0 0.0
        %810 = vmatmul.mubr.f32.gmra.mxu0 %v387
        %v811 = vpop.f32.mrf.mxu0
        %v812 = vadd.f32 %v587, %v811
        %v813 = vpop.f32.mrf.mxu0
        %814 = vmatprep.mubr.f32.mxu0 0.0
        %815 = vmatmul.mubr.f32.gmra.mxu0 %v388
        %v816 = vpop.f32.mrf.mxu0
        %v817 = vadd.f32 %v592, %v816
        %v818 = vpop.f32.mrf.mxu0
        %819 = vmatprep.mubr.f32.mxu0 0.0
        %820 = vmatmul.mubr.f32.gmra.mxu0 %v389
        %v821 = vpop.f32.mrf.mxu0
        %v822 = vadd.f32 %v597, %v821
        %v823 = vpop.f32.mrf.mxu0
        %824 = vmatprep.mubr.f32.mxu0 0.0
        %825 = vmatmul.mubr.f32.gmra.mxu0 %v390
        %v826 = vpop.f32.mrf.mxu0
        %v827 = vadd.f32 %v602, %v826
        %v828 = vpop.f32.mrf.mxu0
        %829 = vmatprep.mubr.f32.mxu0 0.0
        %830 = vmatmul.mubr.f32.gmra.mxu0 %v391
        %v831 = vpop.f32.mrf.mxu0
        %v832 = vadd.f32 %v607, %v831
        %v833 = vpop.f32.mrf.mxu0
        %834 = vmatprep.mubr.f32.mxu0 0.0
        %835 = vmatmul.mubr.f32.gmra.mxu0 %v392
        %v836 = vpop.f32.mrf.mxu0
        %v837 = vadd.f32 %v612, %v836
        %v838 = vpop.f32.mrf.mxu0
        %839 = vmatprep.mubr.f32.mxu0 0.0
        %840 = vmatmul.mubr.f32.gmra.mxu0 %v393
        %v841 = vpop.f32.mrf.mxu0
        %v842 = vadd.f32 %v617, %v841
        %v843 = vpop.f32.mrf.mxu0
        %844 = vmatprep.mubr.f32.mxu0 0.0
        %845 = vmatmul.mubr.f32.gmra.mxu0 %v394
        %v846 = vpop.f32.mrf.mxu0
        %v847 = vadd.f32 %v622, %v846
        %v848 = vpop.f32.mrf.mxu0
        %849 = vmatprep.mubr.f32.mxu0 0.0
        %850 = vmatmul.mubr.f32.gmra.mxu0 %v395
        %v851 = vpop.f32.mrf.mxu0
        %v852 = vadd.f32 %v627, %v851
        %v853 = vpop.f32.mrf.mxu0
        %854 = vmatprep.mubr.f32.mxu0 0.0
        %855 = vmatmul.mubr.f32.gmra.mxu0 %v396
        %v856 = vpop.f32.mrf.mxu0
        %v857 = vadd.f32 %v632, %v856
        %v858 = vpop.f32.mrf.mxu0
        %859 = vmatprep.mubr.f32.mxu0 0.0
        %860 = vmatmul.mubr.f32.gmra.mxu0 %v397
        %v861 = vpop.f32.mrf.mxu0
        %v862 = vadd.f32 %v637, %v861
        %v863 = vpop.f32.mrf.mxu0
        %864 = vmatprep.mubr.f32.mxu0 0.0
        %865 = vmatmul.mubr.f32.gmra.mxu0 %v398
        %v866 = vpop.f32.mrf.mxu0
        %v867 = vadd.f32 %v642, %v866
        %v868 = vpop.f32.mrf.mxu0
        %869 = vmatprep.mubr.f32.mxu0 0.0
        %870 = vmatmul.mubr.f32.gmra.mxu0 %v399
        %v871 = vpop.f32.mrf.mxu0
        %v872 = vadd.f32 %v647, %v871
        %v873 = vpop.f32.mrf.mxu0
        %874 = vmatprep.mubr.f32.mxu0 0.0
        %875 = vmatmul.mubr.f32.gmra.mxu0 %v400
        %v876 = vpop.f32.mrf.mxu0
        %v877 = vadd.f32 %v652, %v876
        %v878 = vpop.f32.mrf.mxu0
        %879 = vmatprep.mubr.f32.mxu0 0.0
        %880 = vmatmul.mubr.f32.gmra.mxu0 %v401
        %v881 = vpop.f32.mrf.mxu0
        %v882 = vadd.f32 %v657, %v881
        %v883 = vpop.f32.mrf.mxu0
        %884 = vmatprep.mubr.f32.mxu0 0.0
        %885 = vmatmul.mubr.f32.gmra.mxu0 %v402
        %v886 = vpop.f32.mrf.mxu0
        %v887 = vadd.f32 %v662, %v886
        %v888 = vpop.f32.mrf.mxu0
        %889 = vmatprep.mubr.f32.mxu0 0.0
        %890 = vmatmul.mubr.f32.gmra.mxu0 %v403
        %v891 = vpop.f32.mrf.mxu0
        %v892 = vadd.f32 %v667, %v891
        %v893 = vpop.f32.mrf.mxu0
        %894 = vmatprep.mubr.f32.mxu0 0.0
        %895 = vmatmul.mubr.f32.gmra.mxu0 %v404
        %v896 = vpop.f32.mrf.mxu0
        %v897 = vadd.f32 %v672, %v896
        %v898 = vpop.f32.mrf.mxu0
        %899 = vmatprep.mubr.f32.mxu0 0.0
        %900 = vmatmul.mubr.f32.gmra.mxu0 %v405
        %v901 = vpop.f32.mrf.mxu0
        %v902 = vadd.f32 %v677, %v901
        %v903 = vpop.f32.mrf.mxu0
        %904 = vmatprep.mubr.f32.mxu0 0.0
        %905 = vmatmul.mubr.f32.gmra.mxu0 %v406
        %v906 = vpop.f32.mrf.mxu0
        %v907 = vadd.f32 %v682, %v906
        %v908 = vpop.f32.mrf.mxu0
        %909 = vmatprep.mubr.f32.mxu0 0.0
        %910 = vmatmul.mubr.f32.gmra.mxu0 %v407
        %v911 = vpop.f32.mrf.mxu0
        %v912 = vadd.f32 %v687, %v911
        %v913 = vpop.f32.mrf.mxu0
        %914 = vmatprep.mubr.f32.mxu0 0.0
        %915 = vmatmul.mubr.f32.gmra.mxu0 %v408
        %v916 = vpop.f32.mrf.mxu0
        %v917 = vadd.f32 %v692, %v916
        %v918 = vpop.f32.mrf.mxu0
        %919 = vmatprep.mubr.f32.mxu0 0.0
        %920 = vmatmul.mubr.f32.gmra.mxu0 %v409
        %v921 = vpop.f32.mrf.mxu0
        %v922 = vadd.f32 %v697, %v921
        %v923 = vpop.f32.mrf.mxu0
        %924 = vdwg.mxu0
        %v925 = vld [vmem:[#allocation2 + $0x2] sm:$0xff]
        %v926 = vld [vmem:[#allocation2 + $0xa] sm:$0xff]
        %v927 = vld [vmem:[#allocation2 + $0x1a] sm:$0xff]
        %v928 = vld [vmem:[#allocation2 + $0x22] sm:$0xff]
        %v929 = vld [vmem:[#allocation2 + $0x32] sm:$0xff]
        %v930 = vld [vmem:[#allocation2 + $0x3a] sm:$0xff]
        %v931 = vld [vmem:[#allocation2 + $0x4a] sm:$0xff]
        %v932 = vld [vmem:[#allocation2 + $0x52] sm:$0xff]
        %v933 = vld [vmem:[#allocation2 + $0x62] sm:$0xff]
        %v934 = vld [vmem:[#allocation2 + $0x6a] sm:$0xff]
        %v935 = vld [vmem:[#allocation2 + $0x7a] sm:$0xff]
        %v936 = vld [vmem:[#allocation2 + $0x82] sm:$0xff]
        %v937 = vld [vmem:[#allocation2 + $0x92] sm:$0xff]
        %v938 = vld [vmem:[#allocation2 + $0x9a] sm:$0xff]
        %v939 = vld [vmem:[#allocation2 + $0xaa] sm:$0xff]
        %v940 = vld [vmem:[#allocation2 + $0xb2] sm:$0xff]
        %v941 = vld [vmem:[#allocation2 + $0xc2] sm:$0xff]
        %v942 = vld [vmem:[#allocation2 + $0xca] sm:$0xff]
        %v943 = vld [vmem:[#allocation2 + $0xda] sm:$0xff]
        %v944 = vld [vmem:[#allocation2 + $0xe2] sm:$0xff]
        %v945 = vld [vmem:[#allocation2 + $0xf2] sm:$0xff]
        %v946 = vld [vmem:[#allocation2 + $0xfa] sm:$0xff]
        %v947 = vld [vmem:[#allocation2 + $0x10a] sm:$0xff]
        %v948 = vld [vmem:[#allocation2 + $0x112] sm:$0xff]
        %v949 = vld [vmem:[#allocation2 + $0x122] sm:$0xff]
        %v950 = vld [vmem:[#allocation2 + $0x12a] sm:$0xff]
        %v951 = vld [vmem:[#allocation2 + $0x13a] sm:$0xff]
        %v952 = vld [vmem:[#allocation2 + $0x142] sm:$0xff]
        %v953 = vld [vmem:[#allocation2 + $0x152] sm:$0xff]
        %v954 = vld [vmem:[#allocation2 + $0x15a] sm:$0xff]
        %v955 = vld [vmem:[#allocation2 + $0x16a] sm:$0xff]
        %v956 = vld [vmem:[#allocation2 + $0x172] sm:$0xff]
        %s957 = scalar_lea.vmem [#allocation6], 256
        %v958 = vld [vmem:[%s957] sm:$0xff]
        %v959 = vld [vmem:[%s957 + $0x8] sm:$0xff]
        %v960 = vld [vmem:[%s957 + $0x10] sm:$0xff]
        %v961 = vld [vmem:[%s957 + $0x18] sm:$0xff]
        %v962 = vld [vmem:[%s957 + $0x20] sm:$0xff]
        %v963 = vld [vmem:[%s957 + $0x28] sm:$0xff]
        %v964 = vld [vmem:[%s957 + $0x30] sm:$0xff]
        %v965 = vld [vmem:[%s957 + $0x38] sm:$0xff]
        %v966 = vld [vmem:[%s957 + $0x40] sm:$0xff]
        %v967 = vld [vmem:[%s957 + $0x48] sm:$0xff]
        %v968 = vld [vmem:[%s957 + $0x50] sm:$0xff]
        %v969 = vld [vmem:[%s957 + $0x58] sm:$0xff]
        %v970 = vld [vmem:[%s957 + $0x60] sm:$0xff]
        %v971 = vld [vmem:[%s957 + $0x68] sm:$0xff]
        %v972 = vld [vmem:[%s957 + $0x70] sm:$0xff]
        %v973 = vld [vmem:[%s957 + $0x78] sm:$0xff]
        %974 = vmatprep.subr.mxu0 0.0
        %975 = vmatpush1.msra.mxu0 %v973
        %976 = vmatprep.subr.mxu0 0.0
        %977 = vmatpush1.msra.mxu0 %v972
        %978 = vmatprep.subr.mxu0 0.0
        %979 = vmatpush1.msra.mxu0 %v971
        %980 = vmatprep.subr.mxu0 0.0
        %981 = vmatpush1.msra.mxu0 %v970
        %982 = vmatprep.subr.mxu0 0.0
        %983 = vmatpush1.msra.mxu0 %v969
        %984 = vmatprep.subr.mxu0 0.0
        %985 = vmatpush1.msra.mxu0 %v968
        %986 = vmatprep.subr.mxu0 0.0
        %987 = vmatpush1.msra.mxu0 %v967
        %988 = vmatprep.subr.mxu0 0.0
        %989 = vmatpush1.msra.mxu0 %v966
        %990 = vmatprep.subr.mxu0 0.0
        %991 = vmatpush1.msra.mxu0 %v965
        %992 = vmatprep.subr.mxu0 0.0
        %993 = vmatpush1.msra.mxu0 %v964
        %994 = vmatprep.subr.mxu0 0.0
        %995 = vmatpush1.msra.mxu0 %v963
        %996 = vmatprep.subr.mxu0 0.0
        %997 = vmatpush1.msra.mxu0 %v962
        %998 = vmatprep.subr.mxu0 0.0
        %999 = vmatpush1.msra.mxu0 %v961
        %1000 = vmatprep.subr.mxu0 0.0
        %1001 = vmatpush1.msra.mxu0 %v960
        %1002 = vmatprep.subr.mxu0 0.0
        %1003 = vmatpush1.msra.mxu0 %v959
        %1004 = vmatprep.subr.mxu0 0.0
        %1005 = vmatpush1.msra.mxu0 %v958
        %1006 = vmatprep.subr.mxu0 0.0
        %1007 = vmatpush2.msra.mxu0 0.0
        %1008 = vmatprep.subr.mxu0 0.0
        %1009 = vmatpush2.msra.mxu0 0.0
        %1010 = vmatprep.subr.mxu0 0.0
        %1011 = vmatpush2.msra.mxu0 0.0
        %1012 = vmatprep.subr.mxu0 0.0
        %1013 = vmatpush2.msra.mxu0 0.0
        %1014 = vmatprep.subr.mxu0 0.0
        %1015 = vmatpush2.msra.mxu0 0.0
        %1016 = vmatprep.subr.mxu0 0.0
        %1017 = vmatpush2.msra.mxu0 0.0
        %1018 = vmatprep.subr.mxu0 0.0
        %1019 = vmatpush2.msra.mxu0 0.0
        %1020 = vmatprep.subr.mxu0 0.0
        %1021 = vmatpush2.msra.mxu0 0.0
        %1022 = vmatprep.subr.mxu0 0.0
        %1023 = vmatpush2.msra.mxu0 0.0
        %1024 = vmatprep.subr.mxu0 0.0
        %1025 = vmatpush2.msra.mxu0 0.0
        %1026 = vmatprep.subr.mxu0 0.0
        %1027 = vmatpush2.msra.mxu0 0.0
        %1028 = vmatprep.subr.mxu0 0.0
        %1029 = vmatpush2.msra.mxu0 0.0
        %1030 = vmatprep.subr.mxu0 0.0
        %1031 = vmatpush2.msra.mxu0 0.0
        %1032 = vmatprep.subr.mxu0 0.0
        %1033 = vmatpush2.msra.mxu0 0.0
        %1034 = vmatprep.subr.mxu0 0.0
        %1035 = vmatpush2.msra.mxu0 0.0
        %1036 = vmatprep.subr.mxu0 0.0
        %1037 = vmatpush2.msra.mxu0 0.0
        %1038 = vmatprep.mubr.f32.mxu0 0.0
        %1039 = vmatmul.mubr.f32.gmra.mxu0 %v925
        %v1040 = vpop.f32.mrf.mxu0
        %v1041 = vadd.f32 0.0, %v1040
        %v1042 = vpop.f32.mrf.mxu0
        %1043 = vmatprep.mubr.f32.mxu0 0.0
        %1044 = vmatmul.mubr.f32.gmra.mxu0 %v926
        %v1045 = vpop.f32.mrf.mxu0
        %v1046 = vadd.f32 0.0, %v1045
        %v1047 = vpop.f32.mrf.mxu0
        %1048 = vmatprep.mubr.f32.mxu0 0.0
        %1049 = vmatmul.mubr.f32.gmra.mxu0 %v927
        %v1050 = vpop.f32.mrf.mxu0
        %v1051 = vadd.f32 0.0, %v1050
        %v1052 = vpop.f32.mrf.mxu0
        %1053 = vmatprep.mubr.f32.mxu0 0.0
        %1054 = vmatmul.mubr.f32.gmra.mxu0 %v928
        %v1055 = vpop.f32.mrf.mxu0
        %v1056 = vadd.f32 0.0, %v1055
        %v1057 = vpop.f32.mrf.mxu0
        %1058 = vmatprep.mubr.f32.mxu0 0.0
        %1059 = vmatmul.mubr.f32.gmra.mxu0 %v929
        %v1060 = vpop.f32.mrf.mxu0
        %v1061 = vadd.f32 0.0, %v1060
        %v1062 = vpop.f32.mrf.mxu0
        %1063 = vmatprep.mubr.f32.mxu0 0.0
        %1064 = vmatmul.mubr.f32.gmra.mxu0 %v930
        %v1065 = vpop.f32.mrf.mxu0
        %v1066 = vadd.f32 0.0, %v1065
        %v1067 = vpop.f32.mrf.mxu0
        %1068 = vmatprep.mubr.f32.mxu0 0.0
        %1069 = vmatmul.mubr.f32.gmra.mxu0 %v931
        %v1070 = vpop.f32.mrf.mxu0
        %v1071 = vadd.f32 0.0, %v1070
        %v1072 = vpop.f32.mrf.mxu0
        %1073 = vmatprep.mubr.f32.mxu0 0.0
        %1074 = vmatmul.mubr.f32.gmra.mxu0 %v932
        %v1075 = vpop.f32.mrf.mxu0
        %v1076 = vadd.f32 0.0, %v1075
        %v1077 = vpop.f32.mrf.mxu0
        %1078 = vmatprep.mubr.f32.mxu0 0.0
        %1079 = vmatmul.mubr.f32.gmra.mxu0 %v933
        %v1080 = vpop.f32.mrf.mxu0
        %v1081 = vadd.f32 0.0, %v1080
        %v1082 = vpop.f32.mrf.mxu0
        %1083 = vmatprep.mubr.f32.mxu0 0.0
        %1084 = vmatmul.mubr.f32.gmra.mxu0 %v934
        %v1085 = vpop.f32.mrf.mxu0
        %v1086 = vadd.f32 0.0, %v1085
        %v1087 = vpop.f32.mrf.mxu0
        %1088 = vmatprep.mubr.f32.mxu0 0.0
        %1089 = vmatmul.mubr.f32.gmra.mxu0 %v935
        %v1090 = vpop.f32.mrf.mxu0
        %v1091 = vadd.f32 0.0, %v1090
        %v1092 = vpop.f32.mrf.mxu0
        %1093 = vmatprep.mubr.f32.mxu0 0.0
        %1094 = vmatmul.mubr.f32.gmra.mxu0 %v936
        %v1095 = vpop.f32.mrf.mxu0
        %v1096 = vadd.f32 0.0, %v1095
        %v1097 = vpop.f32.mrf.mxu0
        %1098 = vmatprep.mubr.f32.mxu0 0.0
        %1099 = vmatmul.mubr.f32.gmra.mxu0 %v937
        %v1100 = vpop.f32.mrf.mxu0
        %v1101 = vadd.f32 0.0, %v1100
        %v1102 = vpop.f32.mrf.mxu0
        %1103 = vmatprep.mubr.f32.mxu0 0.0
        %1104 = vmatmul.mubr.f32.gmra.mxu0 %v938
        %v1105 = vpop.f32.mrf.mxu0
        %v1106 = vadd.f32 0.0, %v1105
        %v1107 = vpop.f32.mrf.mxu0
        %1108 = vmatprep.mubr.f32.mxu0 0.0
        %1109 = vmatmul.mubr.f32.gmra.mxu0 %v939
        %v1110 = vpop.f32.mrf.mxu0
        %v1111 = vadd.f32 0.0, %v1110
        %v1112 = vpop.f32.mrf.mxu0
        %1113 = vmatprep.mubr.f32.mxu0 0.0
        %1114 = vmatmul.mubr.f32.gmra.mxu0 %v940
        %v1115 = vpop.f32.mrf.mxu0
        %v1116 = vadd.f32 0.0, %v1115
        %v1117 = vpop.f32.mrf.mxu0
        %1118 = vmatprep.mubr.f32.mxu0 0.0
        %1119 = vmatmul.mubr.f32.gmra.mxu0 %v941
        %v1120 = vpop.f32.mrf.mxu0
        %v1121 = vadd.f32 0.0, %v1120
        %v1122 = vpop.f32.mrf.mxu0
        %1123 = vmatprep.mubr.f32.mxu0 0.0
        %1124 = vmatmul.mubr.f32.gmra.mxu0 %v942
        %v1125 = vpop.f32.mrf.mxu0
        %v1126 = vadd.f32 0.0, %v1125
        %v1127 = vpop.f32.mrf.mxu0
        %1128 = vmatprep.mubr.f32.mxu0 0.0
        %1129 = vmatmul.mubr.f32.gmra.mxu0 %v943
        %v1130 = vpop.f32.mrf.mxu0
        %v1131 = vadd.f32 0.0, %v1130
        %v1132 = vpop.f32.mrf.mxu0
        %1133 = vmatprep.mubr.f32.mxu0 0.0
        %1134 = vmatmul.mubr.f32.gmra.mxu0 %v944
        %v1135 = vpop.f32.mrf.mxu0
        %v1136 = vadd.f32 0.0, %v1135
        %v1137 = vpop.f32.mrf.mxu0
        %1138 = vmatprep.mubr.f32.mxu0 0.0
        %1139 = vmatmul.mubr.f32.gmra.mxu0 %v945
        %v1140 = vpop.f32.mrf.mxu0
        %v1141 = vadd.f32 0.0, %v1140
        %v1142 = vpop.f32.mrf.mxu0
        %1143 = vmatprep.mubr.f32.mxu0 0.0
        %1144 = vmatmul.mubr.f32.gmra.mxu0 %v946
        %v1145 = vpop.f32.mrf.mxu0
        %v1146 = vadd.f32 0.0, %v1145
        %v1147 = vpop.f32.mrf.mxu0
        %1148 = vmatprep.mubr.f32.mxu0 0.0
        %1149 = vmatmul.mubr.f32.gmra.mxu0 %v947
        %v1150 = vpop.f32.mrf.mxu0
        %v1151 = vadd.f32 0.0, %v1150
        %v1152 = vpop.f32.mrf.mxu0
        %1153 = vmatprep.mubr.f32.mxu0 0.0
        %1154 = vmatmul.mubr.f32.gmra.mxu0 %v948
        %v1155 = vpop.f32.mrf.mxu0
        %v1156 = vadd.f32 0.0, %v1155
        %v1157 = vpop.f32.mrf.mxu0
        %1158 = vmatprep.mubr.f32.mxu0 0.0
        %1159 = vmatmul.mubr.f32.gmra.mxu0 %v949
        %v1160 = vpop.f32.mrf.mxu0
        %v1161 = vadd.f32 0.0, %v1160
        %v1162 = vpop.f32.mrf.mxu0
        %1163 = vmatprep.mubr.f32.mxu0 0.0
        %1164 = vmatmul.mubr.f32.gmra.mxu0 %v950
        %v1165 = vpop.f32.mrf.mxu0
        %v1166 = vadd.f32 0.0, %v1165
        %v1167 = vpop.f32.mrf.mxu0
        %1168 = vmatprep.mubr.f32.mxu0 0.0
        %1169 = vmatmul.mubr.f32.gmra.mxu0 %v951
        %v1170 = vpop.f32.mrf.mxu0
        %v1171 = vadd.f32 0.0, %v1170
        %v1172 = vpop.f32.mrf.mxu0
        %1173 = vmatprep.mubr.f32.mxu0 0.0
        %1174 = vmatmul.mubr.f32.gmra.mxu0 %v952
        %v1175 = vpop.f32.mrf.mxu0
        %v1176 = vadd.f32 0.0, %v1175
        %v1177 = vpop.f32.mrf.mxu0
        %1178 = vmatprep.mubr.f32.mxu0 0.0
        %1179 = vmatmul.mubr.f32.gmra.mxu0 %v953
        %v1180 = vpop.f32.mrf.mxu0
        %v1181 = vadd.f32 0.0, %v1180
        %v1182 = vpop.f32.mrf.mxu0
        %1183 = vmatprep.mubr.f32.mxu0 0.0
        %1184 = vmatmul.mubr.f32.gmra.mxu0 %v954
        %v1185 = vpop.f32.mrf.mxu0
        %v1186 = vadd.f32 0.0, %v1185
        %v1187 = vpop.f32.mrf.mxu0
        %1188 = vmatprep.mubr.f32.mxu0 0.0
        %1189 = vmatmul.mubr.f32.gmra.mxu0 %v955
        %v1190 = vpop.f32.mrf.mxu0
        %v1191 = vadd.f32 0.0, %v1190
        %v1192 = vpop.f32.mrf.mxu0
        %1193 = vmatprep.mubr.f32.mxu0 0.0
        %1194 = vmatmul.mubr.f32.gmra.mxu0 %v956
        %v1195 = vpop.f32.mrf.mxu0
        %v1196 = vadd.f32 0.0, %v1195
        %v1197 = vpop.f32.mrf.mxu0
        %1198 = vdwg.mxu0
        %v1199 = vadd.f32 %v767, %v1041
        %v1200 = vadd.f32 %v772, %v1046
        %v1201 = vadd.f32 %v777, %v1051
        %v1202 = vadd.f32 %v782, %v1056
        %v1203 = vadd.f32 %v787, %v1061
        %v1204 = vadd.f32 %v792, %v1066
        %v1205 = vadd.f32 %v797, %v1071
        %v1206 = vadd.f32 %v802, %v1076
        %v1207 = vadd.f32 %v807, %v1081
        %v1208 = vadd.f32 %v812, %v1086
        %v1209 = vadd.f32 %v817, %v1091
        %v1210 = vadd.f32 %v822, %v1096
        %v1211 = vadd.f32 %v827, %v1101
        %v1212 = vadd.f32 %v832, %v1106
        %v1213 = vadd.f32 %v837, %v1111
        %v1214 = vadd.f32 %v842, %v1116
        %v1215 = vadd.f32 %v847, %v1121
        %v1216 = vadd.f32 %v852, %v1126
        %v1217 = vadd.f32 %v857, %v1131
        %v1218 = vadd.f32 %v862, %v1136
        %v1219 = vadd.f32 %v867, %v1141
        %v1220 = vadd.f32 %v872, %v1146
        %v1221 = vadd.f32 %v877, %v1151
        %v1222 = vadd.f32 %v882, %v1156
        %v1223 = vadd.f32 %v887, %v1161
        %v1224 = vadd.f32 %v892, %v1166
        %v1225 = vadd.f32 %v897, %v1171
        %v1226 = vadd.f32 %v902, %v1176
        %v1227 = vadd.f32 %v907, %v1181
        %v1228 = vadd.f32 %v912, %v1186
        %v1229 = vadd.f32 %v917, %v1191
        %v1230 = vadd.f32 %v922, %v1196
        %s1231 = scalar_lea.vmem [#allocation2], 24
        %v1232 = vld [vmem:[%s1231] sm:$0xff]
        %v1233 = vld [vmem:[%s1231 + $0x8] sm:$0xff]
        %v1234 = vld [vmem:[%s1231 + $0x18] sm:$0xff]
        %v1235 = vld [vmem:[%s1231 + $0x20] sm:$0xff]
        %v1236 = vld [vmem:[%s1231 + $0x30] sm:$0xff]
        %v1237 = vld [vmem:[%s1231 + $0x38] sm:$0xff]
        %v1238 = vld [vmem:[%s1231 + $0x48] sm:$0xff]
        %v1239 = vld [vmem:[%s1231 + $0x50] sm:$0xff]
        %v1240 = vld [vmem:[%s1231 + $0x60] sm:$0xff]
        %v1241 = vld [vmem:[%s1231 + $0x68] sm:$0xff]
        %v1242 = vld [vmem:[%s1231 + $0x78] sm:$0xff]
        %v1243 = vld [vmem:[%s1231 + $0x80] sm:$0xff]
        %v1244 = vld [vmem:[%s1231 + $0x90] sm:$0xff]
        %v1245 = vld [vmem:[%s1231 + $0x98] sm:$0xff]
        %v1246 = vld [vmem:[%s1231 + $0xa8] sm:$0xff]
        %v1247 = vld [vmem:[%s1231 + $0xb0] sm:$0xff]
        %v1248 = vld [vmem:[%s1231 + $0xc0] sm:$0xff]
        %v1249 = vld [vmem:[%s1231 + $0xc8] sm:$0xff]
        %v1250 = vld [vmem:[%s1231 + $0xd8] sm:$0xff]
        %v1251 = vld [vmem:[%s1231 + $0xe0] sm:$0xff]
        %v1252 = vld [vmem:[%s1231 + $0xf0] sm:$0xff]
        %v1253 = vld [vmem:[%s1231 + $0xf8] sm:$0xff]
        %v1254 = vld [vmem:[%s1231 + $0x108] sm:$0xff]
        %v1255 = vld [vmem:[%s1231 + $0x110] sm:$0xff]
        %v1256 = vld [vmem:[%s1231 + $0x120] sm:$0xff]
        %v1257 = vld [vmem:[%s1231 + $0x128] sm:$0xff]
        %v1258 = vld [vmem:[%s1231 + $0x138] sm:$0xff]
        %v1259 = vld [vmem:[%s1231 + $0x140] sm:$0xff]
        %v1260 = vld [vmem:[%s1231 + $0x150] sm:$0xff]
        %v1261 = vld [vmem:[%s1231 + $0x158] sm:$0xff]
        %v1262 = vld [vmem:[%s1231 + $0x168] sm:$0xff]
        %v1263 = vld [vmem:[%s1231 + $0x170] sm:$0xff]
        %s1264 = scalar_lea.vmem [#allocation6], 384
        %v1265 = vld [vmem:[%s1264] sm:$0xff]
        %v1266 = vld [vmem:[%s1264 + $0x8] sm:$0xff]
        %v1267 = vld [vmem:[%s1264 + $0x10] sm:$0xff]
        %v1268 = vld [vmem:[%s1264 + $0x18] sm:$0xff]
        %v1269 = vld [vmem:[%s1264 + $0x20] sm:$0xff]
        %v1270 = vld [vmem:[%s1264 + $0x28] sm:$0xff]
        %v1271 = vld [vmem:[%s1264 + $0x30] sm:$0xff]
        %v1272 = vld [vmem:[%s1264 + $0x38] sm:$0xff]
        %v1273 = vld [vmem:[%s1264 + $0x40] sm:$0xff]
        %v1274 = vld [vmem:[%s1264 + $0x48] sm:$0xff]
        %v1275 = vld [vmem:[%s1264 + $0x50] sm:$0xff]
        %v1276 = vld [vmem:[%s1264 + $0x58] sm:$0xff]
        %v1277 = vld [vmem:[%s1264 + $0x60] sm:$0xff]
        %v1278 = vld [vmem:[%s1264 + $0x68] sm:$0xff]
        %v1279 = vld [vmem:[%s1264 + $0x70] sm:$0xff]
        %v1280 = vld [vmem:[%s1264 + $0x78] sm:$0xff]
        %1281 = vmatprep.subr.mxu0 0.0
        %1282 = vmatpush1.msra.mxu0 %v1280
        %1283 = vmatprep.subr.mxu0 0.0
        %1284 = vmatpush1.msra.mxu0 %v1279
        %1285 = vmatprep.subr.mxu0 0.0
        %1286 = vmatpush1.msra.mxu0 %v1278
        %1287 = vmatprep.subr.mxu0 0.0
        %1288 = vmatpush1.msra.mxu0 %v1277
        %1289 = vmatprep.subr.mxu0 0.0
        %1290 = vmatpush1.msra.mxu0 %v1276
        %1291 = vmatprep.subr.mxu0 0.0
        %1292 = vmatpush1.msra.mxu0 %v1275
        %1293 = vmatprep.subr.mxu0 0.0
        %1294 = vmatpush1.msra.mxu0 %v1274
        %1295 = vmatprep.subr.mxu0 0.0
        %1296 = vmatpush1.msra.mxu0 %v1273
        %1297 = vmatprep.subr.mxu0 0.0
        %1298 = vmatpush1.msra.mxu0 %v1272
        %1299 = vmatprep.subr.mxu0 0.0
        %1300 = vmatpush1.msra.mxu0 %v1271
        %1301 = vmatprep.subr.mxu0 0.0
        %1302 = vmatpush1.msra.mxu0 %v1270
        %1303 = vmatprep.subr.mxu0 0.0
        %1304 = vmatpush1.msra.mxu0 %v1269
        %1305 = vmatprep.subr.mxu0 0.0
        %1306 = vmatpush1.msra.mxu0 %v1268
        %1307 = vmatprep.subr.mxu0 0.0
        %1308 = vmatpush1.msra.mxu0 %v1267
        %1309 = vmatprep.subr.mxu0 0.0
        %1310 = vmatpush1.msra.mxu0 %v1266
        %1311 = vmatprep.subr.mxu0 0.0
        %1312 = vmatpush1.msra.mxu0 %v1265
        %1313 = vmatprep.subr.mxu0 0.0
        %1314 = vmatpush2.msra.mxu0 0.0
        %1315 = vmatprep.subr.mxu0 0.0
        %1316 = vmatpush2.msra.mxu0 0.0
        %1317 = vmatprep.subr.mxu0 0.0
        %1318 = vmatpush2.msra.mxu0 0.0
        %1319 = vmatprep.subr.mxu0 0.0
        %1320 = vmatpush2.msra.mxu0 0.0
        %1321 = vmatprep.subr.mxu0 0.0
        %1322 = vmatpush2.msra.mxu0 0.0
        %1323 = vmatprep.subr.mxu0 0.0
        %1324 = vmatpush2.msra.mxu0 0.0
        %1325 = vmatprep.subr.mxu0 0.0
        %1326 = vmatpush2.msra.mxu0 0.0
        %1327 = vmatprep.subr.mxu0 0.0
        %1328 = vmatpush2.msra.mxu0 0.0
        %1329 = vmatprep.subr.mxu0 0.0
        %1330 = vmatpush2.msra.mxu0 0.0
        %1331 = vmatprep.subr.mxu0 0.0
        %1332 = vmatpush2.msra.mxu0 0.0
        %1333 = vmatprep.subr.mxu0 0.0
        %1334 = vmatpush2.msra.mxu0 0.0
        %1335 = vmatprep.subr.mxu0 0.0
        %1336 = vmatpush2.msra.mxu0 0.0
        %1337 = vmatprep.subr.mxu0 0.0
        %1338 = vmatpush2.msra.mxu0 0.0
        %1339 = vmatprep.subr.mxu0 0.0
        %1340 = vmatpush2.msra.mxu0 0.0
        %1341 = vmatprep.subr.mxu0 0.0
        %1342 = vmatpush2.msra.mxu0 0.0
        %1343 = vmatprep.subr.mxu0 0.0
        %1344 = vmatpush2.msra.mxu0 0.0
        %1345 = vmatprep.mubr.f32.mxu0 0.0
        %1346 = vmatmul.mubr.f32.gmra.mxu0 %v1232
        %v1347 = vpop.f32.mrf.mxu0
        %v1348 = vadd.f32 0.0, %v1347
        %v1349 = vpop.f32.mrf.mxu0
        %1350 = vmatprep.mubr.f32.mxu0 0.0
        %1351 = vmatmul.mubr.f32.gmra.mxu0 %v1233
        %v1352 = vpop.f32.mrf.mxu0
        %v1353 = vadd.f32 0.0, %v1352
        %v1354 = vpop.f32.mrf.mxu0
        %1355 = vmatprep.mubr.f32.mxu0 0.0
        %1356 = vmatmul.mubr.f32.gmra.mxu0 %v1234
        %v1357 = vpop.f32.mrf.mxu0
        %v1358 = vadd.f32 0.0, %v1357
        %v1359 = vpop.f32.mrf.mxu0
        %1360 = vmatprep.mubr.f32.mxu0 0.0
        %1361 = vmatmul.mubr.f32.gmra.mxu0 %v1235
        %v1362 = vpop.f32.mrf.mxu0
        %v1363 = vadd.f32 0.0, %v1362
        %v1364 = vpop.f32.mrf.mxu0
        %1365 = vmatprep.mubr.f32.mxu0 0.0
        %1366 = vmatmul.mubr.f32.gmra.mxu0 %v1236
        %v1367 = vpop.f32.mrf.mxu0
        %v1368 = vadd.f32 0.0, %v1367
        %v1369 = vpop.f32.mrf.mxu0
        %1370 = vmatprep.mubr.f32.mxu0 0.0
        %1371 = vmatmul.mubr.f32.gmra.mxu0 %v1237
        %v1372 = vpop.f32.mrf.mxu0
        %v1373 = vadd.f32 0.0, %v1372
        %v1374 = vpop.f32.mrf.mxu0
        %1375 = vmatprep.mubr.f32.mxu0 0.0
        %1376 = vmatmul.mubr.f32.gmra.mxu0 %v1238
        %v1377 = vpop.f32.mrf.mxu0
        %v1378 = vadd.f32 0.0, %v1377
        %v1379 = vpop.f32.mrf.mxu0
        %1380 = vmatprep.mubr.f32.mxu0 0.0
        %1381 = vmatmul.mubr.f32.gmra.mxu0 %v1239
        %v1382 = vpop.f32.mrf.mxu0
        %v1383 = vadd.f32 0.0, %v1382
        %v1384 = vpop.f32.mrf.mxu0
        %1385 = vmatprep.mubr.f32.mxu0 0.0
        %1386 = vmatmul.mubr.f32.gmra.mxu0 %v1240
        %v1387 = vpop.f32.mrf.mxu0
        %v1388 = vadd.f32 0.0, %v1387
        %v1389 = vpop.f32.mrf.mxu0
        %1390 = vmatprep.mubr.f32.mxu0 0.0
        %1391 = vmatmul.mubr.f32.gmra.mxu0 %v1241
        %v1392 = vpop.f32.mrf.mxu0
        %v1393 = vadd.f32 0.0, %v1392
        %v1394 = vpop.f32.mrf.mxu0
        %1395 = vmatprep.mubr.f32.mxu0 0.0
        %1396 = vmatmul.mubr.f32.gmra.mxu0 %v1242
        %v1397 = vpop.f32.mrf.mxu0
        %v1398 = vadd.f32 0.0, %v1397
        %v1399 = vpop.f32.mrf.mxu0
        %1400 = vmatprep.mubr.f32.mxu0 0.0
        %1401 = vmatmul.mubr.f32.gmra.mxu0 %v1243
        %v1402 = vpop.f32.mrf.mxu0
        %v1403 = vadd.f32 0.0, %v1402
        %v1404 = vpop.f32.mrf.mxu0
        %1405 = vmatprep.mubr.f32.mxu0 0.0
        %1406 = vmatmul.mubr.f32.gmra.mxu0 %v1244
        %v1407 = vpop.f32.mrf.mxu0
        %v1408 = vadd.f32 0.0, %v1407
        %v1409 = vpop.f32.mrf.mxu0
        %1410 = vmatprep.mubr.f32.mxu0 0.0
        %1411 = vmatmul.mubr.f32.gmra.mxu0 %v1245
        %v1412 = vpop.f32.mrf.mxu0
        %v1413 = vadd.f32 0.0, %v1412
        %v1414 = vpop.f32.mrf.mxu0
        %1415 = vmatprep.mubr.f32.mxu0 0.0
        %1416 = vmatmul.mubr.f32.gmra.mxu0 %v1246
        %v1417 = vpop.f32.mrf.mxu0
        %v1418 = vadd.f32 0.0, %v1417
        %v1419 = vpop.f32.mrf.mxu0
        %1420 = vmatprep.mubr.f32.mxu0 0.0
        %1421 = vmatmul.mubr.f32.gmra.mxu0 %v1247
        %v1422 = vpop.f32.mrf.mxu0
        %v1423 = vadd.f32 0.0, %v1422
        %v1424 = vpop.f32.mrf.mxu0
        %1425 = vmatprep.mubr.f32.mxu0 0.0
        %1426 = vmatmul.mubr.f32.gmra.mxu0 %v1248
        %v1427 = vpop.f32.mrf.mxu0
        %v1428 = vadd.f32 0.0, %v1427
        %v1429 = vpop.f32.mrf.mxu0
        %1430 = vmatprep.mubr.f32.mxu0 0.0
        %1431 = vmatmul.mubr.f32.gmra.mxu0 %v1249
        %v1432 = vpop.f32.mrf.mxu0
        %v1433 = vadd.f32 0.0, %v1432
        %v1434 = vpop.f32.mrf.mxu0
        %1435 = vmatprep.mubr.f32.mxu0 0.0
        %1436 = vmatmul.mubr.f32.gmra.mxu0 %v1250
        %v1437 = vpop.f32.mrf.mxu0
        %v1438 = vadd.f32 0.0, %v1437
        %v1439 = vpop.f32.mrf.mxu0
        %1440 = vmatprep.mubr.f32.mxu0 0.0
        %1441 = vmatmul.mubr.f32.gmra.mxu0 %v1251
        %v1442 = vpop.f32.mrf.mxu0
        %v1443 = vadd.f32 0.0, %v1442
        %v1444 = vpop.f32.mrf.mxu0
        %1445 = vmatprep.mubr.f32.mxu0 0.0
        %1446 = vmatmul.mubr.f32.gmra.mxu0 %v1252
        %v1447 = vpop.f32.mrf.mxu0
        %v1448 = vadd.f32 0.0, %v1447
        %v1449 = vpop.f32.mrf.mxu0
        %1450 = vmatprep.mubr.f32.mxu0 0.0
        %1451 = vmatmul.mubr.f32.gmra.mxu0 %v1253
        %v1452 = vpop.f32.mrf.mxu0
        %v1453 = vadd.f32 0.0, %v1452
        %v1454 = vpop.f32.mrf.mxu0
        %1455 = vmatprep.mubr.f32.mxu0 0.0
        %1456 = vmatmul.mubr.f32.gmra.mxu0 %v1254
        %v1457 = vpop.f32.mrf.mxu0
        %v1458 = vadd.f32 0.0, %v1457
        %v1459 = vpop.f32.mrf.mxu0
        %1460 = vmatprep.mubr.f32.mxu0 0.0
        %1461 = vmatmul.mubr.f32.gmra.mxu0 %v1255
        %v1462 = vpop.f32.mrf.mxu0
        %v1463 = vadd.f32 0.0, %v1462
        %v1464 = vpop.f32.mrf.mxu0
        %1465 = vmatprep.mubr.f32.mxu0 0.0
        %1466 = vmatmul.mubr.f32.gmra.mxu0 %v1256
        %v1467 = vpop.f32.mrf.mxu0
        %v1468 = vadd.f32 0.0, %v1467
        %v1469 = vpop.f32.mrf.mxu0
        %1470 = vmatprep.mubr.f32.mxu0 0.0
        %1471 = vmatmul.mubr.f32.gmra.mxu0 %v1257
        %v1472 = vpop.f32.mrf.mxu0
        %v1473 = vadd.f32 0.0, %v1472
        %v1474 = vpop.f32.mrf.mxu0
        %1475 = vmatprep.mubr.f32.mxu0 0.0
        %1476 = vmatmul.mubr.f32.gmra.mxu0 %v1258
        %v1477 = vpop.f32.mrf.mxu0
        %v1478 = vadd.f32 0.0, %v1477
        %v1479 = vpop.f32.mrf.mxu0
        %1480 = vmatprep.mubr.f32.mxu0 0.0
        %1481 = vmatmul.mubr.f32.gmra.mxu0 %v1259
        %v1482 = vpop.f32.mrf.mxu0
        %v1483 = vadd.f32 0.0, %v1482
        %v1484 = vpop.f32.mrf.mxu0
        %1485 = vmatprep.mubr.f32.mxu0 0.0
        %1486 = vmatmul.mubr.f32.gmra.mxu0 %v1260
        %v1487 = vpop.f32.mrf.mxu0
        %v1488 = vadd.f32 0.0, %v1487
        %v1489 = vpop.f32.mrf.mxu0
        %1490 = vmatprep.mubr.f32.mxu0 0.0
        %1491 = vmatmul.mubr.f32.gmra.mxu0 %v1261
        %v1492 = vpop.f32.mrf.mxu0
        %v1493 = vadd.f32 0.0, %v1492
        %v1494 = vpop.f32.mrf.mxu0
        %1495 = vmatprep.mubr.f32.mxu0 0.0
        %1496 = vmatmul.mubr.f32.gmra.mxu0 %v1262
        %v1497 = vpop.f32.mrf.mxu0
        %v1498 = vadd.f32 0.0, %v1497
        %v1499 = vpop.f32.mrf.mxu0
        %1500 = vmatprep.mubr.f32.mxu0 0.0
        %1501 = vmatmul.mubr.f32.gmra.mxu0 %v1263
        %v1502 = vpop.f32.mrf.mxu0
        %v1503 = vadd.f32 0.0, %v1502
        %v1504 = vpop.f32.mrf.mxu0
        %1505 = vdwg.mxu0
        %v1506 = vadd.f32 %v1199, %v1348
        %v1507 = vadd.f32 %v1200, %v1353
        %v1508 = vadd.f32 %v1201, %v1358
        %v1509 = vadd.f32 %v1202, %v1363
        %v1510 = vadd.f32 %v1203, %v1368
        %v1511 = vadd.f32 %v1204, %v1373
        %v1512 = vadd.f32 %v1205, %v1378
        %v1513 = vadd.f32 %v1206, %v1383
        %v1514 = vadd.f32 %v1207, %v1388
        %v1515 = vadd.f32 %v1208, %v1393
        %v1516 = vadd.f32 %v1209, %v1398
        %v1517 = vadd.f32 %v1210, %v1403
        %v1518 = vadd.f32 %v1211, %v1408
        %v1519 = vadd.f32 %v1212, %v1413
        %v1520 = vadd.f32 %v1213, %v1418
        %v1521 = vadd.f32 %v1214, %v1423
        %v1522 = vadd.f32 %v1215, %v1428
        %v1523 = vadd.f32 %v1216, %v1433
        %v1524 = vadd.f32 %v1217, %v1438
        %v1525 = vadd.f32 %v1218, %v1443
        %v1526 = vadd.f32 %v1219, %v1448
        %v1527 = vadd.f32 %v1220, %v1453
        %v1528 = vadd.f32 %v1221, %v1458
        %v1529 = vadd.f32 %v1222, %v1463
        %v1530 = vadd.f32 %v1223, %v1468
        %v1531 = vadd.f32 %v1224, %v1473
        %v1532 = vadd.f32 %v1225, %v1478
        %v1533 = vadd.f32 %v1226, %v1483
        %v1534 = vadd.f32 %v1227, %v1488
        %v1535 = vadd.f32 %v1228, %v1493
        %v1536 = vadd.f32 %v1229, %v1498
        %v1537 = vadd.f32 %v1230, %v1503
        %v1538 = vld [vmem:[%s1231 + $0x1] sm:$0xff]
        %v1539 = vld [vmem:[%s1231 + $0x9] sm:$0xff]
        %v1540 = vld [vmem:[%s1231 + $0x19] sm:$0xff]
        %v1541 = vld [vmem:[%s1231 + $0x21] sm:$0xff]
        %v1542 = vld [vmem:[%s1231 + $0x31] sm:$0xff]
        %v1543 = vld [vmem:[%s1231 + $0x39] sm:$0xff]
        %v1544 = vld [vmem:[%s1231 + $0x49] sm:$0xff]
        %v1545 = vld [vmem:[%s1231 + $0x51] sm:$0xff]
        %v1546 = vld [vmem:[%s1231 + $0x61] sm:$0xff]
        %v1547 = vld [vmem:[%s1231 + $0x69] sm:$0xff]
        %v1548 = vld [vmem:[%s1231 + $0x79] sm:$0xff]
        %v1549 = vld [vmem:[%s1231 + $0x81] sm:$0xff]
        %v1550 = vld [vmem:[%s1231 + $0x91] sm:$0xff]
        %v1551 = vld [vmem:[%s1231 + $0x99] sm:$0xff]
        %v1552 = vld [vmem:[%s1231 + $0xa9] sm:$0xff]
        %v1553 = vld [vmem:[%s1231 + $0xb1] sm:$0xff]
        %v1554 = vld [vmem:[%s1231 + $0xc1] sm:$0xff]
        %v1555 = vld [vmem:[%s1231 + $0xc9] sm:$0xff]
        %v1556 = vld [vmem:[%s1231 + $0xd9] sm:$0xff]
        %v1557 = vld [vmem:[%s1231 + $0xe1] sm:$0xff]
        %v1558 = vld [vmem:[%s1231 + $0xf1] sm:$0xff]
        %v1559 = vld [vmem:[%s1231 + $0xf9] sm:$0xff]
        %v1560 = vld [vmem:[%s1231 + $0x109] sm:$0xff]
        %v1561 = vld [vmem:[%s1231 + $0x111] sm:$0xff]
        %v1562 = vld [vmem:[%s1231 + $0x121] sm:$0xff]
        %v1563 = vld [vmem:[%s1231 + $0x129] sm:$0xff]
        %v1564 = vld [vmem:[%s1231 + $0x139] sm:$0xff]
        %v1565 = vld [vmem:[%s1231 + $0x141] sm:$0xff]
        %v1566 = vld [vmem:[%s1231 + $0x151] sm:$0xff]
        %v1567 = vld [vmem:[%s1231 + $0x159] sm:$0xff]
        %v1568 = vld [vmem:[%s1231 + $0x169] sm:$0xff]
        %v1569 = vld [vmem:[%s1231 + $0x171] sm:$0xff]
        %s1570 = scalar_lea.vmem [#allocation6], 512
        %v1571 = vld [vmem:[%s1570] sm:$0xff]
        %v1572 = vld [vmem:[%s1570 + $0x8] sm:$0xff]
        %v1573 = vld [vmem:[%s1570 + $0x10] sm:$0xff]
        %v1574 = vld [vmem:[%s1570 + $0x18] sm:$0xff]
        %v1575 = vld [vmem:[%s1570 + $0x20] sm:$0xff]
        %v1576 = vld [vmem:[%s1570 + $0x28] sm:$0xff]
        %v1577 = vld [vmem:[%s1570 + $0x30] sm:$0xff]
        %v1578 = vld [vmem:[%s1570 + $0x38] sm:$0xff]
        %v1579 = vld [vmem:[%s1570 + $0x40] sm:$0xff]
        %v1580 = vld [vmem:[%s1570 + $0x48] sm:$0xff]
        %v1581 = vld [vmem:[%s1570 + $0x50] sm:$0xff]
        %v1582 = vld [vmem:[%s1570 + $0x58] sm:$0xff]
        %v1583 = vld [vmem:[%s1570 + $0x60] sm:$0xff]
        %v1584 = vld [vmem:[%s1570 + $0x68] sm:$0xff]
        %v1585 = vld [vmem:[%s1570 + $0x70] sm:$0xff]
        %v1586 = vld [vmem:[%s1570 + $0x78] sm:$0xff]
        %1587 = vmatprep.subr.mxu0 0.0
        %1588 = vmatpush1.msra.mxu0 %v1586
        %1589 = vmatprep.subr.mxu0 0.0
        %1590 = vmatpush1.msra.mxu0 %v1585
        %1591 = vmatprep.subr.mxu0 0.0
        %1592 = vmatpush1.msra.mxu0 %v1584
        %1593 = vmatprep.subr.mxu0 0.0
        %1594 = vmatpush1.msra.mxu0 %v1583
        %1595 = vmatprep.subr.mxu0 0.0
        %1596 = vmatpush1.msra.mxu0 %v1582
        %1597 = vmatprep.subr.mxu0 0.0
        %1598 = vmatpush1.msra.mxu0 %v1581
        %1599 = vmatprep.subr.mxu0 0.0
        %1600 = vmatpush1.msra.mxu0 %v1580
        %1601 = vmatprep.subr.mxu0 0.0
        %1602 = vmatpush1.msra.mxu0 %v1579
        %1603 = vmatprep.subr.mxu0 0.0
        %1604 = vmatpush1.msra.mxu0 %v1578
        %1605 = vmatprep.subr.mxu0 0.0
        %1606 = vmatpush1.msra.mxu0 %v1577
        %1607 = vmatprep.subr.mxu0 0.0
        %1608 = vmatpush1.msra.mxu0 %v1576
        %1609 = vmatprep.subr.mxu0 0.0
        %1610 = vmatpush1.msra.mxu0 %v1575
        %1611 = vmatprep.subr.mxu0 0.0
        %1612 = vmatpush1.msra.mxu0 %v1574
        %1613 = vmatprep.subr.mxu0 0.0
        %1614 = vmatpush1.msra.mxu0 %v1573
        %1615 = vmatprep.subr.mxu0 0.0
        %1616 = vmatpush1.msra.mxu0 %v1572
        %1617 = vmatprep.subr.mxu0 0.0
        %1618 = vmatpush1.msra.mxu0 %v1571
        %1619 = vmatprep.subr.mxu0 0.0
        %1620 = vmatpush2.msra.mxu0 0.0
        %1621 = vmatprep.subr.mxu0 0.0
        %1622 = vmatpush2.msra.mxu0 0.0
        %1623 = vmatprep.subr.mxu0 0.0
        %1624 = vmatpush2.msra.mxu0 0.0
        %1625 = vmatprep.subr.mxu0 0.0
        %1626 = vmatpush2.msra.mxu0 0.0
        %1627 = vmatprep.subr.mxu0 0.0
        %1628 = vmatpush2.msra.mxu0 0.0
        %1629 = vmatprep.subr.mxu0 0.0
        %1630 = vmatpush2.msra.mxu0 0.0
        %1631 = vmatprep.subr.mxu0 0.0
        %1632 = vmatpush2.msra.mxu0 0.0
        %1633 = vmatprep.subr.mxu0 0.0
        %1634 = vmatpush2.msra.mxu0 0.0
        %1635 = vmatprep.subr.mxu0 0.0
        %1636 = vmatpush2.msra.mxu0 0.0
        %1637 = vmatprep.subr.mxu0 0.0
        %1638 = vmatpush2.msra.mxu0 0.0
        %1639 = vmatprep.subr.mxu0 0.0
        %1640 = vmatpush2.msra.mxu0 0.0
        %1641 = vmatprep.subr.mxu0 0.0
        %1642 = vmatpush2.msra.mxu0 0.0
        %1643 = vmatprep.subr.mxu0 0.0
        %1644 = vmatpush2.msra.mxu0 0.0
        %1645 = vmatprep.subr.mxu0 0.0
        %1646 = vmatpush2.msra.mxu0 0.0
        %1647 = vmatprep.subr.mxu0 0.0
        %1648 = vmatpush2.msra.mxu0 0.0
        %1649 = vmatprep.subr.mxu0 0.0
        %1650 = vmatpush2.msra.mxu0 0.0
        %1651 = vmatprep.mubr.f32.mxu0 0.0
        %1652 = vmatmul.mubr.f32.gmra.mxu0 %v1538
        %v1653 = vpop.f32.mrf.mxu0
        %v1654 = vadd.f32 0.0, %v1653
        %v1655 = vpop.f32.mrf.mxu0
        %1656 = vmatprep.mubr.f32.mxu0 0.0
        %1657 = vmatmul.mubr.f32.gmra.mxu0 %v1539
        %v1658 = vpop.f32.mrf.mxu0
        %v1659 = vadd.f32 0.0, %v1658
        %v1660 = vpop.f32.mrf.mxu0
        %1661 = vmatprep.mubr.f32.mxu0 0.0
        %1662 = vmatmul.mubr.f32.gmra.mxu0 %v1540
        %v1663 = vpop.f32.mrf.mxu0
        %v1664 = vadd.f32 0.0, %v1663
        %v1665 = vpop.f32.mrf.mxu0
        %1666 = vmatprep.mubr.f32.mxu0 0.0
        %1667 = vmatmul.mubr.f32.gmra.mxu0 %v1541
        %v1668 = vpop.f32.mrf.mxu0
        %v1669 = vadd.f32 0.0, %v1668
        %v1670 = vpop.f32.mrf.mxu0
        %1671 = vmatprep.mubr.f32.mxu0 0.0
        %1672 = vmatmul.mubr.f32.gmra.mxu0 %v1542
        %v1673 = vpop.f32.mrf.mxu0
        %v1674 = vadd.f32 0.0, %v1673
        %v1675 = vpop.f32.mrf.mxu0
        %1676 = vmatprep.mubr.f32.mxu0 0.0
        %1677 = vmatmul.mubr.f32.gmra.mxu0 %v1543
        %v1678 = vpop.f32.mrf.mxu0
        %v1679 = vadd.f32 0.0, %v1678
        %v1680 = vpop.f32.mrf.mxu0
        %1681 = vmatprep.mubr.f32.mxu0 0.0
        %1682 = vmatmul.mubr.f32.gmra.mxu0 %v1544
        %v1683 = vpop.f32.mrf.mxu0
        %v1684 = vadd.f32 0.0, %v1683
        %v1685 = vpop.f32.mrf.mxu0
        %1686 = vmatprep.mubr.f32.mxu0 0.0
        %1687 = vmatmul.mubr.f32.gmra.mxu0 %v1545
        %v1688 = vpop.f32.mrf.mxu0
        %v1689 = vadd.f32 0.0, %v1688
        %v1690 = vpop.f32.mrf.mxu0
        %1691 = vmatprep.mubr.f32.mxu0 0.0
        %1692 = vmatmul.mubr.f32.gmra.mxu0 %v1546
        %v1693 = vpop.f32.mrf.mxu0
        %v1694 = vadd.f32 0.0, %v1693
        %v1695 = vpop.f32.mrf.mxu0
        %1696 = vmatprep.mubr.f32.mxu0 0.0
        %1697 = vmatmul.mubr.f32.gmra.mxu0 %v1547
        %v1698 = vpop.f32.mrf.mxu0
        %v1699 = vadd.f32 0.0, %v1698
        %v1700 = vpop.f32.mrf.mxu0
        %1701 = vmatprep.mubr.f32.mxu0 0.0
        %1702 = vmatmul.mubr.f32.gmra.mxu0 %v1548
        %v1703 = vpop.f32.mrf.mxu0
        %v1704 = vadd.f32 0.0, %v1703
        %v1705 = vpop.f32.mrf.mxu0
        %1706 = vmatprep.mubr.f32.mxu0 0.0
        %1707 = vmatmul.mubr.f32.gmra.mxu0 %v1549
        %v1708 = vpop.f32.mrf.mxu0
        %v1709 = vadd.f32 0.0, %v1708
        %v1710 = vpop.f32.mrf.mxu0
        %1711 = vmatprep.mubr.f32.mxu0 0.0
        %1712 = vmatmul.mubr.f32.gmra.mxu0 %v1550
        %v1713 = vpop.f32.mrf.mxu0
        %v1714 = vadd.f32 0.0, %v1713
        %v1715 = vpop.f32.mrf.mxu0
        %1716 = vmatprep.mubr.f32.mxu0 0.0
        %1717 = vmatmul.mubr.f32.gmra.mxu0 %v1551
        %v1718 = vpop.f32.mrf.mxu0
        %v1719 = vadd.f32 0.0, %v1718
        %v1720 = vpop.f32.mrf.mxu0
        %1721 = vmatprep.mubr.f32.mxu0 0.0
        %1722 = vmatmul.mubr.f32.gmra.mxu0 %v1552
        %v1723 = vpop.f32.mrf.mxu0
        %v1724 = vadd.f32 0.0, %v1723
        %v1725 = vpop.f32.mrf.mxu0
        %1726 = vmatprep.mubr.f32.mxu0 0.0
        %1727 = vmatmul.mubr.f32.gmra.mxu0 %v1553
        %v1728 = vpop.f32.mrf.mxu0
        %v1729 = vadd.f32 0.0, %v1728
        %v1730 = vpop.f32.mrf.mxu0
        %1731 = vmatprep.mubr.f32.mxu0 0.0
        %1732 = vmatmul.mubr.f32.gmra.mxu0 %v1554
        %v1733 = vpop.f32.mrf.mxu0
        %v1734 = vadd.f32 0.0, %v1733
        %v1735 = vpop.f32.mrf.mxu0
        %1736 = vmatprep.mubr.f32.mxu0 0.0
        %1737 = vmatmul.mubr.f32.gmra.mxu0 %v1555
        %v1738 = vpop.f32.mrf.mxu0
        %v1739 = vadd.f32 0.0, %v1738
        %v1740 = vpop.f32.mrf.mxu0
        %1741 = vmatprep.mubr.f32.mxu0 0.0
        %1742 = vmatmul.mubr.f32.gmra.mxu0 %v1556
        %v1743 = vpop.f32.mrf.mxu0
        %v1744 = vadd.f32 0.0, %v1743
        %v1745 = vpop.f32.mrf.mxu0
        %1746 = vmatprep.mubr.f32.mxu0 0.0
        %1747 = vmatmul.mubr.f32.gmra.mxu0 %v1557
        %v1748 = vpop.f32.mrf.mxu0
        %v1749 = vadd.f32 0.0, %v1748
        %v1750 = vpop.f32.mrf.mxu0
        %1751 = vmatprep.mubr.f32.mxu0 0.0
        %1752 = vmatmul.mubr.f32.gmra.mxu0 %v1558
        %v1753 = vpop.f32.mrf.mxu0
        %v1754 = vadd.f32 0.0, %v1753
        %v1755 = vpop.f32.mrf.mxu0
        %1756 = vmatprep.mubr.f32.mxu0 0.0
        %1757 = vmatmul.mubr.f32.gmra.mxu0 %v1559
        %v1758 = vpop.f32.mrf.mxu0
        %v1759 = vadd.f32 0.0, %v1758
        %v1760 = vpop.f32.mrf.mxu0
        %1761 = vmatprep.mubr.f32.mxu0 0.0
        %1762 = vmatmul.mubr.f32.gmra.mxu0 %v1560
        %v1763 = vpop.f32.mrf.mxu0
        %v1764 = vadd.f32 0.0, %v1763
        %v1765 = vpop.f32.mrf.mxu0
        %1766 = vmatprep.mubr.f32.mxu0 0.0
        %1767 = vmatmul.mubr.f32.gmra.mxu0 %v1561
        %v1768 = vpop.f32.mrf.mxu0
        %v1769 = vadd.f32 0.0, %v1768
        %v1770 = vpop.f32.mrf.mxu0
        %1771 = vmatprep.mubr.f32.mxu0 0.0
        %1772 = vmatmul.mubr.f32.gmra.mxu0 %v1562
        %v1773 = vpop.f32.mrf.mxu0
        %v1774 = vadd.f32 0.0, %v1773
        %v1775 = vpop.f32.mrf.mxu0
        %1776 = vmatprep.mubr.f32.mxu0 0.0
        %1777 = vmatmul.mubr.f32.gmra.mxu0 %v1563
        %v1778 = vpop.f32.mrf.mxu0
        %v1779 = vadd.f32 0.0, %v1778
        %v1780 = vpop.f32.mrf.mxu0
        %1781 = vmatprep.mubr.f32.mxu0 0.0
        %1782 = vmatmul.mubr.f32.gmra.mxu0 %v1564
        %v1783 = vpop.f32.mrf.mxu0
        %v1784 = vadd.f32 0.0, %v1783
        %v1785 = vpop.f32.mrf.mxu0
        %1786 = vmatprep.mubr.f32.mxu0 0.0
        %1787 = vmatmul.mubr.f32.gmra.mxu0 %v1565
        %v1788 = vpop.f32.mrf.mxu0
        %v1789 = vadd.f32 0.0, %v1788
        %v1790 = vpop.f32.mrf.mxu0
        %1791 = vmatprep.mubr.f32.mxu0 0.0
        %1792 = vmatmul.mubr.f32.gmra.mxu0 %v1566
        %v1793 = vpop.f32.mrf.mxu0
        %v1794 = vadd.f32 0.0, %v1793
        %v1795 = vpop.f32.mrf.mxu0
        %1796 = vmatprep.mubr.f32.mxu0 0.0
        %1797 = vmatmul.mubr.f32.gmra.mxu0 %v1567
        %v1798 = vpop.f32.mrf.mxu0
        %v1799 = vadd.f32 0.0, %v1798
        %v1800 = vpop.f32.mrf.mxu0
        %1801 = vmatprep.mubr.f32.mxu0 0.0
        %1802 = vmatmul.mubr.f32.gmra.mxu0 %v1568
        %v1803 = vpop.f32.mrf.mxu0
        %v1804 = vadd.f32 0.0, %v1803
        %v1805 = vpop.f32.mrf.mxu0
        %1806 = vmatprep.mubr.f32.mxu0 0.0
        %1807 = vmatmul.mubr.f32.gmra.mxu0 %v1569
        %v1808 = vpop.f32.mrf.mxu0
        %v1809 = vadd.f32 0.0, %v1808
        %v1810 = vpop.f32.mrf.mxu0
        %1811 = vdwg.mxu0
        %v1812 = vadd.f32 %v1506, %v1654
        %v1813 = vadd.f32 %v1507, %v1659
        %v1814 = vadd.f32 %v1508, %v1664
        %v1815 = vadd.f32 %v1509, %v1669
        %v1816 = vadd.f32 %v1510, %v1674
        %v1817 = vadd.f32 %v1511, %v1679
        %v1818 = vadd.f32 %v1512, %v1684
        %v1819 = vadd.f32 %v1513, %v1689
        %v1820 = vadd.f32 %v1514, %v1694
        %v1821 = vadd.f32 %v1515, %v1699
        %v1822 = vadd.f32 %v1516, %v1704
        %v1823 = vadd.f32 %v1517, %v1709
        %v1824 = vadd.f32 %v1518, %v1714
        %v1825 = vadd.f32 %v1519, %v1719
        %v1826 = vadd.f32 %v1520, %v1724
        %v1827 = vadd.f32 %v1521, %v1729
        %v1828 = vadd.f32 %v1522, %v1734
        %v1829 = vadd.f32 %v1523, %v1739
        %v1830 = vadd.f32 %v1524, %v1744
        %v1831 = vadd.f32 %v1525, %v1749
        %v1832 = vadd.f32 %v1526, %v1754
        %v1833 = vadd.f32 %v1527, %v1759
        %v1834 = vadd.f32 %v1528, %v1764
        %v1835 = vadd.f32 %v1529, %v1769
        %v1836 = vadd.f32 %v1530, %v1774
        %v1837 = vadd.f32 %v1531, %v1779
        %v1838 = vadd.f32 %v1532, %v1784
        %v1839 = vadd.f32 %v1533, %v1789
        %v1840 = vadd.f32 %v1534, %v1794
        %v1841 = vadd.f32 %v1535, %v1799
        %v1842 = vadd.f32 %v1536, %v1804
        %v1843 = vadd.f32 %v1537, %v1809
        %v1844 = vld [vmem:[%s1231 + $0x2] sm:$0xff]
        %v1845 = vld [vmem:[%s1231 + $0xa] sm:$0xff]
        %v1846 = vld [vmem:[%s1231 + $0x1a] sm:$0xff]
        %v1847 = vld [vmem:[%s1231 + $0x22] sm:$0xff]
        %v1848 = vld [vmem:[%s1231 + $0x32] sm:$0xff]
        %v1849 = vld [vmem:[%s1231 + $0x3a] sm:$0xff]
        %v1850 = vld [vmem:[%s1231 + $0x4a] sm:$0xff]
        %v1851 = vld [vmem:[%s1231 + $0x52] sm:$0xff]
        %v1852 = vld [vmem:[%s1231 + $0x62] sm:$0xff]
        %v1853 = vld [vmem:[%s1231 + $0x6a] sm:$0xff]
        %v1854 = vld [vmem:[%s1231 + $0x7a] sm:$0xff]
        %v1855 = vld [vmem:[%s1231 + $0x82] sm:$0xff]
        %v1856 = vld [vmem:[%s1231 + $0x92] sm:$0xff]
        %v1857 = vld [vmem:[%s1231 + $0x9a] sm:$0xff]
        %v1858 = vld [vmem:[%s1231 + $0xaa] sm:$0xff]
        %v1859 = vld [vmem:[%s1231 + $0xb2] sm:$0xff]
        %v1860 = vld [vmem:[%s1231 + $0xc2] sm:$0xff]
        %v1861 = vld [vmem:[%s1231 + $0xca] sm:$0xff]
        %v1862 = vld [vmem:[%s1231 + $0xda] sm:$0xff]
        %v1863 = vld [vmem:[%s1231 + $0xe2] sm:$0xff]
        %v1864 = vld [vmem:[%s1231 + $0xf2] sm:$0xff]
        %v1865 = vld [vmem:[%s1231 + $0xfa] sm:$0xff]
        %v1866 = vld [vmem:[%s1231 + $0x10a] sm:$0xff]
        %v1867 = vld [vmem:[%s1231 + $0x112] sm:$0xff]
        %v1868 = vld [vmem:[%s1231 + $0x122] sm:$0xff]
        %v1869 = vld [vmem:[%s1231 + $0x12a] sm:$0xff]
        %v1870 = vld [vmem:[%s1231 + $0x13a] sm:$0xff]
        %v1871 = vld [vmem:[%s1231 + $0x142] sm:$0xff]
        %v1872 = vld [vmem:[%s1231 + $0x152] sm:$0xff]
        %v1873 = vld [vmem:[%s1231 + $0x15a] sm:$0xff]
        %v1874 = vld [vmem:[%s1231 + $0x16a] sm:$0xff]
        %v1875 = vld [vmem:[%s1231 + $0x172] sm:$0xff]
        %s1876 = scalar_lea.vmem [#allocation6], 640
        %v1877 = vld [vmem:[%s1876] sm:$0xff]
        %v1878 = vld [vmem:[%s1876 + $0x8] sm:$0xff]
        %v1879 = vld [vmem:[%s1876 + $0x10] sm:$0xff]
        %v1880 = vld [vmem:[%s1876 + $0x18] sm:$0xff]
        %v1881 = vld [vmem:[%s1876 + $0x20] sm:$0xff]
        %v1882 = vld [vmem:[%s1876 + $0x28] sm:$0xff]
        %v1883 = vld [vmem:[%s1876 + $0x30] sm:$0xff]
        %v1884 = vld [vmem:[%s1876 + $0x38] sm:$0xff]
        %v1885 = vld [vmem:[%s1876 + $0x40] sm:$0xff]
        %v1886 = vld [vmem:[%s1876 + $0x48] sm:$0xff]
        %v1887 = vld [vmem:[%s1876 + $0x50] sm:$0xff]
        %v1888 = vld [vmem:[%s1876 + $0x58] sm:$0xff]
        %v1889 = vld [vmem:[%s1876 + $0x60] sm:$0xff]
        %v1890 = vld [vmem:[%s1876 + $0x68] sm:$0xff]
        %v1891 = vld [vmem:[%s1876 + $0x70] sm:$0xff]
        %v1892 = vld [vmem:[%s1876 + $0x78] sm:$0xff]
        %1893 = vmatprep.subr.mxu0 0.0
        %1894 = vmatpush1.msra.mxu0 %v1892
        %1895 = vmatprep.subr.mxu0 0.0
        %1896 = vmatpush1.msra.mxu0 %v1891
        %1897 = vmatprep.subr.mxu0 0.0
        %1898 = vmatpush1.msra.mxu0 %v1890
        %1899 = vmatprep.subr.mxu0 0.0
        %1900 = vmatpush1.msra.mxu0 %v1889
        %1901 = vmatprep.subr.mxu0 0.0
        %1902 = vmatpush1.msra.mxu0 %v1888
        %1903 = vmatprep.subr.mxu0 0.0
        %1904 = vmatpush1.msra.mxu0 %v1887
        %1905 = vmatprep.subr.mxu0 0.0
        %1906 = vmatpush1.msra.mxu0 %v1886
        %1907 = vmatprep.subr.mxu0 0.0
        %1908 = vmatpush1.msra.mxu0 %v1885
        %1909 = vmatprep.subr.mxu0 0.0
        %1910 = vmatpush1.msra.mxu0 %v1884
        %1911 = vmatprep.subr.mxu0 0.0
        %1912 = vmatpush1.msra.mxu0 %v1883
        %1913 = vmatprep.subr.mxu0 0.0
        %1914 = vmatpush1.msra.mxu0 %v1882
        %1915 = vmatprep.subr.mxu0 0.0
        %1916 = vmatpush1.msra.mxu0 %v1881
        %1917 = vmatprep.subr.mxu0 0.0
        %1918 = vmatpush1.msra.mxu0 %v1880
        %1919 = vmatprep.subr.mxu0 0.0
        %1920 = vmatpush1.msra.mxu0 %v1879
        %1921 = vmatprep.subr.mxu0 0.0
        %1922 = vmatpush1.msra.mxu0 %v1878
        %1923 = vmatprep.subr.mxu0 0.0
        %1924 = vmatpush1.msra.mxu0 %v1877
        %1925 = vmatprep.subr.mxu0 0.0
        %1926 = vmatpush2.msra.mxu0 0.0
        %1927 = vmatprep.subr.mxu0 0.0
        %1928 = vmatpush2.msra.mxu0 0.0
        %1929 = vmatprep.subr.mxu0 0.0
        %1930 = vmatpush2.msra.mxu0 0.0
        %1931 = vmatprep.subr.mxu0 0.0
        %1932 = vmatpush2.msra.mxu0 0.0
        %1933 = vmatprep.subr.mxu0 0.0
        %1934 = vmatpush2.msra.mxu0 0.0
        %1935 = vmatprep.subr.mxu0 0.0
        %1936 = vmatpush2.msra.mxu0 0.0
        %1937 = vmatprep.subr.mxu0 0.0
        %1938 = vmatpush2.msra.mxu0 0.0
        %1939 = vmatprep.subr.mxu0 0.0
        %1940 = vmatpush2.msra.mxu0 0.0
        %1941 = vmatprep.subr.mxu0 0.0
        %1942 = vmatpush2.msra.mxu0 0.0
        %1943 = vmatprep.subr.mxu0 0.0
        %1944 = vmatpush2.msra.mxu0 0.0
        %1945 = vmatprep.subr.mxu0 0.0
        %1946 = vmatpush2.msra.mxu0 0.0
        %1947 = vmatprep.subr.mxu0 0.0
        %1948 = vmatpush2.msra.mxu0 0.0
        %1949 = vmatprep.subr.mxu0 0.0
        %1950 = vmatpush2.msra.mxu0 0.0
        %1951 = vmatprep.subr.mxu0 0.0
        %1952 = vmatpush2.msra.mxu0 0.0
        %1953 = vmatprep.subr.mxu0 0.0
        %1954 = vmatpush2.msra.mxu0 0.0
        %1955 = vmatprep.subr.mxu0 0.0
        %1956 = vmatpush2.msra.mxu0 0.0
        %1957 = vmatprep.mubr.f32.mxu0 0.0
        %1958 = vmatmul.mubr.f32.gmra.mxu0 %v1844
        %v1959 = vpop.f32.mrf.mxu0
        %v1960 = vadd.f32 0.0, %v1959
        %v1961 = vpop.f32.mrf.mxu0
        %1962 = vmatprep.mubr.f32.mxu0 0.0
        %1963 = vmatmul.mubr.f32.gmra.mxu0 %v1845
        %v1964 = vpop.f32.mrf.mxu0
        %v1965 = vadd.f32 0.0, %v1964
        %v1966 = vpop.f32.mrf.mxu0
        %1967 = vmatprep.mubr.f32.mxu0 0.0
        %1968 = vmatmul.mubr.f32.gmra.mxu0 %v1846
        %v1969 = vpop.f32.mrf.mxu0
        %v1970 = vadd.f32 0.0, %v1969
        %v1971 = vpop.f32.mrf.mxu0
        %1972 = vmatprep.mubr.f32.mxu0 0.0
        %1973 = vmatmul.mubr.f32.gmra.mxu0 %v1847
        %v1974 = vpop.f32.mrf.mxu0
        %v1975 = vadd.f32 0.0, %v1974
        %v1976 = vpop.f32.mrf.mxu0
        %1977 = vmatprep.mubr.f32.mxu0 0.0
        %1978 = vmatmul.mubr.f32.gmra.mxu0 %v1848
        %v1979 = vpop.f32.mrf.mxu0
        %v1980 = vadd.f32 0.0, %v1979
        %v1981 = vpop.f32.mrf.mxu0
        %1982 = vmatprep.mubr.f32.mxu0 0.0
        %1983 = vmatmul.mubr.f32.gmra.mxu0 %v1849
        %v1984 = vpop.f32.mrf.mxu0
        %v1985 = vadd.f32 0.0, %v1984
        %v1986 = vpop.f32.mrf.mxu0
        %1987 = vmatprep.mubr.f32.mxu0 0.0
        %1988 = vmatmul.mubr.f32.gmra.mxu0 %v1850
        %v1989 = vpop.f32.mrf.mxu0
        %v1990 = vadd.f32 0.0, %v1989
        %v1991 = vpop.f32.mrf.mxu0
        %1992 = vmatprep.mubr.f32.mxu0 0.0
        %1993 = vmatmul.mubr.f32.gmra.mxu0 %v1851
        %v1994 = vpop.f32.mrf.mxu0
        %v1995 = vadd.f32 0.0, %v1994
        %v1996 = vpop.f32.mrf.mxu0
        %1997 = vmatprep.mubr.f32.mxu0 0.0
        %1998 = vmatmul.mubr.f32.gmra.mxu0 %v1852
        %v1999 = vpop.f32.mrf.mxu0
        %v2000 = vadd.f32 0.0, %v1999
        %v2001 = vpop.f32.mrf.mxu0
        %2002 = vmatprep.mubr.f32.mxu0 0.0
        %2003 = vmatmul.mubr.f32.gmra.mxu0 %v1853
        %v2004 = vpop.f32.mrf.mxu0
        %v2005 = vadd.f32 0.0, %v2004
        %v2006 = vpop.f32.mrf.mxu0
        %2007 = vmatprep.mubr.f32.mxu0 0.0
        %2008 = vmatmul.mubr.f32.gmra.mxu0 %v1854
        %v2009 = vpop.f32.mrf.mxu0
        %v2010 = vadd.f32 0.0, %v2009
        %v2011 = vpop.f32.mrf.mxu0
        %2012 = vmatprep.mubr.f32.mxu0 0.0
        %2013 = vmatmul.mubr.f32.gmra.mxu0 %v1855
        %v2014 = vpop.f32.mrf.mxu0
        %v2015 = vadd.f32 0.0, %v2014
        %v2016 = vpop.f32.mrf.mxu0
        %2017 = vmatprep.mubr.f32.mxu0 0.0
        %2018 = vmatmul.mubr.f32.gmra.mxu0 %v1856
        %v2019 = vpop.f32.mrf.mxu0
        %v2020 = vadd.f32 0.0, %v2019
        %v2021 = vpop.f32.mrf.mxu0
        %2022 = vmatprep.mubr.f32.mxu0 0.0
        %2023 = vmatmul.mubr.f32.gmra.mxu0 %v1857
        %v2024 = vpop.f32.mrf.mxu0
        %v2025 = vadd.f32 0.0, %v2024
        %v2026 = vpop.f32.mrf.mxu0
        %2027 = vmatprep.mubr.f32.mxu0 0.0
        %2028 = vmatmul.mubr.f32.gmra.mxu0 %v1858
        %v2029 = vpop.f32.mrf.mxu0
        %v2030 = vadd.f32 0.0, %v2029
        %v2031 = vpop.f32.mrf.mxu0
        %2032 = vmatprep.mubr.f32.mxu0 0.0
        %2033 = vmatmul.mubr.f32.gmra.mxu0 %v1859
        %v2034 = vpop.f32.mrf.mxu0
        %v2035 = vadd.f32 0.0, %v2034
        %v2036 = vpop.f32.mrf.mxu0
        %2037 = vmatprep.mubr.f32.mxu0 0.0
        %2038 = vmatmul.mubr.f32.gmra.mxu0 %v1860
        %v2039 = vpop.f32.mrf.mxu0
        %v2040 = vadd.f32 0.0, %v2039
        %v2041 = vpop.f32.mrf.mxu0
        %2042 = vmatprep.mubr.f32.mxu0 0.0
        %2043 = vmatmul.mubr.f32.gmra.mxu0 %v1861
        %v2044 = vpop.f32.mrf.mxu0
        %v2045 = vadd.f32 0.0, %v2044
        %v2046 = vpop.f32.mrf.mxu0
        %2047 = vmatprep.mubr.f32.mxu0 0.0
        %2048 = vmatmul.mubr.f32.gmra.mxu0 %v1862
        %v2049 = vpop.f32.mrf.mxu0
        %v2050 = vadd.f32 0.0, %v2049
        %v2051 = vpop.f32.mrf.mxu0
        %2052 = vmatprep.mubr.f32.mxu0 0.0
        %2053 = vmatmul.mubr.f32.gmra.mxu0 %v1863
        %v2054 = vpop.f32.mrf.mxu0
        %v2055 = vadd.f32 0.0, %v2054
        %v2056 = vpop.f32.mrf.mxu0
        %2057 = vmatprep.mubr.f32.mxu0 0.0
        %2058 = vmatmul.mubr.f32.gmra.mxu0 %v1864
        %v2059 = vpop.f32.mrf.mxu0
        %v2060 = vadd.f32 0.0, %v2059
        %v2061 = vpop.f32.mrf.mxu0
        %2062 = vmatprep.mubr.f32.mxu0 0.0
        %2063 = vmatmul.mubr.f32.gmra.mxu0 %v1865
        %v2064 = vpop.f32.mrf.mxu0
        %v2065 = vadd.f32 0.0, %v2064
        %v2066 = vpop.f32.mrf.mxu0
        %2067 = vmatprep.mubr.f32.mxu0 0.0
        %2068 = vmatmul.mubr.f32.gmra.mxu0 %v1866
        %v2069 = vpop.f32.mrf.mxu0
        %v2070 = vadd.f32 0.0, %v2069
        %v2071 = vpop.f32.mrf.mxu0
        %2072 = vmatprep.mubr.f32.mxu0 0.0
        %2073 = vmatmul.mubr.f32.gmra.mxu0 %v1867
        %v2074 = vpop.f32.mrf.mxu0
        %v2075 = vadd.f32 0.0, %v2074
        %v2076 = vpop.f32.mrf.mxu0
        %2077 = vmatprep.mubr.f32.mxu0 0.0
        %2078 = vmatmul.mubr.f32.gmra.mxu0 %v1868
        %v2079 = vpop.f32.mrf.mxu0
        %v2080 = vadd.f32 0.0, %v2079
        %v2081 = vpop.f32.mrf.mxu0
        %2082 = vmatprep.mubr.f32.mxu0 0.0
        %2083 = vmatmul.mubr.f32.gmra.mxu0 %v1869
        %v2084 = vpop.f32.mrf.mxu0
        %v2085 = vadd.f32 0.0, %v2084
        %v2086 = vpop.f32.mrf.mxu0
        %2087 = vmatprep.mubr.f32.mxu0 0.0
        %2088 = vmatmul.mubr.f32.gmra.mxu0 %v1870
        %v2089 = vpop.f32.mrf.mxu0
        %v2090 = vadd.f32 0.0, %v2089
        %v2091 = vpop.f32.mrf.mxu0
        %2092 = vmatprep.mubr.f32.mxu0 0.0
        %2093 = vmatmul.mubr.f32.gmra.mxu0 %v1871
        %v2094 = vpop.f32.mrf.mxu0
        %v2095 = vadd.f32 0.0, %v2094
        %v2096 = vpop.f32.mrf.mxu0
        %2097 = vmatprep.mubr.f32.mxu0 0.0
        %2098 = vmatmul.mubr.f32.gmra.mxu0 %v1872
        %v2099 = vpop.f32.mrf.mxu0
        %v2100 = vadd.f32 0.0, %v2099
        %v2101 = vpop.f32.mrf.mxu0
        %2102 = vmatprep.mubr.f32.mxu0 0.0
        %2103 = vmatmul.mubr.f32.gmra.mxu0 %v1873
        %v2104 = vpop.f32.mrf.mxu0
        %v2105 = vadd.f32 0.0, %v2104
        %v2106 = vpop.f32.mrf.mxu0
        %2107 = vmatprep.mubr.f32.mxu0 0.0
        %2108 = vmatmul.mubr.f32.gmra.mxu0 %v1874
        %v2109 = vpop.f32.mrf.mxu0
        %v2110 = vadd.f32 0.0, %v2109
        %v2111 = vpop.f32.mrf.mxu0
        %2112 = vmatprep.mubr.f32.mxu0 0.0
        %2113 = vmatmul.mubr.f32.gmra.mxu0 %v1875
        %v2114 = vpop.f32.mrf.mxu0
        %v2115 = vadd.f32 0.0, %v2114
        %v2116 = vpop.f32.mrf.mxu0
        %2117 = vdwg.mxu0
        %v2118 = vadd.f32 %v1812, %v1960
        %v2119 = vadd.f32 %v1813, %v1965
        %v2120 = vadd.f32 %v1814, %v1970
        %v2121 = vadd.f32 %v1815, %v1975
        %v2122 = vadd.f32 %v1816, %v1980
        %v2123 = vadd.f32 %v1817, %v1985
        %v2124 = vadd.f32 %v1818, %v1990
        %v2125 = vadd.f32 %v1819, %v1995
        %v2126 = vadd.f32 %v1820, %v2000
        %v2127 = vadd.f32 %v1821, %v2005
        %v2128 = vadd.f32 %v1822, %v2010
        %v2129 = vadd.f32 %v1823, %v2015
        %v2130 = vadd.f32 %v1824, %v2020
        %v2131 = vadd.f32 %v1825, %v2025
        %v2132 = vadd.f32 %v1826, %v2030
        %v2133 = vadd.f32 %v1827, %v2035
        %v2134 = vadd.f32 %v1828, %v2040
        %v2135 = vadd.f32 %v1829, %v2045
        %v2136 = vadd.f32 %v1830, %v2050
        %v2137 = vadd.f32 %v1831, %v2055
        %v2138 = vadd.f32 %v1832, %v2060
        %v2139 = vadd.f32 %v1833, %v2065
        %v2140 = vadd.f32 %v1834, %v2070
        %v2141 = vadd.f32 %v1835, %v2075
        %v2142 = vadd.f32 %v1836, %v2080
        %v2143 = vadd.f32 %v1837, %v2085
        %v2144 = vadd.f32 %v1838, %v2090
        %v2145 = vadd.f32 %v1839, %v2095
        %v2146 = vadd.f32 %v1840, %v2100
        %v2147 = vadd.f32 %v1841, %v2105
        %v2148 = vadd.f32 %v1842, %v2110
        %v2149 = vadd.f32 %v1843, %v2115
        %s2150 = scalar_lea.vmem [#allocation2], 48
        %v2151 = vld [vmem:[%s2150] sm:$0xff]
        %v2152 = vld [vmem:[%s2150 + $0x8] sm:$0xff]
        %v2153 = vld [vmem:[%s2150 + $0x18] sm:$0xff]
        %v2154 = vld [vmem:[%s2150 + $0x20] sm:$0xff]
        %v2155 = vld [vmem:[%s2150 + $0x30] sm:$0xff]
        %v2156 = vld [vmem:[%s2150 + $0x38] sm:$0xff]
        %v2157 = vld [vmem:[%s2150 + $0x48] sm:$0xff]
        %v2158 = vld [vmem:[%s2150 + $0x50] sm:$0xff]
        %v2159 = vld [vmem:[%s2150 + $0x60] sm:$0xff]
        %v2160 = vld [vmem:[%s2150 + $0x68] sm:$0xff]
        %v2161 = vld [vmem:[%s2150 + $0x78] sm:$0xff]
        %v2162 = vld [vmem:[%s2150 + $0x80] sm:$0xff]
        %v2163 = vld [vmem:[%s2150 + $0x90] sm:$0xff]
        %v2164 = vld [vmem:[%s2150 + $0x98] sm:$0xff]
        %v2165 = vld [vmem:[%s2150 + $0xa8] sm:$0xff]
        %v2166 = vld [vmem:[%s2150 + $0xb0] sm:$0xff]
        %v2167 = vld [vmem:[%s2150 + $0xc0] sm:$0xff]
        %v2168 = vld [vmem:[%s2150 + $0xc8] sm:$0xff]
        %v2169 = vld [vmem:[%s2150 + $0xd8] sm:$0xff]
        %v2170 = vld [vmem:[%s2150 + $0xe0] sm:$0xff]
        %v2171 = vld [vmem:[%s2150 + $0xf0] sm:$0xff]
        %v2172 = vld [vmem:[%s2150 + $0xf8] sm:$0xff]
        %v2173 = vld [vmem:[%s2150 + $0x108] sm:$0xff]
        %v2174 = vld [vmem:[%s2150 + $0x110] sm:$0xff]
        %v2175 = vld [vmem:[%s2150 + $0x120] sm:$0xff]
        %v2176 = vld [vmem:[%s2150 + $0x128] sm:$0xff]
        %v2177 = vld [vmem:[%s2150 + $0x138] sm:$0xff]
        %v2178 = vld [vmem:[%s2150 + $0x140] sm:$0xff]
        %v2179 = vld [vmem:[%s2150 + $0x150] sm:$0xff]
        %v2180 = vld [vmem:[%s2150 + $0x158] sm:$0xff]
        %v2181 = vld [vmem:[%s2150 + $0x168] sm:$0xff]
        %v2182 = vld [vmem:[%s2150 + $0x170] sm:$0xff]
        %s2183 = scalar_lea.vmem [#allocation6], 768
        %v2184 = vld [vmem:[%s2183] sm:$0xff]
        %v2185 = vld [vmem:[%s2183 + $0x8] sm:$0xff]
        %v2186 = vld [vmem:[%s2183 + $0x10] sm:$0xff]
        %v2187 = vld [vmem:[%s2183 + $0x18] sm:$0xff]
        %v2188 = vld [vmem:[%s2183 + $0x20] sm:$0xff]
        %v2189 = vld [vmem:[%s2183 + $0x28] sm:$0xff]
        %v2190 = vld [vmem:[%s2183 + $0x30] sm:$0xff]
        %v2191 = vld [vmem:[%s2183 + $0x38] sm:$0xff]
        %v2192 = vld [vmem:[%s2183 + $0x40] sm:$0xff]
        %v2193 = vld [vmem:[%s2183 + $0x48] sm:$0xff]
        %v2194 = vld [vmem:[%s2183 + $0x50] sm:$0xff]
        %v2195 = vld [vmem:[%s2183 + $0x58] sm:$0xff]
        %v2196 = vld [vmem:[%s2183 + $0x60] sm:$0xff]
        %v2197 = vld [vmem:[%s2183 + $0x68] sm:$0xff]
        %v2198 = vld [vmem:[%s2183 + $0x70] sm:$0xff]
        %v2199 = vld [vmem:[%s2183 + $0x78] sm:$0xff]
        %2200 = vmatprep.subr.mxu0 0.0
        %2201 = vmatpush1.msra.mxu0 %v2199
        %2202 = vmatprep.subr.mxu0 0.0
        %2203 = vmatpush1.msra.mxu0 %v2198
        %2204 = vmatprep.subr.mxu0 0.0
        %2205 = vmatpush1.msra.mxu0 %v2197
        %2206 = vmatprep.subr.mxu0 0.0
        %2207 = vmatpush1.msra.mxu0 %v2196
        %2208 = vmatprep.subr.mxu0 0.0
        %2209 = vmatpush1.msra.mxu0 %v2195
        %2210 = vmatprep.subr.mxu0 0.0
        %2211 = vmatpush1.msra.mxu0 %v2194
        %2212 = vmatprep.subr.mxu0 0.0
        %2213 = vmatpush1.msra.mxu0 %v2193
        %2214 = vmatprep.subr.mxu0 0.0
        %2215 = vmatpush1.msra.mxu0 %v2192
        %2216 = vmatprep.subr.mxu0 0.0
        %2217 = vmatpush1.msra.mxu0 %v2191
        %2218 = vmatprep.subr.mxu0 0.0
        %2219 = vmatpush1.msra.mxu0 %v2190
        %2220 = vmatprep.subr.mxu0 0.0
        %2221 = vmatpush1.msra.mxu0 %v2189
        %2222 = vmatprep.subr.mxu0 0.0
        %2223 = vmatpush1.msra.mxu0 %v2188
        %2224 = vmatprep.subr.mxu0 0.0
        %2225 = vmatpush1.msra.mxu0 %v2187
        %2226 = vmatprep.subr.mxu0 0.0
        %2227 = vmatpush1.msra.mxu0 %v2186
        %2228 = vmatprep.subr.mxu0 0.0
        %2229 = vmatpush1.msra.mxu0 %v2185
        %2230 = vmatprep.subr.mxu0 0.0
        %2231 = vmatpush1.msra.mxu0 %v2184
        %2232 = vmatprep.subr.mxu0 0.0
        %2233 = vmatpush2.msra.mxu0 0.0
        %2234 = vmatprep.subr.mxu0 0.0
        %2235 = vmatpush2.msra.mxu0 0.0
        %2236 = vmatprep.subr.mxu0 0.0
        %2237 = vmatpush2.msra.mxu0 0.0
        %2238 = vmatprep.subr.mxu0 0.0
        %2239 = vmatpush2.msra.mxu0 0.0
        %2240 = vmatprep.subr.mxu0 0.0
        %2241 = vmatpush2.msra.mxu0 0.0
        %2242 = vmatprep.subr.mxu0 0.0
        %2243 = vmatpush2.msra.mxu0 0.0
        %2244 = vmatprep.subr.mxu0 0.0
        %2245 = vmatpush2.msra.mxu0 0.0
        %2246 = vmatprep.subr.mxu0 0.0
        %2247 = vmatpush2.msra.mxu0 0.0
        %2248 = vmatprep.subr.mxu0 0.0
        %2249 = vmatpush2.msra.mxu0 0.0
        %2250 = vmatprep.subr.mxu0 0.0
        %2251 = vmatpush2.msra.mxu0 0.0
        %2252 = vmatprep.subr.mxu0 0.0
        %2253 = vmatpush2.msra.mxu0 0.0
        %2254 = vmatprep.subr.mxu0 0.0
        %2255 = vmatpush2.msra.mxu0 0.0
        %2256 = vmatprep.subr.mxu0 0.0
        %2257 = vmatpush2.msra.mxu0 0.0
        %2258 = vmatprep.subr.mxu0 0.0
        %2259 = vmatpush2.msra.mxu0 0.0
        %2260 = vmatprep.subr.mxu0 0.0
        %2261 = vmatpush2.msra.mxu0 0.0
        %2262 = vmatprep.subr.mxu0 0.0
        %2263 = vmatpush2.msra.mxu0 0.0
        %2264 = vmatprep.mubr.f32.mxu0 0.0
        %2265 = vmatmul.mubr.f32.gmra.mxu0 %v2151
        %v2266 = vpop.f32.mrf.mxu0
        %v2267 = vadd.f32 0.0, %v2266
        %v2268 = vpop.f32.mrf.mxu0
        %2269 = vmatprep.mubr.f32.mxu0 0.0
        %2270 = vmatmul.mubr.f32.gmra.mxu0 %v2152
        %v2271 = vpop.f32.mrf.mxu0
        %v2272 = vadd.f32 0.0, %v2271
        %v2273 = vpop.f32.mrf.mxu0
        %2274 = vmatprep.mubr.f32.mxu0 0.0
        %2275 = vmatmul.mubr.f32.gmra.mxu0 %v2153
        %v2276 = vpop.f32.mrf.mxu0
        %v2277 = vadd.f32 0.0, %v2276
        %v2278 = vpop.f32.mrf.mxu0
        %2279 = vmatprep.mubr.f32.mxu0 0.0
        %2280 = vmatmul.mubr.f32.gmra.mxu0 %v2154
        %v2281 = vpop.f32.mrf.mxu0
        %v2282 = vadd.f32 0.0, %v2281
        %v2283 = vpop.f32.mrf.mxu0
        %2284 = vmatprep.mubr.f32.mxu0 0.0
        %2285 = vmatmul.mubr.f32.gmra.mxu0 %v2155
        %v2286 = vpop.f32.mrf.mxu0
        %v2287 = vadd.f32 0.0, %v2286
        %v2288 = vpop.f32.mrf.mxu0
        %2289 = vmatprep.mubr.f32.mxu0 0.0
        %2290 = vmatmul.mubr.f32.gmra.mxu0 %v2156
        %v2291 = vpop.f32.mrf.mxu0
        %v2292 = vadd.f32 0.0, %v2291
        %v2293 = vpop.f32.mrf.mxu0
        %2294 = vmatprep.mubr.f32.mxu0 0.0
        %2295 = vmatmul.mubr.f32.gmra.mxu0 %v2157
        %v2296 = vpop.f32.mrf.mxu0
        %v2297 = vadd.f32 0.0, %v2296
        %v2298 = vpop.f32.mrf.mxu0
        %2299 = vmatprep.mubr.f32.mxu0 0.0
        %2300 = vmatmul.mubr.f32.gmra.mxu0 %v2158
        %v2301 = vpop.f32.mrf.mxu0
        %v2302 = vadd.f32 0.0, %v2301
        %v2303 = vpop.f32.mrf.mxu0
        %2304 = vmatprep.mubr.f32.mxu0 0.0
        %2305 = vmatmul.mubr.f32.gmra.mxu0 %v2159
        %v2306 = vpop.f32.mrf.mxu0
        %v2307 = vadd.f32 0.0, %v2306
        %v2308 = vpop.f32.mrf.mxu0
        %2309 = vmatprep.mubr.f32.mxu0 0.0
        %2310 = vmatmul.mubr.f32.gmra.mxu0 %v2160
        %v2311 = vpop.f32.mrf.mxu0
        %v2312 = vadd.f32 0.0, %v2311
        %v2313 = vpop.f32.mrf.mxu0
        %2314 = vmatprep.mubr.f32.mxu0 0.0
        %2315 = vmatmul.mubr.f32.gmra.mxu0 %v2161
        %v2316 = vpop.f32.mrf.mxu0
        %v2317 = vadd.f32 0.0, %v2316
        %v2318 = vpop.f32.mrf.mxu0
        %2319 = vmatprep.mubr.f32.mxu0 0.0
        %2320 = vmatmul.mubr.f32.gmra.mxu0 %v2162
        %v2321 = vpop.f32.mrf.mxu0
        %v2322 = vadd.f32 0.0, %v2321
        %v2323 = vpop.f32.mrf.mxu0
        %2324 = vmatprep.mubr.f32.mxu0 0.0
        %2325 = vmatmul.mubr.f32.gmra.mxu0 %v2163
        %v2326 = vpop.f32.mrf.mxu0
        %v2327 = vadd.f32 0.0, %v2326
        %v2328 = vpop.f32.mrf.mxu0
        %2329 = vmatprep.mubr.f32.mxu0 0.0
        %2330 = vmatmul.mubr.f32.gmra.mxu0 %v2164
        %v2331 = vpop.f32.mrf.mxu0
        %v2332 = vadd.f32 0.0, %v2331
        %v2333 = vpop.f32.mrf.mxu0
        %2334 = vmatprep.mubr.f32.mxu0 0.0
        %2335 = vmatmul.mubr.f32.gmra.mxu0 %v2165
        %v2336 = vpop.f32.mrf.mxu0
        %v2337 = vadd.f32 0.0, %v2336
        %v2338 = vpop.f32.mrf.mxu0
        %2339 = vmatprep.mubr.f32.mxu0 0.0
        %2340 = vmatmul.mubr.f32.gmra.mxu0 %v2166
        %v2341 = vpop.f32.mrf.mxu0
        %v2342 = vadd.f32 0.0, %v2341
        %v2343 = vpop.f32.mrf.mxu0
        %2344 = vmatprep.mubr.f32.mxu0 0.0
        %2345 = vmatmul.mubr.f32.gmra.mxu0 %v2167
        %v2346 = vpop.f32.mrf.mxu0
        %v2347 = vadd.f32 0.0, %v2346
        %v2348 = vpop.f32.mrf.mxu0
        %2349 = vmatprep.mubr.f32.mxu0 0.0
        %2350 = vmatmul.mubr.f32.gmra.mxu0 %v2168
        %v2351 = vpop.f32.mrf.mxu0
        %v2352 = vadd.f32 0.0, %v2351
        %v2353 = vpop.f32.mrf.mxu0
        %2354 = vmatprep.mubr.f32.mxu0 0.0
        %2355 = vmatmul.mubr.f32.gmra.mxu0 %v2169
        %v2356 = vpop.f32.mrf.mxu0
        %v2357 = vadd.f32 0.0, %v2356
        %v2358 = vpop.f32.mrf.mxu0
        %2359 = vmatprep.mubr.f32.mxu0 0.0
        %2360 = vmatmul.mubr.f32.gmra.mxu0 %v2170
        %v2361 = vpop.f32.mrf.mxu0
        %v2362 = vadd.f32 0.0, %v2361
        %v2363 = vpop.f32.mrf.mxu0
        %2364 = vmatprep.mubr.f32.mxu0 0.0
        %2365 = vmatmul.mubr.f32.gmra.mxu0 %v2171
        %v2366 = vpop.f32.mrf.mxu0
        %v2367 = vadd.f32 0.0, %v2366
        %v2368 = vpop.f32.mrf.mxu0
        %2369 = vmatprep.mubr.f32.mxu0 0.0
        %2370 = vmatmul.mubr.f32.gmra.mxu0 %v2172
        %v2371 = vpop.f32.mrf.mxu0
        %v2372 = vadd.f32 0.0, %v2371
        %v2373 = vpop.f32.mrf.mxu0
        %2374 = vmatprep.mubr.f32.mxu0 0.0
        %2375 = vmatmul.mubr.f32.gmra.mxu0 %v2173
        %v2376 = vpop.f32.mrf.mxu0
        %v2377 = vadd.f32 0.0, %v2376
        %v2378 = vpop.f32.mrf.mxu0
        %2379 = vmatprep.mubr.f32.mxu0 0.0
        %2380 = vmatmul.mubr.f32.gmra.mxu0 %v2174
        %v2381 = vpop.f32.mrf.mxu0
        %v2382 = vadd.f32 0.0, %v2381
        %v2383 = vpop.f32.mrf.mxu0
        %2384 = vmatprep.mubr.f32.mxu0 0.0
        %2385 = vmatmul.mubr.f32.gmra.mxu0 %v2175
        %v2386 = vpop.f32.mrf.mxu0
        %v2387 = vadd.f32 0.0, %v2386
        %v2388 = vpop.f32.mrf.mxu0
        %2389 = vmatprep.mubr.f32.mxu0 0.0
        %2390 = vmatmul.mubr.f32.gmra.mxu0 %v2176
        %v2391 = vpop.f32.mrf.mxu0
        %v2392 = vadd.f32 0.0, %v2391
        %v2393 = vpop.f32.mrf.mxu0
        %2394 = vmatprep.mubr.f32.mxu0 0.0
        %2395 = vmatmul.mubr.f32.gmra.mxu0 %v2177
        %v2396 = vpop.f32.mrf.mxu0
        %v2397 = vadd.f32 0.0, %v2396
        %v2398 = vpop.f32.mrf.mxu0
        %2399 = vmatprep.mubr.f32.mxu0 0.0
        %2400 = vmatmul.mubr.f32.gmra.mxu0 %v2178
        %v2401 = vpop.f32.mrf.mxu0
        %v2402 = vadd.f32 0.0, %v2401
        %v2403 = vpop.f32.mrf.mxu0
        %2404 = vmatprep.mubr.f32.mxu0 0.0
        %2405 = vmatmul.mubr.f32.gmra.mxu0 %v2179
        %v2406 = vpop.f32.mrf.mxu0
        %v2407 = vadd.f32 0.0, %v2406
        %v2408 = vpop.f32.mrf.mxu0
        %2409 = vmatprep.mubr.f32.mxu0 0.0
        %2410 = vmatmul.mubr.f32.gmra.mxu0 %v2180
        %v2411 = vpop.f32.mrf.mxu0
        %v2412 = vadd.f32 0.0, %v2411
        %v2413 = vpop.f32.mrf.mxu0
        %2414 = vmatprep.mubr.f32.mxu0 0.0
        %2415 = vmatmul.mubr.f32.gmra.mxu0 %v2181
        %v2416 = vpop.f32.mrf.mxu0
        %v2417 = vadd.f32 0.0, %v2416
        %v2418 = vpop.f32.mrf.mxu0
        %2419 = vmatprep.mubr.f32.mxu0 0.0
        %2420 = vmatmul.mubr.f32.gmra.mxu0 %v2182
        %v2421 = vpop.f32.mrf.mxu0
        %v2422 = vadd.f32 0.0, %v2421
        %v2423 = vpop.f32.mrf.mxu0
        %2424 = vdwg.mxu0
        %v2425 = vadd.f32 %v2118, %v2267
        %v2426 = vadd.f32 %v2119, %v2272
        %v2427 = vadd.f32 %v2120, %v2277
        %v2428 = vadd.f32 %v2121, %v2282
        %v2429 = vadd.f32 %v2122, %v2287
        %v2430 = vadd.f32 %v2123, %v2292
        %v2431 = vadd.f32 %v2124, %v2297
        %v2432 = vadd.f32 %v2125, %v2302
        %v2433 = vadd.f32 %v2126, %v2307
        %v2434 = vadd.f32 %v2127, %v2312
        %v2435 = vadd.f32 %v2128, %v2317
        %v2436 = vadd.f32 %v2129, %v2322
        %v2437 = vadd.f32 %v2130, %v2327
        %v2438 = vadd.f32 %v2131, %v2332
        %v2439 = vadd.f32 %v2132, %v2337
        %v2440 = vadd.f32 %v2133, %v2342
        %v2441 = vadd.f32 %v2134, %v2347
        %v2442 = vadd.f32 %v2135, %v2352
        %v2443 = vadd.f32 %v2136, %v2357
        %v2444 = vadd.f32 %v2137, %v2362
        %v2445 = vadd.f32 %v2138, %v2367
        %v2446 = vadd.f32 %v2139, %v2372
        %v2447 = vadd.f32 %v2140, %v2377
        %v2448 = vadd.f32 %v2141, %v2382
        %v2449 = vadd.f32 %v2142, %v2387
        %v2450 = vadd.f32 %v2143, %v2392
        %v2451 = vadd.f32 %v2144, %v2397
        %v2452 = vadd.f32 %v2145, %v2402
        %v2453 = vadd.f32 %v2146, %v2407
        %v2454 = vadd.f32 %v2147, %v2412
        %v2455 = vadd.f32 %v2148, %v2417
        %v2456 = vadd.f32 %v2149, %v2422
        %v2457 = vld [vmem:[%s2150 + $0x1] sm:$0xff]
        %v2458 = vld [vmem:[%s2150 + $0x9] sm:$0xff]
        %v2459 = vld [vmem:[%s2150 + $0x19] sm:$0xff]
        %v2460 = vld [vmem:[%s2150 + $0x21] sm:$0xff]
        %v2461 = vld [vmem:[%s2150 + $0x31] sm:$0xff]
        %v2462 = vld [vmem:[%s2150 + $0x39] sm:$0xff]
        %v2463 = vld [vmem:[%s2150 + $0x49] sm:$0xff]
        %v2464 = vld [vmem:[%s2150 + $0x51] sm:$0xff]
        %v2465 = vld [vmem:[%s2150 + $0x61] sm:$0xff]
        %v2466 = vld [vmem:[%s2150 + $0x69] sm:$0xff]
        %v2467 = vld [vmem:[%s2150 + $0x79] sm:$0xff]
        %v2468 = vld [vmem:[%s2150 + $0x81] sm:$0xff]
        %v2469 = vld [vmem:[%s2150 + $0x91] sm:$0xff]
        %v2470 = vld [vmem:[%s2150 + $0x99] sm:$0xff]
        %v2471 = vld [vmem:[%s2150 + $0xa9] sm:$0xff]
        %v2472 = vld [vmem:[%s2150 + $0xb1] sm:$0xff]
        %v2473 = vld [vmem:[%s2150 + $0xc1] sm:$0xff]
        %v2474 = vld [vmem:[%s2150 + $0xc9] sm:$0xff]
        %v2475 = vld [vmem:[%s2150 + $0xd9] sm:$0xff]
        %v2476 = vld [vmem:[%s2150 + $0xe1] sm:$0xff]
        %v2477 = vld [vmem:[%s2150 + $0xf1] sm:$0xff]
        %v2478 = vld [vmem:[%s2150 + $0xf9] sm:$0xff]
        %v2479 = vld [vmem:[%s2150 + $0x109] sm:$0xff]
        %v2480 = vld [vmem:[%s2150 + $0x111] sm:$0xff]
        %v2481 = vld [vmem:[%s2150 + $0x121] sm:$0xff]
        %v2482 = vld [vmem:[%s2150 + $0x129] sm:$0xff]
        %v2483 = vld [vmem:[%s2150 + $0x139] sm:$0xff]
        %v2484 = vld [vmem:[%s2150 + $0x141] sm:$0xff]
        %v2485 = vld [vmem:[%s2150 + $0x151] sm:$0xff]
        %v2486 = vld [vmem:[%s2150 + $0x159] sm:$0xff]
        %v2487 = vld [vmem:[%s2150 + $0x169] sm:$0xff]
        %v2488 = vld [vmem:[%s2150 + $0x171] sm:$0xff]
        %s2489 = scalar_lea.vmem [#allocation6], 896
        %v2490 = vld [vmem:[%s2489] sm:$0xff]
        %v2491 = vld [vmem:[%s2489 + $0x8] sm:$0xff]
        %v2492 = vld [vmem:[%s2489 + $0x10] sm:$0xff]
        %v2493 = vld [vmem:[%s2489 + $0x18] sm:$0xff]
        %v2494 = vld [vmem:[%s2489 + $0x20] sm:$0xff]
        %v2495 = vld [vmem:[%s2489 + $0x28] sm:$0xff]
        %v2496 = vld [vmem:[%s2489 + $0x30] sm:$0xff]
        %v2497 = vld [vmem:[%s2489 + $0x38] sm:$0xff]
        %v2498 = vld [vmem:[%s2489 + $0x40] sm:$0xff]
        %v2499 = vld [vmem:[%s2489 + $0x48] sm:$0xff]
        %v2500 = vld [vmem:[%s2489 + $0x50] sm:$0xff]
        %v2501 = vld [vmem:[%s2489 + $0x58] sm:$0xff]
        %v2502 = vld [vmem:[%s2489 + $0x60] sm:$0xff]
        %v2503 = vld [vmem:[%s2489 + $0x68] sm:$0xff]
        %v2504 = vld [vmem:[%s2489 + $0x70] sm:$0xff]
        %v2505 = vld [vmem:[%s2489 + $0x78] sm:$0xff]
        %2506 = vmatprep.subr.mxu0 0.0
        %2507 = vmatpush1.msra.mxu0 %v2505
        %2508 = vmatprep.subr.mxu0 0.0
        %2509 = vmatpush1.msra.mxu0 %v2504
        %2510 = vmatprep.subr.mxu0 0.0
        %2511 = vmatpush1.msra.mxu0 %v2503
        %2512 = vmatprep.subr.mxu0 0.0
        %2513 = vmatpush1.msra.mxu0 %v2502
        %2514 = vmatprep.subr.mxu0 0.0
        %2515 = vmatpush1.msra.mxu0 %v2501
        %2516 = vmatprep.subr.mxu0 0.0
        %2517 = vmatpush1.msra.mxu0 %v2500
        %2518 = vmatprep.subr.mxu0 0.0
        %2519 = vmatpush1.msra.mxu0 %v2499
        %2520 = vmatprep.subr.mxu0 0.0
        %2521 = vmatpush1.msra.mxu0 %v2498
        %2522 = vmatprep.subr.mxu0 0.0
        %2523 = vmatpush1.msra.mxu0 %v2497
        %2524 = vmatprep.subr.mxu0 0.0
        %2525 = vmatpush1.msra.mxu0 %v2496
        %2526 = vmatprep.subr.mxu0 0.0
        %2527 = vmatpush1.msra.mxu0 %v2495
        %2528 = vmatprep.subr.mxu0 0.0
        %2529 = vmatpush1.msra.mxu0 %v2494
        %2530 = vmatprep.subr.mxu0 0.0
        %2531 = vmatpush1.msra.mxu0 %v2493
        %2532 = vmatprep.subr.mxu0 0.0
        %2533 = vmatpush1.msra.mxu0 %v2492
        %2534 = vmatprep.subr.mxu0 0.0
        %2535 = vmatpush1.msra.mxu0 %v2491
        %2536 = vmatprep.subr.mxu0 0.0
        %2537 = vmatpush1.msra.mxu0 %v2490
        %2538 = vmatprep.subr.mxu0 0.0
        %2539 = vmatpush2.msra.mxu0 0.0
        %2540 = vmatprep.subr.mxu0 0.0
        %2541 = vmatpush2.msra.mxu0 0.0
        %2542 = vmatprep.subr.mxu0 0.0
        %2543 = vmatpush2.msra.mxu0 0.0
        %2544 = vmatprep.subr.mxu0 0.0
        %2545 = vmatpush2.msra.mxu0 0.0
        %2546 = vmatprep.subr.mxu0 0.0
        %2547 = vmatpush2.msra.mxu0 0.0
        %2548 = vmatprep.subr.mxu0 0.0
        %2549 = vmatpush2.msra.mxu0 0.0
        %2550 = vmatprep.subr.mxu0 0.0
        %2551 = vmatpush2.msra.mxu0 0.0
        %2552 = vmatprep.subr.mxu0 0.0
        %2553 = vmatpush2.msra.mxu0 0.0
        %2554 = vmatprep.subr.mxu0 0.0
        %2555 = vmatpush2.msra.mxu0 0.0
        %2556 = vmatprep.subr.mxu0 0.0
        %2557 = vmatpush2.msra.mxu0 0.0
        %2558 = vmatprep.subr.mxu0 0.0
        %2559 = vmatpush2.msra.mxu0 0.0
        %2560 = vmatprep.subr.mxu0 0.0
        %2561 = vmatpush2.msra.mxu0 0.0
        %2562 = vmatprep.subr.mxu0 0.0
        %2563 = vmatpush2.msra.mxu0 0.0
        %2564 = vmatprep.subr.mxu0 0.0
        %2565 = vmatpush2.msra.mxu0 0.0
        %2566 = vmatprep.subr.mxu0 0.0
        %2567 = vmatpush2.msra.mxu0 0.0
        %2568 = vmatprep.subr.mxu0 0.0
        %2569 = vmatpush2.msra.mxu0 0.0
        %2570 = vmatprep.mubr.f32.mxu0 0.0
        %2571 = vmatmul.mubr.f32.gmra.mxu0 %v2457
        %v2572 = vpop.f32.mrf.mxu0
        %v2573 = vadd.f32 0.0, %v2572
        %v2574 = vpop.f32.mrf.mxu0
        %2575 = vmatprep.mubr.f32.mxu0 0.0
        %2576 = vmatmul.mubr.f32.gmra.mxu0 %v2458
        %v2577 = vpop.f32.mrf.mxu0
        %v2578 = vadd.f32 0.0, %v2577
        %v2579 = vpop.f32.mrf.mxu0
        %2580 = vmatprep.mubr.f32.mxu0 0.0
        %2581 = vmatmul.mubr.f32.gmra.mxu0 %v2459
        %v2582 = vpop.f32.mrf.mxu0
        %v2583 = vadd.f32 0.0, %v2582
        %v2584 = vpop.f32.mrf.mxu0
        %2585 = vmatprep.mubr.f32.mxu0 0.0
        %2586 = vmatmul.mubr.f32.gmra.mxu0 %v2460
        %v2587 = vpop.f32.mrf.mxu0
        %v2588 = vadd.f32 0.0, %v2587
        %v2589 = vpop.f32.mrf.mxu0
        %2590 = vmatprep.mubr.f32.mxu0 0.0
        %2591 = vmatmul.mubr.f32.gmra.mxu0 %v2461
        %v2592 = vpop.f32.mrf.mxu0
        %v2593 = vadd.f32 0.0, %v2592
        %v2594 = vpop.f32.mrf.mxu0
        %2595 = vmatprep.mubr.f32.mxu0 0.0
        %2596 = vmatmul.mubr.f32.gmra.mxu0 %v2462
        %v2597 = vpop.f32.mrf.mxu0
        %v2598 = vadd.f32 0.0, %v2597
        %v2599 = vpop.f32.mrf.mxu0
        %2600 = vmatprep.mubr.f32.mxu0 0.0
        %2601 = vmatmul.mubr.f32.gmra.mxu0 %v2463
        %v2602 = vpop.f32.mrf.mxu0
        %v2603 = vadd.f32 0.0, %v2602
        %v2604 = vpop.f32.mrf.mxu0
        %2605 = vmatprep.mubr.f32.mxu0 0.0
        %2606 = vmatmul.mubr.f32.gmra.mxu0 %v2464
        %v2607 = vpop.f32.mrf.mxu0
        %v2608 = vadd.f32 0.0, %v2607
        %v2609 = vpop.f32.mrf.mxu0
        %2610 = vmatprep.mubr.f32.mxu0 0.0
        %2611 = vmatmul.mubr.f32.gmra.mxu0 %v2465
        %v2612 = vpop.f32.mrf.mxu0
        %v2613 = vadd.f32 0.0, %v2612
        %v2614 = vpop.f32.mrf.mxu0
        %2615 = vmatprep.mubr.f32.mxu0 0.0
        %2616 = vmatmul.mubr.f32.gmra.mxu0 %v2466
        %v2617 = vpop.f32.mrf.mxu0
        %v2618 = vadd.f32 0.0, %v2617
        %v2619 = vpop.f32.mrf.mxu0
        %2620 = vmatprep.mubr.f32.mxu0 0.0
        %2621 = vmatmul.mubr.f32.gmra.mxu0 %v2467
        %v2622 = vpop.f32.mrf.mxu0
        %v2623 = vadd.f32 0.0, %v2622
        %v2624 = vpop.f32.mrf.mxu0
        %2625 = vmatprep.mubr.f32.mxu0 0.0
        %2626 = vmatmul.mubr.f32.gmra.mxu0 %v2468
        %v2627 = vpop.f32.mrf.mxu0
        %v2628 = vadd.f32 0.0, %v2627
        %v2629 = vpop.f32.mrf.mxu0
        %2630 = vmatprep.mubr.f32.mxu0 0.0
        %2631 = vmatmul.mubr.f32.gmra.mxu0 %v2469
        %v2632 = vpop.f32.mrf.mxu0
        %v2633 = vadd.f32 0.0, %v2632
        %v2634 = vpop.f32.mrf.mxu0
        %2635 = vmatprep.mubr.f32.mxu0 0.0
        %2636 = vmatmul.mubr.f32.gmra.mxu0 %v2470
        %v2637 = vpop.f32.mrf.mxu0
        %v2638 = vadd.f32 0.0, %v2637
        %v2639 = vpop.f32.mrf.mxu0
        %2640 = vmatprep.mubr.f32.mxu0 0.0
        %2641 = vmatmul.mubr.f32.gmra.mxu0 %v2471
        %v2642 = vpop.f32.mrf.mxu0
        %v2643 = vadd.f32 0.0, %v2642
        %v2644 = vpop.f32.mrf.mxu0
        %2645 = vmatprep.mubr.f32.mxu0 0.0
        %2646 = vmatmul.mubr.f32.gmra.mxu0 %v2472
        %v2647 = vpop.f32.mrf.mxu0
        %v2648 = vadd.f32 0.0, %v2647
        %v2649 = vpop.f32.mrf.mxu0
        %2650 = vmatprep.mubr.f32.mxu0 0.0
        %2651 = vmatmul.mubr.f32.gmra.mxu0 %v2473
        %v2652 = vpop.f32.mrf.mxu0
        %v2653 = vadd.f32 0.0, %v2652
        %v2654 = vpop.f32.mrf.mxu0
        %2655 = vmatprep.mubr.f32.mxu0 0.0
        %2656 = vmatmul.mubr.f32.gmra.mxu0 %v2474
        %v2657 = vpop.f32.mrf.mxu0
        %v2658 = vadd.f32 0.0, %v2657
        %v2659 = vpop.f32.mrf.mxu0
        %2660 = vmatprep.mubr.f32.mxu0 0.0
        %2661 = vmatmul.mubr.f32.gmra.mxu0 %v2475
        %v2662 = vpop.f32.mrf.mxu0
        %v2663 = vadd.f32 0.0, %v2662
        %v2664 = vpop.f32.mrf.mxu0
        %2665 = vmatprep.mubr.f32.mxu0 0.0
        %2666 = vmatmul.mubr.f32.gmra.mxu0 %v2476
        %v2667 = vpop.f32.mrf.mxu0
        %v2668 = vadd.f32 0.0, %v2667
        %v2669 = vpop.f32.mrf.mxu0
        %2670 = vmatprep.mubr.f32.mxu0 0.0
        %2671 = vmatmul.mubr.f32.gmra.mxu0 %v2477
        %v2672 = vpop.f32.mrf.mxu0
        %v2673 = vadd.f32 0.0, %v2672
        %v2674 = vpop.f32.mrf.mxu0
        %2675 = vmatprep.mubr.f32.mxu0 0.0
        %2676 = vmatmul.mubr.f32.gmra.mxu0 %v2478
        %v2677 = vpop.f32.mrf.mxu0
        %v2678 = vadd.f32 0.0, %v2677
        %v2679 = vpop.f32.mrf.mxu0
        %2680 = vmatprep.mubr.f32.mxu0 0.0
        %2681 = vmatmul.mubr.f32.gmra.mxu0 %v2479
        %v2682 = vpop.f32.mrf.mxu0
        %v2683 = vadd.f32 0.0, %v2682
        %v2684 = vpop.f32.mrf.mxu0
        %2685 = vmatprep.mubr.f32.mxu0 0.0
        %2686 = vmatmul.mubr.f32.gmra.mxu0 %v2480
        %v2687 = vpop.f32.mrf.mxu0
        %v2688 = vadd.f32 0.0, %v2687
        %v2689 = vpop.f32.mrf.mxu0
        %2690 = vmatprep.mubr.f32.mxu0 0.0
        %2691 = vmatmul.mubr.f32.gmra.mxu0 %v2481
        %v2692 = vpop.f32.mrf.mxu0
        %v2693 = vadd.f32 0.0, %v2692
        %v2694 = vpop.f32.mrf.mxu0
        %2695 = vmatprep.mubr.f32.mxu0 0.0
        %2696 = vmatmul.mubr.f32.gmra.mxu0 %v2482
        %v2697 = vpop.f32.mrf.mxu0
        %v2698 = vadd.f32 0.0, %v2697
        %v2699 = vpop.f32.mrf.mxu0
        %2700 = vmatprep.mubr.f32.mxu0 0.0
        %2701 = vmatmul.mubr.f32.gmra.mxu0 %v2483
        %v2702 = vpop.f32.mrf.mxu0
        %v2703 = vadd.f32 0.0, %v2702
        %v2704 = vpop.f32.mrf.mxu0
        %2705 = vmatprep.mubr.f32.mxu0 0.0
        %2706 = vmatmul.mubr.f32.gmra.mxu0 %v2484
        %v2707 = vpop.f32.mrf.mxu0
        %v2708 = vadd.f32 0.0, %v2707
        %v2709 = vpop.f32.mrf.mxu0
        %2710 = vmatprep.mubr.f32.mxu0 0.0
        %2711 = vmatmul.mubr.f32.gmra.mxu0 %v2485
        %v2712 = vpop.f32.mrf.mxu0
        %v2713 = vadd.f32 0.0, %v2712
        %v2714 = vpop.f32.mrf.mxu0
        %2715 = vmatprep.mubr.f32.mxu0 0.0
        %2716 = vmatmul.mubr.f32.gmra.mxu0 %v2486
        %v2717 = vpop.f32.mrf.mxu0
        %v2718 = vadd.f32 0.0, %v2717
        %v2719 = vpop.f32.mrf.mxu0
        %2720 = vmatprep.mubr.f32.mxu0 0.0
        %2721 = vmatmul.mubr.f32.gmra.mxu0 %v2487
        %v2722 = vpop.f32.mrf.mxu0
        %v2723 = vadd.f32 0.0, %v2722
        %v2724 = vpop.f32.mrf.mxu0
        %2725 = vmatprep.mubr.f32.mxu0 0.0
        %2726 = vmatmul.mubr.f32.gmra.mxu0 %v2488
        %v2727 = vpop.f32.mrf.mxu0
        %v2728 = vadd.f32 0.0, %v2727
        %v2729 = vpop.f32.mrf.mxu0
        %2730 = vdwg.mxu0
        %v2731 = vadd.f32 %v2425, %v2573
        %v2732 = vadd.f32 %v2426, %v2578
        %v2733 = vadd.f32 %v2427, %v2583
        %v2734 = vadd.f32 %v2428, %v2588
        %v2735 = vadd.f32 %v2429, %v2593
        %v2736 = vadd.f32 %v2430, %v2598
        %v2737 = vadd.f32 %v2431, %v2603
        %v2738 = vadd.f32 %v2432, %v2608
        %v2739 = vadd.f32 %v2433, %v2613
        %v2740 = vadd.f32 %v2434, %v2618
        %v2741 = vadd.f32 %v2435, %v2623
        %v2742 = vadd.f32 %v2436, %v2628
        %v2743 = vadd.f32 %v2437, %v2633
        %v2744 = vadd.f32 %v2438, %v2638
        %v2745 = vadd.f32 %v2439, %v2643
        %v2746 = vadd.f32 %v2440, %v2648
        %v2747 = vadd.f32 %v2441, %v2653
        %v2748 = vadd.f32 %v2442, %v2658
        %v2749 = vadd.f32 %v2443, %v2663
        %v2750 = vadd.f32 %v2444, %v2668
        %v2751 = vadd.f32 %v2445, %v2673
        %v2752 = vadd.f32 %v2446, %v2678
        %v2753 = vadd.f32 %v2447, %v2683
        %v2754 = vadd.f32 %v2448, %v2688
        %v2755 = vadd.f32 %v2449, %v2693
        %v2756 = vadd.f32 %v2450, %v2698
        %v2757 = vadd.f32 %v2451, %v2703
        %v2758 = vadd.f32 %v2452, %v2708
        %v2759 = vadd.f32 %v2453, %v2713
        %v2760 = vadd.f32 %v2454, %v2718
        %v2761 = vadd.f32 %v2455, %v2723
        %v2762 = vadd.f32 %v2456, %v2728
        %v2763 = vld [vmem:[%s2150 + $0x2] sm:$0xff]
        %v2764 = vld [vmem:[%s2150 + $0xa] sm:$0xff]
        %v2765 = vld [vmem:[%s2150 + $0x1a] sm:$0xff]
        %v2766 = vld [vmem:[%s2150 + $0x22] sm:$0xff]
        %v2767 = vld [vmem:[%s2150 + $0x32] sm:$0xff]
        %v2768 = vld [vmem:[%s2150 + $0x3a] sm:$0xff]
        %v2769 = vld [vmem:[%s2150 + $0x4a] sm:$0xff]
        %v2770 = vld [vmem:[%s2150 + $0x52] sm:$0xff]
        %v2771 = vld [vmem:[%s2150 + $0x62] sm:$0xff]
        %v2772 = vld [vmem:[%s2150 + $0x6a] sm:$0xff]
        %v2773 = vld [vmem:[%s2150 + $0x7a] sm:$0xff]
        %v2774 = vld [vmem:[%s2150 + $0x82] sm:$0xff]
        %v2775 = vld [vmem:[%s2150 + $0x92] sm:$0xff]
        %v2776 = vld [vmem:[%s2150 + $0x9a] sm:$0xff]
        %v2777 = vld [vmem:[%s2150 + $0xaa] sm:$0xff]
        %v2778 = vld [vmem:[%s2150 + $0xb2] sm:$0xff]
        %v2779 = vld [vmem:[%s2150 + $0xc2] sm:$0xff]
        %v2780 = vld [vmem:[%s2150 + $0xca] sm:$0xff]
        %v2781 = vld [vmem:[%s2150 + $0xda] sm:$0xff]
        %v2782 = vld [vmem:[%s2150 + $0xe2] sm:$0xff]
        %v2783 = vld [vmem:[%s2150 + $0xf2] sm:$0xff]
        %v2784 = vld [vmem:[%s2150 + $0xfa] sm:$0xff]
        %v2785 = vld [vmem:[%s2150 + $0x10a] sm:$0xff]
        %v2786 = vld [vmem:[%s2150 + $0x112] sm:$0xff]
        %v2787 = vld [vmem:[%s2150 + $0x122] sm:$0xff]
        %v2788 = vld [vmem:[%s2150 + $0x12a] sm:$0xff]
        %v2789 = vld [vmem:[%s2150 + $0x13a] sm:$0xff]
        %v2790 = vld [vmem:[%s2150 + $0x142] sm:$0xff]
        %v2791 = vld [vmem:[%s2150 + $0x152] sm:$0xff]
        %v2792 = vld [vmem:[%s2150 + $0x15a] sm:$0xff]
        %v2793 = vld [vmem:[%s2150 + $0x16a] sm:$0xff]
        %v2794 = vld [vmem:[%s2150 + $0x172] sm:$0xff]
        %s2795 = scalar_lea.vmem [#allocation6], 1024
        %v2796 = vld [vmem:[%s2795] sm:$0xff]
        %v2797 = vld [vmem:[%s2795 + $0x8] sm:$0xff]
        %v2798 = vld [vmem:[%s2795 + $0x10] sm:$0xff]
        %v2799 = vld [vmem:[%s2795 + $0x18] sm:$0xff]
        %v2800 = vld [vmem:[%s2795 + $0x20] sm:$0xff]
        %v2801 = vld [vmem:[%s2795 + $0x28] sm:$0xff]
        %v2802 = vld [vmem:[%s2795 + $0x30] sm:$0xff]
        %v2803 = vld [vmem:[%s2795 + $0x38] sm:$0xff]
        %v2804 = vld [vmem:[%s2795 + $0x40] sm:$0xff]
        %v2805 = vld [vmem:[%s2795 + $0x48] sm:$0xff]
        %v2806 = vld [vmem:[%s2795 + $0x50] sm:$0xff]
        %v2807 = vld [vmem:[%s2795 + $0x58] sm:$0xff]
        %v2808 = vld [vmem:[%s2795 + $0x60] sm:$0xff]
        %v2809 = vld [vmem:[%s2795 + $0x68] sm:$0xff]
        %v2810 = vld [vmem:[%s2795 + $0x70] sm:$0xff]
        %v2811 = vld [vmem:[%s2795 + $0x78] sm:$0xff]
        %2812 = vmatprep.subr.mxu0 0.0
        %2813 = vmatpush1.msra.mxu0 %v2811
        %2814 = vmatprep.subr.mxu0 0.0
        %2815 = vmatpush1.msra.mxu0 %v2810
        %2816 = vmatprep.subr.mxu0 0.0
        %2817 = vmatpush1.msra.mxu0 %v2809
        %2818 = vmatprep.subr.mxu0 0.0
        %2819 = vmatpush1.msra.mxu0 %v2808
        %2820 = vmatprep.subr.mxu0 0.0
        %2821 = vmatpush1.msra.mxu0 %v2807
        %2822 = vmatprep.subr.mxu0 0.0
        %2823 = vmatpush1.msra.mxu0 %v2806
        %2824 = vmatprep.subr.mxu0 0.0
        %2825 = vmatpush1.msra.mxu0 %v2805
        %2826 = vmatprep.subr.mxu0 0.0
        %2827 = vmatpush1.msra.mxu0 %v2804
        %2828 = vmatprep.subr.mxu0 0.0
        %2829 = vmatpush1.msra.mxu0 %v2803
        %2830 = vmatprep.subr.mxu0 0.0
        %2831 = vmatpush1.msra.mxu0 %v2802
        %2832 = vmatprep.subr.mxu0 0.0
        %2833 = vmatpush1.msra.mxu0 %v2801
        %2834 = vmatprep.subr.mxu0 0.0
        %2835 = vmatpush1.msra.mxu0 %v2800
        %2836 = vmatprep.subr.mxu0 0.0
        %2837 = vmatpush1.msra.mxu0 %v2799
        %2838 = vmatprep.subr.mxu0 0.0
        %2839 = vmatpush1.msra.mxu0 %v2798
        %2840 = vmatprep.subr.mxu0 0.0
        %2841 = vmatpush1.msra.mxu0 %v2797
        %2842 = vmatprep.subr.mxu0 0.0
        %2843 = vmatpush1.msra.mxu0 %v2796
        %2844 = vmatprep.subr.mxu0 0.0
        %2845 = vmatpush2.msra.mxu0 0.0
        %2846 = vmatprep.subr.mxu0 0.0
        %2847 = vmatpush2.msra.mxu0 0.0
        %2848 = vmatprep.subr.mxu0 0.0
        %2849 = vmatpush2.msra.mxu0 0.0
        %2850 = vmatprep.subr.mxu0 0.0
        %2851 = vmatpush2.msra.mxu0 0.0
        %2852 = vmatprep.subr.mxu0 0.0
        %2853 = vmatpush2.msra.mxu0 0.0
        %2854 = vmatprep.subr.mxu0 0.0
        %2855 = vmatpush2.msra.mxu0 0.0
        %2856 = vmatprep.subr.mxu0 0.0
        %2857 = vmatpush2.msra.mxu0 0.0
        %2858 = vmatprep.subr.mxu0 0.0
        %2859 = vmatpush2.msra.mxu0 0.0
        %2860 = vmatprep.subr.mxu0 0.0
        %2861 = vmatpush2.msra.mxu0 0.0
        %2862 = vmatprep.subr.mxu0 0.0
        %2863 = vmatpush2.msra.mxu0 0.0
        %2864 = vmatprep.subr.mxu0 0.0
        %2865 = vmatpush2.msra.mxu0 0.0
        %2866 = vmatprep.subr.mxu0 0.0
        %2867 = vmatpush2.msra.mxu0 0.0
        %2868 = vmatprep.subr.mxu0 0.0
        %2869 = vmatpush2.msra.mxu0 0.0
        %2870 = vmatprep.subr.mxu0 0.0
        %2871 = vmatpush2.msra.mxu0 0.0
        %2872 = vmatprep.subr.mxu0 0.0
        %2873 = vmatpush2.msra.mxu0 0.0
        %2874 = vmatprep.subr.mxu0 0.0
        %2875 = vmatpush2.msra.mxu0 0.0
        %2876 = vmatprep.mubr.f32.mxu0 0.0
        %2877 = vmatmul.mubr.f32.gmra.mxu0 %v2763
        %v2878 = vpop.f32.mrf.mxu0
        %v2879 = vadd.f32 0.0, %v2878
        %v2880 = vpop.f32.mrf.mxu0
        %2881 = vmatprep.mubr.f32.mxu0 0.0
        %2882 = vmatmul.mubr.f32.gmra.mxu0 %v2764
        %v2883 = vpop.f32.mrf.mxu0
        %v2884 = vadd.f32 0.0, %v2883
        %v2885 = vpop.f32.mrf.mxu0
        %2886 = vmatprep.mubr.f32.mxu0 0.0
        %2887 = vmatmul.mubr.f32.gmra.mxu0 %v2765
        %v2888 = vpop.f32.mrf.mxu0
        %v2889 = vadd.f32 0.0, %v2888
        %v2890 = vpop.f32.mrf.mxu0
        %2891 = vmatprep.mubr.f32.mxu0 0.0
        %2892 = vmatmul.mubr.f32.gmra.mxu0 %v2766
        %v2893 = vpop.f32.mrf.mxu0
        %v2894 = vadd.f32 0.0, %v2893
        %v2895 = vpop.f32.mrf.mxu0
        %2896 = vmatprep.mubr.f32.mxu0 0.0
        %2897 = vmatmul.mubr.f32.gmra.mxu0 %v2767
        %v2898 = vpop.f32.mrf.mxu0
        %v2899 = vadd.f32 0.0, %v2898
        %v2900 = vpop.f32.mrf.mxu0
        %2901 = vmatprep.mubr.f32.mxu0 0.0
        %2902 = vmatmul.mubr.f32.gmra.mxu0 %v2768
        %v2903 = vpop.f32.mrf.mxu0
        %v2904 = vadd.f32 0.0, %v2903
        %v2905 = vpop.f32.mrf.mxu0
        %2906 = vmatprep.mubr.f32.mxu0 0.0
        %2907 = vmatmul.mubr.f32.gmra.mxu0 %v2769
        %v2908 = vpop.f32.mrf.mxu0
        %v2909 = vadd.f32 0.0, %v2908
        %v2910 = vpop.f32.mrf.mxu0
        %2911 = vmatprep.mubr.f32.mxu0 0.0
        %2912 = vmatmul.mubr.f32.gmra.mxu0 %v2770
        %v2913 = vpop.f32.mrf.mxu0
        %v2914 = vadd.f32 0.0, %v2913
        %v2915 = vpop.f32.mrf.mxu0
        %2916 = vmatprep.mubr.f32.mxu0 0.0
        %2917 = vmatmul.mubr.f32.gmra.mxu0 %v2771
        %v2918 = vpop.f32.mrf.mxu0
        %v2919 = vadd.f32 0.0, %v2918
        %v2920 = vpop.f32.mrf.mxu0
        %2921 = vmatprep.mubr.f32.mxu0 0.0
        %2922 = vmatmul.mubr.f32.gmra.mxu0 %v2772
        %v2923 = vpop.f32.mrf.mxu0
        %v2924 = vadd.f32 0.0, %v2923
        %v2925 = vpop.f32.mrf.mxu0
        %2926 = vmatprep.mubr.f32.mxu0 0.0
        %2927 = vmatmul.mubr.f32.gmra.mxu0 %v2773
        %v2928 = vpop.f32.mrf.mxu0
        %v2929 = vadd.f32 0.0, %v2928
        %v2930 = vpop.f32.mrf.mxu0
        %2931 = vmatprep.mubr.f32.mxu0 0.0
        %2932 = vmatmul.mubr.f32.gmra.mxu0 %v2774
        %v2933 = vpop.f32.mrf.mxu0
        %v2934 = vadd.f32 0.0, %v2933
        %v2935 = vpop.f32.mrf.mxu0
        %2936 = vmatprep.mubr.f32.mxu0 0.0
        %2937 = vmatmul.mubr.f32.gmra.mxu0 %v2775
        %v2938 = vpop.f32.mrf.mxu0
        %v2939 = vadd.f32 0.0, %v2938
        %v2940 = vpop.f32.mrf.mxu0
        %2941 = vmatprep.mubr.f32.mxu0 0.0
        %2942 = vmatmul.mubr.f32.gmra.mxu0 %v2776
        %v2943 = vpop.f32.mrf.mxu0
        %v2944 = vadd.f32 0.0, %v2943
        %v2945 = vpop.f32.mrf.mxu0
        %2946 = vmatprep.mubr.f32.mxu0 0.0
        %2947 = vmatmul.mubr.f32.gmra.mxu0 %v2777
        %v2948 = vpop.f32.mrf.mxu0
        %v2949 = vadd.f32 0.0, %v2948
        %v2950 = vpop.f32.mrf.mxu0
        %2951 = vmatprep.mubr.f32.mxu0 0.0
        %2952 = vmatmul.mubr.f32.gmra.mxu0 %v2778
        %v2953 = vpop.f32.mrf.mxu0
        %v2954 = vadd.f32 0.0, %v2953
        %v2955 = vpop.f32.mrf.mxu0
        %2956 = vmatprep.mubr.f32.mxu0 0.0
        %2957 = vmatmul.mubr.f32.gmra.mxu0 %v2779
        %v2958 = vpop.f32.mrf.mxu0
        %v2959 = vadd.f32 0.0, %v2958
        %v2960 = vpop.f32.mrf.mxu0
        %2961 = vmatprep.mubr.f32.mxu0 0.0
        %2962 = vmatmul.mubr.f32.gmra.mxu0 %v2780
        %v2963 = vpop.f32.mrf.mxu0
        %v2964 = vadd.f32 0.0, %v2963
        %v2965 = vpop.f32.mrf.mxu0
        %2966 = vmatprep.mubr.f32.mxu0 0.0
        %2967 = vmatmul.mubr.f32.gmra.mxu0 %v2781
        %v2968 = vpop.f32.mrf.mxu0
        %v2969 = vadd.f32 0.0, %v2968
        %v2970 = vpop.f32.mrf.mxu0
        %2971 = vmatprep.mubr.f32.mxu0 0.0
        %2972 = vmatmul.mubr.f32.gmra.mxu0 %v2782
        %v2973 = vpop.f32.mrf.mxu0
        %v2974 = vadd.f32 0.0, %v2973
        %v2975 = vpop.f32.mrf.mxu0
        %2976 = vmatprep.mubr.f32.mxu0 0.0
        %2977 = vmatmul.mubr.f32.gmra.mxu0 %v2783
        %v2978 = vpop.f32.mrf.mxu0
        %v2979 = vadd.f32 0.0, %v2978
        %v2980 = vpop.f32.mrf.mxu0
        %2981 = vmatprep.mubr.f32.mxu0 0.0
        %2982 = vmatmul.mubr.f32.gmra.mxu0 %v2784
        %v2983 = vpop.f32.mrf.mxu0
        %v2984 = vadd.f32 0.0, %v2983
        %v2985 = vpop.f32.mrf.mxu0
        %2986 = vmatprep.mubr.f32.mxu0 0.0
        %2987 = vmatmul.mubr.f32.gmra.mxu0 %v2785
        %v2988 = vpop.f32.mrf.mxu0
        %v2989 = vadd.f32 0.0, %v2988
        %v2990 = vpop.f32.mrf.mxu0
        %2991 = vmatprep.mubr.f32.mxu0 0.0
        %2992 = vmatmul.mubr.f32.gmra.mxu0 %v2786
        %v2993 = vpop.f32.mrf.mxu0
        %v2994 = vadd.f32 0.0, %v2993
        %v2995 = vpop.f32.mrf.mxu0
        %2996 = vmatprep.mubr.f32.mxu0 0.0
        %2997 = vmatmul.mubr.f32.gmra.mxu0 %v2787
        %v2998 = vpop.f32.mrf.mxu0
        %v2999 = vadd.f32 0.0, %v2998
        %v3000 = vpop.f32.mrf.mxu0
        %3001 = vmatprep.mubr.f32.mxu0 0.0
        %3002 = vmatmul.mubr.f32.gmra.mxu0 %v2788
        %v3003 = vpop.f32.mrf.mxu0
        %v3004 = vadd.f32 0.0, %v3003
        %v3005 = vpop.f32.mrf.mxu0
        %3006 = vmatprep.mubr.f32.mxu0 0.0
        %3007 = vmatmul.mubr.f32.gmra.mxu0 %v2789
        %v3008 = vpop.f32.mrf.mxu0
        %v3009 = vadd.f32 0.0, %v3008
        %v3010 = vpop.f32.mrf.mxu0
        %3011 = vmatprep.mubr.f32.mxu0 0.0
        %3012 = vmatmul.mubr.f32.gmra.mxu0 %v2790
        %v3013 = vpop.f32.mrf.mxu0
        %v3014 = vadd.f32 0.0, %v3013
        %v3015 = vpop.f32.mrf.mxu0
        %3016 = vmatprep.mubr.f32.mxu0 0.0
        %3017 = vmatmul.mubr.f32.gmra.mxu0 %v2791
        %v3018 = vpop.f32.mrf.mxu0
        %v3019 = vadd.f32 0.0, %v3018
        %v3020 = vpop.f32.mrf.mxu0
        %3021 = vmatprep.mubr.f32.mxu0 0.0
        %3022 = vmatmul.mubr.f32.gmra.mxu0 %v2792
        %v3023 = vpop.f32.mrf.mxu0
        %v3024 = vadd.f32 0.0, %v3023
        %v3025 = vpop.f32.mrf.mxu0
        %3026 = vmatprep.mubr.f32.mxu0 0.0
        %3027 = vmatmul.mubr.f32.gmra.mxu0 %v2793
        %v3028 = vpop.f32.mrf.mxu0
        %v3029 = vadd.f32 0.0, %v3028
        %v3030 = vpop.f32.mrf.mxu0
        %3031 = vmatprep.mubr.f32.mxu0 0.0
        %3032 = vmatmul.mubr.f32.gmra.mxu0 %v2794
        %v3033 = vpop.f32.mrf.mxu0
        %v3034 = vadd.f32 0.0, %v3033
        %v3035 = vpop.f32.mrf.mxu0
        %3036 = vdwg.mxu0
        %v3037 = vadd.f32 %v2731, %v2879
        %v3038 = vadd.f32 %v2732, %v2884
        %v3039 = vadd.f32 %v2733, %v2889
        %v3040 = vadd.f32 %v2734, %v2894
        %v3041 = vadd.f32 %v2735, %v2899
        %v3042 = vadd.f32 %v2736, %v2904
        %v3043 = vadd.f32 %v2737, %v2909
        %v3044 = vadd.f32 %v2738, %v2914
        %v3045 = vadd.f32 %v2739, %v2919
        %v3046 = vadd.f32 %v2740, %v2924
        %v3047 = vadd.f32 %v2741, %v2929
        %v3048 = vadd.f32 %v2742, %v2934
        %v3049 = vadd.f32 %v2743, %v2939
        %v3050 = vadd.f32 %v2744, %v2944
        %v3051 = vadd.f32 %v2745, %v2949
        %v3052 = vadd.f32 %v2746, %v2954
        %v3053 = vadd.f32 %v2747, %v2959
        %v3054 = vadd.f32 %v2748, %v2964
        %v3055 = vadd.f32 %v2749, %v2969
        %v3056 = vadd.f32 %v2750, %v2974
        %v3057 = vadd.f32 %v2751, %v2979
        %v3058 = vadd.f32 %v2752, %v2984
        %v3059 = vadd.f32 %v2753, %v2989
        %v3060 = vadd.f32 %v2754, %v2994
        %v3061 = vadd.f32 %v2755, %v2999
        %v3062 = vadd.f32 %v2756, %v3004
        %v3063 = vadd.f32 %v2757, %v3009
        %v3064 = vadd.f32 %v2758, %v3014
        %v3065 = vadd.f32 %v2759, %v3019
        %v3066 = vadd.f32 %v2760, %v3024
        %v3067 = vadd.f32 %v2761, %v3029
        %v3068 = vadd.f32 %v2762, %v3034
        %v3070 = vlaneseq
        %v3071 = vshrl.u32 %v3070, 7
        %v3072 = vsub.s32 0, %v3071
        %v3073 = vrot.slane %v304, %v3072
        %v3075 = vadd.f32 %v3037, %v3073
        %v3076 = vadd.f32 %v3038, %v3073
        %v3077 = vadd.f32 %v3039, %v3073
        %v3078 = vadd.f32 %v3040, %v3073
        %v3079 = vadd.f32 %v3041, %v3073
        %v3080 = vadd.f32 %v3042, %v3073
        %v3081 = vadd.f32 %v3043, %v3073
        %v3082 = vadd.f32 %v3044, %v3073
        %v3083 = vadd.f32 %v3045, %v3073
        %v3084 = vadd.f32 %v3046, %v3073
        %v3085 = vadd.f32 %v3047, %v3073
        %v3086 = vadd.f32 %v3048, %v3073
        %v3087 = vadd.f32 %v3049, %v3073
        %v3088 = vadd.f32 %v3050, %v3073
        %v3089 = vadd.f32 %v3051, %v3073
        %v3090 = vadd.f32 %v3052, %v3073
        %v3091 = vadd.f32 %v3053, %v3073
        %v3092 = vadd.f32 %v3054, %v3073
        %v3093 = vadd.f32 %v3055, %v3073
        %v3094 = vadd.f32 %v3056, %v3073
        %v3095 = vadd.f32 %v3057, %v3073
        %v3096 = vadd.f32 %v3058, %v3073
        %v3097 = vadd.f32 %v3059, %v3073
        %v3098 = vadd.f32 %v3060, %v3073
        %v3099 = vadd.f32 %v3061, %v3073
        %v3100 = vadd.f32 %v3062, %v3073
        %v3101 = vadd.f32 %v3063, %v3073
        %v3102 = vadd.f32 %v3064, %v3073
        %v3103 = vadd.f32 %v3065, %v3073
        %v3104 = vadd.f32 %v3066, %v3073
        %v3105 = vadd.f32 %v3067, %v3073
        %v3106 = vadd.f32 %v3068, %v3073
        %v3107 = vadd.f32 %v3075, %v3076
        %v3108 = vadd.f32 %v3107, %v3077
        %v3109 = vadd.f32 %v3108, %v3078
        %v3110 = vadd.f32 %v3109, %v3079
        %v3111 = vadd.f32 %v3110, %v3080
        %v3112 = vadd.f32 %v3111, %v3081
        %v3113 = vadd.f32 %v3112, %v3082
        %v3114 = vadd.f32 %v3113, %v3083
        %v3115 = vadd.f32 %v3114, %v3084
        %v3116 = vadd.f32 %v3115, %v3085
        %v3117 = vadd.f32 %v3116, %v3086
        %v3118 = vadd.f32 %v3117, %v3087
        %v3119 = vadd.f32 %v3118, %v3088
        %v3120 = vadd.f32 %v3119, %v3089
        %v3121 = vadd.f32 %v3120, %v3090
        %v3122 = vadd.f32 %v3121, %v3091
        %v3123 = vadd.f32 %v3122, %v3092
        %v3124 = vadd.f32 %v3123, %v3093
        %v3125 = vadd.f32 %v3124, %v3094
        %v3126 = vadd.f32 %v3125, %v3095
        %v3127 = vadd.f32 %v3126, %v3096
        %v3128 = vadd.f32 %v3127, %v3097
        %v3129 = vadd.f32 %v3128, %v3098
        %v3130 = vadd.f32 %v3129, %v3099
        %v3131 = vadd.f32 %v3130, %v3100
        %v3132 = vadd.f32 %v3131, %v3101
        %v3133 = vadd.f32 %v3132, %v3102
        %v3134 = vadd.f32 %v3133, %v3103
        %v3135 = vadd.f32 %v3134, %v3104
        %v3136 = vadd.f32 %v3135, %v3105
        %v3137 = vadd.f32 %v3136, %v3106
        %v3138 = vrot.slane %v3137, 4
        %v3139 = vadd.f32 %v3137, %v3138
        %v3140 = vrot.slane %v3139, 2
        %v3141 = vadd.f32 %v3139, %v3140
        %v3142 = vrot.slane %v3141, 1
        %v3143 = vadd.f32 %v3141, %v3142
        %v3144 = vrcp.pop 256.0
        %v3145 = vmul.f32 %v3143, %v3144
        %v3146 = vsub.f32 %v3075, %v3145
        %v3147 = vsub.f32 %v3076, %v3145
        %v3148 = vsub.f32 %v3077, %v3145
        %v3149 = vsub.f32 %v3078, %v3145
        %v3150 = vsub.f32 %v3079, %v3145
        %v3151 = vsub.f32 %v3080, %v3145
        %v3152 = vsub.f32 %v3081, %v3145
        %v3153 = vsub.f32 %v3082, %v3145
        %v3154 = vsub.f32 %v3083, %v3145
        %v3155 = vsub.f32 %v3084, %v3145
        %v3156 = vsub.f32 %v3085, %v3145
        %v3157 = vsub.f32 %v3086, %v3145
        %v3158 = vsub.f32 %v3087, %v3145
        %v3159 = vsub.f32 %v3088, %v3145
        %v3160 = vsub.f32 %v3089, %v3145
        %v3161 = vsub.f32 %v3090, %v3145
        %v3162 = vsub.f32 %v3091, %v3145
        %v3163 = vsub.f32 %v3092, %v3145
        %v3164 = vsub.f32 %v3093, %v3145
        %v3165 = vsub.f32 %v3094, %v3145
        %v3166 = vsub.f32 %v3095, %v3145
        %v3167 = vsub.f32 %v3096, %v3145
        %v3168 = vsub.f32 %v3097, %v3145
        %v3169 = vsub.f32 %v3098, %v3145
        %v3170 = vsub.f32 %v3099, %v3145
        %v3171 = vsub.f32 %v3100, %v3145
        %v3172 = vsub.f32 %v3101, %v3145
        %v3173 = vsub.f32 %v3102, %v3145
        %v3174 = vsub.f32 %v3103, %v3145
        %v3175 = vsub.f32 %v3104, %v3145
        %v3176 = vsub.f32 %v3105, %v3145
        %v3177 = vsub.f32 %v3106, %v3145
        %v3178 = vmul.f32 %v3146, %v3146
        %v3179 = vmul.f32 %v3147, %v3147
        %v3180 = vmul.f32 %v3148, %v3148
        %v3181 = vmul.f32 %v3149, %v3149
        %v3182 = vmul.f32 %v3150, %v3150
        %v3183 = vmul.f32 %v3151, %v3151
        %v3184 = vmul.f32 %v3152, %v3152
        %v3185 = vmul.f32 %v3153, %v3153
        %v3186 = vmul.f32 %v3154, %v3154
        %v3187 = vmul.f32 %v3155, %v3155
        %v3188 = vmul.f32 %v3156, %v3156
        %v3189 = vmul.f32 %v3157, %v3157
        %v3190 = vmul.f32 %v3158, %v3158
        %v3191 = vmul.f32 %v3159, %v3159
        %v3192 = vmul.f32 %v3160, %v3160
        %v3193 = vmul.f32 %v3161, %v3161
        %v3194 = vmul.f32 %v3162, %v3162
        %v3195 = vmul.f32 %v3163, %v3163
        %v3196 = vmul.f32 %v3164, %v3164
        %v3197 = vmul.f32 %v3165, %v3165
        %v3198 = vmul.f32 %v3166, %v3166
        %v3199 = vmul.f32 %v3167, %v3167
        %v3200 = vmul.f32 %v3168, %v3168
        %v3201 = vmul.f32 %v3169, %v3169
        %v3202 = vmul.f32 %v3170, %v3170
        %v3203 = vmul.f32 %v3171, %v3171
        %v3204 = vmul.f32 %v3172, %v3172
        %v3205 = vmul.f32 %v3173, %v3173
        %v3206 = vmul.f32 %v3174, %v3174
        %v3207 = vmul.f32 %v3175, %v3175
        %v3208 = vmul.f32 %v3176, %v3176
        %v3209 = vmul.f32 %v3177, %v3177
        %v3210 = vadd.f32 %v3178, %v3179
        %v3211 = vadd.f32 %v3210, %v3180
        %v3212 = vadd.f32 %v3211, %v3181
        %v3213 = vadd.f32 %v3212, %v3182
        %v3214 = vadd.f32 %v3213, %v3183
        %v3215 = vadd.f32 %v3214, %v3184
        %v3216 = vadd.f32 %v3215, %v3185
        %v3217 = vadd.f32 %v3216, %v3186
        %v3218 = vadd.f32 %v3217, %v3187
        %v3219 = vadd.f32 %v3218, %v3188
        %v3220 = vadd.f32 %v3219, %v3189
        %v3221 = vadd.f32 %v3220, %v3190
        %v3222 = vadd.f32 %v3221, %v3191
        %v3223 = vadd.f32 %v3222, %v3192
        %v3224 = vadd.f32 %v3223, %v3193
        %v3225 = vadd.f32 %v3224, %v3194
        %v3226 = vadd.f32 %v3225, %v3195
        %v3227 = vadd.f32 %v3226, %v3196
        %v3228 = vadd.f32 %v3227, %v3197
        %v3229 = vadd.f32 %v3228, %v3198
        %v3230 = vadd.f32 %v3229, %v3199
        %v3231 = vadd.f32 %v3230, %v3200
        %v3232 = vadd.f32 %v3231, %v3201
        %v3233 = vadd.f32 %v3232, %v3202
        %v3234 = vadd.f32 %v3233, %v3203
        %v3235 = vadd.f32 %v3234, %v3204
        %v3236 = vadd.f32 %v3235, %v3205
        %v3237 = vadd.f32 %v3236, %v3206
        %v3238 = vadd.f32 %v3237, %v3207
        %v3239 = vadd.f32 %v3238, %v3208
        %v3240 = vadd.f32 %v3239, %v3209
        %v3241 = vrot.slane %v3240, 4
        %v3242 = vadd.f32 %v3240, %v3241
        %v3243 = vrot.slane %v3242, 2
        %v3244 = vadd.f32 %v3242, %v3243
        %v3245 = vrot.slane %v3244, 1
        %v3246 = vadd.f32 %v3244, %v3245
        %v3247 = vmul.f32 %v3246, %v3144
        %v3248 = vadd.f32 %v3247, 1e-05
        %v3249 = vrsqrt.pop %v3248
        %v3250 = vmul.f32 %v3146, %v3249
        %v3251 = vmul.f32 %v3147, %v3249
        %v3252 = vmul.f32 %v3148, %v3249
        %v3253 = vmul.f32 %v3149, %v3249
        %v3254 = vmul.f32 %v3150, %v3249
        %v3255 = vmul.f32 %v3151, %v3249
        %v3256 = vmul.f32 %v3152, %v3249
        %v3257 = vmul.f32 %v3153, %v3249
        %v3258 = vmul.f32 %v3154, %v3249
        %v3259 = vmul.f32 %v3155, %v3249
        %v3260 = vmul.f32 %v3156, %v3249
        %v3261 = vmul.f32 %v3157, %v3249
        %v3262 = vmul.f32 %v3158, %v3249
        %v3263 = vmul.f32 %v3159, %v3249
        %v3264 = vmul.f32 %v3160, %v3249
        %v3265 = vmul.f32 %v3161, %v3249
        %v3266 = vmul.f32 %v3162, %v3249
        %v3267 = vmul.f32 %v3163, %v3249
        %v3268 = vmul.f32 %v3164, %v3249
        %v3269 = vmul.f32 %v3165, %v3249
        %v3270 = vmul.f32 %v3166, %v3249
        %v3271 = vmul.f32 %v3167, %v3249
        %v3272 = vmul.f32 %v3168, %v3249
        %v3273 = vmul.f32 %v3169, %v3249
        %v3274 = vmul.f32 %v3170, %v3249
        %v3275 = vmul.f32 %v3171, %v3249
        %v3276 = vmul.f32 %v3172, %v3249
        %v3277 = vmul.f32 %v3173, %v3249
        %v3278 = vmul.f32 %v3174, %v3249
        %v3279 = vmul.f32 %v3175, %v3249
        %v3280 = vmul.f32 %v3176, %v3249
        %v3281 = vmul.f32 %v3177, %v3249
        %v3282 = vmax.f32 %v3250, 0.0
        %v3283 = vmax.f32 %v3251, 0.0
        %v3284 = vmax.f32 %v3252, 0.0
        %v3285 = vmax.f32 %v3253, 0.0
        %v3286 = vmax.f32 %v3254, 0.0
        %v3287 = vmax.f32 %v3255, 0.0
        %v3288 = vmax.f32 %v3256, 0.0
        %v3289 = vmax.f32 %v3257, 0.0
        %v3290 = vmax.f32 %v3258, 0.0
        %v3291 = vmax.f32 %v3259, 0.0
        %v3292 = vmax.f32 %v3260, 0.0
        %v3293 = vmax.f32 %v3261, 0.0
        %v3294 = vmax.f32 %v3262, 0.0
        %v3295 = vmax.f32 %v3263, 0.0
        %v3296 = vmax.f32 %v3264, 0.0
        %v3297 = vmax.f32 %v3265, 0.0
        %v3298 = vmax.f32 %v3266, 0.0
        %v3299 = vmax.f32 %v3267, 0.0
        %v3300 = vmax.f32 %v3268, 0.0
        %v3301 = vmax.f32 %v3269, 0.0
        %v3302 = vmax.f32 %v3270, 0.0
        %v3303 = vmax.f32 %v3271, 0.0
        %v3304 = vmax.f32 %v3272, 0.0
        %v3305 = vmax.f32 %v3273, 0.0
        %v3306 = vmax.f32 %v3274, 0.0
        %v3307 = vmax.f32 %v3275, 0.0
        %v3308 = vmax.f32 %v3276, 0.0
        %v3309 = vmax.f32 %v3277, 0.0
        %v3310 = vmax.f32 %v3278, 0.0
        %v3311 = vmax.f32 %v3279, 0.0
        %v3312 = vmax.f32 %v3280, 0.0
        %v3313 = vmax.f32 %v3281, 0.0
        %3314 = vst [vmem:[#allocation2 + $0x1] sm:$0xff] %v3284
        %3315 = vst [vmem:[#allocation2 + $0x9] sm:$0xff] %v3285
        %3316 = vst [vmem:[#allocation2 + $0x19] sm:$0xff] %v3282
        %3317 = vst [vmem:[#allocation2 + $0x21] sm:$0xff] %v3283
        %3318 = vst [vmem:[#allocation2 + $0x31] sm:$0xff] %v3284
        %3319 = vst [vmem:[#allocation2 + $0x39] sm:$0xff] %v3285
        %3320 = vst [vmem:[#allocation2 + $0x49] sm:$0xff] %v3286
        %3321 = vst [vmem:[#allocation2 + $0x51] sm:$0xff] %v3287
        %3322 = vst [vmem:[#allocation2 + $0x61] sm:$0xff] %v3288
        %3323 = vst [vmem:[#allocation2 + $0x69] sm:$0xff] %v3289
        %3324 = vst [vmem:[#allocation2 + $0x79] sm:$0xff] %v3290
        %3325 = vst [vmem:[#allocation2 + $0x81] sm:$0xff] %v3291
        %3326 = vst [vmem:[#allocation2 + $0x91] sm:$0xff] %v3292
        %3327 = vst [vmem:[#allocation2 + $0x99] sm:$0xff] %v3293
        %3328 = vst [vmem:[#allocation2 + $0xa9] sm:$0xff] %v3294
        %3329 = vst [vmem:[#allocation2 + $0xb1] sm:$0xff] %v3295
        %3330 = vst [vmem:[#allocation2 + $0xc1] sm:$0xff] %v3296
        %3331 = vst [vmem:[#allocation2 + $0xc9] sm:$0xff] %v3297
        %3332 = vst [vmem:[#allocation2 + $0xd9] sm:$0xff] %v3298
        %3333 = vst [vmem:[#allocation2 + $0xe1] sm:$0xff] %v3299
        %3334 = vst [vmem:[#allocation2 + $0xf1] sm:$0xff] %v3300
        %3335 = vst [vmem:[#allocation2 + $0xf9] sm:$0xff] %v3301
        %3336 = vst [vmem:[#allocation2 + $0x109] sm:$0xff] %v3302
        %3337 = vst [vmem:[#allocation2 + $0x111] sm:$0xff] %v3303
        %3338 = vst [vmem:[#allocation2 + $0x121] sm:$0xff] %v3304
        %3339 = vst [vmem:[#allocation2 + $0x129] sm:$0xff] %v3305
        %3340 = vst [vmem:[#allocation2 + $0x139] sm:$0xff] %v3306
        %3341 = vst [vmem:[#allocation2 + $0x141] sm:$0xff] %v3307
        %3342 = vst [vmem:[#allocation2 + $0x151] sm:$0xff] %v3308
        %3343 = vst [vmem:[#allocation2 + $0x159] sm:$0xff] %v3309
        %3344 = vst [vmem:[#allocation2 + $0x169] sm:$0xff] %v3310
        %3345 = vst [vmem:[#allocation2 + $0x171] sm:$0xff] %v3311
        %3346 = vst [vmem:[#allocation2 + $0x181] sm:$0xff] %v3312
        %3347 = vst [vmem:[#allocation2 + $0x189] sm:$0xff] %v3313
        %3348 = vst [vmem:[#allocation2 + $0x199] sm:$0xff] %v3310
        %3349 = vst [vmem:[#allocation2 + $0x1a1] sm:$0xff] %v3311
        %3350 = vst [vmem:[#allocation2 - $0x1] sm:$0x2] %v3284
        %3351 = vst [vmem:[#allocation2 + $0x17] sm:$0x2] %v3282
        %3352 = vst [vmem:[#allocation2 + $0x2f] sm:$0x2] %v3284
        %3353 = vst [vmem:[#allocation2 + $0x47] sm:$0x2] %v3286
        %3354 = vst [vmem:[#allocation2 + $0x5f] sm:$0x2] %v3288
        %3355 = vst [vmem:[#allocation2 + $0x77] sm:$0x2] %v3290
        %3356 = vst [vmem:[#allocation2 + $0x8f] sm:$0x2] %v3292
        %3357 = vst [vmem:[#allocation2 + $0xa7] sm:$0x2] %v3294
        %3358 = vst [vmem:[#allocation2 + $0xbf] sm:$0x2] %v3296
        %3359 = vst [vmem:[#allocation2 + $0xd7] sm:$0x2] %v3298
        %3360 = vst [vmem:[#allocation2 + $0xef] sm:$0x2] %v3300
        %3361 = vst [vmem:[#allocation2 + $0x107] sm:$0x2] %v3302
        %3362 = vst [vmem:[#allocation2 + $0x11f] sm:$0x2] %v3304
        %3363 = vst [vmem:[#allocation2 + $0x137] sm:$0x2] %v3306
        %3364 = vst [vmem:[#allocation2 + $0x14f] sm:$0x2] %v3308
        %3365 = vst [vmem:[#allocation2 + $0x167] sm:$0x2] %v3310
        %3366 = vst [vmem:[#allocation2 + $0x17f] sm:$0x2] %v3312
        %3367 = vst [vmem:[#allocation2 + $0x197] sm:$0x2] %v3310
        %3368 = vst [vmem:[#allocation2 + $0xb] sm:$0x40] %v3285
        %3369 = vst [vmem:[#allocation2 + $0x23] sm:$0x40] %v3283
        %3370 = vst [vmem:[#allocation2 + $0x3b] sm:$0x40] %v3285
        %3371 = vst [vmem:[#allocation2 + $0x53] sm:$0x40] %v3287
        %3372 = vst [vmem:[#allocation2 + $0x6b] sm:$0x40] %v3289
        %3373 = vst [vmem:[#allocation2 + $0x83] sm:$0x40] %v3291
        %3374 = vst [vmem:[#allocation2 + $0x9b] sm:$0x40] %v3293
        %3375 = vst [vmem:[#allocation2 + $0xb3] sm:$0x40] %v3295
        %3376 = vst [vmem:[#allocation2 + $0xcb] sm:$0x40] %v3297
        %3377 = vst [vmem:[#allocation2 + $0xe3] sm:$0x40] %v3299
        %3378 = vst [vmem:[#allocation2 + $0xfb] sm:$0x40] %v3301
        %3379 = vst [vmem:[#allocation2 + $0x113] sm:$0x40] %v3303
        %3380 = vst [vmem:[#allocation2 + $0x12b] sm:$0x40] %v3305
        %3381 = vst [vmem:[#allocation2 + $0x143] sm:$0x40] %v3307
        %3382 = vst [vmem:[#allocation2 + $0x15b] sm:$0x40] %v3309
        %3383 = vst [vmem:[#allocation2 + $0x173] sm:$0x40] %v3311
        %3384 = vst [vmem:[#allocation2 + $0x18b] sm:$0x40] %v3313
        %3385 = vst [vmem:[#allocation2 + $0x1a3] sm:$0x40] %v3311
        %v3386 = vld [vmem:[#allocation2] sm:$0xff]
        %v3387 = vld [vmem:[#allocation2 + $0x8] sm:$0xff]
        %v3388 = vld [vmem:[#allocation2 + $0x18] sm:$0xff]
        %v3389 = vld [vmem:[#allocation2 + $0x20] sm:$0xff]
        %v3390 = vld [vmem:[#allocation2 + $0x30] sm:$0xff]
        %v3391 = vld [vmem:[#allocation2 + $0x38] sm:$0xff]
        %v3392 = vld [vmem:[#allocation2 + $0x48] sm:$0xff]
        %v3393 = vld [vmem:[#allocation2 + $0x50] sm:$0xff]
        %v3394 = vld [vmem:[#allocation2 + $0x60] sm:$0xff]
        %v3395 = vld [vmem:[#allocation2 + $0x68] sm:$0xff]
        %v3396 = vld [vmem:[#allocation2 + $0x78] sm:$0xff]
        %v3397 = vld [vmem:[#allocation2 + $0x80] sm:$0xff]
        %v3398 = vld [vmem:[#allocation2 + $0x90] sm:$0xff]
        %v3399 = vld [vmem:[#allocation2 + $0x98] sm:$0xff]
        %v3400 = vld [vmem:[#allocation2 + $0xa8] sm:$0xff]
        %v3401 = vld [vmem:[#allocation2 + $0xb0] sm:$0xff]
        %v3402 = vld [vmem:[#allocation2 + $0xc0] sm:$0xff]
        %v3403 = vld [vmem:[#allocation2 + $0xc8] sm:$0xff]
        %v3404 = vld [vmem:[#allocation2 + $0xd8] sm:$0xff]
        %v3405 = vld [vmem:[#allocation2 + $0xe0] sm:$0xff]
        %v3406 = vld [vmem:[#allocation2 + $0xf0] sm:$0xff]
        %v3407 = vld [vmem:[#allocation2 + $0xf8] sm:$0xff]
        %v3408 = vld [vmem:[#allocation2 + $0x108] sm:$0xff]
        %v3409 = vld [vmem:[#allocation2 + $0x110] sm:$0xff]
        %v3410 = vld [vmem:[#allocation2 + $0x120] sm:$0xff]
        %v3411 = vld [vmem:[#allocation2 + $0x128] sm:$0xff]
        %v3412 = vld [vmem:[#allocation2 + $0x138] sm:$0xff]
        %v3413 = vld [vmem:[#allocation2 + $0x140] sm:$0xff]
        %v3414 = vld [vmem:[#allocation2 + $0x150] sm:$0xff]
        %v3415 = vld [vmem:[#allocation2 + $0x158] sm:$0xff]
        %v3416 = vld [vmem:[#allocation2 + $0x168] sm:$0xff]
        %v3417 = vld [vmem:[#allocation2 + $0x170] sm:$0xff]
        %v3418 = vld [vmem:[#allocation8] sm:$0xff]
        %v3419 = vld [vmem:[#allocation8 + $0x8] sm:$0xff]
        %v3420 = vld [vmem:[#allocation8 + $0x10] sm:$0xff]
        %v3421 = vld [vmem:[#allocation8 + $0x18] sm:$0xff]
        %v3422 = vld [vmem:[#allocation8 + $0x20] sm:$0xff]
        %v3423 = vld [vmem:[#allocation8 + $0x28] sm:$0xff]
        %v3424 = vld [vmem:[#allocation8 + $0x30] sm:$0xff]
        %v3425 = vld [vmem:[#allocation8 + $0x38] sm:$0xff]
        %v3426 = vld [vmem:[#allocation8 + $0x40] sm:$0xff]
        %v3427 = vld [vmem:[#allocation8 + $0x48] sm:$0xff]
        %v3428 = vld [vmem:[#allocation8 + $0x50] sm:$0xff]
        %v3429 = vld [vmem:[#allocation8 + $0x58] sm:$0xff]
        %v3430 = vld [vmem:[#allocation8 + $0x60] sm:$0xff]
        %v3431 = vld [vmem:[#allocation8 + $0x68] sm:$0xff]
        %v3432 = vld [vmem:[#allocation8 + $0x70] sm:$0xff]
        %v3433 = vld [vmem:[#allocation8 + $0x78] sm:$0xff]
        %v3434 = vld [vmem:[#allocation2 + $0x1] sm:$0xff]
        %v3435 = vld [vmem:[#allocation2 + $0x9] sm:$0xff]
        %v3436 = vld [vmem:[#allocation2 + $0x19] sm:$0xff]
        %v3437 = vld [vmem:[#allocation2 + $0x21] sm:$0xff]
        %v3438 = vld [vmem:[#allocation2 + $0x31] sm:$0xff]
        %v3439 = vld [vmem:[#allocation2 + $0x39] sm:$0xff]
        %v3440 = vld [vmem:[#allocation2 + $0x49] sm:$0xff]
        %v3441 = vld [vmem:[#allocation2 + $0x51] sm:$0xff]
        %v3442 = vld [vmem:[#allocation2 + $0x61] sm:$0xff]
        %v3443 = vld [vmem:[#allocation2 + $0x69] sm:$0xff]
        %v3444 = vld [vmem:[#allocation2 + $0x79] sm:$0xff]
        %v3445 = vld [vmem:[#allocation2 + $0x81] sm:$0xff]
        %v3446 = vld [vmem:[#allocation2 + $0x91] sm:$0xff]
        %v3447 = vld [vmem:[#allocation2 + $0x99] sm:$0xff]
        %v3448 = vld [vmem:[#allocation2 + $0xa9] sm:$0xff]
        %v3449 = vld [vmem:[#allocation2 + $0xb1] sm:$0xff]
        %v3450 = vld [vmem:[#allocation2 + $0xc1] sm:$0xff]
        %v3451 = vld [vmem:[#allocation2 + $0xc9] sm:$0xff]
        %v3452 = vld [vmem:[#allocation2 + $0xd9] sm:$0xff]
        %v3453 = vld [vmem:[#allocation2 + $0xe1] sm:$0xff]
        %v3454 = vld [vmem:[#allocation2 + $0xf1] sm:$0xff]
        %v3455 = vld [vmem:[#allocation2 + $0xf9] sm:$0xff]
        %v3456 = vld [vmem:[#allocation2 + $0x109] sm:$0xff]
        %v3457 = vld [vmem:[#allocation2 + $0x111] sm:$0xff]
        %v3458 = vld [vmem:[#allocation2 + $0x121] sm:$0xff]
        %v3459 = vld [vmem:[#allocation2 + $0x129] sm:$0xff]
        %v3460 = vld [vmem:[#allocation2 + $0x139] sm:$0xff]
        %v3461 = vld [vmem:[#allocation2 + $0x141] sm:$0xff]
        %v3462 = vld [vmem:[#allocation2 + $0x151] sm:$0xff]
        %v3463 = vld [vmem:[#allocation2 + $0x159] sm:$0xff]
        %v3464 = vld [vmem:[#allocation2 + $0x169] sm:$0xff]
        %v3465 = vld [vmem:[#allocation2 + $0x171] sm:$0xff]
        %s3466 = scalar_lea.vmem [#allocation8], 128
        %v3467 = vld [vmem:[%s3466] sm:$0xff]
        %v3468 = vld [vmem:[%s3466 + $0x8] sm:$0xff]
        %v3469 = vld [vmem:[%s3466 + $0x10] sm:$0xff]
        %v3470 = vld [vmem:[%s3466 + $0x18] sm:$0xff]
        %v3471 = vld [vmem:[%s3466 + $0x20] sm:$0xff]
        %v3472 = vld [vmem:[%s3466 + $0x28] sm:$0xff]
        %v3473 = vld [vmem:[%s3466 + $0x30] sm:$0xff]
        %v3474 = vld [vmem:[%s3466 + $0x38] sm:$0xff]
        %v3475 = vld [vmem:[%s3466 + $0x40] sm:$0xff]
        %v3476 = vld [vmem:[%s3466 + $0x48] sm:$0xff]
        %v3477 = vld [vmem:[%s3466 + $0x50] sm:$0xff]
        %v3478 = vld [vmem:[%s3466 + $0x58] sm:$0xff]
        %v3479 = vld [vmem:[%s3466 + $0x60] sm:$0xff]
        %v3480 = vld [vmem:[%s3466 + $0x68] sm:$0xff]
        %v3481 = vld [vmem:[%s3466 + $0x70] sm:$0xff]
        %v3482 = vld [vmem:[%s3466 + $0x78] sm:$0xff]
        %3483 = vmatprep.subr.mxu0 0.0
        %3484 = vmatpush1.msra.mxu0 %v3482
        %3485 = vmatprep.subr.mxu0 0.0
        %3486 = vmatpush1.msra.mxu0 %v3481
        %3487 = vmatprep.subr.mxu0 0.0
        %3488 = vmatpush1.msra.mxu0 %v3480
        %3489 = vmatprep.subr.mxu0 0.0
        %3490 = vmatpush1.msra.mxu0 %v3479
        %3491 = vmatprep.subr.mxu0 0.0
        %3492 = vmatpush1.msra.mxu0 %v3478
        %3493 = vmatprep.subr.mxu0 0.0
        %3494 = vmatpush1.msra.mxu0 %v3477
        %3495 = vmatprep.subr.mxu0 0.0
        %3496 = vmatpush1.msra.mxu0 %v3476
        %3497 = vmatprep.subr.mxu0 0.0
        %3498 = vmatpush1.msra.mxu0 %v3475
        %3499 = vmatprep.subr.mxu0 0.0
        %3500 = vmatpush1.msra.mxu0 %v3474
        %3501 = vmatprep.subr.mxu0 0.0
        %3502 = vmatpush1.msra.mxu0 %v3473
        %3503 = vmatprep.subr.mxu0 0.0
        %3504 = vmatpush1.msra.mxu0 %v3472
        %3505 = vmatprep.subr.mxu0 0.0
        %3506 = vmatpush1.msra.mxu0 %v3471
        %3507 = vmatprep.subr.mxu0 0.0
        %3508 = vmatpush1.msra.mxu0 %v3470
        %3509 = vmatprep.subr.mxu0 0.0
        %3510 = vmatpush1.msra.mxu0 %v3469
        %3511 = vmatprep.subr.mxu0 0.0
        %3512 = vmatpush1.msra.mxu0 %v3468
        %3513 = vmatprep.subr.mxu0 0.0
        %3514 = vmatpush1.msra.mxu0 %v3467
        %3515 = vmatprep.subr.mxu0 0.0
        %3516 = vmatpush2.msra.mxu0 0.0
        %3517 = vmatprep.subr.mxu0 0.0
        %3518 = vmatpush2.msra.mxu0 0.0
        %3519 = vmatprep.subr.mxu0 0.0
        %3520 = vmatpush2.msra.mxu0 0.0
        %3521 = vmatprep.subr.mxu0 0.0
        %3522 = vmatpush2.msra.mxu0 0.0
        %3523 = vmatprep.subr.mxu0 0.0
        %3524 = vmatpush2.msra.mxu0 0.0
        %3525 = vmatprep.subr.mxu0 0.0
        %3526 = vmatpush2.msra.mxu0 0.0
        %3527 = vmatprep.subr.mxu0 0.0
        %3528 = vmatpush2.msra.mxu0 0.0
        %3529 = vmatprep.subr.mxu0 0.0
        %3530 = vmatpush2.msra.mxu0 0.0
        %3531 = vmatprep.subr.mxu0 0.0
        %3532 = vmatpush2.msra.mxu0 0.0
        %3533 = vmatprep.subr.mxu0 0.0
        %3534 = vmatpush2.msra.mxu0 0.0
        %3535 = vmatprep.subr.mxu0 0.0
        %3536 = vmatpush2.msra.mxu0 0.0
        %3537 = vmatprep.subr.mxu0 0.0
        %3538 = vmatpush2.msra.mxu0 0.0
        %3539 = vmatprep.subr.mxu0 0.0
        %3540 = vmatpush2.msra.mxu0 0.0
        %3541 = vmatprep.subr.mxu0 0.0
        %3542 = vmatpush2.msra.mxu0 0.0
        %3543 = vmatprep.subr.mxu0 0.0
        %3544 = vmatpush2.msra.mxu0 0.0
        %3545 = vmatprep.subr.mxu0 0.0
        %3546 = vmatpush2.msra.mxu0 0.0
        %3547 = vmatprep.mubr.f32.mxu0 0.0
        %3548 = vmatmul.mubr.f32.gmra.mxu0 %v3434
        %v3549 = vpop.f32.mrf.mxu0
        %v3550 = vadd.f32 0.0, %v3549
        %v3551 = vpop.f32.mrf.mxu0
        %3552 = vmatprep.mubr.f32.mxu0 0.0
        %3553 = vmatmul.mubr.f32.gmra.mxu0 %v3435
        %v3554 = vpop.f32.mrf.mxu0
        %v3555 = vadd.f32 0.0, %v3554
        %v3556 = vpop.f32.mrf.mxu0
        %3557 = vmatprep.mubr.f32.mxu0 0.0
        %3558 = vmatmul.mubr.f32.gmra.mxu0 %v3436
        %v3559 = vpop.f32.mrf.mxu0
        %v3560 = vadd.f32 0.0, %v3559
        %v3561 = vpop.f32.mrf.mxu0
        %3562 = vmatprep.mubr.f32.mxu0 0.0
        %3563 = vmatmul.mubr.f32.gmra.mxu0 %v3437
        %v3564 = vpop.f32.mrf.mxu0
        %v3565 = vadd.f32 0.0, %v3564
        %v3566 = vpop.f32.mrf.mxu0
        %3567 = vmatprep.mubr.f32.mxu0 0.0
        %3568 = vmatmul.mubr.f32.gmra.mxu0 %v3438
        %v3569 = vpop.f32.mrf.mxu0
        %v3570 = vadd.f32 0.0, %v3569
        %v3571 = vpop.f32.mrf.mxu0
        %3572 = vmatprep.mubr.f32.mxu0 0.0
        %3573 = vmatmul.mubr.f32.gmra.mxu0 %v3439
        %v3574 = vpop.f32.mrf.mxu0
        %v3575 = vadd.f32 0.0, %v3574
        %v3576 = vpop.f32.mrf.mxu0
        %3577 = vmatprep.mubr.f32.mxu0 0.0
        %3578 = vmatmul.mubr.f32.gmra.mxu0 %v3440
        %v3579 = vpop.f32.mrf.mxu0
        %v3580 = vadd.f32 0.0, %v3579
        %v3581 = vpop.f32.mrf.mxu0
        %3582 = vmatprep.mubr.f32.mxu0 0.0
        %3583 = vmatmul.mubr.f32.gmra.mxu0 %v3441
        %v3584 = vpop.f32.mrf.mxu0
        %v3585 = vadd.f32 0.0, %v3584
        %v3586 = vpop.f32.mrf.mxu0
        %3587 = vmatprep.mubr.f32.mxu0 0.0
        %3588 = vmatmul.mubr.f32.gmra.mxu0 %v3442
        %v3589 = vpop.f32.mrf.mxu0
        %v3590 = vadd.f32 0.0, %v3589
        %v3591 = vpop.f32.mrf.mxu0
        %3592 = vmatprep.mubr.f32.mxu0 0.0
        %3593 = vmatmul.mubr.f32.gmra.mxu0 %v3443
        %v3594 = vpop.f32.mrf.mxu0
        %v3595 = vadd.f32 0.0, %v3594
        %v3596 = vpop.f32.mrf.mxu0
        %3597 = vmatprep.mubr.f32.mxu0 0.0
        %3598 = vmatmul.mubr.f32.gmra.mxu0 %v3444
        %v3599 = vpop.f32.mrf.mxu0
        %v3600 = vadd.f32 0.0, %v3599
        %v3601 = vpop.f32.mrf.mxu0
        %3602 = vmatprep.mubr.f32.mxu0 0.0
        %3603 = vmatmul.mubr.f32.gmra.mxu0 %v3445
        %v3604 = vpop.f32.mrf.mxu0
        %v3605 = vadd.f32 0.0, %v3604
        %v3606 = vpop.f32.mrf.mxu0
        %3607 = vmatprep.mubr.f32.mxu0 0.0
        %3608 = vmatmul.mubr.f32.gmra.mxu0 %v3446
        %v3609 = vpop.f32.mrf.mxu0
        %v3610 = vadd.f32 0.0, %v3609
        %v3611 = vpop.f32.mrf.mxu0
        %3612 = vmatprep.mubr.f32.mxu0 0.0
        %3613 = vmatmul.mubr.f32.gmra.mxu0 %v3447
        %v3614 = vpop.f32.mrf.mxu0
        %v3615 = vadd.f32 0.0, %v3614
        %v3616 = vpop.f32.mrf.mxu0
        %3617 = vmatprep.mubr.f32.mxu0 0.0
        %3618 = vmatmul.mubr.f32.gmra.mxu0 %v3448
        %v3619 = vpop.f32.mrf.mxu0
        %v3620 = vadd.f32 0.0, %v3619
        %v3621 = vpop.f32.mrf.mxu0
        %3622 = vmatprep.mubr.f32.mxu0 0.0
        %3623 = vmatmul.mubr.f32.gmra.mxu0 %v3449
        %v3624 = vpop.f32.mrf.mxu0
        %v3625 = vadd.f32 0.0, %v3624
        %v3626 = vpop.f32.mrf.mxu0
        %3627 = vmatprep.mubr.f32.mxu0 0.0
        %3628 = vmatmul.mubr.f32.gmra.mxu0 %v3450
        %v3629 = vpop.f32.mrf.mxu0
        %v3630 = vadd.f32 0.0, %v3629
        %v3631 = vpop.f32.mrf.mxu0
        %3632 = vmatprep.mubr.f32.mxu0 0.0
        %3633 = vmatmul.mubr.f32.gmra.mxu0 %v3451
        %v3634 = vpop.f32.mrf.mxu0
        %v3635 = vadd.f32 0.0, %v3634
        %v3636 = vpop.f32.mrf.mxu0
        %3637 = vmatprep.mubr.f32.mxu0 0.0
        %3638 = vmatmul.mubr.f32.gmra.mxu0 %v3452
        %v3639 = vpop.f32.mrf.mxu0
        %v3640 = vadd.f32 0.0, %v3639
        %v3641 = vpop.f32.mrf.mxu0
        %3642 = vmatprep.mubr.f32.mxu0 0.0
        %3643 = vmatmul.mubr.f32.gmra.mxu0 %v3453
        %v3644 = vpop.f32.mrf.mxu0
        %v3645 = vadd.f32 0.0, %v3644
        %v3646 = vpop.f32.mrf.mxu0
        %3647 = vmatprep.mubr.f32.mxu0 0.0
        %3648 = vmatmul.mubr.f32.gmra.mxu0 %v3454
        %v3649 = vpop.f32.mrf.mxu0
        %v3650 = vadd.f32 0.0, %v3649
        %v3651 = vpop.f32.mrf.mxu0
        %3652 = vmatprep.mubr.f32.mxu0 0.0
        %3653 = vmatmul.mubr.f32.gmra.mxu0 %v3455
        %v3654 = vpop.f32.mrf.mxu0
        %v3655 = vadd.f32 0.0, %v3654
        %v3656 = vpop.f32.mrf.mxu0
        %3657 = vmatprep.mubr.f32.mxu0 0.0
        %3658 = vmatmul.mubr.f32.gmra.mxu0 %v3456
        %v3659 = vpop.f32.mrf.mxu0
        %v3660 = vadd.f32 0.0, %v3659
        %v3661 = vpop.f32.mrf.mxu0
        %3662 = vmatprep.mubr.f32.mxu0 0.0
        %3663 = vmatmul.mubr.f32.gmra.mxu0 %v3457
        %v3664 = vpop.f32.mrf.mxu0
        %v3665 = vadd.f32 0.0, %v3664
        %v3666 = vpop.f32.mrf.mxu0
        %3667 = vmatprep.mubr.f32.mxu0 0.0
        %3668 = vmatmul.mubr.f32.gmra.mxu0 %v3458
        %v3669 = vpop.f32.mrf.mxu0
        %v3670 = vadd.f32 0.0, %v3669
        %v3671 = vpop.f32.mrf.mxu0
        %3672 = vmatprep.mubr.f32.mxu0 0.0
        %3673 = vmatmul.mubr.f32.gmra.mxu0 %v3459
        %v3674 = vpop.f32.mrf.mxu0
        %v3675 = vadd.f32 0.0, %v3674
        %v3676 = vpop.f32.mrf.mxu0
        %3677 = vmatprep.mubr.f32.mxu0 0.0
        %3678 = vmatmul.mubr.f32.gmra.mxu0 %v3460
        %v3679 = vpop.f32.mrf.mxu0
        %v3680 = vadd.f32 0.0, %v3679
        %v3681 = vpop.f32.mrf.mxu0
        %3682 = vmatprep.mubr.f32.mxu0 0.0
        %3683 = vmatmul.mubr.f32.gmra.mxu0 %v3461
        %v3684 = vpop.f32.mrf.mxu0
        %v3685 = vadd.f32 0.0, %v3684
        %v3686 = vpop.f32.mrf.mxu0
        %3687 = vmatprep.mubr.f32.mxu0 0.0
        %3688 = vmatmul.mubr.f32.gmra.mxu0 %v3462
        %v3689 = vpop.f32.mrf.mxu0
        %v3690 = vadd.f32 0.0, %v3689
        %v3691 = vpop.f32.mrf.mxu0
        %3692 = vmatprep.mubr.f32.mxu0 0.0
        %3693 = vmatmul.mubr.f32.gmra.mxu0 %v3463
        %v3694 = vpop.f32.mrf.mxu0
        %v3695 = vadd.f32 0.0, %v3694
        %v3696 = vpop.f32.mrf.mxu0
        %3697 = vmatprep.mubr.f32.mxu0 0.0
        %3698 = vmatmul.mubr.f32.gmra.mxu0 %v3464
        %v3699 = vpop.f32.mrf.mxu0
        %v3700 = vadd.f32 0.0, %v3699
        %v3701 = vpop.f32.mrf.mxu0
        %3702 = vmatprep.mubr.f32.mxu0 0.0
        %3703 = vmatmul.mubr.f32.gmra.mxu0 %v3465
        %v3704 = vpop.f32.mrf.mxu0
        %v3705 = vadd.f32 0.0, %v3704
        %v3706 = vpop.f32.mrf.mxu0
        %3707 = vdwg.mxu0
        %3708 = vmatprep.subr.mxu0 0.0
        %3709 = vmatpush1.msra.mxu0 %v3433
        %3710 = vmatprep.subr.mxu0 0.0
        %3711 = vmatpush1.msra.mxu0 %v3432
        %3712 = vmatprep.subr.mxu0 0.0
        %3713 = vmatpush1.msra.mxu0 %v3431
        %3714 = vmatprep.subr.mxu0 0.0
        %3715 = vmatpush1.msra.mxu0 %v3430
        %3716 = vmatprep.subr.mxu0 0.0
        %3717 = vmatpush1.msra.mxu0 %v3429
        %3718 = vmatprep.subr.mxu0 0.0
        %3719 = vmatpush1.msra.mxu0 %v3428
        %3720 = vmatprep.subr.mxu0 0.0
        %3721 = vmatpush1.msra.mxu0 %v3427
        %3722 = vmatprep.subr.mxu0 0.0
        %3723 = vmatpush1.msra.mxu0 %v3426
        %3724 = vmatprep.subr.mxu0 0.0
        %3725 = vmatpush1.msra.mxu0 %v3425
        %3726 = vmatprep.subr.mxu0 0.0
        %3727 = vmatpush1.msra.mxu0 %v3424
        %3728 = vmatprep.subr.mxu0 0.0
        %3729 = vmatpush1.msra.mxu0 %v3423
        %3730 = vmatprep.subr.mxu0 0.0
        %3731 = vmatpush1.msra.mxu0 %v3422
        %3732 = vmatprep.subr.mxu0 0.0
        %3733 = vmatpush1.msra.mxu0 %v3421
        %3734 = vmatprep.subr.mxu0 0.0
        %3735 = vmatpush1.msra.mxu0 %v3420
        %3736 = vmatprep.subr.mxu0 0.0
        %3737 = vmatpush1.msra.mxu0 %v3419
        %3738 = vmatprep.subr.mxu0 0.0
        %3739 = vmatpush1.msra.mxu0 %v3418
        %3740 = vmatprep.subr.mxu0 0.0
        %3741 = vmatpush2.msra.mxu0 0.0
        %3742 = vmatprep.subr.mxu0 0.0
        %3743 = vmatpush2.msra.mxu0 0.0
        %3744 = vmatprep.subr.mxu0 0.0
        %3745 = vmatpush2.msra.mxu0 0.0
        %3746 = vmatprep.subr.mxu0 0.0
        %3747 = vmatpush2.msra.mxu0 0.0
        %3748 = vmatprep.subr.mxu0 0.0
        %3749 = vmatpush2.msra.mxu0 0.0
        %3750 = vmatprep.subr.mxu0 0.0
        %3751 = vmatpush2.msra.mxu0 0.0
        %3752 = vmatprep.subr.mxu0 0.0
        %3753 = vmatpush2.msra.mxu0 0.0
        %3754 = vmatprep.subr.mxu0 0.0
        %3755 = vmatpush2.msra.mxu0 0.0
        %3756 = vmatprep.subr.mxu0 0.0
        %3757 = vmatpush2.msra.mxu0 0.0
        %3758 = vmatprep.subr.mxu0 0.0
        %3759 = vmatpush2.msra.mxu0 0.0
        %3760 = vmatprep.subr.mxu0 0.0
        %3761 = vmatpush2.msra.mxu0 0.0
        %3762 = vmatprep.subr.mxu0 0.0
        %3763 = vmatpush2.msra.mxu0 0.0
        %3764 = vmatprep.subr.mxu0 0.0
        %3765 = vmatpush2.msra.mxu0 0.0
        %3766 = vmatprep.subr.mxu0 0.0
        %3767 = vmatpush2.msra.mxu0 0.0
        %3768 = vmatprep.subr.mxu0 0.0
        %3769 = vmatpush2.msra.mxu0 0.0
        %3770 = vmatprep.subr.mxu0 0.0
        %3771 = vmatpush2.msra.mxu0 0.0
        %3772 = vmatprep.mubr.f32.mxu0 0.0
        %3773 = vmatmul.mubr.f32.gmra.mxu0 %v3386
        %v3774 = vpop.f32.mrf.mxu0
        %v3775 = vadd.f32 %v3550, %v3774
        %v3776 = vpop.f32.mrf.mxu0
        %3777 = vmatprep.mubr.f32.mxu0 0.0
        %3778 = vmatmul.mubr.f32.gmra.mxu0 %v3387
        %v3779 = vpop.f32.mrf.mxu0
        %v3780 = vadd.f32 %v3555, %v3779
        %v3781 = vpop.f32.mrf.mxu0
        %3782 = vmatprep.mubr.f32.mxu0 0.0
        %3783 = vmatmul.mubr.f32.gmra.mxu0 %v3388
        %v3784 = vpop.f32.mrf.mxu0
        %v3785 = vadd.f32 %v3560, %v3784
        %v3786 = vpop.f32.mrf.mxu0
        %3787 = vmatprep.mubr.f32.mxu0 0.0
        %3788 = vmatmul.mubr.f32.gmra.mxu0 %v3389
        %v3789 = vpop.f32.mrf.mxu0
        %v3790 = vadd.f32 %v3565, %v3789
        %v3791 = vpop.f32.mrf.mxu0
        %3792 = vmatprep.mubr.f32.mxu0 0.0
        %3793 = vmatmul.mubr.f32.gmra.mxu0 %v3390
        %v3794 = vpop.f32.mrf.mxu0
        %v3795 = vadd.f32 %v3570, %v3794
        %v3796 = vpop.f32.mrf.mxu0
        %3797 = vmatprep.mubr.f32.mxu0 0.0
        %3798 = vmatmul.mubr.f32.gmra.mxu0 %v3391
        %v3799 = vpop.f32.mrf.mxu0
        %v3800 = vadd.f32 %v3575, %v3799
        %v3801 = vpop.f32.mrf.mxu0
        %3802 = vmatprep.mubr.f32.mxu0 0.0
        %3803 = vmatmul.mubr.f32.gmra.mxu0 %v3392
        %v3804 = vpop.f32.mrf.mxu0
        %v3805 = vadd.f32 %v3580, %v3804
        %v3806 = vpop.f32.mrf.mxu0
        %3807 = vmatprep.mubr.f32.mxu0 0.0
        %3808 = vmatmul.mubr.f32.gmra.mxu0 %v3393
        %v3809 = vpop.f32.mrf.mxu0
        %v3810 = vadd.f32 %v3585, %v3809
        %v3811 = vpop.f32.mrf.mxu0
        %3812 = vmatprep.mubr.f32.mxu0 0.0
        %3813 = vmatmul.mubr.f32.gmra.mxu0 %v3394
        %v3814 = vpop.f32.mrf.mxu0
        %v3815 = vadd.f32 %v3590, %v3814
        %v3816 = vpop.f32.mrf.mxu0
        %3817 = vmatprep.mubr.f32.mxu0 0.0
        %3818 = vmatmul.mubr.f32.gmra.mxu0 %v3395
        %v3819 = vpop.f32.mrf.mxu0
        %v3820 = vadd.f32 %v3595, %v3819
        %v3821 = vpop.f32.mrf.mxu0
        %3822 = vmatprep.mubr.f32.mxu0 0.0
        %3823 = vmatmul.mubr.f32.gmra.mxu0 %v3396
        %v3824 = vpop.f32.mrf.mxu0
        %v3825 = vadd.f32 %v3600, %v3824
        %v3826 = vpop.f32.mrf.mxu0
        %3827 = vmatprep.mubr.f32.mxu0 0.0
        %3828 = vmatmul.mubr.f32.gmra.mxu0 %v3397
        %v3829 = vpop.f32.mrf.mxu0
        %v3830 = vadd.f32 %v3605, %v3829
        %v3831 = vpop.f32.mrf.mxu0
        %3832 = vmatprep.mubr.f32.mxu0 0.0
        %3833 = vmatmul.mubr.f32.gmra.mxu0 %v3398
        %v3834 = vpop.f32.mrf.mxu0
        %v3835 = vadd.f32 %v3610, %v3834
        %v3836 = vpop.f32.mrf.mxu0
        %3837 = vmatprep.mubr.f32.mxu0 0.0
        %3838 = vmatmul.mubr.f32.gmra.mxu0 %v3399
        %v3839 = vpop.f32.mrf.mxu0
        %v3840 = vadd.f32 %v3615, %v3839
        %v3841 = vpop.f32.mrf.mxu0
        %3842 = vmatprep.mubr.f32.mxu0 0.0
        %3843 = vmatmul.mubr.f32.gmra.mxu0 %v3400
        %v3844 = vpop.f32.mrf.mxu0
        %v3845 = vadd.f32 %v3620, %v3844
        %v3846 = vpop.f32.mrf.mxu0
        %3847 = vmatprep.mubr.f32.mxu0 0.0
        %3848 = vmatmul.mubr.f32.gmra.mxu0 %v3401
        %v3849 = vpop.f32.mrf.mxu0
        %v3850 = vadd.f32 %v3625, %v3849
        %v3851 = vpop.f32.mrf.mxu0
        %3852 = vmatprep.mubr.f32.mxu0 0.0
        %3853 = vmatmul.mubr.f32.gmra.mxu0 %v3402
        %v3854 = vpop.f32.mrf.mxu0
        %v3855 = vadd.f32 %v3630, %v3854
        %v3856 = vpop.f32.mrf.mxu0
        %3857 = vmatprep.mubr.f32.mxu0 0.0
        %3858 = vmatmul.mubr.f32.gmra.mxu0 %v3403
        %v3859 = vpop.f32.mrf.mxu0
        %v3860 = vadd.f32 %v3635, %v3859
        %v3861 = vpop.f32.mrf.mxu0
        %3862 = vmatprep.mubr.f32.mxu0 0.0
        %3863 = vmatmul.mubr.f32.gmra.mxu0 %v3404
        %v3864 = vpop.f32.mrf.mxu0
        %v3865 = vadd.f32 %v3640, %v3864
        %v3866 = vpop.f32.mrf.mxu0
        %3867 = vmatprep.mubr.f32.mxu0 0.0
        %3868 = vmatmul.mubr.f32.gmra.mxu0 %v3405
        %v3869 = vpop.f32.mrf.mxu0
        %v3870 = vadd.f32 %v3645, %v3869
        %v3871 = vpop.f32.mrf.mxu0
        %3872 = vmatprep.mubr.f32.mxu0 0.0
        %3873 = vmatmul.mubr.f32.gmra.mxu0 %v3406
        %v3874 = vpop.f32.mrf.mxu0
        %v3875 = vadd.f32 %v3650, %v3874
        %v3876 = vpop.f32.mrf.mxu0
        %3877 = vmatprep.mubr.f32.mxu0 0.0
        %3878 = vmatmul.mubr.f32.gmra.mxu0 %v3407
        %v3879 = vpop.f32.mrf.mxu0
        %v3880 = vadd.f32 %v3655, %v3879
        %v3881 = vpop.f32.mrf.mxu0
        %3882 = vmatprep.mubr.f32.mxu0 0.0
        %3883 = vmatmul.mubr.f32.gmra.mxu0 %v3408
        %v3884 = vpop.f32.mrf.mxu0
        %v3885 = vadd.f32 %v3660, %v3884
        %v3886 = vpop.f32.mrf.mxu0
        %3887 = vmatprep.mubr.f32.mxu0 0.0
        %3888 = vmatmul.mubr.f32.gmra.mxu0 %v3409
        %v3889 = vpop.f32.mrf.mxu0
        %v3890 = vadd.f32 %v3665, %v3889
        %v3891 = vpop.f32.mrf.mxu0
        %3892 = vmatprep.mubr.f32.mxu0 0.0
        %3893 = vmatmul.mubr.f32.gmra.mxu0 %v3410
        %v3894 = vpop.f32.mrf.mxu0
        %v3895 = vadd.f32 %v3670, %v3894
        %v3896 = vpop.f32.mrf.mxu0
        %3897 = vmatprep.mubr.f32.mxu0 0.0
        %3898 = vmatmul.mubr.f32.gmra.mxu0 %v3411
        %v3899 = vpop.f32.mrf.mxu0
        %v3900 = vadd.f32 %v3675, %v3899
        %v3901 = vpop.f32.mrf.mxu0
        %3902 = vmatprep.mubr.f32.mxu0 0.0
        %3903 = vmatmul.mubr.f32.gmra.mxu0 %v3412
        %v3904 = vpop.f32.mrf.mxu0
        %v3905 = vadd.f32 %v3680, %v3904
        %v3906 = vpop.f32.mrf.mxu0
        %3907 = vmatprep.mubr.f32.mxu0 0.0
        %3908 = vmatmul.mubr.f32.gmra.mxu0 %v3413
        %v3909 = vpop.f32.mrf.mxu0
        %v3910 = vadd.f32 %v3685, %v3909
        %v3911 = vpop.f32.mrf.mxu0
        %3912 = vmatprep.mubr.f32.mxu0 0.0
        %3913 = vmatmul.mubr.f32.gmra.mxu0 %v3414
        %v3914 = vpop.f32.mrf.mxu0
        %v3915 = vadd.f32 %v3690, %v3914
        %v3916 = vpop.f32.mrf.mxu0
        %3917 = vmatprep.mubr.f32.mxu0 0.0
        %3918 = vmatmul.mubr.f32.gmra.mxu0 %v3415
        %v3919 = vpop.f32.mrf.mxu0
        %v3920 = vadd.f32 %v3695, %v3919
        %v3921 = vpop.f32.mrf.mxu0
        %3922 = vmatprep.mubr.f32.mxu0 0.0
        %3923 = vmatmul.mubr.f32.gmra.mxu0 %v3416
        %v3924 = vpop.f32.mrf.mxu0
        %v3925 = vadd.f32 %v3700, %v3924
        %v3926 = vpop.f32.mrf.mxu0
        %3927 = vmatprep.mubr.f32.mxu0 0.0
        %3928 = vmatmul.mubr.f32.gmra.mxu0 %v3417
        %v3929 = vpop.f32.mrf.mxu0
        %v3930 = vadd.f32 %v3705, %v3929
        %v3931 = vpop.f32.mrf.mxu0
        %3932 = vdwg.mxu0
        %v3933 = vld [vmem:[#allocation2 + $0x2] sm:$0xff]
        %v3934 = vld [vmem:[#allocation2 + $0xa] sm:$0xff]
        %v3935 = vld [vmem:[#allocation2 + $0x1a] sm:$0xff]
        %v3936 = vld [vmem:[#allocation2 + $0x22] sm:$0xff]
        %v3937 = vld [vmem:[#allocation2 + $0x32] sm:$0xff]
        %v3938 = vld [vmem:[#allocation2 + $0x3a] sm:$0xff]
        %v3939 = vld [vmem:[#allocation2 + $0x4a] sm:$0xff]
        %v3940 = vld [vmem:[#allocation2 + $0x52] sm:$0xff]
        %v3941 = vld [vmem:[#allocation2 + $0x62] sm:$0xff]
        %v3942 = vld [vmem:[#allocation2 + $0x6a] sm:$0xff]
        %v3943 = vld [vmem:[#allocation2 + $0x7a] sm:$0xff]
        %v3944 = vld [vmem:[#allocation2 + $0x82] sm:$0xff]
        %v3945 = vld [vmem:[#allocation2 + $0x92] sm:$0xff]
        %v3946 = vld [vmem:[#allocation2 + $0x9a] sm:$0xff]
        %v3947 = vld [vmem:[#allocation2 + $0xaa] sm:$0xff]
        %v3948 = vld [vmem:[#allocation2 + $0xb2] sm:$0xff]
        %v3949 = vld [vmem:[#allocation2 + $0xc2] sm:$0xff]
        %v3950 = vld [vmem:[#allocation2 + $0xca] sm:$0xff]
        %v3951 = vld [vmem:[#allocation2 + $0xda] sm:$0xff]
        %v3952 = vld [vmem:[#allocation2 + $0xe2] sm:$0xff]
        %v3953 = vld [vmem:[#allocation2 + $0xf2] sm:$0xff]
        %v3954 = vld [vmem:[#allocation2 + $0xfa] sm:$0xff]
        %v3955 = vld [vmem:[#allocation2 + $0x10a] sm:$0xff]
        %v3956 = vld [vmem:[#allocation2 + $0x112] sm:$0xff]
        %v3957 = vld [vmem:[#allocation2 + $0x122] sm:$0xff]
        %v3958 = vld [vmem:[#allocation2 + $0x12a] sm:$0xff]
        %v3959 = vld [vmem:[#allocation2 + $0x13a] sm:$0xff]
        %v3960 = vld [vmem:[#allocation2 + $0x142] sm:$0xff]
        %v3961 = vld [vmem:[#allocation2 + $0x152] sm:$0xff]
        %v3962 = vld [vmem:[#allocation2 + $0x15a] sm:$0xff]
        %v3963 = vld [vmem:[#allocation2 + $0x16a] sm:$0xff]
        %v3964 = vld [vmem:[#allocation2 + $0x172] sm:$0xff]
        %s3965 = scalar_lea.vmem [#allocation8], 256
        %v3966 = vld [vmem:[%s3965] sm:$0xff]
        %v3967 = vld [vmem:[%s3965 + $0x8] sm:$0xff]
        %v3968 = vld [vmem:[%s3965 + $0x10] sm:$0xff]
        %v3969 = vld [vmem:[%s3965 + $0x18] sm:$0xff]
        %v3970 = vld [vmem:[%s3965 + $0x20] sm:$0xff]
        %v3971 = vld [vmem:[%s3965 + $0x28] sm:$0xff]
        %v3972 = vld [vmem:[%s3965 + $0x30] sm:$0xff]
        %v3973 = vld [vmem:[%s3965 + $0x38] sm:$0xff]
        %v3974 = vld [vmem:[%s3965 + $0x40] sm:$0xff]
        %v3975 = vld [vmem:[%s3965 + $0x48] sm:$0xff]
        %v3976 = vld [vmem:[%s3965 + $0x50] sm:$0xff]
        %v3977 = vld [vmem:[%s3965 + $0x58] sm:$0xff]
        %v3978 = vld [vmem:[%s3965 + $0x60] sm:$0xff]
        %v3979 = vld [vmem:[%s3965 + $0x68] sm:$0xff]
        %v3980 = vld [vmem:[%s3965 + $0x70] sm:$0xff]
        %v3981 = vld [vmem:[%s3965 + $0x78] sm:$0xff]
        %3982 = vmatprep.subr.mxu0 0.0
        %3983 = vmatpush1.msra.mxu0 %v3981
        %3984 = vmatprep.subr.mxu0 0.0
        %3985 = vmatpush1.msra.mxu0 %v3980
        %3986 = vmatprep.subr.mxu0 0.0
        %3987 = vmatpush1.msra.mxu0 %v3979
        %3988 = vmatprep.subr.mxu0 0.0
        %3989 = vmatpush1.msra.mxu0 %v3978
        %3990 = vmatprep.subr.mxu0 0.0
        %3991 = vmatpush1.msra.mxu0 %v3977
        %3992 = vmatprep.subr.mxu0 0.0
        %3993 = vmatpush1.msra.mxu0 %v3976
        %3994 = vmatprep.subr.mxu0 0.0
        %3995 = vmatpush1.msra.mxu0 %v3975
        %3996 = vmatprep.subr.mxu0 0.0
        %3997 = vmatpush1.msra.mxu0 %v3974
        %3998 = vmatprep.subr.mxu0 0.0
        %3999 = vmatpush1.msra.mxu0 %v3973
        %4000 = vmatprep.subr.mxu0 0.0
        %4001 = vmatpush1.msra.mxu0 %v3972
        %4002 = vmatprep.subr.mxu0 0.0
        %4003 = vmatpush1.msra.mxu0 %v3971
        %4004 = vmatprep.subr.mxu0 0.0
        %4005 = vmatpush1.msra.mxu0 %v3970
        %4006 = vmatprep.subr.mxu0 0.0
        %4007 = vmatpush1.msra.mxu0 %v3969
        %4008 = vmatprep.subr.mxu0 0.0
        %4009 = vmatpush1.msra.mxu0 %v3968
        %4010 = vmatprep.subr.mxu0 0.0
        %4011 = vmatpush1.msra.mxu0 %v3967
        %4012 = vmatprep.subr.mxu0 0.0
        %4013 = vmatpush1.msra.mxu0 %v3966
        %4014 = vmatprep.subr.mxu0 0.0
        %4015 = vmatpush2.msra.mxu0 0.0
        %4016 = vmatprep.subr.mxu0 0.0
        %4017 = vmatpush2.msra.mxu0 0.0
        %4018 = vmatprep.subr.mxu0 0.0
        %4019 = vmatpush2.msra.mxu0 0.0
        %4020 = vmatprep.subr.mxu0 0.0
        %4021 = vmatpush2.msra.mxu0 0.0
        %4022 = vmatprep.subr.mxu0 0.0
        %4023 = vmatpush2.msra.mxu0 0.0
        %4024 = vmatprep.subr.mxu0 0.0
        %4025 = vmatpush2.msra.mxu0 0.0
        %4026 = vmatprep.subr.mxu0 0.0
        %4027 = vmatpush2.msra.mxu0 0.0
        %4028 = vmatprep.subr.mxu0 0.0
        %4029 = vmatpush2.msra.mxu0 0.0
        %4030 = vmatprep.subr.mxu0 0.0
        %4031 = vmatpush2.msra.mxu0 0.0
        %4032 = vmatprep.subr.mxu0 0.0
        %4033 = vmatpush2.msra.mxu0 0.0
        %4034 = vmatprep.subr.mxu0 0.0
        %4035 = vmatpush2.msra.mxu0 0.0
        %4036 = vmatprep.subr.mxu0 0.0
        %4037 = vmatpush2.msra.mxu0 0.0
        %4038 = vmatprep.subr.mxu0 0.0
        %4039 = vmatpush2.msra.mxu0 0.0
        %4040 = vmatprep.subr.mxu0 0.0
        %4041 = vmatpush2.msra.mxu0 0.0
        %4042 = vmatprep.subr.mxu0 0.0
        %4043 = vmatpush2.msra.mxu0 0.0
        %4044 = vmatprep.subr.mxu0 0.0
        %4045 = vmatpush2.msra.mxu0 0.0
        %4046 = vmatprep.mubr.f32.mxu0 0.0
        %4047 = vmatmul.mubr.f32.gmra.mxu0 %v3933
        %v4048 = vpop.f32.mrf.mxu0
        %v4049 = vadd.f32 0.0, %v4048
        %v4050 = vpop.f32.mrf.mxu0
        %4051 = vmatprep.mubr.f32.mxu0 0.0
        %4052 = vmatmul.mubr.f32.gmra.mxu0 %v3934
        %v4053 = vpop.f32.mrf.mxu0
        %v4054 = vadd.f32 0.0, %v4053
        %v4055 = vpop.f32.mrf.mxu0
        %4056 = vmatprep.mubr.f32.mxu0 0.0
        %4057 = vmatmul.mubr.f32.gmra.mxu0 %v3935
        %v4058 = vpop.f32.mrf.mxu0
        %v4059 = vadd.f32 0.0, %v4058
        %v4060 = vpop.f32.mrf.mxu0
        %4061 = vmatprep.mubr.f32.mxu0 0.0
        %4062 = vmatmul.mubr.f32.gmra.mxu0 %v3936
        %v4063 = vpop.f32.mrf.mxu0
        %v4064 = vadd.f32 0.0, %v4063
        %v4065 = vpop.f32.mrf.mxu0
        %4066 = vmatprep.mubr.f32.mxu0 0.0
        %4067 = vmatmul.mubr.f32.gmra.mxu0 %v3937
        %v4068 = vpop.f32.mrf.mxu0
        %v4069 = vadd.f32 0.0, %v4068
        %v4070 = vpop.f32.mrf.mxu0
        %4071 = vmatprep.mubr.f32.mxu0 0.0
        %4072 = vmatmul.mubr.f32.gmra.mxu0 %v3938
        %v4073 = vpop.f32.mrf.mxu0
        %v4074 = vadd.f32 0.0, %v4073
        %v4075 = vpop.f32.mrf.mxu0
        %4076 = vmatprep.mubr.f32.mxu0 0.0
        %4077 = vmatmul.mubr.f32.gmra.mxu0 %v3939
        %v4078 = vpop.f32.mrf.mxu0
        %v4079 = vadd.f32 0.0, %v4078
        %v4080 = vpop.f32.mrf.mxu0
        %4081 = vmatprep.mubr.f32.mxu0 0.0
        %4082 = vmatmul.mubr.f32.gmra.mxu0 %v3940
        %v4083 = vpop.f32.mrf.mxu0
        %v4084 = vadd.f32 0.0, %v4083
        %v4085 = vpop.f32.mrf.mxu0
        %4086 = vmatprep.mubr.f32.mxu0 0.0
        %4087 = vmatmul.mubr.f32.gmra.mxu0 %v3941
        %v4088 = vpop.f32.mrf.mxu0
        %v4089 = vadd.f32 0.0, %v4088
        %v4090 = vpop.f32.mrf.mxu0
        %4091 = vmatprep.mubr.f32.mxu0 0.0
        %4092 = vmatmul.mubr.f32.gmra.mxu0 %v3942
        %v4093 = vpop.f32.mrf.mxu0
        %v4094 = vadd.f32 0.0, %v4093
        %v4095 = vpop.f32.mrf.mxu0
        %4096 = vmatprep.mubr.f32.mxu0 0.0
        %4097 = vmatmul.mubr.f32.gmra.mxu0 %v3943
        %v4098 = vpop.f32.mrf.mxu0
        %v4099 = vadd.f32 0.0, %v4098
        %v4100 = vpop.f32.mrf.mxu0
        %4101 = vmatprep.mubr.f32.mxu0 0.0
        %4102 = vmatmul.mubr.f32.gmra.mxu0 %v3944
        %v4103 = vpop.f32.mrf.mxu0
        %v4104 = vadd.f32 0.0, %v4103
        %v4105 = vpop.f32.mrf.mxu0
        %4106 = vmatprep.mubr.f32.mxu0 0.0
        %4107 = vmatmul.mubr.f32.gmra.mxu0 %v3945
        %v4108 = vpop.f32.mrf.mxu0
        %v4109 = vadd.f32 0.0, %v4108
        %v4110 = vpop.f32.mrf.mxu0
        %4111 = vmatprep.mubr.f32.mxu0 0.0
        %4112 = vmatmul.mubr.f32.gmra.mxu0 %v3946
        %v4113 = vpop.f32.mrf.mxu0
        %v4114 = vadd.f32 0.0, %v4113
        %v4115 = vpop.f32.mrf.mxu0
        %4116 = vmatprep.mubr.f32.mxu0 0.0
        %4117 = vmatmul.mubr.f32.gmra.mxu0 %v3947
        %v4118 = vpop.f32.mrf.mxu0
        %v4119 = vadd.f32 0.0, %v4118
        %v4120 = vpop.f32.mrf.mxu0
        %4121 = vmatprep.mubr.f32.mxu0 0.0
        %4122 = vmatmul.mubr.f32.gmra.mxu0 %v3948
        %v4123 = vpop.f32.mrf.mxu0
        %v4124 = vadd.f32 0.0, %v4123
        %v4125 = vpop.f32.mrf.mxu0
        %4126 = vmatprep.mubr.f32.mxu0 0.0
        %4127 = vmatmul.mubr.f32.gmra.mxu0 %v3949
        %v4128 = vpop.f32.mrf.mxu0
        %v4129 = vadd.f32 0.0, %v4128
        %v4130 = vpop.f32.mrf.mxu0
        %4131 = vmatprep.mubr.f32.mxu0 0.0
        %4132 = vmatmul.mubr.f32.gmra.mxu0 %v3950
        %v4133 = vpop.f32.mrf.mxu0
        %v4134 = vadd.f32 0.0, %v4133
        %v4135 = vpop.f32.mrf.mxu0
        %4136 = vmatprep.mubr.f32.mxu0 0.0
        %4137 = vmatmul.mubr.f32.gmra.mxu0 %v3951
        %v4138 = vpop.f32.mrf.mxu0
        %v4139 = vadd.f32 0.0, %v4138
        %v4140 = vpop.f32.mrf.mxu0
        %4141 = vmatprep.mubr.f32.mxu0 0.0
        %4142 = vmatmul.mubr.f32.gmra.mxu0 %v3952
        %v4143 = vpop.f32.mrf.mxu0
        %v4144 = vadd.f32 0.0, %v4143
        %v4145 = vpop.f32.mrf.mxu0
        %4146 = vmatprep.mubr.f32.mxu0 0.0
        %4147 = vmatmul.mubr.f32.gmra.mxu0 %v3953
        %v4148 = vpop.f32.mrf.mxu0
        %v4149 = vadd.f32 0.0, %v4148
        %v4150 = vpop.f32.mrf.mxu0
        %4151 = vmatprep.mubr.f32.mxu0 0.0
        %4152 = vmatmul.mubr.f32.gmra.mxu0 %v3954
        %v4153 = vpop.f32.mrf.mxu0
        %v4154 = vadd.f32 0.0, %v4153
        %v4155 = vpop.f32.mrf.mxu0
        %4156 = vmatprep.mubr.f32.mxu0 0.0
        %4157 = vmatmul.mubr.f32.gmra.mxu0 %v3955
        %v4158 = vpop.f32.mrf.mxu0
        %v4159 = vadd.f32 0.0, %v4158
        %v4160 = vpop.f32.mrf.mxu0
        %4161 = vmatprep.mubr.f32.mxu0 0.0
        %4162 = vmatmul.mubr.f32.gmra.mxu0 %v3956
        %v4163 = vpop.f32.mrf.mxu0
        %v4164 = vadd.f32 0.0, %v4163
        %v4165 = vpop.f32.mrf.mxu0
        %4166 = vmatprep.mubr.f32.mxu0 0.0
        %4167 = vmatmul.mubr.f32.gmra.mxu0 %v3957
        %v4168 = vpop.f32.mrf.mxu0
        %v4169 = vadd.f32 0.0, %v4168
        %v4170 = vpop.f32.mrf.mxu0
        %4171 = vmatprep.mubr.f32.mxu0 0.0
        %4172 = vmatmul.mubr.f32.gmra.mxu0 %v3958
        %v4173 = vpop.f32.mrf.mxu0
        %v4174 = vadd.f32 0.0, %v4173
        %v4175 = vpop.f32.mrf.mxu0
        %4176 = vmatprep.mubr.f32.mxu0 0.0
        %4177 = vmatmul.mubr.f32.gmra.mxu0 %v3959
        %v4178 = vpop.f32.mrf.mxu0
        %v4179 = vadd.f32 0.0, %v4178
        %v4180 = vpop.f32.mrf.mxu0
        %4181 = vmatprep.mubr.f32.mxu0 0.0
        %4182 = vmatmul.mubr.f32.gmra.mxu0 %v3960
        %v4183 = vpop.f32.mrf.mxu0
        %v4184 = vadd.f32 0.0, %v4183
        %v4185 = vpop.f32.mrf.mxu0
        %4186 = vmatprep.mubr.f32.mxu0 0.0
        %4187 = vmatmul.mubr.f32.gmra.mxu0 %v3961
        %v4188 = vpop.f32.mrf.mxu0
        %v4189 = vadd.f32 0.0, %v4188
        %v4190 = vpop.f32.mrf.mxu0
        %4191 = vmatprep.mubr.f32.mxu0 0.0
        %4192 = vmatmul.mubr.f32.gmra.mxu0 %v3962
        %v4193 = vpop.f32.mrf.mxu0
        %v4194 = vadd.f32 0.0, %v4193
        %v4195 = vpop.f32.mrf.mxu0
        %4196 = vmatprep.mubr.f32.mxu0 0.0
        %4197 = vmatmul.mubr.f32.gmra.mxu0 %v3963
        %v4198 = vpop.f32.mrf.mxu0
        %v4199 = vadd.f32 0.0, %v4198
        %v4200 = vpop.f32.mrf.mxu0
        %4201 = vmatprep.mubr.f32.mxu0 0.0
        %4202 = vmatmul.mubr.f32.gmra.mxu0 %v3964
        %v4203 = vpop.f32.mrf.mxu0
        %v4204 = vadd.f32 0.0, %v4203
        %v4205 = vpop.f32.mrf.mxu0
        %4206 = vdwg.mxu0
        %v4207 = vadd.f32 %v3775, %v4049
        %v4208 = vadd.f32 %v3780, %v4054
        %v4209 = vadd.f32 %v3785, %v4059
        %v4210 = vadd.f32 %v3790, %v4064
        %v4211 = vadd.f32 %v3795, %v4069
        %v4212 = vadd.f32 %v3800, %v4074
        %v4213 = vadd.f32 %v3805, %v4079
        %v4214 = vadd.f32 %v3810, %v4084
        %v4215 = vadd.f32 %v3815, %v4089
        %v4216 = vadd.f32 %v3820, %v4094
        %v4217 = vadd.f32 %v3825, %v4099
        %v4218 = vadd.f32 %v3830, %v4104
        %v4219 = vadd.f32 %v3835, %v4109
        %v4220 = vadd.f32 %v3840, %v4114
        %v4221 = vadd.f32 %v3845, %v4119
        %v4222 = vadd.f32 %v3850, %v4124
        %v4223 = vadd.f32 %v3855, %v4129
        %v4224 = vadd.f32 %v3860, %v4134
        %v4225 = vadd.f32 %v3865, %v4139
        %v4226 = vadd.f32 %v3870, %v4144
        %v4227 = vadd.f32 %v3875, %v4149
        %v4228 = vadd.f32 %v3880, %v4154
        %v4229 = vadd.f32 %v3885, %v4159
        %v4230 = vadd.f32 %v3890, %v4164
        %v4231 = vadd.f32 %v3895, %v4169
        %v4232 = vadd.f32 %v3900, %v4174
        %v4233 = vadd.f32 %v3905, %v4179
        %v4234 = vadd.f32 %v3910, %v4184
        %v4235 = vadd.f32 %v3915, %v4189
        %v4236 = vadd.f32 %v3920, %v4194
        %v4237 = vadd.f32 %v3925, %v4199
        %v4238 = vadd.f32 %v3930, %v4204
        %v4239 = vld [vmem:[%s1231] sm:$0xff]
        %v4240 = vld [vmem:[%s1231 + $0x8] sm:$0xff]
        %v4241 = vld [vmem:[%s1231 + $0x18] sm:$0xff]
        %v4242 = vld [vmem:[%s1231 + $0x20] sm:$0xff]
        %v4243 = vld [vmem:[%s1231 + $0x30] sm:$0xff]
        %v4244 = vld [vmem:[%s1231 + $0x38] sm:$0xff]
        %v4245 = vld [vmem:[%s1231 + $0x48] sm:$0xff]
        %v4246 = vld [vmem:[%s1231 + $0x50] sm:$0xff]
        %v4247 = vld [vmem:[%s1231 + $0x60] sm:$0xff]
        %v4248 = vld [vmem:[%s1231 + $0x68] sm:$0xff]
        %v4249 = vld [vmem:[%s1231 + $0x78] sm:$0xff]
        %v4250 = vld [vmem:[%s1231 + $0x80] sm:$0xff]
        %v4251 = vld [vmem:[%s1231 + $0x90] sm:$0xff]
        %v4252 = vld [vmem:[%s1231 + $0x98] sm:$0xff]
        %v4253 = vld [vmem:[%s1231 + $0xa8] sm:$0xff]
        %v4254 = vld [vmem:[%s1231 + $0xb0] sm:$0xff]
        %v4255 = vld [vmem:[%s1231 + $0xc0] sm:$0xff]
        %v4256 = vld [vmem:[%s1231 + $0xc8] sm:$0xff]
        %v4257 = vld [vmem:[%s1231 + $0xd8] sm:$0xff]
        %v4258 = vld [vmem:[%s1231 + $0xe0] sm:$0xff]
        %v4259 = vld [vmem:[%s1231 + $0xf0] sm:$0xff]
        %v4260 = vld [vmem:[%s1231 + $0xf8] sm:$0xff]
        %v4261 = vld [vmem:[%s1231 + $0x108] sm:$0xff]
        %v4262 = vld [vmem:[%s1231 + $0x110] sm:$0xff]
        %v4263 = vld [vmem:[%s1231 + $0x120] sm:$0xff]
        %v4264 = vld [vmem:[%s1231 + $0x128] sm:$0xff]
        %v4265 = vld [vmem:[%s1231 + $0x138] sm:$0xff]
        %v4266 = vld [vmem:[%s1231 + $0x140] sm:$0xff]
        %v4267 = vld [vmem:[%s1231 + $0x150] sm:$0xff]
        %v4268 = vld [vmem:[%s1231 + $0x158] sm:$0xff]
        %v4269 = vld [vmem:[%s1231 + $0x168] sm:$0xff]
        %v4270 = vld [vmem:[%s1231 + $0x170] sm:$0xff]
        %s4271 = scalar_lea.vmem [#allocation8], 384
        %v4272 = vld [vmem:[%s4271] sm:$0xff]
        %v4273 = vld [vmem:[%s4271 + $0x8] sm:$0xff]
        %v4274 = vld [vmem:[%s4271 + $0x10] sm:$0xff]
        %v4275 = vld [vmem:[%s4271 + $0x18] sm:$0xff]
        %v4276 = vld [vmem:[%s4271 + $0x20] sm:$0xff]
        %v4277 = vld [vmem:[%s4271 + $0x28] sm:$0xff]
        %v4278 = vld [vmem:[%s4271 + $0x30] sm:$0xff]
        %v4279 = vld [vmem:[%s4271 + $0x38] sm:$0xff]
        %v4280 = vld [vmem:[%s4271 + $0x40] sm:$0xff]
        %v4281 = vld [vmem:[%s4271 + $0x48] sm:$0xff]
        %v4282 = vld [vmem:[%s4271 + $0x50] sm:$0xff]
        %v4283 = vld [vmem:[%s4271 + $0x58] sm:$0xff]
        %v4284 = vld [vmem:[%s4271 + $0x60] sm:$0xff]
        %v4285 = vld [vmem:[%s4271 + $0x68] sm:$0xff]
        %v4286 = vld [vmem:[%s4271 + $0x70] sm:$0xff]
        %v4287 = vld [vmem:[%s4271 + $0x78] sm:$0xff]
        %4288 = vmatprep.subr.mxu0 0.0
        %4289 = vmatpush1.msra.mxu0 %v4287
        %4290 = vmatprep.subr.mxu0 0.0
        %4291 = vmatpush1.msra.mxu0 %v4286
        %4292 = vmatprep.subr.mxu0 0.0
        %4293 = vmatpush1.msra.mxu0 %v4285
        %4294 = vmatprep.subr.mxu0 0.0
        %4295 = vmatpush1.msra.mxu0 %v4284
        %4296 = vmatprep.subr.mxu0 0.0
        %4297 = vmatpush1.msra.mxu0 %v4283
        %4298 = vmatprep.subr.mxu0 0.0
        %4299 = vmatpush1.msra.mxu0 %v4282
        %4300 = vmatprep.subr.mxu0 0.0
        %4301 = vmatpush1.msra.mxu0 %v4281
        %4302 = vmatprep.subr.mxu0 0.0
        %4303 = vmatpush1.msra.mxu0 %v4280
        %4304 = vmatprep.subr.mxu0 0.0
        %4305 = vmatpush1.msra.mxu0 %v4279
        %4306 = vmatprep.subr.mxu0 0.0
        %4307 = vmatpush1.msra.mxu0 %v4278
        %4308 = vmatprep.subr.mxu0 0.0
        %4309 = vmatpush1.msra.mxu0 %v4277
        %4310 = vmatprep.subr.mxu0 0.0
        %4311 = vmatpush1.msra.mxu0 %v4276
        %4312 = vmatprep.subr.mxu0 0.0
        %4313 = vmatpush1.msra.mxu0 %v4275
        %4314 = vmatprep.subr.mxu0 0.0
        %4315 = vmatpush1.msra.mxu0 %v4274
        %4316 = vmatprep.subr.mxu0 0.0
        %4317 = vmatpush1.msra.mxu0 %v4273
        %4318 = vmatprep.subr.mxu0 0.0
        %4319 = vmatpush1.msra.mxu0 %v4272
        %4320 = vmatprep.subr.mxu0 0.0
        %4321 = vmatpush2.msra.mxu0 0.0
        %4322 = vmatprep.subr.mxu0 0.0
        %4323 = vmatpush2.msra.mxu0 0.0
        %4324 = vmatprep.subr.mxu0 0.0
        %4325 = vmatpush2.msra.mxu0 0.0
        %4326 = vmatprep.subr.mxu0 0.0
        %4327 = vmatpush2.msra.mxu0 0.0
        %4328 = vmatprep.subr.mxu0 0.0
        %4329 = vmatpush2.msra.mxu0 0.0
        %4330 = vmatprep.subr.mxu0 0.0
        %4331 = vmatpush2.msra.mxu0 0.0
        %4332 = vmatprep.subr.mxu0 0.0
        %4333 = vmatpush2.msra.mxu0 0.0
        %4334 = vmatprep.subr.mxu0 0.0
        %4335 = vmatpush2.msra.mxu0 0.0
        %4336 = vmatprep.subr.mxu0 0.0
        %4337 = vmatpush2.msra.mxu0 0.0
        %4338 = vmatprep.subr.mxu0 0.0
        %4339 = vmatpush2.msra.mxu0 0.0
        %4340 = vmatprep.subr.mxu0 0.0
        %4341 = vmatpush2.msra.mxu0 0.0
        %4342 = vmatprep.subr.mxu0 0.0
        %4343 = vmatpush2.msra.mxu0 0.0
        %4344 = vmatprep.subr.mxu0 0.0
        %4345 = vmatpush2.msra.mxu0 0.0
        %4346 = vmatprep.subr.mxu0 0.0
        %4347 = vmatpush2.msra.mxu0 0.0
        %4348 = vmatprep.subr.mxu0 0.0
        %4349 = vmatpush2.msra.mxu0 0.0
        %4350 = vmatprep.subr.mxu0 0.0
        %4351 = vmatpush2.msra.mxu0 0.0
        %4352 = vmatprep.mubr.f32.mxu0 0.0
        %4353 = vmatmul.mubr.f32.gmra.mxu0 %v4239
        %v4354 = vpop.f32.mrf.mxu0
        %v4355 = vadd.f32 0.0, %v4354
        %v4356 = vpop.f32.mrf.mxu0
        %4357 = vmatprep.mubr.f32.mxu0 0.0
        %4358 = vmatmul.mubr.f32.gmra.mxu0 %v4240
        %v4359 = vpop.f32.mrf.mxu0
        %v4360 = vadd.f32 0.0, %v4359
        %v4361 = vpop.f32.mrf.mxu0
        %4362 = vmatprep.mubr.f32.mxu0 0.0
        %4363 = vmatmul.mubr.f32.gmra.mxu0 %v4241
        %v4364 = vpop.f32.mrf.mxu0
        %v4365 = vadd.f32 0.0, %v4364
        %v4366 = vpop.f32.mrf.mxu0
        %4367 = vmatprep.mubr.f32.mxu0 0.0
        %4368 = vmatmul.mubr.f32.gmra.mxu0 %v4242
        %v4369 = vpop.f32.mrf.mxu0
        %v4370 = vadd.f32 0.0, %v4369
        %v4371 = vpop.f32.mrf.mxu0
        %4372 = vmatprep.mubr.f32.mxu0 0.0
        %4373 = vmatmul.mubr.f32.gmra.mxu0 %v4243
        %v4374 = vpop.f32.mrf.mxu0
        %v4375 = vadd.f32 0.0, %v4374
        %v4376 = vpop.f32.mrf.mxu0
        %4377 = vmatprep.mubr.f32.mxu0 0.0
        %4378 = vmatmul.mubr.f32.gmra.mxu0 %v4244
        %v4379 = vpop.f32.mrf.mxu0
        %v4380 = vadd.f32 0.0, %v4379
        %v4381 = vpop.f32.mrf.mxu0
        %4382 = vmatprep.mubr.f32.mxu0 0.0
        %4383 = vmatmul.mubr.f32.gmra.mxu0 %v4245
        %v4384 = vpop.f32.mrf.mxu0
        %v4385 = vadd.f32 0.0, %v4384
        %v4386 = vpop.f32.mrf.mxu0
        %4387 = vmatprep.mubr.f32.mxu0 0.0
        %4388 = vmatmul.mubr.f32.gmra.mxu0 %v4246
        %v4389 = vpop.f32.mrf.mxu0
        %v4390 = vadd.f32 0.0, %v4389
        %v4391 = vpop.f32.mrf.mxu0
        %4392 = vmatprep.mubr.f32.mxu0 0.0
        %4393 = vmatmul.mubr.f32.gmra.mxu0 %v4247
        %v4394 = vpop.f32.mrf.mxu0
        %v4395 = vadd.f32 0.0, %v4394
        %v4396 = vpop.f32.mrf.mxu0
        %4397 = vmatprep.mubr.f32.mxu0 0.0
        %4398 = vmatmul.mubr.f32.gmra.mxu0 %v4248
        %v4399 = vpop.f32.mrf.mxu0
        %v4400 = vadd.f32 0.0, %v4399
        %v4401 = vpop.f32.mrf.mxu0
        %4402 = vmatprep.mubr.f32.mxu0 0.0
        %4403 = vmatmul.mubr.f32.gmra.mxu0 %v4249
        %v4404 = vpop.f32.mrf.mxu0
        %v4405 = vadd.f32 0.0, %v4404
        %v4406 = vpop.f32.mrf.mxu0
        %4407 = vmatprep.mubr.f32.mxu0 0.0
        %4408 = vmatmul.mubr.f32.gmra.mxu0 %v4250
        %v4409 = vpop.f32.mrf.mxu0
        %v4410 = vadd.f32 0.0, %v4409
        %v4411 = vpop.f32.mrf.mxu0
        %4412 = vmatprep.mubr.f32.mxu0 0.0
        %4413 = vmatmul.mubr.f32.gmra.mxu0 %v4251
        %v4414 = vpop.f32.mrf.mxu0
        %v4415 = vadd.f32 0.0, %v4414
        %v4416 = vpop.f32.mrf.mxu0
        %4417 = vmatprep.mubr.f32.mxu0 0.0
        %4418 = vmatmul.mubr.f32.gmra.mxu0 %v4252
        %v4419 = vpop.f32.mrf.mxu0
        %v4420 = vadd.f32 0.0, %v4419
        %v4421 = vpop.f32.mrf.mxu0
        %4422 = vmatprep.mubr.f32.mxu0 0.0
        %4423 = vmatmul.mubr.f32.gmra.mxu0 %v4253
        %v4424 = vpop.f32.mrf.mxu0
        %v4425 = vadd.f32 0.0, %v4424
        %v4426 = vpop.f32.mrf.mxu0
        %4427 = vmatprep.mubr.f32.mxu0 0.0
        %4428 = vmatmul.mubr.f32.gmra.mxu0 %v4254
        %v4429 = vpop.f32.mrf.mxu0
        %v4430 = vadd.f32 0.0, %v4429
        %v4431 = vpop.f32.mrf.mxu0
        %4432 = vmatprep.mubr.f32.mxu0 0.0
        %4433 = vmatmul.mubr.f32.gmra.mxu0 %v4255
        %v4434 = vpop.f32.mrf.mxu0
        %v4435 = vadd.f32 0.0, %v4434
        %v4436 = vpop.f32.mrf.mxu0
        %4437 = vmatprep.mubr.f32.mxu0 0.0
        %4438 = vmatmul.mubr.f32.gmra.mxu0 %v4256
        %v4439 = vpop.f32.mrf.mxu0
        %v4440 = vadd.f32 0.0, %v4439
        %v4441 = vpop.f32.mrf.mxu0
        %4442 = vmatprep.mubr.f32.mxu0 0.0
        %4443 = vmatmul.mubr.f32.gmra.mxu0 %v4257
        %v4444 = vpop.f32.mrf.mxu0
        %v4445 = vadd.f32 0.0, %v4444
        %v4446 = vpop.f32.mrf.mxu0
        %4447 = vmatprep.mubr.f32.mxu0 0.0
        %4448 = vmatmul.mubr.f32.gmra.mxu0 %v4258
        %v4449 = vpop.f32.mrf.mxu0
        %v4450 = vadd.f32 0.0, %v4449
        %v4451 = vpop.f32.mrf.mxu0
        %4452 = vmatprep.mubr.f32.mxu0 0.0
        %4453 = vmatmul.mubr.f32.gmra.mxu0 %v4259
        %v4454 = vpop.f32.mrf.mxu0
        %v4455 = vadd.f32 0.0, %v4454
        %v4456 = vpop.f32.mrf.mxu0
        %4457 = vmatprep.mubr.f32.mxu0 0.0
        %4458 = vmatmul.mubr.f32.gmra.mxu0 %v4260
        %v4459 = vpop.f32.mrf.mxu0
        %v4460 = vadd.f32 0.0, %v4459
        %v4461 = vpop.f32.mrf.mxu0
        %4462 = vmatprep.mubr.f32.mxu0 0.0
        %4463 = vmatmul.mubr.f32.gmra.mxu0 %v4261
        %v4464 = vpop.f32.mrf.mxu0
        %v4465 = vadd.f32 0.0, %v4464
        %v4466 = vpop.f32.mrf.mxu0
        %4467 = vmatprep.mubr.f32.mxu0 0.0
        %4468 = vmatmul.mubr.f32.gmra.mxu0 %v4262
        %v4469 = vpop.f32.mrf.mxu0
        %v4470 = vadd.f32 0.0, %v4469
        %v4471 = vpop.f32.mrf.mxu0
        %4472 = vmatprep.mubr.f32.mxu0 0.0
        %4473 = vmatmul.mubr.f32.gmra.mxu0 %v4263
        %v4474 = vpop.f32.mrf.mxu0
        %v4475 = vadd.f32 0.0, %v4474
        %v4476 = vpop.f32.mrf.mxu0
        %4477 = vmatprep.mubr.f32.mxu0 0.0
        %4478 = vmatmul.mubr.f32.gmra.mxu0 %v4264
        %v4479 = vpop.f32.mrf.mxu0
        %v4480 = vadd.f32 0.0, %v4479
        %v4481 = vpop.f32.mrf.mxu0
        %4482 = vmatprep.mubr.f32.mxu0 0.0
        %4483 = vmatmul.mubr.f32.gmra.mxu0 %v4265
        %v4484 = vpop.f32.mrf.mxu0
        %v4485 = vadd.f32 0.0, %v4484
        %v4486 = vpop.f32.mrf.mxu0
        %4487 = vmatprep.mubr.f32.mxu0 0.0
        %4488 = vmatmul.mubr.f32.gmra.mxu0 %v4266
        %v4489 = vpop.f32.mrf.mxu0
        %v4490 = vadd.f32 0.0, %v4489
        %v4491 = vpop.f32.mrf.mxu0
        %4492 = vmatprep.mubr.f32.mxu0 0.0
        %4493 = vmatmul.mubr.f32.gmra.mxu0 %v4267
        %v4494 = vpop.f32.mrf.mxu0
        %v4495 = vadd.f32 0.0, %v4494
        %v4496 = vpop.f32.mrf.mxu0
        %4497 = vmatprep.mubr.f32.mxu0 0.0
        %4498 = vmatmul.mubr.f32.gmra.mxu0 %v4268
        %v4499 = vpop.f32.mrf.mxu0
        %v4500 = vadd.f32 0.0, %v4499
        %v4501 = vpop.f32.mrf.mxu0
        %4502 = vmatprep.mubr.f32.mxu0 0.0
        %4503 = vmatmul.mubr.f32.gmra.mxu0 %v4269
        %v4504 = vpop.f32.mrf.mxu0
        %v4505 = vadd.f32 0.0, %v4504
        %v4506 = vpop.f32.mrf.mxu0
        %4507 = vmatprep.mubr.f32.mxu0 0.0
        %4508 = vmatmul.mubr.f32.gmra.mxu0 %v4270
        %v4509 = vpop.f32.mrf.mxu0
        %v4510 = vadd.f32 0.0, %v4509
        %v4511 = vpop.f32.mrf.mxu0
        %4512 = vdwg.mxu0
        %v4513 = vadd.f32 %v4207, %v4355
        %v4514 = vadd.f32 %v4208, %v4360
        %v4515 = vadd.f32 %v4209, %v4365
        %v4516 = vadd.f32 %v4210, %v4370
        %v4517 = vadd.f32 %v4211, %v4375
        %v4518 = vadd.f32 %v4212, %v4380
        %v4519 = vadd.f32 %v4213, %v4385
        %v4520 = vadd.f32 %v4214, %v4390
        %v4521 = vadd.f32 %v4215, %v4395
        %v4522 = vadd.f32 %v4216, %v4400
        %v4523 = vadd.f32 %v4217, %v4405
        %v4524 = vadd.f32 %v4218, %v4410
        %v4525 = vadd.f32 %v4219, %v4415
        %v4526 = vadd.f32 %v4220, %v4420
        %v4527 = vadd.f32 %v4221, %v4425
        %v4528 = vadd.f32 %v4222, %v4430
        %v4529 = vadd.f32 %v4223, %v4435
        %v4530 = vadd.f32 %v4224, %v4440
        %v4531 = vadd.f32 %v4225, %v4445
        %v4532 = vadd.f32 %v4226, %v4450
        %v4533 = vadd.f32 %v4227, %v4455
        %v4534 = vadd.f32 %v4228, %v4460
        %v4535 = vadd.f32 %v4229, %v4465
        %v4536 = vadd.f32 %v4230, %v4470
        %v4537 = vadd.f32 %v4231, %v4475
        %v4538 = vadd.f32 %v4232, %v4480
        %v4539 = vadd.f32 %v4233, %v4485
        %v4540 = vadd.f32 %v4234, %v4490
        %v4541 = vadd.f32 %v4235, %v4495
        %v4542 = vadd.f32 %v4236, %v4500
        %v4543 = vadd.f32 %v4237, %v4505
        %v4544 = vadd.f32 %v4238, %v4510
        %v4545 = vld [vmem:[%s1231 + $0x1] sm:$0xff]
        %v4546 = vld [vmem:[%s1231 + $0x9] sm:$0xff]
        %v4547 = vld [vmem:[%s1231 + $0x19] sm:$0xff]
        %v4548 = vld [vmem:[%s1231 + $0x21] sm:$0xff]
        %v4549 = vld [vmem:[%s1231 + $0x31] sm:$0xff]
        %v4550 = vld [vmem:[%s1231 + $0x39] sm:$0xff]
        %v4551 = vld [vmem:[%s1231 + $0x49] sm:$0xff]
        %v4552 = vld [vmem:[%s1231 + $0x51] sm:$0xff]
        %v4553 = vld [vmem:[%s1231 + $0x61] sm:$0xff]
        %v4554 = vld [vmem:[%s1231 + $0x69] sm:$0xff]
        %v4555 = vld [vmem:[%s1231 + $0x79] sm:$0xff]
        %v4556 = vld [vmem:[%s1231 + $0x81] sm:$0xff]
        %v4557 = vld [vmem:[%s1231 + $0x91] sm:$0xff]
        %v4558 = vld [vmem:[%s1231 + $0x99] sm:$0xff]
        %v4559 = vld [vmem:[%s1231 + $0xa9] sm:$0xff]
        %v4560 = vld [vmem:[%s1231 + $0xb1] sm:$0xff]
        %v4561 = vld [vmem:[%s1231 + $0xc1] sm:$0xff]
        %v4562 = vld [vmem:[%s1231 + $0xc9] sm:$0xff]
        %v4563 = vld [vmem:[%s1231 + $0xd9] sm:$0xff]
        %v4564 = vld [vmem:[%s1231 + $0xe1] sm:$0xff]
        %v4565 = vld [vmem:[%s1231 + $0xf1] sm:$0xff]
        %v4566 = vld [vmem:[%s1231 + $0xf9] sm:$0xff]
        %v4567 = vld [vmem:[%s1231 + $0x109] sm:$0xff]
        %v4568 = vld [vmem:[%s1231 + $0x111] sm:$0xff]
        %v4569 = vld [vmem:[%s1231 + $0x121] sm:$0xff]
        %v4570 = vld [vmem:[%s1231 + $0x129] sm:$0xff]
        %v4571 = vld [vmem:[%s1231 + $0x139] sm:$0xff]
        %v4572 = vld [vmem:[%s1231 + $0x141] sm:$0xff]
        %v4573 = vld [vmem:[%s1231 + $0x151] sm:$0xff]
        %v4574 = vld [vmem:[%s1231 + $0x159] sm:$0xff]
        %v4575 = vld [vmem:[%s1231 + $0x169] sm:$0xff]
        %v4576 = vld [vmem:[%s1231 + $0x171] sm:$0xff]
        %s4577 = scalar_lea.vmem [#allocation8], 512
        %v4578 = vld [vmem:[%s4577] sm:$0xff]
        %v4579 = vld [vmem:[%s4577 + $0x8] sm:$0xff]
        %v4580 = vld [vmem:[%s4577 + $0x10] sm:$0xff]
        %v4581 = vld [vmem:[%s4577 + $0x18] sm:$0xff]
        %v4582 = vld [vmem:[%s4577 + $0x20] sm:$0xff]
        %v4583 = vld [vmem:[%s4577 + $0x28] sm:$0xff]
        %v4584 = vld [vmem:[%s4577 + $0x30] sm:$0xff]
        %v4585 = vld [vmem:[%s4577 + $0x38] sm:$0xff]
        %v4586 = vld [vmem:[%s4577 + $0x40] sm:$0xff]
        %v4587 = vld [vmem:[%s4577 + $0x48] sm:$0xff]
        %v4588 = vld [vmem:[%s4577 + $0x50] sm:$0xff]
        %v4589 = vld [vmem:[%s4577 + $0x58] sm:$0xff]
        %v4590 = vld [vmem:[%s4577 + $0x60] sm:$0xff]
        %v4591 = vld [vmem:[%s4577 + $0x68] sm:$0xff]
        %v4592 = vld [vmem:[%s4577 + $0x70] sm:$0xff]
        %v4593 = vld [vmem:[%s4577 + $0x78] sm:$0xff]
        %4594 = vmatprep.subr.mxu0 0.0
        %4595 = vmatpush1.msra.mxu0 %v4593
        %4596 = vmatprep.subr.mxu0 0.0
        %4597 = vmatpush1.msra.mxu0 %v4592
        %4598 = vmatprep.subr.mxu0 0.0
        %4599 = vmatpush1.msra.mxu0 %v4591
        %4600 = vmatprep.subr.mxu0 0.0
        %4601 = vmatpush1.msra.mxu0 %v4590
        %4602 = vmatprep.subr.mxu0 0.0
        %4603 = vmatpush1.msra.mxu0 %v4589
        %4604 = vmatprep.subr.mxu0 0.0
        %4605 = vmatpush1.msra.mxu0 %v4588
        %4606 = vmatprep.subr.mxu0 0.0
        %4607 = vmatpush1.msra.mxu0 %v4587
        %4608 = vmatprep.subr.mxu0 0.0
        %4609 = vmatpush1.msra.mxu0 %v4586
        %4610 = vmatprep.subr.mxu0 0.0
        %4611 = vmatpush1.msra.mxu0 %v4585
        %4612 = vmatprep.subr.mxu0 0.0
        %4613 = vmatpush1.msra.mxu0 %v4584
        %4614 = vmatprep.subr.mxu0 0.0
        %4615 = vmatpush1.msra.mxu0 %v4583
        %4616 = vmatprep.subr.mxu0 0.0
        %4617 = vmatpush1.msra.mxu0 %v4582
        %4618 = vmatprep.subr.mxu0 0.0
        %4619 = vmatpush1.msra.mxu0 %v4581
        %4620 = vmatprep.subr.mxu0 0.0
        %4621 = vmatpush1.msra.mxu0 %v4580
        %4622 = vmatprep.subr.mxu0 0.0
        %4623 = vmatpush1.msra.mxu0 %v4579
        %4624 = vmatprep.subr.mxu0 0.0
        %4625 = vmatpush1.msra.mxu0 %v4578
        %4626 = vmatprep.subr.mxu0 0.0
        %4627 = vmatpush2.msra.mxu0 0.0
        %4628 = vmatprep.subr.mxu0 0.0
        %4629 = vmatpush2.msra.mxu0 0.0
        %4630 = vmatprep.subr.mxu0 0.0
        %4631 = vmatpush2.msra.mxu0 0.0
        %4632 = vmatprep.subr.mxu0 0.0
        %4633 = vmatpush2.msra.mxu0 0.0
        %4634 = vmatprep.subr.mxu0 0.0
        %4635 = vmatpush2.msra.mxu0 0.0
        %4636 = vmatprep.subr.mxu0 0.0
        %4637 = vmatpush2.msra.mxu0 0.0
        %4638 = vmatprep.subr.mxu0 0.0
        %4639 = vmatpush2.msra.mxu0 0.0
        %4640 = vmatprep.subr.mxu0 0.0
        %4641 = vmatpush2.msra.mxu0 0.0
        %4642 = vmatprep.subr.mxu0 0.0
        %4643 = vmatpush2.msra.mxu0 0.0
        %4644 = vmatprep.subr.mxu0 0.0
        %4645 = vmatpush2.msra.mxu0 0.0
        %4646 = vmatprep.subr.mxu0 0.0
        %4647 = vmatpush2.msra.mxu0 0.0
        %4648 = vmatprep.subr.mxu0 0.0
        %4649 = vmatpush2.msra.mxu0 0.0
        %4650 = vmatprep.subr.mxu0 0.0
        %4651 = vmatpush2.msra.mxu0 0.0
        %4652 = vmatprep.subr.mxu0 0.0
        %4653 = vmatpush2.msra.mxu0 0.0
        %4654 = vmatprep.subr.mxu0 0.0
        %4655 = vmatpush2.msra.mxu0 0.0
        %4656 = vmatprep.subr.mxu0 0.0
        %4657 = vmatpush2.msra.mxu0 0.0
        %4658 = vmatprep.mubr.f32.mxu0 0.0
        %4659 = vmatmul.mubr.f32.gmra.mxu0 %v4545
        %v4660 = vpop.f32.mrf.mxu0
        %v4661 = vadd.f32 0.0, %v4660
        %v4662 = vpop.f32.mrf.mxu0
        %4663 = vmatprep.mubr.f32.mxu0 0.0
        %4664 = vmatmul.mubr.f32.gmra.mxu0 %v4546
        %v4665 = vpop.f32.mrf.mxu0
        %v4666 = vadd.f32 0.0, %v4665
        %v4667 = vpop.f32.mrf.mxu0
        %4668 = vmatprep.mubr.f32.mxu0 0.0
        %4669 = vmatmul.mubr.f32.gmra.mxu0 %v4547
        %v4670 = vpop.f32.mrf.mxu0
        %v4671 = vadd.f32 0.0, %v4670
        %v4672 = vpop.f32.mrf.mxu0
        %4673 = vmatprep.mubr.f32.mxu0 0.0
        %4674 = vmatmul.mubr.f32.gmra.mxu0 %v4548
        %v4675 = vpop.f32.mrf.mxu0
        %v4676 = vadd.f32 0.0, %v4675
        %v4677 = vpop.f32.mrf.mxu0
        %4678 = vmatprep.mubr.f32.mxu0 0.0
        %4679 = vmatmul.mubr.f32.gmra.mxu0 %v4549
        %v4680 = vpop.f32.mrf.mxu0
        %v4681 = vadd.f32 0.0, %v4680
        %v4682 = vpop.f32.mrf.mxu0
        %4683 = vmatprep.mubr.f32.mxu0 0.0
        %4684 = vmatmul.mubr.f32.gmra.mxu0 %v4550
        %v4685 = vpop.f32.mrf.mxu0
        %v4686 = vadd.f32 0.0, %v4685
        %v4687 = vpop.f32.mrf.mxu0
        %4688 = vmatprep.mubr.f32.mxu0 0.0
        %4689 = vmatmul.mubr.f32.gmra.mxu0 %v4551
        %v4690 = vpop.f32.mrf.mxu0
        %v4691 = vadd.f32 0.0, %v4690
        %v4692 = vpop.f32.mrf.mxu0
        %4693 = vmatprep.mubr.f32.mxu0 0.0
        %4694 = vmatmul.mubr.f32.gmra.mxu0 %v4552
        %v4695 = vpop.f32.mrf.mxu0
        %v4696 = vadd.f32 0.0, %v4695
        %v4697 = vpop.f32.mrf.mxu0
        %4698 = vmatprep.mubr.f32.mxu0 0.0
        %4699 = vmatmul.mubr.f32.gmra.mxu0 %v4553
        %v4700 = vpop.f32.mrf.mxu0
        %v4701 = vadd.f32 0.0, %v4700
        %v4702 = vpop.f32.mrf.mxu0
        %4703 = vmatprep.mubr.f32.mxu0 0.0
        %4704 = vmatmul.mubr.f32.gmra.mxu0 %v4554
        %v4705 = vpop.f32.mrf.mxu0
        %v4706 = vadd.f32 0.0, %v4705
        %v4707 = vpop.f32.mrf.mxu0
        %4708 = vmatprep.mubr.f32.mxu0 0.0
        %4709 = vmatmul.mubr.f32.gmra.mxu0 %v4555
        %v4710 = vpop.f32.mrf.mxu0
        %v4711 = vadd.f32 0.0, %v4710
        %v4712 = vpop.f32.mrf.mxu0
        %4713 = vmatprep.mubr.f32.mxu0 0.0
        %4714 = vmatmul.mubr.f32.gmra.mxu0 %v4556
        %v4715 = vpop.f32.mrf.mxu0
        %v4716 = vadd.f32 0.0, %v4715
        %v4717 = vpop.f32.mrf.mxu0
        %4718 = vmatprep.mubr.f32.mxu0 0.0
        %4719 = vmatmul.mubr.f32.gmra.mxu0 %v4557
        %v4720 = vpop.f32.mrf.mxu0
        %v4721 = vadd.f32 0.0, %v4720
        %v4722 = vpop.f32.mrf.mxu0
        %4723 = vmatprep.mubr.f32.mxu0 0.0
        %4724 = vmatmul.mubr.f32.gmra.mxu0 %v4558
        %v4725 = vpop.f32.mrf.mxu0
        %v4726 = vadd.f32 0.0, %v4725
        %v4727 = vpop.f32.mrf.mxu0
        %4728 = vmatprep.mubr.f32.mxu0 0.0
        %4729 = vmatmul.mubr.f32.gmra.mxu0 %v4559
        %v4730 = vpop.f32.mrf.mxu0
        %v4731 = vadd.f32 0.0, %v4730
        %v4732 = vpop.f32.mrf.mxu0
        %4733 = vmatprep.mubr.f32.mxu0 0.0
        %4734 = vmatmul.mubr.f32.gmra.mxu0 %v4560
        %v4735 = vpop.f32.mrf.mxu0
        %v4736 = vadd.f32 0.0, %v4735
        %v4737 = vpop.f32.mrf.mxu0
        %4738 = vmatprep.mubr.f32.mxu0 0.0
        %4739 = vmatmul.mubr.f32.gmra.mxu0 %v4561
        %v4740 = vpop.f32.mrf.mxu0
        %v4741 = vadd.f32 0.0, %v4740
        %v4742 = vpop.f32.mrf.mxu0
        %4743 = vmatprep.mubr.f32.mxu0 0.0
        %4744 = vmatmul.mubr.f32.gmra.mxu0 %v4562
        %v4745 = vpop.f32.mrf.mxu0
        %v4746 = vadd.f32 0.0, %v4745
        %v4747 = vpop.f32.mrf.mxu0
        %4748 = vmatprep.mubr.f32.mxu0 0.0
        %4749 = vmatmul.mubr.f32.gmra.mxu0 %v4563
        %v4750 = vpop.f32.mrf.mxu0
        %v4751 = vadd.f32 0.0, %v4750
        %v4752 = vpop.f32.mrf.mxu0
        %4753 = vmatprep.mubr.f32.mxu0 0.0
        %4754 = vmatmul.mubr.f32.gmra.mxu0 %v4564
        %v4755 = vpop.f32.mrf.mxu0
        %v4756 = vadd.f32 0.0, %v4755
        %v4757 = vpop.f32.mrf.mxu0
        %4758 = vmatprep.mubr.f32.mxu0 0.0
        %4759 = vmatmul.mubr.f32.gmra.mxu0 %v4565
        %v4760 = vpop.f32.mrf.mxu0
        %v4761 = vadd.f32 0.0, %v4760
        %v4762 = vpop.f32.mrf.mxu0
        %4763 = vmatprep.mubr.f32.mxu0 0.0
        %4764 = vmatmul.mubr.f32.gmra.mxu0 %v4566
        %v4765 = vpop.f32.mrf.mxu0
        %v4766 = vadd.f32 0.0, %v4765
        %v4767 = vpop.f32.mrf.mxu0
        %4768 = vmatprep.mubr.f32.mxu0 0.0
        %4769 = vmatmul.mubr.f32.gmra.mxu0 %v4567
        %v4770 = vpop.f32.mrf.mxu0
        %v4771 = vadd.f32 0.0, %v4770
        %v4772 = vpop.f32.mrf.mxu0
        %4773 = vmatprep.mubr.f32.mxu0 0.0
        %4774 = vmatmul.mubr.f32.gmra.mxu0 %v4568
        %v4775 = vpop.f32.mrf.mxu0
        %v4776 = vadd.f32 0.0, %v4775
        %v4777 = vpop.f32.mrf.mxu0
        %4778 = vmatprep.mubr.f32.mxu0 0.0
        %4779 = vmatmul.mubr.f32.gmra.mxu0 %v4569
        %v4780 = vpop.f32.mrf.mxu0
        %v4781 = vadd.f32 0.0, %v4780
        %v4782 = vpop.f32.mrf.mxu0
        %4783 = vmatprep.mubr.f32.mxu0 0.0
        %4784 = vmatmul.mubr.f32.gmra.mxu0 %v4570
        %v4785 = vpop.f32.mrf.mxu0
        %v4786 = vadd.f32 0.0, %v4785
        %v4787 = vpop.f32.mrf.mxu0
        %4788 = vmatprep.mubr.f32.mxu0 0.0
        %4789 = vmatmul.mubr.f32.gmra.mxu0 %v4571
        %v4790 = vpop.f32.mrf.mxu0
        %v4791 = vadd.f32 0.0, %v4790
        %v4792 = vpop.f32.mrf.mxu0
        %4793 = vmatprep.mubr.f32.mxu0 0.0
        %4794 = vmatmul.mubr.f32.gmra.mxu0 %v4572
        %v4795 = vpop.f32.mrf.mxu0
        %v4796 = vadd.f32 0.0, %v4795
        %v4797 = vpop.f32.mrf.mxu0
        %4798 = vmatprep.mubr.f32.mxu0 0.0
        %4799 = vmatmul.mubr.f32.gmra.mxu0 %v4573
        %v4800 = vpop.f32.mrf.mxu0
        %v4801 = vadd.f32 0.0, %v4800
        %v4802 = vpop.f32.mrf.mxu0
        %4803 = vmatprep.mubr.f32.mxu0 0.0
        %4804 = vmatmul.mubr.f32.gmra.mxu0 %v4574
        %v4805 = vpop.f32.mrf.mxu0
        %v4806 = vadd.f32 0.0, %v4805
        %v4807 = vpop.f32.mrf.mxu0
        %4808 = vmatprep.mubr.f32.mxu0 0.0
        %4809 = vmatmul.mubr.f32.gmra.mxu0 %v4575
        %v4810 = vpop.f32.mrf.mxu0
        %v4811 = vadd.f32 0.0, %v4810
        %v4812 = vpop.f32.mrf.mxu0
        %4813 = vmatprep.mubr.f32.mxu0 0.0
        %4814 = vmatmul.mubr.f32.gmra.mxu0 %v4576
        %v4815 = vpop.f32.mrf.mxu0
        %v4816 = vadd.f32 0.0, %v4815
        %v4817 = vpop.f32.mrf.mxu0
        %4818 = vdwg.mxu0
        %v4819 = vadd.f32 %v4513, %v4661
        %v4820 = vadd.f32 %v4514, %v4666
        %v4821 = vadd.f32 %v4515, %v4671
        %v4822 = vadd.f32 %v4516, %v4676
        %v4823 = vadd.f32 %v4517, %v4681
        %v4824 = vadd.f32 %v4518, %v4686
        %v4825 = vadd.f32 %v4519, %v4691
        %v4826 = vadd.f32 %v4520, %v4696
        %v4827 = vadd.f32 %v4521, %v4701
        %v4828 = vadd.f32 %v4522, %v4706
        %v4829 = vadd.f32 %v4523, %v4711
        %v4830 = vadd.f32 %v4524, %v4716
        %v4831 = vadd.f32 %v4525, %v4721
        %v4832 = vadd.f32 %v4526, %v4726
        %v4833 = vadd.f32 %v4527, %v4731
        %v4834 = vadd.f32 %v4528, %v4736
        %v4835 = vadd.f32 %v4529, %v4741
        %v4836 = vadd.f32 %v4530, %v4746
        %v4837 = vadd.f32 %v4531, %v4751
        %v4838 = vadd.f32 %v4532, %v4756
        %v4839 = vadd.f32 %v4533, %v4761
        %v4840 = vadd.f32 %v4534, %v4766
        %v4841 = vadd.f32 %v4535, %v4771
        %v4842 = vadd.f32 %v4536, %v4776
        %v4843 = vadd.f32 %v4537, %v4781
        %v4844 = vadd.f32 %v4538, %v4786
        %v4845 = vadd.f32 %v4539, %v4791
        %v4846 = vadd.f32 %v4540, %v4796
        %v4847 = vadd.f32 %v4541, %v4801
        %v4848 = vadd.f32 %v4542, %v4806
        %v4849 = vadd.f32 %v4543, %v4811
        %v4850 = vadd.f32 %v4544, %v4816
        %v4851 = vld [vmem:[%s1231 + $0x2] sm:$0xff]
        %v4852 = vld [vmem:[%s1231 + $0xa] sm:$0xff]
        %v4853 = vld [vmem:[%s1231 + $0x1a] sm:$0xff]
        %v4854 = vld [vmem:[%s1231 + $0x22] sm:$0xff]
        %v4855 = vld [vmem:[%s1231 + $0x32] sm:$0xff]
        %v4856 = vld [vmem:[%s1231 + $0x3a] sm:$0xff]
        %v4857 = vld [vmem:[%s1231 + $0x4a] sm:$0xff]
        %v4858 = vld [vmem:[%s1231 + $0x52] sm:$0xff]
        %v4859 = vld [vmem:[%s1231 + $0x62] sm:$0xff]
        %v4860 = vld [vmem:[%s1231 + $0x6a] sm:$0xff]
        %v4861 = vld [vmem:[%s1231 + $0x7a] sm:$0xff]
        %v4862 = vld [vmem:[%s1231 + $0x82] sm:$0xff]
        %v4863 = vld [vmem:[%s1231 + $0x92] sm:$0xff]
        %v4864 = vld [vmem:[%s1231 + $0x9a] sm:$0xff]
        %v4865 = vld [vmem:[%s1231 + $0xaa] sm:$0xff]
        %v4866 = vld [vmem:[%s1231 + $0xb2] sm:$0xff]
        %v4867 = vld [vmem:[%s1231 + $0xc2] sm:$0xff]
        %v4868 = vld [vmem:[%s1231 + $0xca] sm:$0xff]
        %v4869 = vld [vmem:[%s1231 + $0xda] sm:$0xff]
        %v4870 = vld [vmem:[%s1231 + $0xe2] sm:$0xff]
        %v4871 = vld [vmem:[%s1231 + $0xf2] sm:$0xff]
        %v4872 = vld [vmem:[%s1231 + $0xfa] sm:$0xff]
        %v4873 = vld [vmem:[%s1231 + $0x10a] sm:$0xff]
        %v4874 = vld [vmem:[%s1231 + $0x112] sm:$0xff]
        %v4875 = vld [vmem:[%s1231 + $0x122] sm:$0xff]
        %v4876 = vld [vmem:[%s1231 + $0x12a] sm:$0xff]
        %v4877 = vld [vmem:[%s1231 + $0x13a] sm:$0xff]
        %v4878 = vld [vmem:[%s1231 + $0x142] sm:$0xff]
        %v4879 = vld [vmem:[%s1231 + $0x152] sm:$0xff]
        %v4880 = vld [vmem:[%s1231 + $0x15a] sm:$0xff]
        %v4881 = vld [vmem:[%s1231 + $0x16a] sm:$0xff]
        %v4882 = vld [vmem:[%s1231 + $0x172] sm:$0xff]
        %s4883 = scalar_lea.vmem [#allocation8], 640
        %v4884 = vld [vmem:[%s4883] sm:$0xff]
        %v4885 = vld [vmem:[%s4883 + $0x8] sm:$0xff]
        %v4886 = vld [vmem:[%s4883 + $0x10] sm:$0xff]
        %v4887 = vld [vmem:[%s4883 + $0x18] sm:$0xff]
        %v4888 = vld [vmem:[%s4883 + $0x20] sm:$0xff]
        %v4889 = vld [vmem:[%s4883 + $0x28] sm:$0xff]
        %v4890 = vld [vmem:[%s4883 + $0x30] sm:$0xff]
        %v4891 = vld [vmem:[%s4883 + $0x38] sm:$0xff]
        %v4892 = vld [vmem:[%s4883 + $0x40] sm:$0xff]
        %v4893 = vld [vmem:[%s4883 + $0x48] sm:$0xff]
        %v4894 = vld [vmem:[%s4883 + $0x50] sm:$0xff]
        %v4895 = vld [vmem:[%s4883 + $0x58] sm:$0xff]
        %v4896 = vld [vmem:[%s4883 + $0x60] sm:$0xff]
        %v4897 = vld [vmem:[%s4883 + $0x68] sm:$0xff]
        %v4898 = vld [vmem:[%s4883 + $0x70] sm:$0xff]
        %v4899 = vld [vmem:[%s4883 + $0x78] sm:$0xff]
        %4900 = vmatprep.subr.mxu0 0.0
        %4901 = vmatpush1.msra.mxu0 %v4899
        %4902 = vmatprep.subr.mxu0 0.0
        %4903 = vmatpush1.msra.mxu0 %v4898
        %4904 = vmatprep.subr.mxu0 0.0
        %4905 = vmatpush1.msra.mxu0 %v4897
        %4906 = vmatprep.subr.mxu0 0.0
        %4907 = vmatpush1.msra.mxu0 %v4896
        %4908 = vmatprep.subr.mxu0 0.0
        %4909 = vmatpush1.msra.mxu0 %v4895
        %4910 = vmatprep.subr.mxu0 0.0
        %4911 = vmatpush1.msra.mxu0 %v4894
        %4912 = vmatprep.subr.mxu0 0.0
        %4913 = vmatpush1.msra.mxu0 %v4893
        %4914 = vmatprep.subr.mxu0 0.0
        %4915 = vmatpush1.msra.mxu0 %v4892
        %4916 = vmatprep.subr.mxu0 0.0
        %4917 = vmatpush1.msra.mxu0 %v4891
        %4918 = vmatprep.subr.mxu0 0.0
        %4919 = vmatpush1.msra.mxu0 %v4890
        %4920 = vmatprep.subr.mxu0 0.0
        %4921 = vmatpush1.msra.mxu0 %v4889
        %4922 = vmatprep.subr.mxu0 0.0
        %4923 = vmatpush1.msra.mxu0 %v4888
        %4924 = vmatprep.subr.mxu0 0.0
        %4925 = vmatpush1.msra.mxu0 %v4887
        %4926 = vmatprep.subr.mxu0 0.0
        %4927 = vmatpush1.msra.mxu0 %v4886
        %4928 = vmatprep.subr.mxu0 0.0
        %4929 = vmatpush1.msra.mxu0 %v4885
        %4930 = vmatprep.subr.mxu0 0.0
        %4931 = vmatpush1.msra.mxu0 %v4884
        %4932 = vmatprep.subr.mxu0 0.0
        %4933 = vmatpush2.msra.mxu0 0.0
        %4934 = vmatprep.subr.mxu0 0.0
        %4935 = vmatpush2.msra.mxu0 0.0
        %4936 = vmatprep.subr.mxu0 0.0
        %4937 = vmatpush2.msra.mxu0 0.0
        %4938 = vmatprep.subr.mxu0 0.0
        %4939 = vmatpush2.msra.mxu0 0.0
        %4940 = vmatprep.subr.mxu0 0.0
        %4941 = vmatpush2.msra.mxu0 0.0
        %4942 = vmatprep.subr.mxu0 0.0
        %4943 = vmatpush2.msra.mxu0 0.0
        %4944 = vmatprep.subr.mxu0 0.0
        %4945 = vmatpush2.msra.mxu0 0.0
        %4946 = vmatprep.subr.mxu0 0.0
        %4947 = vmatpush2.msra.mxu0 0.0
        %4948 = vmatprep.subr.mxu0 0.0
        %4949 = vmatpush2.msra.mxu0 0.0
        %4950 = vmatprep.subr.mxu0 0.0
        %4951 = vmatpush2.msra.mxu0 0.0
        %4952 = vmatprep.subr.mxu0 0.0
        %4953 = vmatpush2.msra.mxu0 0.0
        %4954 = vmatprep.subr.mxu0 0.0
        %4955 = vmatpush2.msra.mxu0 0.0
        %4956 = vmatprep.subr.mxu0 0.0
        %4957 = vmatpush2.msra.mxu0 0.0
        %4958 = vmatprep.subr.mxu0 0.0
        %4959 = vmatpush2.msra.mxu0 0.0
        %4960 = vmatprep.subr.mxu0 0.0
        %4961 = vmatpush2.msra.mxu0 0.0
        %4962 = vmatprep.subr.mxu0 0.0
        %4963 = vmatpush2.msra.mxu0 0.0
        %4964 = vmatprep.mubr.f32.mxu0 0.0
        %4965 = vmatmul.mubr.f32.gmra.mxu0 %v4851
        %v4966 = vpop.f32.mrf.mxu0
        %v4967 = vadd.f32 0.0, %v4966
        %v4968 = vpop.f32.mrf.mxu0
        %4969 = vmatprep.mubr.f32.mxu0 0.0
        %4970 = vmatmul.mubr.f32.gmra.mxu0 %v4852
        %v4971 = vpop.f32.mrf.mxu0
        %v4972 = vadd.f32 0.0, %v4971
        %v4973 = vpop.f32.mrf.mxu0
        %4974 = vmatprep.mubr.f32.mxu0 0.0
        %4975 = vmatmul.mubr.f32.gmra.mxu0 %v4853
        %v4976 = vpop.f32.mrf.mxu0
        %v4977 = vadd.f32 0.0, %v4976
        %v4978 = vpop.f32.mrf.mxu0
        %4979 = vmatprep.mubr.f32.mxu0 0.0
        %4980 = vmatmul.mubr.f32.gmra.mxu0 %v4854
        %v4981 = vpop.f32.mrf.mxu0
        %v4982 = vadd.f32 0.0, %v4981
        %v4983 = vpop.f32.mrf.mxu0
        %4984 = vmatprep.mubr.f32.mxu0 0.0
        %4985 = vmatmul.mubr.f32.gmra.mxu0 %v4855
        %v4986 = vpop.f32.mrf.mxu0
        %v4987 = vadd.f32 0.0, %v4986
        %v4988 = vpop.f32.mrf.mxu0
        %4989 = vmatprep.mubr.f32.mxu0 0.0
        %4990 = vmatmul.mubr.f32.gmra.mxu0 %v4856
        %v4991 = vpop.f32.mrf.mxu0
        %v4992 = vadd.f32 0.0, %v4991
        %v4993 = vpop.f32.mrf.mxu0
        %4994 = vmatprep.mubr.f32.mxu0 0.0
        %4995 = vmatmul.mubr.f32.gmra.mxu0 %v4857
        %v4996 = vpop.f32.mrf.mxu0
        %v4997 = vadd.f32 0.0, %v4996
        %v4998 = vpop.f32.mrf.mxu0
        %4999 = vmatprep.mubr.f32.mxu0 0.0
        %5000 = vmatmul.mubr.f32.gmra.mxu0 %v4858
        %v5001 = vpop.f32.mrf.mxu0
        %v5002 = vadd.f32 0.0, %v5001
        %v5003 = vpop.f32.mrf.mxu0
        %5004 = vmatprep.mubr.f32.mxu0 0.0
        %5005 = vmatmul.mubr.f32.gmra.mxu0 %v4859
        %v5006 = vpop.f32.mrf.mxu0
        %v5007 = vadd.f32 0.0, %v5006
        %v5008 = vpop.f32.mrf.mxu0
        %5009 = vmatprep.mubr.f32.mxu0 0.0
        %5010 = vmatmul.mubr.f32.gmra.mxu0 %v4860
        %v5011 = vpop.f32.mrf.mxu0
        %v5012 = vadd.f32 0.0, %v5011
        %v5013 = vpop.f32.mrf.mxu0
        %5014 = vmatprep.mubr.f32.mxu0 0.0
        %5015 = vmatmul.mubr.f32.gmra.mxu0 %v4861
        %v5016 = vpop.f32.mrf.mxu0
        %v5017 = vadd.f32 0.0, %v5016
        %v5018 = vpop.f32.mrf.mxu0
        %5019 = vmatprep.mubr.f32.mxu0 0.0
        %5020 = vmatmul.mubr.f32.gmra.mxu0 %v4862
        %v5021 = vpop.f32.mrf.mxu0
        %v5022 = vadd.f32 0.0, %v5021
        %v5023 = vpop.f32.mrf.mxu0
        %5024 = vmatprep.mubr.f32.mxu0 0.0
        %5025 = vmatmul.mubr.f32.gmra.mxu0 %v4863
        %v5026 = vpop.f32.mrf.mxu0
        %v5027 = vadd.f32 0.0, %v5026
        %v5028 = vpop.f32.mrf.mxu0
        %5029 = vmatprep.mubr.f32.mxu0 0.0
        %5030 = vmatmul.mubr.f32.gmra.mxu0 %v4864
        %v5031 = vpop.f32.mrf.mxu0
        %v5032 = vadd.f32 0.0, %v5031
        %v5033 = vpop.f32.mrf.mxu0
        %5034 = vmatprep.mubr.f32.mxu0 0.0
        %5035 = vmatmul.mubr.f32.gmra.mxu0 %v4865
        %v5036 = vpop.f32.mrf.mxu0
        %v5037 = vadd.f32 0.0, %v5036
        %v5038 = vpop.f32.mrf.mxu0
        %5039 = vmatprep.mubr.f32.mxu0 0.0
        %5040 = vmatmul.mubr.f32.gmra.mxu0 %v4866
        %v5041 = vpop.f32.mrf.mxu0
        %v5042 = vadd.f32 0.0, %v5041
        %v5043 = vpop.f32.mrf.mxu0
        %5044 = vmatprep.mubr.f32.mxu0 0.0
        %5045 = vmatmul.mubr.f32.gmra.mxu0 %v4867
        %v5046 = vpop.f32.mrf.mxu0
        %v5047 = vadd.f32 0.0, %v5046
        %v5048 = vpop.f32.mrf.mxu0
        %5049 = vmatprep.mubr.f32.mxu0 0.0
        %5050 = vmatmul.mubr.f32.gmra.mxu0 %v4868
        %v5051 = vpop.f32.mrf.mxu0
        %v5052 = vadd.f32 0.0, %v5051
        %v5053 = vpop.f32.mrf.mxu0
        %5054 = vmatprep.mubr.f32.mxu0 0.0
        %5055 = vmatmul.mubr.f32.gmra.mxu0 %v4869
        %v5056 = vpop.f32.mrf.mxu0
        %v5057 = vadd.f32 0.0, %v5056
        %v5058 = vpop.f32.mrf.mxu0
        %5059 = vmatprep.mubr.f32.mxu0 0.0
        %5060 = vmatmul.mubr.f32.gmra.mxu0 %v4870
        %v5061 = vpop.f32.mrf.mxu0
        %v5062 = vadd.f32 0.0, %v5061
        %v5063 = vpop.f32.mrf.mxu0
        %5064 = vmatprep.mubr.f32.mxu0 0.0
        %5065 = vmatmul.mubr.f32.gmra.mxu0 %v4871
        %v5066 = vpop.f32.mrf.mxu0
        %v5067 = vadd.f32 0.0, %v5066
        %v5068 = vpop.f32.mrf.mxu0
        %5069 = vmatprep.mubr.f32.mxu0 0.0
        %5070 = vmatmul.mubr.f32.gmra.mxu0 %v4872
        %v5071 = vpop.f32.mrf.mxu0
        %v5072 = vadd.f32 0.0, %v5071
        %v5073 = vpop.f32.mrf.mxu0
        %5074 = vmatprep.mubr.f32.mxu0 0.0
        %5075 = vmatmul.mubr.f32.gmra.mxu0 %v4873
        %v5076 = vpop.f32.mrf.mxu0
        %v5077 = vadd.f32 0.0, %v5076
        %v5078 = vpop.f32.mrf.mxu0
        %5079 = vmatprep.mubr.f32.mxu0 0.0
        %5080 = vmatmul.mubr.f32.gmra.mxu0 %v4874
        %v5081 = vpop.f32.mrf.mxu0
        %v5082 = vadd.f32 0.0, %v5081
        %v5083 = vpop.f32.mrf.mxu0
        %5084 = vmatprep.mubr.f32.mxu0 0.0
        %5085 = vmatmul.mubr.f32.gmra.mxu0 %v4875
        %v5086 = vpop.f32.mrf.mxu0
        %v5087 = vadd.f32 0.0, %v5086
        %v5088 = vpop.f32.mrf.mxu0
        %5089 = vmatprep.mubr.f32.mxu0 0.0
        %5090 = vmatmul.mubr.f32.gmra.mxu0 %v4876
        %v5091 = vpop.f32.mrf.mxu0
        %v5092 = vadd.f32 0.0, %v5091
        %v5093 = vpop.f32.mrf.mxu0
        %5094 = vmatprep.mubr.f32.mxu0 0.0
        %5095 = vmatmul.mubr.f32.gmra.mxu0 %v4877
        %v5096 = vpop.f32.mrf.mxu0
        %v5097 = vadd.f32 0.0, %v5096
        %v5098 = vpop.f32.mrf.mxu0
        %5099 = vmatprep.mubr.f32.mxu0 0.0
        %5100 = vmatmul.mubr.f32.gmra.mxu0 %v4878
        %v5101 = vpop.f32.mrf.mxu0
        %v5102 = vadd.f32 0.0, %v5101
        %v5103 = vpop.f32.mrf.mxu0
        %5104 = vmatprep.mubr.f32.mxu0 0.0
        %5105 = vmatmul.mubr.f32.gmra.mxu0 %v4879
        %v5106 = vpop.f32.mrf.mxu0
        %v5107 = vadd.f32 0.0, %v5106
        %v5108 = vpop.f32.mrf.mxu0
        %5109 = vmatprep.mubr.f32.mxu0 0.0
        %5110 = vmatmul.mubr.f32.gmra.mxu0 %v4880
        %v5111 = vpop.f32.mrf.mxu0
        %v5112 = vadd.f32 0.0, %v5111
        %v5113 = vpop.f32.mrf.mxu0
        %5114 = vmatprep.mubr.f32.mxu0 0.0
        %5115 = vmatmul.mubr.f32.gmra.mxu0 %v4881
        %v5116 = vpop.f32.mrf.mxu0
        %v5117 = vadd.f32 0.0, %v5116
        %v5118 = vpop.f32.mrf.mxu0
        %5119 = vmatprep.mubr.f32.mxu0 0.0
        %5120 = vmatmul.mubr.f32.gmra.mxu0 %v4882
        %v5121 = vpop.f32.mrf.mxu0
        %v5122 = vadd.f32 0.0, %v5121
        %v5123 = vpop.f32.mrf.mxu0
        %5124 = vdwg.mxu0
        %v5125 = vadd.f32 %v4819, %v4967
        %v5126 = vadd.f32 %v4820, %v4972
        %v5127 = vadd.f32 %v4821, %v4977
        %v5128 = vadd.f32 %v4822, %v4982
        %v5129 = vadd.f32 %v4823, %v4987
        %v5130 = vadd.f32 %v4824, %v4992
        %v5131 = vadd.f32 %v4825, %v4997
        %v5132 = vadd.f32 %v4826, %v5002
        %v5133 = vadd.f32 %v4827, %v5007
        %v5134 = vadd.f32 %v4828, %v5012
        %v5135 = vadd.f32 %v4829, %v5017
        %v5136 = vadd.f32 %v4830, %v5022
        %v5137 = vadd.f32 %v4831, %v5027
        %v5138 = vadd.f32 %v4832, %v5032
        %v5139 = vadd.f32 %v4833, %v5037
        %v5140 = vadd.f32 %v4834, %v5042
        %v5141 = vadd.f32 %v4835, %v5047
        %v5142 = vadd.f32 %v4836, %v5052
        %v5143 = vadd.f32 %v4837, %v5057
        %v5144 = vadd.f32 %v4838, %v5062
        %v5145 = vadd.f32 %v4839, %v5067
        %v5146 = vadd.f32 %v4840, %v5072
        %v5147 = vadd.f32 %v4841, %v5077
        %v5148 = vadd.f32 %v4842, %v5082
        %v5149 = vadd.f32 %v4843, %v5087
        %v5150 = vadd.f32 %v4844, %v5092
        %v5151 = vadd.f32 %v4845, %v5097
        %v5152 = vadd.f32 %v4846, %v5102
        %v5153 = vadd.f32 %v4847, %v5107
        %v5154 = vadd.f32 %v4848, %v5112
        %v5155 = vadd.f32 %v4849, %v5117
        %v5156 = vadd.f32 %v4850, %v5122
        %v5157 = vld [vmem:[%s2150] sm:$0xff]
        %v5158 = vld [vmem:[%s2150 + $0x8] sm:$0xff]
        %v5159 = vld [vmem:[%s2150 + $0x18] sm:$0xff]
        %v5160 = vld [vmem:[%s2150 + $0x20] sm:$0xff]
        %v5161 = vld [vmem:[%s2150 + $0x30] sm:$0xff]
        %v5162 = vld [vmem:[%s2150 + $0x38] sm:$0xff]
        %v5163 = vld [vmem:[%s2150 + $0x48] sm:$0xff]
        %v5164 = vld [vmem:[%s2150 + $0x50] sm:$0xff]
        %v5165 = vld [vmem:[%s2150 + $0x60] sm:$0xff]
        %v5166 = vld [vmem:[%s2150 + $0x68] sm:$0xff]
        %v5167 = vld [vmem:[%s2150 + $0x78] sm:$0xff]
        %v5168 = vld [vmem:[%s2150 + $0x80] sm:$0xff]
        %v5169 = vld [vmem:[%s2150 + $0x90] sm:$0xff]
        %v5170 = vld [vmem:[%s2150 + $0x98] sm:$0xff]
        %v5171 = vld [vmem:[%s2150 + $0xa8] sm:$0xff]
        %v5172 = vld [vmem:[%s2150 + $0xb0] sm:$0xff]
        %v5173 = vld [vmem:[%s2150 + $0xc0] sm:$0xff]
        %v5174 = vld [vmem:[%s2150 + $0xc8] sm:$0xff]
        %v5175 = vld [vmem:[%s2150 + $0xd8] sm:$0xff]
        %v5176 = vld [vmem:[%s2150 + $0xe0] sm:$0xff]
        %v5177 = vld [vmem:[%s2150 + $0xf0] sm:$0xff]
        %v5178 = vld [vmem:[%s2150 + $0xf8] sm:$0xff]
        %v5179 = vld [vmem:[%s2150 + $0x108] sm:$0xff]
        %v5180 = vld [vmem:[%s2150 + $0x110] sm:$0xff]
        %v5181 = vld [vmem:[%s2150 + $0x120] sm:$0xff]
        %v5182 = vld [vmem:[%s2150 + $0x128] sm:$0xff]
        %v5183 = vld [vmem:[%s2150 + $0x138] sm:$0xff]
        %v5184 = vld [vmem:[%s2150 + $0x140] sm:$0xff]
        %v5185 = vld [vmem:[%s2150 + $0x150] sm:$0xff]
        %v5186 = vld [vmem:[%s2150 + $0x158] sm:$0xff]
        %v5187 = vld [vmem:[%s2150 + $0x168] sm:$0xff]
        %v5188 = vld [vmem:[%s2150 + $0x170] sm:$0xff]
        %s5189 = scalar_lea.vmem [#allocation8], 768
        %v5190 = vld [vmem:[%s5189] sm:$0xff]
        %v5191 = vld [vmem:[%s5189 + $0x8] sm:$0xff]
        %v5192 = vld [vmem:[%s5189 + $0x10] sm:$0xff]
        %v5193 = vld [vmem:[%s5189 + $0x18] sm:$0xff]
        %v5194 = vld [vmem:[%s5189 + $0x20] sm:$0xff]
        %v5195 = vld [vmem:[%s5189 + $0x28] sm:$0xff]
        %v5196 = vld [vmem:[%s5189 + $0x30] sm:$0xff]
        %v5197 = vld [vmem:[%s5189 + $0x38] sm:$0xff]
        %v5198 = vld [vmem:[%s5189 + $0x40] sm:$0xff]
        %v5199 = vld [vmem:[%s5189 + $0x48] sm:$0xff]
        %v5200 = vld [vmem:[%s5189 + $0x50] sm:$0xff]
        %v5201 = vld [vmem:[%s5189 + $0x58] sm:$0xff]
        %v5202 = vld [vmem:[%s5189 + $0x60] sm:$0xff]
        %v5203 = vld [vmem:[%s5189 + $0x68] sm:$0xff]
        %v5204 = vld [vmem:[%s5189 + $0x70] sm:$0xff]
        %v5205 = vld [vmem:[%s5189 + $0x78] sm:$0xff]
        %5206 = vmatprep.subr.mxu0 0.0
        %5207 = vmatpush1.msra.mxu0 %v5205
        %5208 = vmatprep.subr.mxu0 0.0
        %5209 = vmatpush1.msra.mxu0 %v5204
        %5210 = vmatprep.subr.mxu0 0.0
        %5211 = vmatpush1.msra.mxu0 %v5203
        %5212 = vmatprep.subr.mxu0 0.0
        %5213 = vmatpush1.msra.mxu0 %v5202
        %5214 = vmatprep.subr.mxu0 0.0
        %5215 = vmatpush1.msra.mxu0 %v5201
        %5216 = vmatprep.subr.mxu0 0.0
        %5217 = vmatpush1.msra.mxu0 %v5200
        %5218 = vmatprep.subr.mxu0 0.0
        %5219 = vmatpush1.msra.mxu0 %v5199
        %5220 = vmatprep.subr.mxu0 0.0
        %5221 = vmatpush1.msra.mxu0 %v5198
        %5222 = vmatprep.subr.mxu0 0.0
        %5223 = vmatpush1.msra.mxu0 %v5197
        %5224 = vmatprep.subr.mxu0 0.0
        %5225 = vmatpush1.msra.mxu0 %v5196
        %5226 = vmatprep.subr.mxu0 0.0
        %5227 = vmatpush1.msra.mxu0 %v5195
        %5228 = vmatprep.subr.mxu0 0.0
        %5229 = vmatpush1.msra.mxu0 %v5194
        %5230 = vmatprep.subr.mxu0 0.0
        %5231 = vmatpush1.msra.mxu0 %v5193
        %5232 = vmatprep.subr.mxu0 0.0
        %5233 = vmatpush1.msra.mxu0 %v5192
        %5234 = vmatprep.subr.mxu0 0.0
        %5235 = vmatpush1.msra.mxu0 %v5191
        %5236 = vmatprep.subr.mxu0 0.0
        %5237 = vmatpush1.msra.mxu0 %v5190
        %5238 = vmatprep.subr.mxu0 0.0
        %5239 = vmatpush2.msra.mxu0 0.0
        %5240 = vmatprep.subr.mxu0 0.0
        %5241 = vmatpush2.msra.mxu0 0.0
        %5242 = vmatprep.subr.mxu0 0.0
        %5243 = vmatpush2.msra.mxu0 0.0
        %5244 = vmatprep.subr.mxu0 0.0
        %5245 = vmatpush2.msra.mxu0 0.0
        %5246 = vmatprep.subr.mxu0 0.0
        %5247 = vmatpush2.msra.mxu0 0.0
        %5248 = vmatprep.subr.mxu0 0.0
        %5249 = vmatpush2.msra.mxu0 0.0
        %5250 = vmatprep.subr.mxu0 0.0
        %5251 = vmatpush2.msra.mxu0 0.0
        %5252 = vmatprep.subr.mxu0 0.0
        %5253 = vmatpush2.msra.mxu0 0.0
        %5254 = vmatprep.subr.mxu0 0.0
        %5255 = vmatpush2.msra.mxu0 0.0
        %5256 = vmatprep.subr.mxu0 0.0
        %5257 = vmatpush2.msra.mxu0 0.0
        %5258 = vmatprep.subr.mxu0 0.0
        %5259 = vmatpush2.msra.mxu0 0.0
        %5260 = vmatprep.subr.mxu0 0.0
        %5261 = vmatpush2.msra.mxu0 0.0
        %5262 = vmatprep.subr.mxu0 0.0
        %5263 = vmatpush2.msra.mxu0 0.0
        %5264 = vmatprep.subr.mxu0 0.0
        %5265 = vmatpush2.msra.mxu0 0.0
        %5266 = vmatprep.subr.mxu0 0.0
        %5267 = vmatpush2.msra.mxu0 0.0
        %5268 = vmatprep.subr.mxu0 0.0
        %5269 = vmatpush2.msra.mxu0 0.0
        %5270 = vmatprep.mubr.f32.mxu0 0.0
        %5271 = vmatmul.mubr.f32.gmra.mxu0 %v5157
        %v5272 = vpop.f32.mrf.mxu0
        %v5273 = vadd.f32 0.0, %v5272
        %v5274 = vpop.f32.mrf.mxu0
        %5275 = vmatprep.mubr.f32.mxu0 0.0
        %5276 = vmatmul.mubr.f32.gmra.mxu0 %v5158
        %v5277 = vpop.f32.mrf.mxu0
        %v5278 = vadd.f32 0.0, %v5277
        %v5279 = vpop.f32.mrf.mxu0
        %5280 = vmatprep.mubr.f32.mxu0 0.0
        %5281 = vmatmul.mubr.f32.gmra.mxu0 %v5159
        %v5282 = vpop.f32.mrf.mxu0
        %v5283 = vadd.f32 0.0, %v5282
        %v5284 = vpop.f32.mrf.mxu0
        %5285 = vmatprep.mubr.f32.mxu0 0.0
        %5286 = vmatmul.mubr.f32.gmra.mxu0 %v5160
        %v5287 = vpop.f32.mrf.mxu0
        %v5288 = vadd.f32 0.0, %v5287
        %v5289 = vpop.f32.mrf.mxu0
        %5290 = vmatprep.mubr.f32.mxu0 0.0
        %5291 = vmatmul.mubr.f32.gmra.mxu0 %v5161
        %v5292 = vpop.f32.mrf.mxu0
        %v5293 = vadd.f32 0.0, %v5292
        %v5294 = vpop.f32.mrf.mxu0
        %5295 = vmatprep.mubr.f32.mxu0 0.0
        %5296 = vmatmul.mubr.f32.gmra.mxu0 %v5162
        %v5297 = vpop.f32.mrf.mxu0
        %v5298 = vadd.f32 0.0, %v5297
        %v5299 = vpop.f32.mrf.mxu0
        %5300 = vmatprep.mubr.f32.mxu0 0.0
        %5301 = vmatmul.mubr.f32.gmra.mxu0 %v5163
        %v5302 = vpop.f32.mrf.mxu0
        %v5303 = vadd.f32 0.0, %v5302
        %v5304 = vpop.f32.mrf.mxu0
        %5305 = vmatprep.mubr.f32.mxu0 0.0
        %5306 = vmatmul.mubr.f32.gmra.mxu0 %v5164
        %v5307 = vpop.f32.mrf.mxu0
        %v5308 = vadd.f32 0.0, %v5307
        %v5309 = vpop.f32.mrf.mxu0
        %5310 = vmatprep.mubr.f32.mxu0 0.0
        %5311 = vmatmul.mubr.f32.gmra.mxu0 %v5165
        %v5312 = vpop.f32.mrf.mxu0
        %v5313 = vadd.f32 0.0, %v5312
        %v5314 = vpop.f32.mrf.mxu0
        %5315 = vmatprep.mubr.f32.mxu0 0.0
        %5316 = vmatmul.mubr.f32.gmra.mxu0 %v5166
        %v5317 = vpop.f32.mrf.mxu0
        %v5318 = vadd.f32 0.0, %v5317
        %v5319 = vpop.f32.mrf.mxu0
        %5320 = vmatprep.mubr.f32.mxu0 0.0
        %5321 = vmatmul.mubr.f32.gmra.mxu0 %v5167
        %v5322 = vpop.f32.mrf.mxu0
        %v5323 = vadd.f32 0.0, %v5322
        %v5324 = vpop.f32.mrf.mxu0
        %5325 = vmatprep.mubr.f32.mxu0 0.0
        %5326 = vmatmul.mubr.f32.gmra.mxu0 %v5168
        %v5327 = vpop.f32.mrf.mxu0
        %v5328 = vadd.f32 0.0, %v5327
        %v5329 = vpop.f32.mrf.mxu0
        %5330 = vmatprep.mubr.f32.mxu0 0.0
        %5331 = vmatmul.mubr.f32.gmra.mxu0 %v5169
        %v5332 = vpop.f32.mrf.mxu0
        %v5333 = vadd.f32 0.0, %v5332
        %v5334 = vpop.f32.mrf.mxu0
        %5335 = vmatprep.mubr.f32.mxu0 0.0
        %5336 = vmatmul.mubr.f32.gmra.mxu0 %v5170
        %v5337 = vpop.f32.mrf.mxu0
        %v5338 = vadd.f32 0.0, %v5337
        %v5339 = vpop.f32.mrf.mxu0
        %5340 = vmatprep.mubr.f32.mxu0 0.0
        %5341 = vmatmul.mubr.f32.gmra.mxu0 %v5171
        %v5342 = vpop.f32.mrf.mxu0
        %v5343 = vadd.f32 0.0, %v5342
        %v5344 = vpop.f32.mrf.mxu0
        %5345 = vmatprep.mubr.f32.mxu0 0.0
        %5346 = vmatmul.mubr.f32.gmra.mxu0 %v5172
        %v5347 = vpop.f32.mrf.mxu0
        %v5348 = vadd.f32 0.0, %v5347
        %v5349 = vpop.f32.mrf.mxu0
        %5350 = vmatprep.mubr.f32.mxu0 0.0
        %5351 = vmatmul.mubr.f32.gmra.mxu0 %v5173
        %v5352 = vpop.f32.mrf.mxu0
        %v5353 = vadd.f32 0.0, %v5352
        %v5354 = vpop.f32.mrf.mxu0
        %5355 = vmatprep.mubr.f32.mxu0 0.0
        %5356 = vmatmul.mubr.f32.gmra.mxu0 %v5174
        %v5357 = vpop.f32.mrf.mxu0
        %v5358 = vadd.f32 0.0, %v5357
        %v5359 = vpop.f32.mrf.mxu0
        %5360 = vmatprep.mubr.f32.mxu0 0.0
        %5361 = vmatmul.mubr.f32.gmra.mxu0 %v5175
        %v5362 = vpop.f32.mrf.mxu0
        %v5363 = vadd.f32 0.0, %v5362
        %v5364 = vpop.f32.mrf.mxu0
        %5365 = vmatprep.mubr.f32.mxu0 0.0
        %5366 = vmatmul.mubr.f32.gmra.mxu0 %v5176
        %v5367 = vpop.f32.mrf.mxu0
        %v5368 = vadd.f32 0.0, %v5367
        %v5369 = vpop.f32.mrf.mxu0
        %5370 = vmatprep.mubr.f32.mxu0 0.0
        %5371 = vmatmul.mubr.f32.gmra.mxu0 %v5177
        %v5372 = vpop.f32.mrf.mxu0
        %v5373 = vadd.f32 0.0, %v5372
        %v5374 = vpop.f32.mrf.mxu0
        %5375 = vmatprep.mubr.f32.mxu0 0.0
        %5376 = vmatmul.mubr.f32.gmra.mxu0 %v5178
        %v5377 = vpop.f32.mrf.mxu0
        %v5378 = vadd.f32 0.0, %v5377
        %v5379 = vpop.f32.mrf.mxu0
        %5380 = vmatprep.mubr.f32.mxu0 0.0
        %5381 = vmatmul.mubr.f32.gmra.mxu0 %v5179
        %v5382 = vpop.f32.mrf.mxu0
        %v5383 = vadd.f32 0.0, %v5382
        %v5384 = vpop.f32.mrf.mxu0
        %5385 = vmatprep.mubr.f32.mxu0 0.0
        %5386 = vmatmul.mubr.f32.gmra.mxu0 %v5180
        %v5387 = vpop.f32.mrf.mxu0
        %v5388 = vadd.f32 0.0, %v5387
        %v5389 = vpop.f32.mrf.mxu0
        %5390 = vmatprep.mubr.f32.mxu0 0.0
        %5391 = vmatmul.mubr.f32.gmra.mxu0 %v5181
        %v5392 = vpop.f32.mrf.mxu0
        %v5393 = vadd.f32 0.0, %v5392
        %v5394 = vpop.f32.mrf.mxu0
        %5395 = vmatprep.mubr.f32.mxu0 0.0
        %5396 = vmatmul.mubr.f32.gmra.mxu0 %v5182
        %v5397 = vpop.f32.mrf.mxu0
        %v5398 = vadd.f32 0.0, %v5397
        %v5399 = vpop.f32.mrf.mxu0
        %5400 = vmatprep.mubr.f32.mxu0 0.0
        %5401 = vmatmul.mubr.f32.gmra.mxu0 %v5183
        %v5402 = vpop.f32.mrf.mxu0
        %v5403 = vadd.f32 0.0, %v5402
        %v5404 = vpop.f32.mrf.mxu0
        %5405 = vmatprep.mubr.f32.mxu0 0.0
        %5406 = vmatmul.mubr.f32.gmra.mxu0 %v5184
        %v5407 = vpop.f32.mrf.mxu0
        %v5408 = vadd.f32 0.0, %v5407
        %v5409 = vpop.f32.mrf.mxu0
        %5410 = vmatprep.mubr.f32.mxu0 0.0
        %5411 = vmatmul.mubr.f32.gmra.mxu0 %v5185
        %v5412 = vpop.f32.mrf.mxu0
        %v5413 = vadd.f32 0.0, %v5412
        %v5414 = vpop.f32.mrf.mxu0
        %5415 = vmatprep.mubr.f32.mxu0 0.0
        %5416 = vmatmul.mubr.f32.gmra.mxu0 %v5186
        %v5417 = vpop.f32.mrf.mxu0
        %v5418 = vadd.f32 0.0, %v5417
        %v5419 = vpop.f32.mrf.mxu0
        %5420 = vmatprep.mubr.f32.mxu0 0.0
        %5421 = vmatmul.mubr.f32.gmra.mxu0 %v5187
        %v5422 = vpop.f32.mrf.mxu0
        %v5423 = vadd.f32 0.0, %v5422
        %v5424 = vpop.f32.mrf.mxu0
        %5425 = vmatprep.mubr.f32.mxu0 0.0
        %5426 = vmatmul.mubr.f32.gmra.mxu0 %v5188
        %v5427 = vpop.f32.mrf.mxu0
        %v5428 = vadd.f32 0.0, %v5427
        %v5429 = vpop.f32.mrf.mxu0
        %5430 = vdwg.mxu0
        %v5431 = vadd.f32 %v5125, %v5273
        %v5432 = vadd.f32 %v5126, %v5278
        %v5433 = vadd.f32 %v5127, %v5283
        %v5434 = vadd.f32 %v5128, %v5288
        %v5435 = vadd.f32 %v5129, %v5293
        %v5436 = vadd.f32 %v5130, %v5298
        %v5437 = vadd.f32 %v5131, %v5303
        %v5438 = vadd.f32 %v5132, %v5308
        %v5439 = vadd.f32 %v5133, %v5313
        %v5440 = vadd.f32 %v5134, %v5318
        %v5441 = vadd.f32 %v5135, %v5323
        %v5442 = vadd.f32 %v5136, %v5328
        %v5443 = vadd.f32 %v5137, %v5333
        %v5444 = vadd.f32 %v5138, %v5338
        %v5445 = vadd.f32 %v5139, %v5343
        %v5446 = vadd.f32 %v5140, %v5348
        %v5447 = vadd.f32 %v5141, %v5353
        %v5448 = vadd.f32 %v5142, %v5358
        %v5449 = vadd.f32 %v5143, %v5363
        %v5450 = vadd.f32 %v5144, %v5368
        %v5451 = vadd.f32 %v5145, %v5373
        %v5452 = vadd.f32 %v5146, %v5378
        %v5453 = vadd.f32 %v5147, %v5383
        %v5454 = vadd.f32 %v5148, %v5388
        %v5455 = vadd.f32 %v5149, %v5393
        %v5456 = vadd.f32 %v5150, %v5398
        %v5457 = vadd.f32 %v5151, %v5403
        %v5458 = vadd.f32 %v5152, %v5408
        %v5459 = vadd.f32 %v5153, %v5413
        %v5460 = vadd.f32 %v5154, %v5418
        %v5461 = vadd.f32 %v5155, %v5423
        %v5462 = vadd.f32 %v5156, %v5428
        %v5463 = vld [vmem:[%s2150 + $0x1] sm:$0xff]
        %v5464 = vld [vmem:[%s2150 + $0x9] sm:$0xff]
        %v5465 = vld [vmem:[%s2150 + $0x19] sm:$0xff]
        %v5466 = vld [vmem:[%s2150 + $0x21] sm:$0xff]
        %v5467 = vld [vmem:[%s2150 + $0x31] sm:$0xff]
        %v5468 = vld [vmem:[%s2150 + $0x39] sm:$0xff]
        %v5469 = vld [vmem:[%s2150 + $0x49] sm:$0xff]
        %v5470 = vld [vmem:[%s2150 + $0x51] sm:$0xff]
        %v5471 = vld [vmem:[%s2150 + $0x61] sm:$0xff]
        %v5472 = vld [vmem:[%s2150 + $0x69] sm:$0xff]
        %v5473 = vld [vmem:[%s2150 + $0x79] sm:$0xff]
        %v5474 = vld [vmem:[%s2150 + $0x81] sm:$0xff]
        %v5475 = vld [vmem:[%s2150 + $0x91] sm:$0xff]
        %v5476 = vld [vmem:[%s2150 + $0x99] sm:$0xff]
        %v5477 = vld [vmem:[%s2150 + $0xa9] sm:$0xff]
        %v5478 = vld [vmem:[%s2150 + $0xb1] sm:$0xff]
        %v5479 = vld [vmem:[%s2150 + $0xc1] sm:$0xff]
        %v5480 = vld [vmem:[%s2150 + $0xc9] sm:$0xff]
        %v5481 = vld [vmem:[%s2150 + $0xd9] sm:$0xff]
        %v5482 = vld [vmem:[%s2150 + $0xe1] sm:$0xff]
        %v5483 = vld [vmem:[%s2150 + $0xf1] sm:$0xff]
        %v5484 = vld [vmem:[%s2150 + $0xf9] sm:$0xff]
        %v5485 = vld [vmem:[%s2150 + $0x109] sm:$0xff]
        %v5486 = vld [vmem:[%s2150 + $0x111] sm:$0xff]
        %v5487 = vld [vmem:[%s2150 + $0x121] sm:$0xff]
        %v5488 = vld [vmem:[%s2150 + $0x129] sm:$0xff]
        %v5489 = vld [vmem:[%s2150 + $0x139] sm:$0xff]
        %v5490 = vld [vmem:[%s2150 + $0x141] sm:$0xff]
        %v5491 = vld [vmem:[%s2150 + $0x151] sm:$0xff]
        %v5492 = vld [vmem:[%s2150 + $0x159] sm:$0xff]
        %v5493 = vld [vmem:[%s2150 + $0x169] sm:$0xff]
        %v5494 = vld [vmem:[%s2150 + $0x171] sm:$0xff]
        %s5495 = scalar_lea.vmem [#allocation8], 896
        %v5496 = vld [vmem:[%s5495] sm:$0xff]
        %v5497 = vld [vmem:[%s5495 + $0x8] sm:$0xff]
        %v5498 = vld [vmem:[%s5495 + $0x10] sm:$0xff]
        %v5499 = vld [vmem:[%s5495 + $0x18] sm:$0xff]
        %v5500 = vld [vmem:[%s5495 + $0x20] sm:$0xff]
        %v5501 = vld [vmem:[%s5495 + $0x28] sm:$0xff]
        %v5502 = vld [vmem:[%s5495 + $0x30] sm:$0xff]
        %v5503 = vld [vmem:[%s5495 + $0x38] sm:$0xff]
        %v5504 = vld [vmem:[%s5495 + $0x40] sm:$0xff]
        %v5505 = vld [vmem:[%s5495 + $0x48] sm:$0xff]
        %v5506 = vld [vmem:[%s5495 + $0x50] sm:$0xff]
        %v5507 = vld [vmem:[%s5495 + $0x58] sm:$0xff]
        %v5508 = vld [vmem:[%s5495 + $0x60] sm:$0xff]
        %v5509 = vld [vmem:[%s5495 + $0x68] sm:$0xff]
        %v5510 = vld [vmem:[%s5495 + $0x70] sm:$0xff]
        %v5511 = vld [vmem:[%s5495 + $0x78] sm:$0xff]
        %5512 = vmatprep.subr.mxu0 0.0
        %5513 = vmatpush1.msra.mxu0 %v5511
        %5514 = vmatprep.subr.mxu0 0.0
        %5515 = vmatpush1.msra.mxu0 %v5510
        %5516 = vmatprep.subr.mxu0 0.0
        %5517 = vmatpush1.msra.mxu0 %v5509
        %5518 = vmatprep.subr.mxu0 0.0
        %5519 = vmatpush1.msra.mxu0 %v5508
        %5520 = vmatprep.subr.mxu0 0.0
        %5521 = vmatpush1.msra.mxu0 %v5507
        %5522 = vmatprep.subr.mxu0 0.0
        %5523 = vmatpush1.msra.mxu0 %v5506
        %5524 = vmatprep.subr.mxu0 0.0
        %5525 = vmatpush1.msra.mxu0 %v5505
        %5526 = vmatprep.subr.mxu0 0.0
        %5527 = vmatpush1.msra.mxu0 %v5504
        %5528 = vmatprep.subr.mxu0 0.0
        %5529 = vmatpush1.msra.mxu0 %v5503
        %5530 = vmatprep.subr.mxu0 0.0
        %5531 = vmatpush1.msra.mxu0 %v5502
        %5532 = vmatprep.subr.mxu0 0.0
        %5533 = vmatpush1.msra.mxu0 %v5501
        %5534 = vmatprep.subr.mxu0 0.0
        %5535 = vmatpush1.msra.mxu0 %v5500
        %5536 = vmatprep.subr.mxu0 0.0
        %5537 = vmatpush1.msra.mxu0 %v5499
        %5538 = vmatprep.subr.mxu0 0.0
        %5539 = vmatpush1.msra.mxu0 %v5498
        %5540 = vmatprep.subr.mxu0 0.0
        %5541 = vmatpush1.msra.mxu0 %v5497
        %5542 = vmatprep.subr.mxu0 0.0
        %5543 = vmatpush1.msra.mxu0 %v5496
        %5544 = vmatprep.subr.mxu0 0.0
        %5545 = vmatpush2.msra.mxu0 0.0
        %5546 = vmatprep.subr.mxu0 0.0
        %5547 = vmatpush2.msra.mxu0 0.0
        %5548 = vmatprep.subr.mxu0 0.0
        %5549 = vmatpush2.msra.mxu0 0.0
        %5550 = vmatprep.subr.mxu0 0.0
        %5551 = vmatpush2.msra.mxu0 0.0
        %5552 = vmatprep.subr.mxu0 0.0
        %5553 = vmatpush2.msra.mxu0 0.0
        %5554 = vmatprep.subr.mxu0 0.0
        %5555 = vmatpush2.msra.mxu0 0.0
        %5556 = vmatprep.subr.mxu0 0.0
        %5557 = vmatpush2.msra.mxu0 0.0
        %5558 = vmatprep.subr.mxu0 0.0
        %5559 = vmatpush2.msra.mxu0 0.0
        %5560 = vmatprep.subr.mxu0 0.0
        %5561 = vmatpush2.msra.mxu0 0.0
        %5562 = vmatprep.subr.mxu0 0.0
        %5563 = vmatpush2.msra.mxu0 0.0
        %5564 = vmatprep.subr.mxu0 0.0
        %5565 = vmatpush2.msra.mxu0 0.0
        %5566 = vmatprep.subr.mxu0 0.0
        %5567 = vmatpush2.msra.mxu0 0.0
        %5568 = vmatprep.subr.mxu0 0.0
        %5569 = vmatpush2.msra.mxu0 0.0
        %5570 = vmatprep.subr.mxu0 0.0
        %5571 = vmatpush2.msra.mxu0 0.0
        %5572 = vmatprep.subr.mxu0 0.0
        %5573 = vmatpush2.msra.mxu0 0.0
        %5574 = vmatprep.subr.mxu0 0.0
        %5575 = vmatpush2.msra.mxu0 0.0
        %5576 = vmatprep.mubr.f32.mxu0 0.0
        %5577 = vmatmul.mubr.f32.gmra.mxu0 %v5463
        %v5578 = vpop.f32.mrf.mxu0
        %v5579 = vadd.f32 0.0, %v5578
        %v5580 = vpop.f32.mrf.mxu0
        %5581 = vmatprep.mubr.f32.mxu0 0.0
        %5582 = vmatmul.mubr.f32.gmra.mxu0 %v5464
        %v5583 = vpop.f32.mrf.mxu0
        %v5584 = vadd.f32 0.0, %v5583
        %v5585 = vpop.f32.mrf.mxu0
        %5586 = vmatprep.mubr.f32.mxu0 0.0
        %5587 = vmatmul.mubr.f32.gmra.mxu0 %v5465
        %v5588 = vpop.f32.mrf.mxu0
        %v5589 = vadd.f32 0.0, %v5588
        %v5590 = vpop.f32.mrf.mxu0
        %5591 = vmatprep.mubr.f32.mxu0 0.0
        %5592 = vmatmul.mubr.f32.gmra.mxu0 %v5466
        %v5593 = vpop.f32.mrf.mxu0
        %v5594 = vadd.f32 0.0, %v5593
        %v5595 = vpop.f32.mrf.mxu0
        %5596 = vmatprep.mubr.f32.mxu0 0.0
        %5597 = vmatmul.mubr.f32.gmra.mxu0 %v5467
        %v5598 = vpop.f32.mrf.mxu0
        %v5599 = vadd.f32 0.0, %v5598
        %v5600 = vpop.f32.mrf.mxu0
        %5601 = vmatprep.mubr.f32.mxu0 0.0
        %5602 = vmatmul.mubr.f32.gmra.mxu0 %v5468
        %v5603 = vpop.f32.mrf.mxu0
        %v5604 = vadd.f32 0.0, %v5603
        %v5605 = vpop.f32.mrf.mxu0
        %5606 = vmatprep.mubr.f32.mxu0 0.0
        %5607 = vmatmul.mubr.f32.gmra.mxu0 %v5469
        %v5608 = vpop.f32.mrf.mxu0
        %v5609 = vadd.f32 0.0, %v5608
        %v5610 = vpop.f32.mrf.mxu0
        %5611 = vmatprep.mubr.f32.mxu0 0.0
        %5612 = vmatmul.mubr.f32.gmra.mxu0 %v5470
        %v5613 = vpop.f32.mrf.mxu0
        %v5614 = vadd.f32 0.0, %v5613
        %v5615 = vpop.f32.mrf.mxu0
        %5616 = vmatprep.mubr.f32.mxu0 0.0
        %5617 = vmatmul.mubr.f32.gmra.mxu0 %v5471
        %v5618 = vpop.f32.mrf.mxu0
        %v5619 = vadd.f32 0.0, %v5618
        %v5620 = vpop.f32.mrf.mxu0
        %5621 = vmatprep.mubr.f32.mxu0 0.0
        %5622 = vmatmul.mubr.f32.gmra.mxu0 %v5472
        %v5623 = vpop.f32.mrf.mxu0
        %v5624 = vadd.f32 0.0, %v5623
        %v5625 = vpop.f32.mrf.mxu0
        %5626 = vmatprep.mubr.f32.mxu0 0.0
        %5627 = vmatmul.mubr.f32.gmra.mxu0 %v5473
        %v5628 = vpop.f32.mrf.mxu0
        %v5629 = vadd.f32 0.0, %v5628
        %v5630 = vpop.f32.mrf.mxu0
        %5631 = vmatprep.mubr.f32.mxu0 0.0
        %5632 = vmatmul.mubr.f32.gmra.mxu0 %v5474
        %v5633 = vpop.f32.mrf.mxu0
        %v5634 = vadd.f32 0.0, %v5633
        %v5635 = vpop.f32.mrf.mxu0
        %5636 = vmatprep.mubr.f32.mxu0 0.0
        %5637 = vmatmul.mubr.f32.gmra.mxu0 %v5475
        %v5638 = vpop.f32.mrf.mxu0
        %v5639 = vadd.f32 0.0, %v5638
        %v5640 = vpop.f32.mrf.mxu0
        %5641 = vmatprep.mubr.f32.mxu0 0.0
        %5642 = vmatmul.mubr.f32.gmra.mxu0 %v5476
        %v5643 = vpop.f32.mrf.mxu0
        %v5644 = vadd.f32 0.0, %v5643
        %v5645 = vpop.f32.mrf.mxu0
        %5646 = vmatprep.mubr.f32.mxu0 0.0
        %5647 = vmatmul.mubr.f32.gmra.mxu0 %v5477
        %v5648 = vpop.f32.mrf.mxu0
        %v5649 = vadd.f32 0.0, %v5648
        %v5650 = vpop.f32.mrf.mxu0
        %5651 = vmatprep.mubr.f32.mxu0 0.0
        %5652 = vmatmul.mubr.f32.gmra.mxu0 %v5478
        %v5653 = vpop.f32.mrf.mxu0
        %v5654 = vadd.f32 0.0, %v5653
        %v5655 = vpop.f32.mrf.mxu0
        %5656 = vmatprep.mubr.f32.mxu0 0.0
        %5657 = vmatmul.mubr.f32.gmra.mxu0 %v5479
        %v5658 = vpop.f32.mrf.mxu0
        %v5659 = vadd.f32 0.0, %v5658
        %v5660 = vpop.f32.mrf.mxu0
        %5661 = vmatprep.mubr.f32.mxu0 0.0
        %5662 = vmatmul.mubr.f32.gmra.mxu0 %v5480
        %v5663 = vpop.f32.mrf.mxu0
        %v5664 = vadd.f32 0.0, %v5663
        %v5665 = vpop.f32.mrf.mxu0
        %5666 = vmatprep.mubr.f32.mxu0 0.0
        %5667 = vmatmul.mubr.f32.gmra.mxu0 %v5481
        %v5668 = vpop.f32.mrf.mxu0
        %v5669 = vadd.f32 0.0, %v5668
        %v5670 = vpop.f32.mrf.mxu0
        %5671 = vmatprep.mubr.f32.mxu0 0.0
        %5672 = vmatmul.mubr.f32.gmra.mxu0 %v5482
        %v5673 = vpop.f32.mrf.mxu0
        %v5674 = vadd.f32 0.0, %v5673
        %v5675 = vpop.f32.mrf.mxu0
        %5676 = vmatprep.mubr.f32.mxu0 0.0
        %5677 = vmatmul.mubr.f32.gmra.mxu0 %v5483
        %v5678 = vpop.f32.mrf.mxu0
        %v5679 = vadd.f32 0.0, %v5678
        %v5680 = vpop.f32.mrf.mxu0
        %5681 = vmatprep.mubr.f32.mxu0 0.0
        %5682 = vmatmul.mubr.f32.gmra.mxu0 %v5484
        %v5683 = vpop.f32.mrf.mxu0
        %v5684 = vadd.f32 0.0, %v5683
        %v5685 = vpop.f32.mrf.mxu0
        %5686 = vmatprep.mubr.f32.mxu0 0.0
        %5687 = vmatmul.mubr.f32.gmra.mxu0 %v5485
        %v5688 = vpop.f32.mrf.mxu0
        %v5689 = vadd.f32 0.0, %v5688
        %v5690 = vpop.f32.mrf.mxu0
        %5691 = vmatprep.mubr.f32.mxu0 0.0
        %5692 = vmatmul.mubr.f32.gmra.mxu0 %v5486
        %v5693 = vpop.f32.mrf.mxu0
        %v5694 = vadd.f32 0.0, %v5693
        %v5695 = vpop.f32.mrf.mxu0
        %5696 = vmatprep.mubr.f32.mxu0 0.0
        %5697 = vmatmul.mubr.f32.gmra.mxu0 %v5487
        %v5698 = vpop.f32.mrf.mxu0
        %v5699 = vadd.f32 0.0, %v5698
        %v5700 = vpop.f32.mrf.mxu0
        %5701 = vmatprep.mubr.f32.mxu0 0.0
        %5702 = vmatmul.mubr.f32.gmra.mxu0 %v5488
        %v5703 = vpop.f32.mrf.mxu0
        %v5704 = vadd.f32 0.0, %v5703
        %v5705 = vpop.f32.mrf.mxu0
        %5706 = vmatprep.mubr.f32.mxu0 0.0
        %5707 = vmatmul.mubr.f32.gmra.mxu0 %v5489
        %v5708 = vpop.f32.mrf.mxu0
        %v5709 = vadd.f32 0.0, %v5708
        %v5710 = vpop.f32.mrf.mxu0
        %5711 = vmatprep.mubr.f32.mxu0 0.0
        %5712 = vmatmul.mubr.f32.gmra.mxu0 %v5490
        %v5713 = vpop.f32.mrf.mxu0
        %v5714 = vadd.f32 0.0, %v5713
        %v5715 = vpop.f32.mrf.mxu0
        %5716 = vmatprep.mubr.f32.mxu0 0.0
        %5717 = vmatmul.mubr.f32.gmra.mxu0 %v5491
        %v5718 = vpop.f32.mrf.mxu0
        %v5719 = vadd.f32 0.0, %v5718
        %v5720 = vpop.f32.mrf.mxu0
        %5721 = vmatprep.mubr.f32.mxu0 0.0
        %5722 = vmatmul.mubr.f32.gmra.mxu0 %v5492
        %v5723 = vpop.f32.mrf.mxu0
        %v5724 = vadd.f32 0.0, %v5723
        %v5725 = vpop.f32.mrf.mxu0
        %5726 = vmatprep.mubr.f32.mxu0 0.0
        %5727 = vmatmul.mubr.f32.gmra.mxu0 %v5493
        %v5728 = vpop.f32.mrf.mxu0
        %v5729 = vadd.f32 0.0, %v5728
        %v5730 = vpop.f32.mrf.mxu0
        %5731 = vmatprep.mubr.f32.mxu0 0.0
        %5732 = vmatmul.mubr.f32.gmra.mxu0 %v5494
        %v5733 = vpop.f32.mrf.mxu0
        %v5734 = vadd.f32 0.0, %v5733
        %v5735 = vpop.f32.mrf.mxu0
        %5736 = vdwg.mxu0
        %v5737 = vadd.f32 %v5431, %v5579
        %v5738 = vadd.f32 %v5432, %v5584
        %v5739 = vadd.f32 %v5433, %v5589
        %v5740 = vadd.f32 %v5434, %v5594
        %v5741 = vadd.f32 %v5435, %v5599
        %v5742 = vadd.f32 %v5436, %v5604
        %v5743 = vadd.f32 %v5437, %v5609
        %v5744 = vadd.f32 %v5438, %v5614
        %v5745 = vadd.f32 %v5439, %v5619
        %v5746 = vadd.f32 %v5440, %v5624
        %v5747 = vadd.f32 %v5441, %v5629
        %v5748 = vadd.f32 %v5442, %v5634
        %v5749 = vadd.f32 %v5443, %v5639
        %v5750 = vadd.f32 %v5444, %v5644
        %v5751 = vadd.f32 %v5445, %v5649
        %v5752 = vadd.f32 %v5446, %v5654
        %v5753 = vadd.f32 %v5447, %v5659
        %v5754 = vadd.f32 %v5448, %v5664
        %v5755 = vadd.f32 %v5449, %v5669
        %v5756 = vadd.f32 %v5450, %v5674
        %v5757 = vadd.f32 %v5451, %v5679
        %v5758 = vadd.f32 %v5452, %v5684
        %v5759 = vadd.f32 %v5453, %v5689
        %v5760 = vadd.f32 %v5454, %v5694
        %v5761 = vadd.f32 %v5455, %v5699
        %v5762 = vadd.f32 %v5456, %v5704
        %v5763 = vadd.f32 %v5457, %v5709
        %v5764 = vadd.f32 %v5458, %v5714
        %v5765 = vadd.f32 %v5459, %v5719
        %v5766 = vadd.f32 %v5460, %v5724
        %v5767 = vadd.f32 %v5461, %v5729
        %v5768 = vadd.f32 %v5462, %v5734
        %v5769 = vld [vmem:[%s2150 + $0x2] sm:$0xff]
        %v5770 = vld [vmem:[%s2150 + $0xa] sm:$0xff]
        %v5771 = vld [vmem:[%s2150 + $0x1a] sm:$0xff]
        %v5772 = vld [vmem:[%s2150 + $0x22] sm:$0xff]
        %v5773 = vld [vmem:[%s2150 + $0x32] sm:$0xff]
        %v5774 = vld [vmem:[%s2150 + $0x3a] sm:$0xff]
        %v5775 = vld [vmem:[%s2150 + $0x4a] sm:$0xff]
        %v5776 = vld [vmem:[%s2150 + $0x52] sm:$0xff]
        %v5777 = vld [vmem:[%s2150 + $0x62] sm:$0xff]
        %v5778 = vld [vmem:[%s2150 + $0x6a] sm:$0xff]
        %v5779 = vld [vmem:[%s2150 + $0x7a] sm:$0xff]
        %v5780 = vld [vmem:[%s2150 + $0x82] sm:$0xff]
        %v5781 = vld [vmem:[%s2150 + $0x92] sm:$0xff]
        %v5782 = vld [vmem:[%s2150 + $0x9a] sm:$0xff]
        %v5783 = vld [vmem:[%s2150 + $0xaa] sm:$0xff]
        %v5784 = vld [vmem:[%s2150 + $0xb2] sm:$0xff]
        %v5785 = vld [vmem:[%s2150 + $0xc2] sm:$0xff]
        %v5786 = vld [vmem:[%s2150 + $0xca] sm:$0xff]
        %v5787 = vld [vmem:[%s2150 + $0xda] sm:$0xff]
        %v5788 = vld [vmem:[%s2150 + $0xe2] sm:$0xff]
        %v5789 = vld [vmem:[%s2150 + $0xf2] sm:$0xff]
        %v5790 = vld [vmem:[%s2150 + $0xfa] sm:$0xff]
        %v5791 = vld [vmem:[%s2150 + $0x10a] sm:$0xff]
        %v5792 = vld [vmem:[%s2150 + $0x112] sm:$0xff]
        %v5793 = vld [vmem:[%s2150 + $0x122] sm:$0xff]
        %v5794 = vld [vmem:[%s2150 + $0x12a] sm:$0xff]
        %v5795 = vld [vmem:[%s2150 + $0x13a] sm:$0xff]
        %v5796 = vld [vmem:[%s2150 + $0x142] sm:$0xff]
        %v5797 = vld [vmem:[%s2150 + $0x152] sm:$0xff]
        %v5798 = vld [vmem:[%s2150 + $0x15a] sm:$0xff]
        %v5799 = vld [vmem:[%s2150 + $0x16a] sm:$0xff]
        %v5800 = vld [vmem:[%s2150 + $0x172] sm:$0xff]
        %s5801 = scalar_lea.vmem [#allocation8], 1024
        %v5802 = vld [vmem:[%s5801] sm:$0xff]
        %v5803 = vld [vmem:[%s5801 + $0x8] sm:$0xff]
        %v5804 = vld [vmem:[%s5801 + $0x10] sm:$0xff]
        %v5805 = vld [vmem:[%s5801 + $0x18] sm:$0xff]
        %v5806 = vld [vmem:[%s5801 + $0x20] sm:$0xff]
        %v5807 = vld [vmem:[%s5801 + $0x28] sm:$0xff]
        %v5808 = vld [vmem:[%s5801 + $0x30] sm:$0xff]
        %v5809 = vld [vmem:[%s5801 + $0x38] sm:$0xff]
        %v5810 = vld [vmem:[%s5801 + $0x40] sm:$0xff]
        %v5811 = vld [vmem:[%s5801 + $0x48] sm:$0xff]
        %v5812 = vld [vmem:[%s5801 + $0x50] sm:$0xff]
        %v5813 = vld [vmem:[%s5801 + $0x58] sm:$0xff]
        %v5814 = vld [vmem:[%s5801 + $0x60] sm:$0xff]
        %v5815 = vld [vmem:[%s5801 + $0x68] sm:$0xff]
        %v5816 = vld [vmem:[%s5801 + $0x70] sm:$0xff]
        %v5817 = vld [vmem:[%s5801 + $0x78] sm:$0xff]
        %5818 = vmatprep.subr.mxu0 0.0
        %5819 = vmatpush1.msra.mxu0 %v5817
        %5820 = vmatprep.subr.mxu0 0.0
        %5821 = vmatpush1.msra.mxu0 %v5816
        %5822 = vmatprep.subr.mxu0 0.0
        %5823 = vmatpush1.msra.mxu0 %v5815
        %5824 = vmatprep.subr.mxu0 0.0
        %5825 = vmatpush1.msra.mxu0 %v5814
        %5826 = vmatprep.subr.mxu0 0.0
        %5827 = vmatpush1.msra.mxu0 %v5813
        %5828 = vmatprep.subr.mxu0 0.0
        %5829 = vmatpush1.msra.mxu0 %v5812
        %5830 = vmatprep.subr.mxu0 0.0
        %5831 = vmatpush1.msra.mxu0 %v5811
        %5832 = vmatprep.subr.mxu0 0.0
        %5833 = vmatpush1.msra.mxu0 %v5810
        %5834 = vmatprep.subr.mxu0 0.0
        %5835 = vmatpush1.msra.mxu0 %v5809
        %5836 = vmatprep.subr.mxu0 0.0
        %5837 = vmatpush1.msra.mxu0 %v5808
        %5838 = vmatprep.subr.mxu0 0.0
        %5839 = vmatpush1.msra.mxu0 %v5807
        %5840 = vmatprep.subr.mxu0 0.0
        %5841 = vmatpush1.msra.mxu0 %v5806
        %5842 = vmatprep.subr.mxu0 0.0
        %5843 = vmatpush1.msra.mxu0 %v5805
        %5844 = vmatprep.subr.mxu0 0.0
        %5845 = vmatpush1.msra.mxu0 %v5804
        %5846 = vmatprep.subr.mxu0 0.0
        %5847 = vmatpush1.msra.mxu0 %v5803
        %5848 = vmatprep.subr.mxu0 0.0
        %5849 = vmatpush1.msra.mxu0 %v5802
        %5850 = vmatprep.subr.mxu0 0.0
        %5851 = vmatpush2.msra.mxu0 0.0
        %5852 = vmatprep.subr.mxu0 0.0
        %5853 = vmatpush2.msra.mxu0 0.0
        %5854 = vmatprep.subr.mxu0 0.0
        %5855 = vmatpush2.msra.mxu0 0.0
        %5856 = vmatprep.subr.mxu0 0.0
        %5857 = vmatpush2.msra.mxu0 0.0
        %5858 = vmatprep.subr.mxu0 0.0
        %5859 = vmatpush2.msra.mxu0 0.0
        %5860 = vmatprep.subr.mxu0 0.0
        %5861 = vmatpush2.msra.mxu0 0.0
        %5862 = vmatprep.subr.mxu0 0.0
        %5863 = vmatpush2.msra.mxu0 0.0
        %5864 = vmatprep.subr.mxu0 0.0
        %5865 = vmatpush2.msra.mxu0 0.0
        %5866 = vmatprep.subr.mxu0 0.0
        %5867 = vmatpush2.msra.mxu0 0.0
        %5868 = vmatprep.subr.mxu0 0.0
        %5869 = vmatpush2.msra.mxu0 0.0
        %5870 = vmatprep.subr.mxu0 0.0
        %5871 = vmatpush2.msra.mxu0 0.0
        %5872 = vmatprep.subr.mxu0 0.0
        %5873 = vmatpush2.msra.mxu0 0.0
        %5874 = vmatprep.subr.mxu0 0.0
        %5875 = vmatpush2.msra.mxu0 0.0
        %5876 = vmatprep.subr.mxu0 0.0
        %5877 = vmatpush2.msra.mxu0 0.0
        %5878 = vmatprep.subr.mxu0 0.0
        %5879 = vmatpush2.msra.mxu0 0.0
        %5880 = vmatprep.subr.mxu0 0.0
        %5881 = vmatpush2.msra.mxu0 0.0
        %5882 = vmatprep.mubr.f32.mxu0 0.0
        %5883 = vmatmul.mubr.f32.gmra.mxu0 %v5769
        %v5884 = vpop.f32.mrf.mxu0
        %v5885 = vadd.f32 0.0, %v5884
        %v5886 = vpop.f32.mrf.mxu0
        %5887 = vmatprep.mubr.f32.mxu0 0.0
        %5888 = vmatmul.mubr.f32.gmra.mxu0 %v5770
        %v5889 = vpop.f32.mrf.mxu0
        %v5890 = vadd.f32 0.0, %v5889
        %v5891 = vpop.f32.mrf.mxu0
        %5892 = vmatprep.mubr.f32.mxu0 0.0
        %5893 = vmatmul.mubr.f32.gmra.mxu0 %v5771
        %v5894 = vpop.f32.mrf.mxu0
        %v5895 = vadd.f32 0.0, %v5894
        %v5896 = vpop.f32.mrf.mxu0
        %5897 = vmatprep.mubr.f32.mxu0 0.0
        %5898 = vmatmul.mubr.f32.gmra.mxu0 %v5772
        %v5899 = vpop.f32.mrf.mxu0
        %v5900 = vadd.f32 0.0, %v5899
        %v5901 = vpop.f32.mrf.mxu0
        %5902 = vmatprep.mubr.f32.mxu0 0.0
        %5903 = vmatmul.mubr.f32.gmra.mxu0 %v5773
        %v5904 = vpop.f32.mrf.mxu0
        %v5905 = vadd.f32 0.0, %v5904
        %v5906 = vpop.f32.mrf.mxu0
        %5907 = vmatprep.mubr.f32.mxu0 0.0
        %5908 = vmatmul.mubr.f32.gmra.mxu0 %v5774
        %v5909 = vpop.f32.mrf.mxu0
        %v5910 = vadd.f32 0.0, %v5909
        %v5911 = vpop.f32.mrf.mxu0
        %5912 = vmatprep.mubr.f32.mxu0 0.0
        %5913 = vmatmul.mubr.f32.gmra.mxu0 %v5775
        %v5914 = vpop.f32.mrf.mxu0
        %v5915 = vadd.f32 0.0, %v5914
        %v5916 = vpop.f32.mrf.mxu0
        %5917 = vmatprep.mubr.f32.mxu0 0.0
        %5918 = vmatmul.mubr.f32.gmra.mxu0 %v5776
        %v5919 = vpop.f32.mrf.mxu0
        %v5920 = vadd.f32 0.0, %v5919
        %v5921 = vpop.f32.mrf.mxu0
        %5922 = vmatprep.mubr.f32.mxu0 0.0
        %5923 = vmatmul.mubr.f32.gmra.mxu0 %v5777
        %v5924 = vpop.f32.mrf.mxu0
        %v5925 = vadd.f32 0.0, %v5924
        %v5926 = vpop.f32.mrf.mxu0
        %5927 = vmatprep.mubr.f32.mxu0 0.0
        %5928 = vmatmul.mubr.f32.gmra.mxu0 %v5778
        %v5929 = vpop.f32.mrf.mxu0
        %v5930 = vadd.f32 0.0, %v5929
        %v5931 = vpop.f32.mrf.mxu0
        %5932 = vmatprep.mubr.f32.mxu0 0.0
        %5933 = vmatmul.mubr.f32.gmra.mxu0 %v5779
        %v5934 = vpop.f32.mrf.mxu0
        %v5935 = vadd.f32 0.0, %v5934
        %v5936 = vpop.f32.mrf.mxu0
        %5937 = vmatprep.mubr.f32.mxu0 0.0
        %5938 = vmatmul.mubr.f32.gmra.mxu0 %v5780
        %v5939 = vpop.f32.mrf.mxu0
        %v5940 = vadd.f32 0.0, %v5939
        %v5941 = vpop.f32.mrf.mxu0
        %5942 = vmatprep.mubr.f32.mxu0 0.0
        %5943 = vmatmul.mubr.f32.gmra.mxu0 %v5781
        %v5944 = vpop.f32.mrf.mxu0
        %v5945 = vadd.f32 0.0, %v5944
        %v5946 = vpop.f32.mrf.mxu0
        %5947 = vmatprep.mubr.f32.mxu0 0.0
        %5948 = vmatmul.mubr.f32.gmra.mxu0 %v5782
        %v5949 = vpop.f32.mrf.mxu0
        %v5950 = vadd.f32 0.0, %v5949
        %v5951 = vpop.f32.mrf.mxu0
        %5952 = vmatprep.mubr.f32.mxu0 0.0
        %5953 = vmatmul.mubr.f32.gmra.mxu0 %v5783
        %v5954 = vpop.f32.mrf.mxu0
        %v5955 = vadd.f32 0.0, %v5954
        %v5956 = vpop.f32.mrf.mxu0
        %5957 = vmatprep.mubr.f32.mxu0 0.0
        %5958 = vmatmul.mubr.f32.gmra.mxu0 %v5784
        %v5959 = vpop.f32.mrf.mxu0
        %v5960 = vadd.f32 0.0, %v5959
        %v5961 = vpop.f32.mrf.mxu0
        %5962 = vmatprep.mubr.f32.mxu0 0.0
        %5963 = vmatmul.mubr.f32.gmra.mxu0 %v5785
        %v5964 = vpop.f32.mrf.mxu0
        %v5965 = vadd.f32 0.0, %v5964
        %v5966 = vpop.f32.mrf.mxu0
        %5967 = vmatprep.mubr.f32.mxu0 0.0
        %5968 = vmatmul.mubr.f32.gmra.mxu0 %v5786
        %v5969 = vpop.f32.mrf.mxu0
        %v5970 = vadd.f32 0.0, %v5969
        %v5971 = vpop.f32.mrf.mxu0
        %5972 = vmatprep.mubr.f32.mxu0 0.0
        %5973 = vmatmul.mubr.f32.gmra.mxu0 %v5787
        %v5974 = vpop.f32.mrf.mxu0
        %v5975 = vadd.f32 0.0, %v5974
        %v5976 = vpop.f32.mrf.mxu0
        %5977 = vmatprep.mubr.f32.mxu0 0.0
        %5978 = vmatmul.mubr.f32.gmra.mxu0 %v5788
        %v5979 = vpop.f32.mrf.mxu0
        %v5980 = vadd.f32 0.0, %v5979
        %v5981 = vpop.f32.mrf.mxu0
        %5982 = vmatprep.mubr.f32.mxu0 0.0
        %5983 = vmatmul.mubr.f32.gmra.mxu0 %v5789
        %v5984 = vpop.f32.mrf.mxu0
        %v5985 = vadd.f32 0.0, %v5984
        %v5986 = vpop.f32.mrf.mxu0
        %5987 = vmatprep.mubr.f32.mxu0 0.0
        %5988 = vmatmul.mubr.f32.gmra.mxu0 %v5790
        %v5989 = vpop.f32.mrf.mxu0
        %v5990 = vadd.f32 0.0, %v5989
        %v5991 = vpop.f32.mrf.mxu0
        %5992 = vmatprep.mubr.f32.mxu0 0.0
        %5993 = vmatmul.mubr.f32.gmra.mxu0 %v5791
        %v5994 = vpop.f32.mrf.mxu0
        %v5995 = vadd.f32 0.0, %v5994
        %v5996 = vpop.f32.mrf.mxu0
        %5997 = vmatprep.mubr.f32.mxu0 0.0
        %5998 = vmatmul.mubr.f32.gmra.mxu0 %v5792
        %v5999 = vpop.f32.mrf.mxu0
        %v6000 = vadd.f32 0.0, %v5999
        %v6001 = vpop.f32.mrf.mxu0
        %6002 = vmatprep.mubr.f32.mxu0 0.0
        %6003 = vmatmul.mubr.f32.gmra.mxu0 %v5793
        %v6004 = vpop.f32.mrf.mxu0
        %v6005 = vadd.f32 0.0, %v6004
        %v6006 = vpop.f32.mrf.mxu0
        %6007 = vmatprep.mubr.f32.mxu0 0.0
        %6008 = vmatmul.mubr.f32.gmra.mxu0 %v5794
        %v6009 = vpop.f32.mrf.mxu0
        %v6010 = vadd.f32 0.0, %v6009
        %v6011 = vpop.f32.mrf.mxu0
        %6012 = vmatprep.mubr.f32.mxu0 0.0
        %6013 = vmatmul.mubr.f32.gmra.mxu0 %v5795
        %v6014 = vpop.f32.mrf.mxu0
        %v6015 = vadd.f32 0.0, %v6014
        %v6016 = vpop.f32.mrf.mxu0
        %6017 = vmatprep.mubr.f32.mxu0 0.0
        %6018 = vmatmul.mubr.f32.gmra.mxu0 %v5796
        %v6019 = vpop.f32.mrf.mxu0
        %v6020 = vadd.f32 0.0, %v6019
        %v6021 = vpop.f32.mrf.mxu0
        %6022 = vmatprep.mubr.f32.mxu0 0.0
        %6023 = vmatmul.mubr.f32.gmra.mxu0 %v5797
        %v6024 = vpop.f32.mrf.mxu0
        %v6025 = vadd.f32 0.0, %v6024
        %v6026 = vpop.f32.mrf.mxu0
        %6027 = vmatprep.mubr.f32.mxu0 0.0
        %6028 = vmatmul.mubr.f32.gmra.mxu0 %v5798
        %v6029 = vpop.f32.mrf.mxu0
        %v6030 = vadd.f32 0.0, %v6029
        %v6031 = vpop.f32.mrf.mxu0
        %6032 = vmatprep.mubr.f32.mxu0 0.0
        %6033 = vmatmul.mubr.f32.gmra.mxu0 %v5799
        %v6034 = vpop.f32.mrf.mxu0
        %v6035 = vadd.f32 0.0, %v6034
        %v6036 = vpop.f32.mrf.mxu0
        %6037 = vmatprep.mubr.f32.mxu0 0.0
        %6038 = vmatmul.mubr.f32.gmra.mxu0 %v5800
        %v6039 = vpop.f32.mrf.mxu0
        %v6040 = vadd.f32 0.0, %v6039
        %v6041 = vpop.f32.mrf.mxu0
        %6042 = vdwg.mxu0
        %v6043 = vadd.f32 %v5737, %v5885
        %v6044 = vadd.f32 %v5738, %v5890
        %v6045 = vadd.f32 %v5739, %v5895
        %v6046 = vadd.f32 %v5740, %v5900
        %v6047 = vadd.f32 %v5741, %v5905
        %v6048 = vadd.f32 %v5742, %v5910
        %v6049 = vadd.f32 %v5743, %v5915
        %v6050 = vadd.f32 %v5744, %v5920
        %v6051 = vadd.f32 %v5745, %v5925
        %v6052 = vadd.f32 %v5746, %v5930
        %v6053 = vadd.f32 %v5747, %v5935
        %v6054 = vadd.f32 %v5748, %v5940
        %v6055 = vadd.f32 %v5749, %v5945
        %v6056 = vadd.f32 %v5750, %v5950
        %v6057 = vadd.f32 %v5751, %v5955
        %v6058 = vadd.f32 %v5752, %v5960
        %v6059 = vadd.f32 %v5753, %v5965
        %v6060 = vadd.f32 %v5754, %v5970
        %v6061 = vadd.f32 %v5755, %v5975
        %v6062 = vadd.f32 %v5756, %v5980
        %v6063 = vadd.f32 %v5757, %v5985
        %v6064 = vadd.f32 %v5758, %v5990
        %v6065 = vadd.f32 %v5759, %v5995
        %v6066 = vadd.f32 %v5760, %v6000
        %v6067 = vadd.f32 %v5761, %v6005
        %v6068 = vadd.f32 %v5762, %v6010
        %v6069 = vadd.f32 %v5763, %v6015
        %v6070 = vadd.f32 %v5764, %v6020
        %v6071 = vadd.f32 %v5765, %v6025
        %v6072 = vadd.f32 %v5766, %v6030
        %v6073 = vadd.f32 %v5767, %v6035
        %v6074 = vadd.f32 %v5768, %v6040
        %v6076 = vlaneseq
        %v6077 = vshrl.u32 %v6076, 7
        %v6078 = vsub.s32 0, %v6077
        %v6079 = vrot.slane %v305, %v6078
        %v6081 = vadd.f32 %v6043, %v6079
        %v6082 = vadd.f32 %v6044, %v6079
        %v6083 = vadd.f32 %v6045, %v6079
        %v6084 = vadd.f32 %v6046, %v6079
        %v6085 = vadd.f32 %v6047, %v6079
        %v6086 = vadd.f32 %v6048, %v6079
        %v6087 = vadd.f32 %v6049, %v6079
        %v6088 = vadd.f32 %v6050, %v6079
        %v6089 = vadd.f32 %v6051, %v6079
        %v6090 = vadd.f32 %v6052, %v6079
        %v6091 = vadd.f32 %v6053, %v6079
        %v6092 = vadd.f32 %v6054, %v6079
        %v6093 = vadd.f32 %v6055, %v6079
        %v6094 = vadd.f32 %v6056, %v6079
        %v6095 = vadd.f32 %v6057, %v6079
        %v6096 = vadd.f32 %v6058, %v6079
        %v6097 = vadd.f32 %v6059, %v6079
        %v6098 = vadd.f32 %v6060, %v6079
        %v6099 = vadd.f32 %v6061, %v6079
        %v6100 = vadd.f32 %v6062, %v6079
        %v6101 = vadd.f32 %v6063, %v6079
        %v6102 = vadd.f32 %v6064, %v6079
        %v6103 = vadd.f32 %v6065, %v6079
        %v6104 = vadd.f32 %v6066, %v6079
        %v6105 = vadd.f32 %v6067, %v6079
        %v6106 = vadd.f32 %v6068, %v6079
        %v6107 = vadd.f32 %v6069, %v6079
        %v6108 = vadd.f32 %v6070, %v6079
        %v6109 = vadd.f32 %v6071, %v6079
        %v6110 = vadd.f32 %v6072, %v6079
        %v6111 = vadd.f32 %v6073, %v6079
        %v6112 = vadd.f32 %v6074, %v6079
        %v6113 = vadd.f32 %v6081, %v6082
        %v6114 = vadd.f32 %v6113, %v6083
        %v6115 = vadd.f32 %v6114, %v6084
        %v6116 = vadd.f32 %v6115, %v6085
        %v6117 = vadd.f32 %v6116, %v6086
        %v6118 = vadd.f32 %v6117, %v6087
        %v6119 = vadd.f32 %v6118, %v6088
        %v6120 = vadd.f32 %v6119, %v6089
        %v6121 = vadd.f32 %v6120, %v6090
        %v6122 = vadd.f32 %v6121, %v6091
        %v6123 = vadd.f32 %v6122, %v6092
        %v6124 = vadd.f32 %v6123, %v6093
        %v6125 = vadd.f32 %v6124, %v6094
        %v6126 = vadd.f32 %v6125, %v6095
        %v6127 = vadd.f32 %v6126, %v6096
        %v6128 = vadd.f32 %v6127, %v6097
        %v6129 = vadd.f32 %v6128, %v6098
        %v6130 = vadd.f32 %v6129, %v6099
        %v6131 = vadd.f32 %v6130, %v6100
        %v6132 = vadd.f32 %v6131, %v6101
        %v6133 = vadd.f32 %v6132, %v6102
        %v6134 = vadd.f32 %v6133, %v6103
        %v6135 = vadd.f32 %v6134, %v6104
        %v6136 = vadd.f32 %v6135, %v6105
        %v6137 = vadd.f32 %v6136, %v6106
        %v6138 = vadd.f32 %v6137, %v6107
        %v6139 = vadd.f32 %v6138, %v6108
        %v6140 = vadd.f32 %v6139, %v6109
        %v6141 = vadd.f32 %v6140, %v6110
        %v6142 = vadd.f32 %v6141, %v6111
        %v6143 = vadd.f32 %v6142, %v6112
        %v6144 = vrot.slane %v6143, 4
        %v6145 = vadd.f32 %v6143, %v6144
        %v6146 = vrot.slane %v6145, 2
        %v6147 = vadd.f32 %v6145, %v6146
        %v6148 = vrot.slane %v6147, 1
        %v6149 = vadd.f32 %v6147, %v6148
        %v6150 = vmul.f32 %v6149, %v3144
        %v6151 = vsub.f32 %v6081, %v6150
        %v6152 = vsub.f32 %v6082, %v6150
        %v6153 = vsub.f32 %v6083, %v6150
        %v6154 = vsub.f32 %v6084, %v6150
        %v6155 = vsub.f32 %v6085, %v6150
        %v6156 = vsub.f32 %v6086, %v6150
        %v6157 = vsub.f32 %v6087, %v6150
        %v6158 = vsub.f32 %v6088, %v6150
        %v6159 = vsub.f32 %v6089, %v6150
        %v6160 = vsub.f32 %v6090, %v6150
        %v6161 = vsub.f32 %v6091, %v6150
        %v6162 = vsub.f32 %v6092, %v6150
        %v6163 = vsub.f32 %v6093, %v6150
        %v6164 = vsub.f32 %v6094, %v6150
        %v6165 = vsub.f32 %v6095, %v6150
        %v6166 = vsub.f32 %v6096, %v6150
        %v6167 = vsub.f32 %v6097, %v6150
        %v6168 = vsub.f32 %v6098, %v6150
        %v6169 = vsub.f32 %v6099, %v6150
        %v6170 = vsub.f32 %v6100, %v6150
        %v6171 = vsub.f32 %v6101, %v6150
        %v6172 = vsub.f32 %v6102, %v6150
        %v6173 = vsub.f32 %v6103, %v6150
        %v6174 = vsub.f32 %v6104, %v6150
        %v6175 = vsub.f32 %v6105, %v6150
        %v6176 = vsub.f32 %v6106, %v6150
        %v6177 = vsub.f32 %v6107, %v6150
        %v6178 = vsub.f32 %v6108, %v6150
        %v6179 = vsub.f32 %v6109, %v6150
        %v6180 = vsub.f32 %v6110, %v6150
        %v6181 = vsub.f32 %v6111, %v6150
        %v6182 = vsub.f32 %v6112, %v6150
        %v6183 = vmul.f32 %v6151, %v6151
        %v6184 = vmul.f32 %v6152, %v6152
        %v6185 = vmul.f32 %v6153, %v6153
        %v6186 = vmul.f32 %v6154, %v6154
        %v6187 = vmul.f32 %v6155, %v6155
        %v6188 = vmul.f32 %v6156, %v6156
        %v6189 = vmul.f32 %v6157, %v6157
        %v6190 = vmul.f32 %v6158, %v6158
        %v6191 = vmul.f32 %v6159, %v6159
        %v6192 = vmul.f32 %v6160, %v6160
        %v6193 = vmul.f32 %v6161, %v6161
        %v6194 = vmul.f32 %v6162, %v6162
        %v6195 = vmul.f32 %v6163, %v6163
        %v6196 = vmul.f32 %v6164, %v6164
        %v6197 = vmul.f32 %v6165, %v6165
        %v6198 = vmul.f32 %v6166, %v6166
        %v6199 = vmul.f32 %v6167, %v6167
        %v6200 = vmul.f32 %v6168, %v6168
        %v6201 = vmul.f32 %v6169, %v6169
        %v6202 = vmul.f32 %v6170, %v6170
        %v6203 = vmul.f32 %v6171, %v6171
        %v6204 = vmul.f32 %v6172, %v6172
        %v6205 = vmul.f32 %v6173, %v6173
        %v6206 = vmul.f32 %v6174, %v6174
        %v6207 = vmul.f32 %v6175, %v6175
        %v6208 = vmul.f32 %v6176, %v6176
        %v6209 = vmul.f32 %v6177, %v6177
        %v6210 = vmul.f32 %v6178, %v6178
        %v6211 = vmul.f32 %v6179, %v6179
        %v6212 = vmul.f32 %v6180, %v6180
        %v6213 = vmul.f32 %v6181, %v6181
        %v6214 = vmul.f32 %v6182, %v6182
        %v6215 = vadd.f32 %v6183, %v6184
        %v6216 = vadd.f32 %v6215, %v6185
        %v6217 = vadd.f32 %v6216, %v6186
        %v6218 = vadd.f32 %v6217, %v6187
        %v6219 = vadd.f32 %v6218, %v6188
        %v6220 = vadd.f32 %v6219, %v6189
        %v6221 = vadd.f32 %v6220, %v6190
        %v6222 = vadd.f32 %v6221, %v6191
        %v6223 = vadd.f32 %v6222, %v6192
        %v6224 = vadd.f32 %v6223, %v6193
        %v6225 = vadd.f32 %v6224, %v6194
        %v6226 = vadd.f32 %v6225, %v6195
        %v6227 = vadd.f32 %v6226, %v6196
        %v6228 = vadd.f32 %v6227, %v6197
        %v6229 = vadd.f32 %v6228, %v6198
        %v6230 = vadd.f32 %v6229, %v6199
        %v6231 = vadd.f32 %v6230, %v6200
        %v6232 = vadd.f32 %v6231, %v6201
        %v6233 = vadd.f32 %v6232, %v6202
        %v6234 = vadd.f32 %v6233, %v6203
        %v6235 = vadd.f32 %v6234, %v6204
        %v6236 = vadd.f32 %v6235, %v6205
        %v6237 = vadd.f32 %v6236, %v6206
        %v6238 = vadd.f32 %v6237, %v6207
        %v6239 = vadd.f32 %v6238, %v6208
        %v6240 = vadd.f32 %v6239, %v6209
        %v6241 = vadd.f32 %v6240, %v6210
        %v6242 = vadd.f32 %v6241, %v6211
        %v6243 = vadd.f32 %v6242, %v6212
        %v6244 = vadd.f32 %v6243, %v6213
        %v6245 = vadd.f32 %v6244, %v6214
        %v6246 = vrot.slane %v6245, 4
        %v6247 = vadd.f32 %v6245, %v6246
        %v6248 = vrot.slane %v6247, 2
        %v6249 = vadd.f32 %v6247, %v6248
        %v6250 = vrot.slane %v6249, 1
        %v6251 = vadd.f32 %v6249, %v6250
        %v6252 = vmul.f32 %v6251, %v3144
        %v6253 = vadd.f32 %v6252, 1e-05
        %v6254 = vrsqrt.pop %v6253
        %v6255 = vmul.f32 %v6151, %v6254
        %v6256 = vmul.f32 %v6152, %v6254
        %v6257 = vmul.f32 %v6153, %v6254
        %v6258 = vmul.f32 %v6154, %v6254
        %v6259 = vmul.f32 %v6155, %v6254
        %v6260 = vmul.f32 %v6156, %v6254
        %v6261 = vmul.f32 %v6157, %v6254
        %v6262 = vmul.f32 %v6158, %v6254
        %v6263 = vmul.f32 %v6159, %v6254
        %v6264 = vmul.f32 %v6160, %v6254
        %v6265 = vmul.f32 %v6161, %v6254
        %v6266 = vmul.f32 %v6162, %v6254
        %v6267 = vmul.f32 %v6163, %v6254
        %v6268 = vmul.f32 %v6164, %v6254
        %v6269 = vmul.f32 %v6165, %v6254
        %v6270 = vmul.f32 %v6166, %v6254
        %v6271 = vmul.f32 %v6167, %v6254
        %v6272 = vmul.f32 %v6168, %v6254
        %v6273 = vmul.f32 %v6169, %v6254
        %v6274 = vmul.f32 %v6170, %v6254
        %v6275 = vmul.f32 %v6171, %v6254
        %v6276 = vmul.f32 %v6172, %v6254
        %v6277 = vmul.f32 %v6173, %v6254
        %v6278 = vmul.f32 %v6174, %v6254
        %v6279 = vmul.f32 %v6175, %v6254
        %v6280 = vmul.f32 %v6176, %v6254
        %v6281 = vmul.f32 %v6177, %v6254
        %v6282 = vmul.f32 %v6178, %v6254
        %v6283 = vmul.f32 %v6179, %v6254
        %v6284 = vmul.f32 %v6180, %v6254
        %v6285 = vmul.f32 %v6181, %v6254
        %v6286 = vmul.f32 %v6182, %v6254
        %v6287 = vadd.f32 %v272, %v6255
        %v6288 = vadd.f32 %v273, %v6256
        %v6289 = vadd.f32 %v274, %v6257
        %v6290 = vadd.f32 %v275, %v6258
        %v6291 = vadd.f32 %v276, %v6259
        %v6292 = vadd.f32 %v277, %v6260
        %v6293 = vadd.f32 %v278, %v6261
        %v6294 = vadd.f32 %v279, %v6262
        %v6295 = vadd.f32 %v280, %v6263
        %v6296 = vadd.f32 %v281, %v6264
        %v6297 = vadd.f32 %v282, %v6265
        %v6298 = vadd.f32 %v283, %v6266
        %v6299 = vadd.f32 %v284, %v6267
        %v6300 = vadd.f32 %v285, %v6268
        %v6301 = vadd.f32 %v286, %v6269
        %v6302 = vadd.f32 %v287, %v6270
        %v6303 = vadd.f32 %v288, %v6271
        %v6304 = vadd.f32 %v289, %v6272
        %v6305 = vadd.f32 %v290, %v6273
        %v6306 = vadd.f32 %v291, %v6274
        %v6307 = vadd.f32 %v292, %v6275
        %v6308 = vadd.f32 %v293, %v6276
        %v6309 = vadd.f32 %v294, %v6277
        %v6310 = vadd.f32 %v295, %v6278
        %v6311 = vadd.f32 %v296, %v6279
        %v6312 = vadd.f32 %v297, %v6280
        %v6313 = vadd.f32 %v298, %v6281
        %v6314 = vadd.f32 %v299, %v6282
        %v6315 = vadd.f32 %v300, %v6283
        %v6316 = vadd.f32 %v301, %v6284
        %v6317 = vadd.f32 %v302, %v6285
        %v6318 = vadd.f32 %v303, %v6286
        %6319 = vst [vmem:[%s271] sm:$0xff] %v6287
        %6320 = vst [vmem:[%s271 + $0x8] sm:$0xff] %v6288
        %6321 = vst [vmem:[%s271 + $0x10] sm:$0xff] %v6289
        %6322 = vst [vmem:[%s271 + $0x18] sm:$0xff] %v6290
        %6323 = vst [vmem:[%s271 + $0x20] sm:$0xff] %v6291
        %6324 = vst [vmem:[%s271 + $0x28] sm:$0xff] %v6292
        %6325 = vst [vmem:[%s271 + $0x30] sm:$0xff] %v6293
        %6326 = vst [vmem:[%s271 + $0x38] sm:$0xff] %v6294
        %6327 = vst [vmem:[%s271 + $0x40] sm:$0xff] %v6295
        %6328 = vst [vmem:[%s271 + $0x48] sm:$0xff] %v6296
        %6329 = vst [vmem:[%s271 + $0x50] sm:$0xff] %v6297
        %6330 = vst [vmem:[%s271 + $0x58] sm:$0xff] %v6298
        %6331 = vst [vmem:[%s271 + $0x60] sm:$0xff] %v6299
        %6332 = vst [vmem:[%s271 + $0x68] sm:$0xff] %v6300
        %6333 = vst [vmem:[%s271 + $0x70] sm:$0xff] %v6301
        %6334 = vst [vmem:[%s271 + $0x78] sm:$0xff] %v6302
        %6335 = vst [vmem:[%s271 + $0x80] sm:$0xff] %v6303
        %6336 = vst [vmem:[%s271 + $0x88] sm:$0xff] %v6304
        %6337 = vst [vmem:[%s271 + $0x90] sm:$0xff] %v6305
        %6338 = vst [vmem:[%s271 + $0x98] sm:$0xff] %v6306
        %6339 = vst [vmem:[%s271 + $0xa0] sm:$0xff] %v6307
        %6340 = vst [vmem:[%s271 + $0xa8] sm:$0xff] %v6308
        %6341 = vst [vmem:[%s271 + $0xb0] sm:$0xff] %v6309
        %6342 = vst [vmem:[%s271 + $0xb8] sm:$0xff] %v6310
        %6343 = vst [vmem:[%s271 + $0xc0] sm:$0xff] %v6311
        %6344 = vst [vmem:[%s271 + $0xc8] sm:$0xff] %v6312
        %6345 = vst [vmem:[%s271 + $0xd0] sm:$0xff] %v6313
        %6346 = vst [vmem:[%s271 + $0xd8] sm:$0xff] %v6314
        %6347 = vst [vmem:[%s271 + $0xe0] sm:$0xff] %v6315
        %6348 = vst [vmem:[%s271 + $0xe8] sm:$0xff] %v6316
        %6349 = vst [vmem:[%s271 + $0xf0] sm:$0xff] %v6317
        %6350 = vst [vmem:[%s271 + $0xf8] sm:$0xff] %v6318
        %s6351 = sand.u32 %s141, 1
        %s6352 = scalar_lea.sflag [#allocation5], %s6351
        %s6353 = sand.u32 %s141, 1
        %s6354 = smul.addr %s6353, 256
        %s6355 = scalar_lea.vmem [#allocation9], %s6354
        // Predicated region
        $region53: #{tpu_custom_call.1} parent=39 // pred_check
          %p6356 = pneg %p151
        $region54: #{tpu_custom_call.1} parent=39 // pred_check_branch
          %6358 = sbr.rel (%p6356) target = $region56
        $region55: #{tpu_custom_call.1} parent=39 // pred_region
          %s6360 = ssub.s32 4096, 4096
          %6361 = vsyncadd %s6352, %s6360
          %s6362 = smul.addr %s23, 32
          %s6363 = smul.addr %s6362, 128
          %s6364 = scalar_lea.hbm %s5, %s6363
          %s6365 = sshll.u32 %s6355, 4
          %s6366 = int_to_ptr.vmem [resolvable:$true] %s6365
          %6371 = dma.vmem_to_hbm [thread:$0]  %s6366, 4096, %s6364, %s6352, 128, 128, 8
        $region56: #{tpu_custom_call.1} parent=39 // pred_fallthru
          _
      $region40: #{tpu_custom_call.1} parent=5 // pred_fallthru
        _
      %p6372 = scmp.le.s32.totalorder 2, %s18
      // Predicated region
      $region57: #{tpu_custom_call.1} parent=5 // pred_check
        %p6373 = pneg %p6372
      $region58: #{tpu_custom_call.1} parent=5 // pred_check_branch
        %6375 = sbr.rel (%p6373) target = $region60
      $region59: #{tpu_custom_call.1} parent=5 // pred_region
        %s6376 = ssub.s32 %s18, 2
        // Predicated region
        $region61: #{tpu_custom_call.1} parent=59 // pred_check
          %p6377 = pneg %p157
        $region62: #{tpu_custom_call.1} parent=59 // pred_check_branch
          %6379 = sbr.rel (%p6377) target = $region64
        $region63: #{tpu_custom_call.1} parent=59 // pred_region
          %s6380 = sand.u32 %s142, 1
          %s6381 = scalar_lea.sflag [#allocation5], %s6380
          %s6382 = sand.u32 %s142, 1
          %s6383 = smul.addr %s6382, 256
          %s6384 = scalar_lea.vmem [#allocation9], %s6383
          %6385 = dma.done %s6381, 4096
        $region64: #{tpu_custom_call.1} parent=59 // pred_fallthru
          _
      $region60: #{tpu_custom_call.1} parent=5 // pred_fallthru
        _
    $region6: #{tpu_custom_call.1} parent=1 // loop_footer
      %s22 = sadd.s32 1, %s18
    $region7: #{tpu_custom_call.1} parent=1 // loop_footer_branch
      %17 = sbr.rel target = $region3
    $region8: #{tpu_custom_call.1} parent=1 // loop_exit
      _
    %6386 = vsyncpa [#allocation4], 1
    %s6387 = scalar_lea.sflag [#allocation4], 1
    %6388 = vsyncpa %s6387, 1
    %6389 = vsyncpa [#allocation7], 1
    %6390 = vsyncpa [#allocation5], 1
    %s6391 = scalar_lea.sflag [#allocation5], 1
    %6392 = vsyncpa %s6391, 1

</llo_original>
